<compile_context>
chip_gen: v7x
topology: tpu7x:2x2x1
jax: 0.10.0
libtpu: 0.0.40
codegen_flags: <defaults>
</compile_context>

<pallas_src>
import functools

import jax
import jax.numpy as jnp
from jax.experimental import pallas as pl
from jax.experimental.pallas import tpu as pltpu


# ----------------------------------------------------------------------------
# helpers
# ----------------------------------------------------------------------------
def _tile(dim, preferred):
    """Pick an MXU-aligned tile, falling back to the full dim (always legal)."""
    if dim >= preferred and dim % preferred == 0:
        return preferred
    return dim


# ----------------------------------------------------------------------------
# Kernel 1: fused RMSNorm + matmul (flat output)        out = RMSNorm(x) @ W
# ----------------------------------------------------------------------------
def _rms_matmul_kernel(x_ref, g_ref, w_ref, o_ref, *, eps):
    x = x_ref[...].astype(jnp.float32)
    var = jnp.mean(x * x, axis=-1, keepdims=True)
    xn = (x * jax.lax.rsqrt(var + eps) * g_ref[...].astype(jnp.float32))
    o_ref[...] = jnp.dot(
        xn.astype(jnp.bfloat16), w_ref[...], preferred_element_type=jnp.float32
    ).astype(o_ref.dtype)


def rms_matmul(x, gamma, w, eps):
    """x: (T, K) f32/bf16, gamma: (1, K), w: (K, N) bf16 -> (T, N) bf16."""
    T, K = x.shape
    N = w.shape[-1]
    tm = _tile(T, 128)
    tn = _tile(N, 256)
    return pl.pallas_call(
        functools.partial(_rms_matmul_kernel, eps=eps),
        grid=(T // tm, N // tn),
        in_specs=[
            pl.BlockSpec((tm, K), lambda i, j: (i, 0)),
            pl.BlockSpec((1, K), lambda i, j: (0, 0)),
            pl.BlockSpec((K, tn), lambda i, j: (0, j)),
        ],
        out_specs=pl.BlockSpec((tm, tn), lambda i, j: (i, j)),
        out_shape=jax.ShapeDtypeStruct((T, N), jnp.bfloat16),
        compiler_params=pltpu.CompilerParams(
            dimension_semantics=("parallel", "parallel")),
    )(x, gamma, w)


# ----------------------------------------------------------------------------
# Kernels 2/3: fused RMSNorm + matmul with head-major output
#              out[h] = RMSNorm(x) @ W[h]     (no transpose glue afterwards)
# ----------------------------------------------------------------------------
def _rms_matmul_heads_kernel(x_ref, g_ref, w_ref, o_ref, *, eps):
    x = x_ref[...].astype(jnp.float32)
    var = jnp.mean(x * x, axis=-1, keepdims=True)
    xn = (x * jax.lax.rsqrt(var + eps) * g_ref[...].astype(jnp.float32))
    o_ref[0] = jnp.dot(
        xn.astype(jnp.bfloat16), w_ref[0], preferred_element_type=jnp.float32
    ).astype(o_ref.dtype)


def rms_matmul_heads(x, gamma, w, eps):
    """x: (T, K), gamma: (1, K), w: (nh, K, D) bf16 -> (nh, T, D) bf16."""
    T, K = x.shape
    nh, _, D = w.shape
    tm = _tile(T, 128)
    return pl.pallas_call(
        functools.partial(_rms_matmul_heads_kernel, eps=eps),
        grid=(nh, T // tm),
        in_specs=[
            pl.BlockSpec((tm, K), lambda h, i: (i, 0)),
            pl.BlockSpec((1, K), lambda h, i: (0, 0)),
            pl.BlockSpec((1, K, D), lambda h, i: (h, 0, 0)),
        ],
        out_specs=pl.BlockSpec((1, tm, D), lambda h, i: (h, i, 0)),
        out_shape=jax.ShapeDtypeStruct((nh, T, D), jnp.bfloat16),
        compiler_params=pltpu.CompilerParams(
            dimension_semantics=("parallel", "parallel")),
    )(x, gamma, w)


# ----------------------------------------------------------------------------
# Kernel 4: causal flash attention, grid (heads, q_tiles, kv_tiles)
#           score = (scale*q_nope)·k_nope + (scale*q_pe)·k_pe    (k_pe shared)
# ----------------------------------------------------------------------------
def _flash_kernel(qn_ref, qp_ref, kn_ref, kp_ref, v_ref, o_ref,
                  m_sc, l_sc, acc_sc, *, scale, tq, tk):
    qi = pl.program_id(1)
    ki = pl.program_id(2)

    @pl.when(ki == 0)
    def _():
        m_sc[...] = jnp.full_like(m_sc, -1e30)
        l_sc[...] = jnp.zeros_like(l_sc)
        acc_sc[...] = jnp.zeros_like(acc_sc)

    # causal block skip: kv block entirely above the diagonal contributes nothing
    @pl.when(ki * tk < (qi + 1) * tq)
    def _():
        # fold the softmax scale into the (small) q tiles, not the (tq,tk) scores
        qn = (qn_ref[0].astype(jnp.float32) * scale).astype(jnp.bfloat16)
        qp = (qp_ref[0].astype(jnp.float32) * scale).astype(jnp.bfloat16)
        s = jax.lax.dot_general(qn, kn_ref[0], (((1,), (1,)), ((), ())),
                                preferred_element_type=jnp.float32)
        s = s + jax.lax.dot_general(qp, kp_ref[...], (((1,), (1,)), ((), ())),
                                    preferred_element_type=jnp.float32)
        row = qi * tq + jax.lax.broadcasted_iota(jnp.int32, (tq, tk), 0)
        col = ki * tk + jax.lax.broadcasted_iota(jnp.int32, (tq, tk), 1)
        s = jnp.where(col <= row, s, -1e30)

        m_prev = m_sc[...]
        m_new = jnp.maximum(m_prev, jnp.max(s, axis=-1, keepdims=True))
        alpha = jnp.exp(m_prev - m_new)
        p = jnp.exp(s - m_new)
        l_sc[...] = alpha * l_sc[...] + jnp.sum(p, axis=-1, keepdims=True)
        acc_sc[...] = alpha * acc_sc[...] + jnp.dot(
            p.astype(jnp.bfloat16), v_ref[0], preferred_element_type=jnp.float32)
        m_sc[...] = m_new

    @pl.when(ki == pl.num_programs(2) - 1)
    def _():
        inv_l = pl.reciprocal(l_sc[...], approx=True)
        o_ref[0] = (acc_sc[...] * inv_l).astype(o_ref.dtype)


def flash_attention(q_nope, q_pe, k_nope, k_pe, v, scale):
    """q_nope/k_nope: (nh,T,nope), q_pe: (nh,T,rope), k_pe: (T,rope) shared,
    v: (nh,T,v_dim) -> (nh,T,v_dim)."""
    nh, T, nope = q_nope.shape
    rope = q_pe.shape[-1]
    v_dim = v.shape[-1]
    tq = _tile(T, 128)
    tk = _tile(T, 128)
    return pl.pallas_call(
        functools.partial(_flash_kernel, scale=scale, tq=tq, tk=tk),
        grid=(nh, T // tq, T // tk),
        in_specs=[
            pl.BlockSpec((1, tq, nope), lambda h, qi, ki: (h, qi, 0)),
            pl.BlockSpec((1, tq, rope), lambda h, qi, ki: (h, qi, 0)),
            pl.BlockSpec((1, tk, nope), lambda h, qi, ki: (h, ki, 0)),
            pl.BlockSpec((tk, rope), lambda h, qi, ki: (ki, 0)),     # shared k_pe
            pl.BlockSpec((1, tk, v_dim), lambda h, qi, ki: (h, ki, 0)),
        ],
        out_specs=pl.BlockSpec((1, tq, v_dim), lambda h, qi, ki: (h, qi, 0)),
        out_shape=jax.ShapeDtypeStruct((nh, T, v_dim), jnp.bfloat16),
        scratch_shapes=[
            pltpu.VMEM((tq, 1), jnp.float32),
            pltpu.VMEM((tq, 1), jnp.float32),
            pltpu.VMEM((tq, v_dim), jnp.float32),
        ],
        compiler_params=pltpu.CompilerParams(
            dimension_semantics=("parallel", "parallel", "arbitrary")),
    )(q_nope, q_pe, k_nope, k_pe, v)


# ----------------------------------------------------------------------------
# Kernel 5: o_proj (reduction over heads) + residual add + post-attn RMSNorm
# ----------------------------------------------------------------------------
def _oproj_norm_kernel(attn_ref, wo_ref, r_ref, g_ref, h_ref, res_ref, acc_ref,
                       *, eps):
    h = pl.program_id(1)

    @pl.when(h == 0)
    def _():
        acc_ref[...] = jnp.zeros_like(acc_ref)

    acc_ref[...] += jnp.dot(attn_ref[0], wo_ref[0],
                            preferred_element_type=jnp.float32)

    @pl.when(h == pl.num_programs(1) - 1)
    def _():
        s = acc_ref[...] + r_ref[...].astype(jnp.float32)
        res_ref[...] = s.astype(res_ref.dtype)
        var = jnp.mean(s * s, axis=-1, keepdims=True)
        h_ref[...] = (s * jax.lax.rsqrt(var + eps)
                      * g_ref[...].astype(jnp.float32)).astype(h_ref.dtype)


def oproj_add_rmsnorm(attn, w_o, residual, gamma, eps):
    """attn: (nh,T,v_dim) bf16, w_o: (nh,v_dim,H) bf16, residual: (T,H) f32.
    Returns (normed_h bf16, new_residual f32)."""
    nh, T, v_dim = attn.shape
    H = w_o.shape[-1]
    tm = _tile(T, 128)
    out_shape = (jax.ShapeDtypeStruct((T, H), jnp.bfloat16),
                 jax.ShapeDtypeStruct((T, H), residual.dtype))
    return pl.pallas_call(
        functools.partial(_oproj_norm_kernel, eps=eps),
        grid=(T // tm, nh),
        in_specs=[
            pl.BlockSpec((1, tm, v_dim), lambda i, h: (h, i, 0)),
            pl.BlockSpec((1, v_dim, H), lambda i, h: (h, 0, 0)),
            pl.BlockSpec((tm, H), lambda i, h: (i, 0)),
            pl.BlockSpec((1, H), lambda i, h: (0, 0)),
        ],
        out_specs=(
            pl.BlockSpec((tm, H), lambda i, h: (i, 0)),
            pl.BlockSpec((tm, H), lambda i, h: (i, 0)),
        ),
        out_shape=out_shape,
        scratch_shapes=[pltpu.VMEM((tm, H), jnp.float32)],
        compiler_params=pltpu.CompilerParams(
            dimension_semantics=("parallel", "arbitrary")),
    )(attn, w_o, residual, gamma)


# ----------------------------------------------------------------------------
# Kernel 6: fused DeepseekV2MLP  down( silu(x@Wg) * (x@Wu) ),
#           intermediate dim streamed, down-proj accumulated in f32 scratch
# ----------------------------------------------------------------------------
def _mlp_kernel(x_ref, wg_ref, wu_ref, wd_ref, o_ref, acc_ref):
    j = pl.program_id(1)

    @pl.when(j == 0)
    def _():
        acc_ref[...] = jnp.zeros_like(acc_ref)

    x = x_ref[...]
    g = jnp.dot(x, wg_ref[...], preferred_element_type=jnp.float32)
    u = jnp.dot(x, wu_ref[...], preferred_element_type=jnp.float32)
    a = (g * jax.nn.sigmoid(g) * u).astype(jnp.bfloat16)     # SiluAndMul
    acc_ref[...] += jnp.dot(a, wd_ref[...], preferred_element_type=jnp.float32)

    @pl.when(j == pl.num_programs(1) - 1)
    def _():
        o_ref[...] = acc_ref[...].astype(o_ref.dtype)


def mlp(x, w_gate, w_up, w_down):
    """x: (T,H) bf16, w_gate/w_up: (H,I) bf16, w_down: (I,H) bf16 -> (T,H) f32."""
    T, H = x.shape
    I = w_gate.shape[-1]
    tm = _tile(T, 128)
    ti = _tile(I, 512)
    return pl.pallas_call(
        _mlp_kernel,
        grid=(T // tm, I // ti),
        in_specs=[
            pl.BlockSpec((tm, H), lambda i, j: (i, 0)),
            pl.BlockSpec((H, ti), lambda i, j: (0, j)),
            pl.BlockSpec((H, ti), lambda i, j: (0, j)),
            pl.BlockSpec((ti, H), lambda i, j: (j, 0)),
        ],
        out_specs=pl.BlockSpec((tm, H), lambda i, j: (i, 0)),
        out_shape=jax.ShapeDtypeStruct((T, H), jnp.float32),
        scratch_shapes=[pltpu.VMEM((tm, H), jnp.float32)],
        compiler_params=pltpu.CompilerParams(
            dimension_semantics=("parallel", "arbitrary")),
    )(x, w_gate, w_up, w_down)


# ----------------------------------------------------------------------------
# XLA glue: deepseek (non-neox / interleaved) rotary embedding (tiny tensors)
# ----------------------------------------------------------------------------
def _rope_tables(positions, rope_dim, base):
    inv_freq = 1.0 / (base ** (jnp.arange(0, rope_dim, 2, dtype=jnp.float32)
                               / rope_dim))
    freqs = positions.astype(jnp.float32)[:, None] * inv_freq[None, :]
    return jnp.cos(freqs), jnp.sin(freqs)


def _apply_interleaved_rope(x, cos, sin):
    """x: (..., T, rope); cos/sin: (T, rope//2). Interleaved (non-neox) RoPE."""
    shape = x.shape
    xf = x.astype(jnp.float32)
    x1 = xf[..., ::2]
    x2 = xf[..., 1::2]
    c = jnp.broadcast_to(cos, x1.shape)
    s = jnp.broadcast_to(sin, x1.shape)
    o1 = x1 * c - x2 * s
    o2 = x2 * c + x1 * s
    return jnp.stack([o1, o2], axis=-1).reshape(shape).astype(x.dtype)


# ----------------------------------------------------------------------------
# Decoder layer
# ----------------------------------------------------------------------------
class Config:
    hidden_size = 256
    num_attention_heads = 2
    qk_nope_head_dim = 64
    qk_rope_head_dim = 32
    v_head_dim = 64
    q_lora_rank = 128
    kv_lora_rank = 128
    intermediate_size = 256
    rms_norm_eps = 1e-6
    rope_theta = 10000.0
    routed_scaling_factor = 1.0   # only used on fp16 path -> no-op here


def init_params(cfg, key):
    ks = jax.random.split(key, 8)

    def w(k, shape):
        return (0.02 * jax.random.normal(k, shape, dtype=jnp.float32)
                ).astype(jnp.bfloat16)

    H = cfg.hidden_size
    nh = cfg.num_attention_heads
    qk_head_dim = cfg.qk_nope_head_dim + cfg.qk_rope_head_dim
    w_q_a = w(ks[0], (H, cfg.q_lora_rank))
    w_kv_a = w(ks[1], (H, cfg.kv_lora_rank + cfg.qk_rope_head_dim))
    return {
        "input_ln": jnp.ones((1, H), jnp.float32),
        "post_ln": jnp.ones((1, H), jnp.float32),
        "q_a_ln": jnp.ones((1, cfg.q_lora_rank), jnp.float32),
        "kv_a_ln": jnp.ones((1, cfg.kv_lora_rank), jnp.float32),
        # merged A projection: [W_q_a | W_kv_a_with_mqa]
        "w_a_combined": jnp.concatenate([w_q_a, w_kv_a], axis=1),
        # B projections stored head-major so kernels emit (nh, T, D) directly
        "w_q_b": w(ks[2], (nh, cfg.q_lora_rank, qk_head_dim)),
        "w_kv_b": w(ks[3], (nh, cfg.kv_lora_rank,
                            cfg.qk_nope_head_dim + cfg.v_head_dim)),
        "w_o": w(ks[4], (nh, cfg.v_head_dim, H)),
        "w_gate": w(ks[5], (H, cfg.intermediate_size)),
        "w_up": w(ks[6], (H, cfg.intermediate_size)),
        "w_down": w(ks[7], (cfg.intermediate_size, H)),
    }


def deepseek_v2_decoder_layer(cfg, params, positions, hidden_states,
                              residual=None):
    T, H = hidden_states.shape
    nope = cfg.qk_nope_head_dim
    rope = cfg.qk_rope_head_dim
    qk_head_dim = nope + rope
    eps = cfg.rms_norm_eps
    scale = qk_head_dim ** -0.5

    # --- input layernorm (norm itself is fused into the A projection) ---
    if residual is None:
        residual = hidden_states
        x_in = hidden_states
    else:
        # fused-add semantics of vLLM RMSNorm: residual <- x + residual, then norm
        residual = hidden_states + residual
        x_in = residual

    # --- fused RMSNorm + merged A projection: [q_c | kv_a | k_pe] ---
    qkv_a = rms_matmul(x_in, params["input_ln"], params["w_a_combined"], eps)
    q_c = qkv_a[:, : cfg.q_lora_rank]
    kv_a = qkv_a[:, cfg.q_lora_rank: cfg.q_lora_rank + cfg.kv_lora_rank]
    k_pe = qkv_a[:, cfg.q_lora_rank + cfg.kv_lora_rank:]          # (T, rope), raw

    # --- fused q_a_layernorm + q_b_proj (head-major) ---
    q = rms_matmul_heads(q_c, params["q_a_ln"], params["w_q_b"], eps)   # (nh,T,Dqk)
    # --- fused kv_a_layernorm + kv_b_proj (head-major) ---
    kv = rms_matmul_heads(kv_a, params["kv_a_ln"], params["w_kv_b"], eps)

    q_nope = q[..., :nope]
    q_pe = q[..., nope:]
    k_nope = kv[..., :nope]
    v = kv[..., nope:]                                            # no zero padding

    cos, sin = _rope_tables(positions, rope, cfg.rope_theta)
    q_pe = _apply_interleaved_rope(q_pe, cos, sin)                # (nh, T, rope)
    k_pe = _apply_interleaved_rope(k_pe, cos, sin)                # (T, rope) shared

    # --- causal flash attention over one packed sequence ---
    attn = flash_attention(q_nope, q_pe, k_nope, k_pe, v, scale)  # (nh, T, v_dim)

    # --- o_proj + residual add + post-attention RMSNorm, fused ---
    h, residual = oproj_add_rmsnorm(attn, params["w_o"], residual,
                                    params["post_ln"], eps)

    # --- dense MLP (layer_idx < first_k_dense_replace) ---
    h = mlp(h, params["w_gate"], params["w_up"], params["w_down"])

    return h, residual


if __name__ == "__main__":
    cfg = Config()
    key = jax.random.PRNGKey(0)
    k_param, k_x = jax.random.split(key)
    params = init_params(cfg, k_param)

    T = 256
    hidden_states = jax.random.normal(k_x, (T, cfg.hidden_size),
                                      dtype=jnp.float32)
    positions = jnp.arange(T, dtype=jnp.int32)

    fwd = jax.jit(lambda p, pos, x: deepseek_v2_decoder_layer(cfg, p, pos, x, None))
    h_out, res_out = fwd(params, positions, hidden_states)
    jax.block_until_ready((h_out, res_out))

    assert h_out.shape == (T, cfg.hidden_size)
    assert res_out.shape == (T, cfg.hidden_size)
    assert bool(jnp.all(jnp.isfinite(h_out))) and bool(jnp.all(jnp.isfinite(res_out)))
    print("KERNEL_OK")
</pallas_src>

<mosaic_0001>
module attributes {stable_mosaic.version = 11 : i64} {
  func.func @_rms_matmul_kernel(%arg0: i32, %arg1: i32, %arg2: memref<128x256xf32, #tpu.memory_space<vmem>>, %arg3: memref<1x256xf32, #tpu.memory_space<vmem>>, %arg4: memref<256x288xbf16, #tpu.memory_space<vmem>>, %arg5: memref<128x288xbf16, #tpu.memory_space<vmem>>) attributes {dimension_semantics = [#tpu.dimension_semantics<parallel>, #tpu.dimension_semantics<parallel>], iteration_bounds = array<i64: 2, 1>, scalar_prefetch = 0 : i64, scratch_operands = 0 : i64, tpu.core_type = #tpu.core_type<tc>, window_params = [{transform_indices = @transform_0, window_bounds = array<i64: 128, 256>}, {pipeline_mode = #tpu.pipeline_mode<synchronous>, transform_indices = @transform_1, window_bounds = array<i64: 1, 256>}, {transform_indices = @transform_2, window_bounds = array<i64: 256, 288>}, {transform_indices = @transform_3, window_bounds = array<i64: 128, 288>}]} {
    %c0 = arith.constant 0 : index
    %c0_0 = arith.constant 0 : index
    %0 = vector.load %arg2[%c0, %c0_0] : memref<128x256xf32, #tpu.memory_space<vmem>>, vector<128x256xf32>
    %1 = arith.mulf %0, %0 : vector<128x256xf32>
    %cst = arith.constant dense<0.000000e+00> : vector<128xf32>
    %2 = vector.multi_reduction <add>, %1, %cst [1] : vector<128x256xf32> to vector<128xf32>
    %3 = vector.shape_cast %2 : vector<128xf32> to vector<128x1xf32>
    %cst_1 = arith.constant 2.560000e+02 : f32
    %4 = vector.broadcast %cst_1 : f32 to vector<128x1xf32>
    %5 = arith.divf %3, %4 : vector<128x1xf32>
    %cst_2 = arith.constant 9.99999997E-7 : f32
    %6 = vector.broadcast %cst_2 : f32 to vector<128x1xf32>
    %7 = arith.addf %5, %6 : vector<128x1xf32>
    %8 = math.rsqrt %7 : vector<128x1xf32>
    %9 = vector.broadcast %8 : vector<128x1xf32> to vector<128x256xf32>
    %10 = arith.mulf %0, %9 : vector<128x256xf32>
    %c0_3 = arith.constant 0 : index
    %c0_4 = arith.constant 0 : index
    %11 = vector.load %arg3[%c0_3, %c0_4] : memref<1x256xf32, #tpu.memory_space<vmem>>, vector<1x256xf32>
    %12 = vector.broadcast %11 : vector<1x256xf32> to vector<128x256xf32>
    %13 = arith.mulf %10, %12 : vector<128x256xf32>
    %14 = arith.truncf %13 : vector<128x256xf32> to vector<128x256xbf16>
    %c0_5 = arith.constant 0 : index
    %c0_6 = arith.constant 0 : index
    %15 = vector.load %arg4[%c0_5, %c0_6] : memref<256x288xbf16, #tpu.memory_space<vmem>>, vector<256x288xbf16>
    %cst_7 = arith.constant dense<0.000000e+00> : vector<128x288xf32>
    %16 = tpu.matmul %14, %15, %cst_7 {dimension_numbers = #tpu.dot_dimension_numbers<[1], [0], [0], [1], [0, 0, 1, 1], [], []>} : vector<128x256xbf16>, vector<256x288xbf16>, vector<128x288xf32> -> vector<128x288xf32>
    %17 = arith.truncf %16 : vector<128x288xf32> to vector<128x288xbf16>
    %c0_8 = arith.constant 0 : index
    %c0_9 = arith.constant 0 : index
    %18 = vector.load %arg5[%c0_8, %c0_9] : memref<128x288xbf16, #tpu.memory_space<vmem>>, vector<128x288xbf16>
    tpu.vector_store %arg5[%c0_8, %c0_9], %17 {strides = array<i32>} : memref<128x288xbf16, #tpu.memory_space<vmem>>, vector<128x288xbf16>,
    return
  }
  func.func @transform_0(%arg0: i32, %arg1: i32) -> (i32, i32) {
    %c0_i32 = arith.constant 0 : i32
    %c0_i32_0 = arith.constant 0 : i32
    return %arg0, %c0_i32 : i32, i32
  }
  func.func @transform_1(%arg0: i32, %arg1: i32) -> (i32, i32) {
    %c0_i32 = arith.constant 0 : i32
    %c0_i32_0 = arith.constant 0 : i32
    %c0_i32_1 = arith.constant 0 : i32
    return %c0_i32, %c0_i32_0 : i32, i32
  }
  func.func @transform_2(%arg0: i32, %arg1: i32) -> (i32, i32) {
    %c0_i32 = arith.constant 0 : i32
    %c0_i32_0 = arith.constant 0 : i32
    return %c0_i32, %arg1 : i32, i32
  }
  func.func @transform_3(%arg0: i32, %arg1: i32) -> (i32, i32) {
    %c0_i32 = arith.constant 0 : i32
    return %arg0, %arg1 : i32, i32
  }
}

module attributes {stable_mosaic.version = 11 : i64} {
  func.func @_rms_matmul_heads_kernel(%arg0: i32, %arg1: i32, %arg2: memref<128x128xbf16, #tpu.memory_space<vmem>>, %arg3: memref<1x128xf32, #tpu.memory_space<vmem>>, %arg4: memref<1x128x96xbf16, #tpu.memory_space<vmem>>, %arg5: memref<1x128x96xbf16, #tpu.memory_space<vmem>>) attributes {dimension_semantics = [#tpu.dimension_semantics<parallel>, #tpu.dimension_semantics<parallel>], iteration_bounds = array<i64: 2, 2>, scalar_prefetch = 0 : i64, scratch_operands = 0 : i64, tpu.core_type = #tpu.core_type<tc>, window_params = [{transform_indices = @transform_0, window_bounds = array<i64: 128, 128>}, {pipeline_mode = #tpu.pipeline_mode<synchronous>, transform_indices = @transform_1, window_bounds = array<i64: 1, 128>}, {transform_indices = @transform_2, window_bounds = array<i64: 1, 128, 96>}, {transform_indices = @transform_3, window_bounds = array<i64: 1, 128, 96>}]} {
    %c0 = arith.constant 0 : index
    %c0_0 = arith.constant 0 : index
    %0 = vector.load %arg2[%c0, %c0_0] : memref<128x128xbf16, #tpu.memory_space<vmem>>, vector<128x128xbf16>
    %1 = arith.extf %0 : vector<128x128xbf16> to vector<128x128xf32>
    %2 = arith.mulf %1, %1 : vector<128x128xf32>
    %cst = arith.constant dense<0.000000e+00> : vector<128xf32>
    %3 = vector.multi_reduction <add>, %2, %cst [1] : vector<128x128xf32> to vector<128xf32>
    %4 = vector.shape_cast %3 : vector<128xf32> to vector<128x1xf32>
    %cst_1 = arith.constant 1.280000e+02 : f32
    %5 = vector.broadcast %cst_1 : f32 to vector<128x1xf32>
    %6 = arith.divf %4, %5 : vector<128x1xf32>
    %cst_2 = arith.constant 9.99999997E-7 : f32
    %7 = vector.broadcast %cst_2 : f32 to vector<128x1xf32>
    %8 = arith.addf %6, %7 : vector<128x1xf32>
    %9 = math.rsqrt %8 : vector<128x1xf32>
    %10 = vector.broadcast %9 : vector<128x1xf32> to vector<128x128xf32>
    %11 = arith.mulf %1, %10 : vector<128x128xf32>
    %c0_3 = arith.constant 0 : index
    %c0_4 = arith.constant 0 : index
    %12 = vector.load %arg3[%c0_3, %c0_4] : memref<1x128xf32, #tpu.memory_space<vmem>>, vector<1x128xf32>
    %13 = vector.broadcast %12 : vector<1x128xf32> to vector<128x128xf32>
    %14 = arith.mulf %11, %13 : vector<128x128xf32>
    %15 = arith.truncf %14 : vector<128x128xf32> to vector<128x128xbf16>
    %c0_5 = arith.constant 0 : index
    %c0_6 = arith.constant 0 : index
    %c0_7 = arith.constant 0 : index
    %16 = vector.load %arg4[%c0_5, %c0_6, %c0_7] : memref<1x128x96xbf16, #tpu.memory_space<vmem>>, vector<1x128x96xbf16>
    %17 = vector.shape_cast %16 : vector<1x128x96xbf16> to vector<128x96xbf16>
    %cst_8 = arith.constant dense<0.000000e+00> : vector<128x96xf32>
    %18 = tpu.matmul %15, %17, %cst_8 {dimension_numbers = #tpu.dot_dimension_numbers<[1], [0], [0], [1], [0, 0, 1, 1], [], []>} : vector<128x128xbf16>, vector<128x96xbf16>, vector<128x96xf32> -> vector<128x96xf32>
    %19 = arith.truncf %18 : vector<128x96xf32> to vector<128x96xbf16>
    %c0_9 = arith.constant 0 : index
    %c0_10 = arith.constant 0 : index
    %c0_11 = arith.constant 0 : index
    %20 = vector.load %arg5[%c0_9, %c0_10, %c0_11] : memref<1x128x96xbf16, #tpu.memory_space<vmem>>, vector<1x128x96xbf16>
    %21 = vector.shape_cast %20 : vector<1x128x96xbf16> to vector<128x96xbf16>
    %22 = vector.shape_cast %19 : vector<128x96xbf16> to vector<1x128x96xbf16>
    tpu.vector_store %arg5[%c0_9, %c0_10, %c0_11], %22 {strides = array<i32>} : memref<1x128x96xbf16, #tpu.memory_space<vmem>>, vector<1x128x96xbf16>,
    return
  }
  func.func @transform_0(%arg0: i32, %arg1: i32) -> (i32, i32) {
    %c0_i32 = arith.constant 0 : i32
    %c0_i32_0 = arith.constant 0 : i32
    return %arg1, %c0_i32 : i32, i32
  }
  func.func @transform_1(%arg0: i32, %arg1: i32) -> (i32, i32) {
    %c0_i32 = arith.constant 0 : i32
    %c0_i32_0 = arith.constant 0 : i32
    %c0_i32_1 = arith.constant 0 : i32
    return %c0_i32, %c0_i32_0 : i32, i32
  }
  func.func @transform_2(%arg0: i32, %arg1: i32) -> (i32, i32, i32) {
    %c0_i32 = arith.constant 0 : i32
    %c0_i32_0 = arith.constant 0 : i32
    %c0_i32_1 = arith.constant 0 : i32
    return %arg0, %c0_i32, %c0_i32_0 : i32, i32, i32
  }
  func.func @transform_3(%arg0: i32, %arg1: i32) -> (i32, i32, i32) {
    %c0_i32 = arith.constant 0 : i32
    %c0_i32_0 = arith.constant 0 : i32
    return %arg0, %arg1, %c0_i32 : i32, i32, i32
  }
}

module attributes {stable_mosaic.version = 11 : i64} {
  func.func @_oproj_norm_kernel(%arg0: i32, %arg1: i32, %arg2: memref<1x128x64xbf16, #tpu.memory_space<vmem>>, %arg3: memref<1x64x256xbf16, #tpu.memory_space<vmem>>, %arg4: memref<128x256xf32, #tpu.memory_space<vmem>>, %arg5: memref<1x256xf32, #tpu.memory_space<vmem>>, %arg6: memref<128x256xbf16, #tpu.memory_space<vmem>>, %arg7: memref<128x256xf32, #tpu.memory_space<vmem>>, %arg8: memref<128x256xf32, #tpu.memory_space<vmem>>) attributes {dimension_semantics = [#tpu.dimension_semantics<parallel>, #tpu.dimension_semantics<arbitrary>], iteration_bounds = array<i64: 2, 2>, scalar_prefetch = 0 : i64, scratch_operands = 1 : i64, tpu.core_type = #tpu.core_type<tc>, window_params = [{transform_indices = @transform_0, window_bounds = array<i64: 1, 128, 64>}, {transform_indices = @transform_1, window_bounds = array<i64: 1, 64, 256>}, {transform_indices = @transform_2, window_bounds = array<i64: 128, 256>}, {pipeline_mode = #tpu.pipeline_mode<synchronous>, transform_indices = @transform_3, window_bounds = array<i64: 1, 256>}, {transform_indices = @transform_4, window_bounds = array<i64: 128, 256>}, {transform_indices = @transform_5, window_bounds = array<i64: 128, 256>}]} {
    %c0_i32 = arith.constant 0 : i32
    %0 = arith.cmpi eq, %arg1, %c0_i32 : i32
    %1 = arith.extui %0 : i1 to i32
    %c0_i32_0 = arith.constant 0 : i32
    %2 = arith.cmpi ne, %1, %c0_i32_0 : i32
    scf.if %2 {
      %cst_11 = arith.constant 0.000000e+00 : f32
      %14 = vector.broadcast %cst_11 : f32 to vector<128x256xf32>
      %c0_12 = arith.constant 0 : index
      %c0_13 = arith.constant 0 : index
      %15 = vector.load %arg8[%c0_12, %c0_13] : memref<128x256xf32, #tpu.memory_space<vmem>>, vector<128x256xf32>
      tpu.vector_store %arg8[%c0_12, %c0_13], %14 {strides = array<i32>} : memref<128x256xf32, #tpu.memory_space<vmem>>, vector<128x256xf32>,
    } else {
    }
    %c0 = arith.constant 0 : index
    %c0_1 = arith.constant 0 : index
    %3 = vector.load %arg8[%c0, %c0_1] : memref<128x256xf32, #tpu.memory_space<vmem>>, vector<128x256xf32>
    %c0_2 = arith.constant 0 : index
    %c0_3 = arith.constant 0 : index
    %c0_4 = arith.constant 0 : index
    %4 = vector.load %arg2[%c0_2, %c0_3, %c0_4] : memref<1x128x64xbf16, #tpu.memory_space<vmem>>, vector<1x128x64xbf16>
    %5 = vector.shape_cast %4 : vector<1x128x64xbf16> to vector<128x64xbf16>
    %c0_5 = arith.constant 0 : index
    %c0_6 = arith.constant 0 : index
    %c0_7 = arith.constant 0 : index
    %6 = vector.load %arg3[%c0_5, %c0_6, %c0_7] : memref<1x64x256xbf16, #tpu.memory_space<vmem>>, vector<1x64x256xbf16>
    %7 = vector.shape_cast %6 : vector<1x64x256xbf16> to vector<64x256xbf16>
    %cst = arith.constant dense<0.000000e+00> : vector<128x256xf32>
    %8 = tpu.matmul %5, %7, %cst {dimension_numbers = #tpu.dot_dimension_numbers<[1], [0], [0], [1], [0, 0, 1, 1], [], []>} : vector<128x64xbf16>, vector<64x256xbf16>, vector<128x256xf32> -> vector<128x256xf32>
    %9 = arith.addf %3, %8 : vector<128x256xf32>
    %c0_8 = arith.constant 0 : index
    %c0_9 = arith.constant 0 : index
    %10 = vector.load %arg8[%c0_8, %c0_9] : memref<128x256xf32, #tpu.memory_space<vmem>>, vector<128x256xf32>
    tpu.vector_store %arg8[%c0_8, %c0_9], %9 {strides = array<i32>} : memref<128x256xf32, #tpu.memory_space<vmem>>, vector<128x256xf32>,
    %c1_i32 = arith.constant 1 : i32
    %11 = arith.cmpi eq, %arg1, %c1_i32 : i32
    %12 = arith.extui %11 : i1 to i32
    %c0_i32_10 = arith.constant 0 : i32
    %13 = arith.cmpi ne, %12, %c0_i32_10 : i32
    scf.if %13 {
      %c0_11 = arith.constant 0 : index
      %c0_12 = arith.constant 0 : index
      %14 = vector.load %arg8[%c0_11, %c0_12] : memref<128x256xf32, #tpu.memory_space<vmem>>, vector<128x256xf32>
      %c0_13 = arith.constant 0 : index
      %c0_14 = arith.constant 0 : index
      %15 = vector.load %arg4[%c0_13, %c0_14] : memref<128x256xf32, #tpu.memory_space<vmem>>, vector<128x256xf32>
      %16 = arith.addf %14, %15 : vector<128x256xf32>
      %c0_15 = arith.constant 0 : index
      %c0_16 = arith.constant 0 : index
      %17 = vector.load %arg7[%c0_15, %c0_16] : memref<128x256xf32, #tpu.memory_space<vmem>>, vector<128x256xf32>
      tpu.vector_store %arg7[%c0_15, %c0_16], %16 {strides = array<i32>} : memref<128x256xf32, #tpu.memory_space<vmem>>, vector<128x256xf32>,
      %18 = arith.mulf %16, %16 : vector<128x256xf32>
      %cst_17 = arith.constant dense<0.000000e+00> : vector<128xf32>
      %19 = vector.multi_reduction <add>, %18, %cst_17 [1] : vector<128x256xf32> to vector<128xf32>
      %20 = vector.shape_cast %19 : vector<128xf32> to vector<128x1xf32>
      %cst_18 = arith.constant 2.560000e+02 : f32
      %21 = vector.broadcast %cst_18 : f32 to vector<128x1xf32>
      %22 = arith.divf %20, %21 : vector<128x1xf32>
      %cst_19 = arith.constant 9.99999997E-7 : f32
      %23 = vector.broadcast %cst_19 : f32 to vector<128x1xf32>
      %24 = arith.addf %22, %23 : vector<128x1xf32>
      %25 = math.rsqrt %24 : vector<128x1xf32>
      %26 = vector.broadcast %25 : vector<128x1xf32> to vector<128x256xf32>
      %27 = arith.mulf %16, %26 : vector<128x256xf32>
      %c0_20 = arith.constant 0 : index
      %c0_21 = arith.constant 0 : index
      %28 = vector.load %arg5[%c0_20, %c0_21] : memref<1x256xf32, #tpu.memory_space<vmem>>, vector<1x256xf32>
      %29 = vector.broadcast %28 : vector<1x256xf32> to vector<128x256xf32>
      %30 = arith.mulf %27, %29 : vector<128x256xf32>
      %31 = arith.truncf %30 : vector<128x256xf32> to vector<128x256xbf16>
      %c0_22 = arith.constant 0 : index
      %c0_23 = arith.constant 0 : index
      %32 = vector.load %arg6[%c0_22, %c0_23] : memref<128x256xbf16, #tpu.memory_space<vmem>>, vector<128x256xbf16>
      tpu.vector_store %arg6[%c0_22, %c0_23], %31 {strides = array<i32>} : memref<128x256xbf16, #tpu.memory_space<vmem>>, vector<128x256xbf16>,
    } else {
    }
    return
  }
  func.func @transform_0(%arg0: i32, %arg1: i32) -> (i32, i32, i32) {
    %c0_i32 = arith.constant 0 : i32
    %c0_i32_0 = arith.constant 0 : i32
    return %arg1, %arg0, %c0_i32 : i32, i32, i32
  }
  func.func @transform_1(%arg0: i32, %arg1: i32) -> (i32, i32, i32) {
    %c0_i32 = arith.constant 0 : i32
    %c0_i32_0 = arith.constant 0 : i32
    %c0_i32_1 = arith.constant 0 : i32
    return %arg1, %c0_i32, %c0_i32_0 : i32, i32, i32
  }
  func.func @transform_2(%arg0: i32, %arg1: i32) -> (i32, i32) {
    %c0_i32 = arith.constant 0 : i32
    %c0_i32_0 = arith.constant 0 : i32
    return %arg0, %c0_i32 : i32, i32
  }
  func.func @transform_3(%arg0: i32, %arg1: i32) -> (i32, i32) {
    %c0_i32 = arith.constant 0 : i32
    %c0_i32_0 = arith.constant 0 : i32
    %c0_i32_1 = arith.constant 0 : i32
    return %c0_i32, %c0_i32_0 : i32, i32
  }
  func.func @transform_4(%arg0: i32, %arg1: i32) -> (i32, i32) {
    %c0_i32 = arith.constant 0 : i32
    %c0_i32_0 = arith.constant 0 : i32
    return %arg0, %c0_i32 : i32, i32
  }
  func.func @transform_5(%arg0: i32, %arg1: i32) -> (i32, i32) {
    %c0_i32 = arith.constant 0 : i32
    %c0_i32_0 = arith.constant 0 : i32
    return %arg0, %c0_i32 : i32, i32
  }
}

module attributes {stable_mosaic.version = 11 : i64} {
  func.func @_rms_matmul_heads_kernel(%arg0: i32, %arg1: i32, %arg2: memref<128x128xbf16, #tpu.memory_space<vmem>>, %arg3: memref<1x128xf32, #tpu.memory_space<vmem>>, %arg4: memref<1x128x128xbf16, #tpu.memory_space<vmem>>, %arg5: memref<1x128x128xbf16, #tpu.memory_space<vmem>>) attributes {dimension_semantics = [#tpu.dimension_semantics<parallel>, #tpu.dimension_semantics<parallel>], iteration_bounds = array<i64: 2, 2>, scalar_prefetch = 0 : i64, scratch_operands = 0 : i64, tpu.core_type = #tpu.core_type<tc>, window_params = [{transform_indices = @transform_0, window_bounds = array<i64: 128, 128>}, {pipeline_mode = #tpu.pipeline_mode<synchronous>, transform_indices = @transform_1, window_bounds = array<i64: 1, 128>}, {transform_indices = @transform_2, window_bounds = array<i64: 1, 128, 128>}, {transform_indices = @transform_3, window_bounds = array<i64: 1, 128, 128>}]} {
    %c0 = arith.constant 0 : index
    %c0_0 = arith.constant 0 : index
    %0 = vector.load %arg2[%c0, %c0_0] : memref<128x128xbf16, #tpu.memory_space<vmem>>, vector<128x128xbf16>
    %1 = arith.extf %0 : vector<128x128xbf16> to vector<128x128xf32>
    %2 = arith.mulf %1, %1 : vector<128x128xf32>
    %cst = arith.constant dense<0.000000e+00> : vector<128xf32>
    %3 = vector.multi_reduction <add>, %2, %cst [1] : vector<128x128xf32> to vector<128xf32>
    %4 = vector.shape_cast %3 : vector<128xf32> to vector<128x1xf32>
    %cst_1 = arith.constant 1.280000e+02 : f32
    %5 = vector.broadcast %cst_1 : f32 to vector<128x1xf32>
    %6 = arith.divf %4, %5 : vector<128x1xf32>
    %cst_2 = arith.constant 9.99999997E-7 : f32
    %7 = vector.broadcast %cst_2 : f32 to vector<128x1xf32>
    %8 = arith.addf %6, %7 : vector<128x1xf32>
    %9 = math.rsqrt %8 : vector<128x1xf32>
    %10 = vector.broadcast %9 : vector<128x1xf32> to vector<128x128xf32>
    %11 = arith.mulf %1, %10 : vector<128x128xf32>
    %c0_3 = arith.constant 0 : index
    %c0_4 = arith.constant 0 : index
    %12 = vector.load %arg3[%c0_3, %c0_4] : memref<1x128xf32, #tpu.memory_space<vmem>>, vector<1x128xf32>
    %13 = vector.broadcast %12 : vector<1x128xf32> to vector<128x128xf32>
    %14 = arith.mulf %11, %13 : vector<128x128xf32>
    %15 = arith.truncf %14 : vector<128x128xf32> to vector<128x128xbf16>
    %c0_5 = arith.constant 0 : index
    %c0_6 = arith.constant 0 : index
    %c0_7 = arith.constant 0 : index
    %16 = vector.load %arg4[%c0_5, %c0_6, %c0_7] : memref<1x128x128xbf16, #tpu.memory_space<vmem>>, vector<1x128x128xbf16>
    %17 = vector.shape_cast %16 : vector<1x128x128xbf16> to vector<128x128xbf16>
    %cst_8 = arith.constant dense<0.000000e+00> : vector<128x128xf32>
    %18 = tpu.matmul %15, %17, %cst_8 {dimension_numbers = #tpu.dot_dimension_numbers<[1], [0], [0], [1], [0, 0, 1, 1], [], []>} : vector<128x128xbf16>, vector<128x128xbf16>, vector<128x128xf32> -> vector<128x128xf32>
    %19 = arith.truncf %18 : vector<128x128xf32> to vector<128x128xbf16>
    %c0_9 = arith.constant 0 : index
    %c0_10 = arith.constant 0 : index
    %c0_11 = arith.constant 0 : index
    %20 = vector.load %arg5[%c0_9, %c0_10, %c0_11] : memref<1x128x128xbf16, #tpu.memory_space<vmem>>, vector<1x128x128xbf16>
    %21 = vector.shape_cast %20 : vector<1x128x128xbf16> to vector<128x128xbf16>
    %22 = vector.shape_cast %19 : vector<128x128xbf16> to vector<1x128x128xbf16>
    tpu.vector_store %arg5[%c0_9, %c0_10, %c0_11], %22 {strides = array<i32>} : memref<1x128x128xbf16, #tpu.memory_space<vmem>>, vector<1x128x128xbf16>,
    return
  }
  func.func @transform_0(%arg0: i32, %arg1: i32) -> (i32, i32) {
    %c0_i32 = arith.constant 0 : i32
    %c0_i32_0 = arith.constant 0 : i32
    return %arg1, %c0_i32 : i32, i32
  }
  func.func @transform_1(%arg0: i32, %arg1: i32) -> (i32, i32) {
    %c0_i32 = arith.constant 0 : i32
    %c0_i32_0 = arith.constant 0 : i32
    %c0_i32_1 = arith.constant 0 : i32
    return %c0_i32, %c0_i32_0 : i32, i32
  }
  func.func @transform_2(%arg0: i32, %arg1: i32) -> (i32, i32, i32) {
    %c0_i32 = arith.constant 0 : i32
    %c0_i32_0 = arith.constant 0 : i32
    %c0_i32_1 = arith.constant 0 : i32
    return %arg0, %c0_i32, %c0_i32_0 : i32, i32, i32
  }
  func.func @transform_3(%arg0: i32, %arg1: i32) -> (i32, i32, i32) {
    %c0_i32 = arith.constant 0 : i32
    %c0_i32_0 = arith.constant 0 : i32
    return %arg0, %arg1, %c0_i32 : i32, i32, i32
  }
}

module attributes {stable_mosaic.version = 11 : i64} {
  func.func @_flash_kernel(%arg0: i32, %arg1: i32, %arg2: i32, %arg3: memref<1x128x64xbf16, #tpu.memory_space<vmem>>, %arg4: memref<1x128x32xbf16, #tpu.memory_space<vmem>>, %arg5: memref<1x128x64xbf16, #tpu.memory_space<vmem>>, %arg6: memref<128x32xbf16, #tpu.memory_space<vmem>>, %arg7: memref<1x128x64xbf16, #tpu.memory_space<vmem>>, %arg8: memref<1x128x64xbf16, #tpu.memory_space<vmem>>, %arg9: memref<128x1xf32, #tpu.memory_space<vmem>>, %arg10: memref<128x1xf32, #tpu.memory_space<vmem>>, %arg11: memref<128x64xf32, #tpu.memory_space<vmem>>) attributes {dimension_semantics = [#tpu.dimension_semantics<parallel>, #tpu.dimension_semantics<parallel>, #tpu.dimension_semantics<arbitrary>], iteration_bounds = array<i64: 2, 2, 2>, scalar_prefetch = 0 : i64, scratch_operands = 3 : i64, tpu.core_type = #tpu.core_type<tc>, window_params = [{transform_indices = @transform_0, window_bounds = array<i64: 1, 128, 64>}, {transform_indices = @transform_1, window_bounds = array<i64: 1, 128, 32>}, {transform_indices = @transform_2, window_bounds = array<i64: 1, 128, 64>}, {transform_indices = @transform_3, window_bounds = array<i64: 128, 32>}, {transform_indices = @transform_4, window_bounds = array<i64: 1, 128, 64>}, {transform_indices = @transform_5, window_bounds = array<i64: 1, 128, 64>}]} {
    %c0_i32 = arith.constant 0 : i32
    %0 = arith.cmpi eq, %arg2, %c0_i32 : i32
    %1 = arith.extui %0 : i1 to i32
    %c0_i32_0 = arith.constant 0 : i32
    %2 = arith.cmpi ne, %1, %c0_i32_0 : i32
    scf.if %2 {
      %cst = arith.constant -1.000000e+30 : f32
      %12 = vector.broadcast %cst : f32 to vector<128x1xf32>
      %c0 = arith.constant 0 : index
      %c0_5 = arith.constant 0 : index
      %13 = vector.load %arg9[%c0, %c0_5] : memref<128x1xf32, #tpu.memory_space<vmem>>, vector<128x1xf32>
      tpu.vector_store %arg9[%c0, %c0_5], %12 {strides = array<i32>} : memref<128x1xf32, #tpu.memory_space<vmem>>, vector<128x1xf32>,
      %cst_6 = arith.constant 0.000000e+00 : f32
      %14 = vector.broadcast %cst_6 : f32 to vector<128x1xf32>
      %c0_7 = arith.constant 0 : index
      %c0_8 = arith.constant 0 : index
      %15 = vector.load %arg10[%c0_7, %c0_8] : memref<128x1xf32, #tpu.memory_space<vmem>>, vector<128x1xf32>
      tpu.vector_store %arg10[%c0_7, %c0_8], %14 {strides = array<i32>} : memref<128x1xf32, #tpu.memory_space<vmem>>, vector<128x1xf32>,
      %cst_9 = arith.constant 0.000000e+00 : f32
      %16 = vector.broadcast %cst_9 : f32 to vector<128x64xf32>
      %c0_10 = arith.constant 0 : index
      %c0_11 = arith.constant 0 : index
      %17 = vector.load %arg11[%c0_10, %c0_11] : memref<128x64xf32, #tpu.memory_space<vmem>>, vector<128x64xf32>
      tpu.vector_store %arg11[%c0_10, %c0_11], %16 {strides = array<i32>} : memref<128x64xf32, #tpu.memory_space<vmem>>, vector<128x64xf32>,
    } else {
    }
    %c128_i32 = arith.constant 128 : i32
    %3 = arith.muli %arg2, %c128_i32 : i32
    %c1_i32 = arith.constant 1 : i32
    %4 = arith.addi %arg1, %c1_i32 : i32
    %c128_i32_1 = arith.constant 128 : i32
    %5 = arith.muli %4, %c128_i32_1 : i32
    %6 = arith.cmpi slt, %3, %5 : i32
    %7 = arith.extui %6 : i1 to i32
    %c0_i32_2 = arith.constant 0 : i32
    %8 = arith.cmpi ne, %7, %c0_i32_2 : i32
    scf.if %8 {
      %c0 = arith.constant 0 : index
      %c0_5 = arith.constant 0 : index
      %c0_6 = arith.constant 0 : index
      %12 = vector.load %arg3[%c0, %c0_5, %c0_6] : memref<1x128x64xbf16, #tpu.memory_space<vmem>>, vector<1x128x64xbf16>
      %13 = vector.shape_cast %12 : vector<1x128x64xbf16> to vector<128x64xbf16>
      %14 = arith.extf %13 : vector<128x64xbf16> to vector<128x64xf32>
      %cst = arith.constant 0.102062076 : f32
      %15 = vector.broadcast %cst : f32 to vector<128x64xf32>
      %16 = arith.mulf %14, %15 : vector<128x64xf32>
      %17 = arith.truncf %16 : vector<128x64xf32> to vector<128x64xbf16>
      %c0_7 = arith.constant 0 : index
      %c0_8 = arith.constant 0 : index
      %c0_9 = arith.constant 0 : index
      %18 = vector.load %arg4[%c0_7, %c0_8, %c0_9] : memref<1x128x32xbf16, #tpu.memory_space<vmem>>, vector<1x128x32xbf16>
      %19 = vector.shape_cast %18 : vector<1x128x32xbf16> to vector<128x32xbf16>
      %20 = arith.extf %19 : vector<128x32xbf16> to vector<128x32xf32>
      %cst_10 = arith.constant 0.102062076 : f32
      %21 = vector.broadcast %cst_10 : f32 to vector<128x32xf32>
      %22 = arith.mulf %20, %21 : vector<128x32xf32>
      %23 = arith.truncf %22 : vector<128x32xf32> to vector<128x32xbf16>
      %c0_11 = arith.constant 0 : index
      %c0_12 = arith.constant 0 : index
      %c0_13 = arith.constant 0 : index
      %24 = vector.load %arg5[%c0_11, %c0_12, %c0_13] : memref<1x128x64xbf16, #tpu.memory_space<vmem>>, vector<1x128x64xbf16>
      %25 = vector.shape_cast %24 : vector<1x128x64xbf16> to vector<128x64xbf16>
      %cst_14 = arith.constant dense<0.000000e+00> : vector<128x128xf32>
      %26 = tpu.matmul %17, %25, %cst_14 {dimension_numbers = #tpu.dot_dimension_numbers<[1], [1], [0], [0], [0, 0, 1, 0], [], []>} : vector<128x64xbf16>, vector<128x64xbf16>, vector<128x128xf32> -> vector<128x128xf32>
      %c0_15 = arith.constant 0 : index
      %c0_16 = arith.constant 0 : index
      %27 = vector.load %arg6[%c0_15, %c0_16] : memref<128x32xbf16, #tpu.memory_space<vmem>>, vector<128x32xbf16>
      %cst_17 = arith.constant dense<0.000000e+00> : vector<128x128xf32>
      %28 = tpu.matmul %23, %27, %cst_17 {dimension_numbers = #tpu.dot_dimension_numbers<[1], [1], [0], [0], [0, 0, 1, 0], [], []>} : vector<128x32xbf16>, vector<128x32xbf16>, vector<128x128xf32> -> vector<128x128xf32>
      %29 = arith.addf %26, %28 : vector<128x128xf32>
      %c128_i32_18 = arith.constant 128 : i32
      %30 = arith.muli %arg1, %c128_i32_18 : i32
      %31 = tpu.iota {dimensions = array<i32: 0>} : vector<128x128xi32>
      %32 = vector.broadcast %30 : i32 to vector<128x128xi32>
      %33 = arith.addi %32, %31 : vector<128x128xi32>
      %c128_i32_19 = arith.constant 128 : i32
      %34 = arith.muli %arg2, %c128_i32_19 : i32
      %35 = tpu.iota {dimensions = array<i32: 1>} : vector<128x128xi32>
      %36 = vector.broadcast %34 : i32 to vector<128x128xi32>
      %37 = arith.addi %36, %35 : vector<128x128xi32>
      %38 = arith.cmpi sle, %37, %33 : vector<128x128xi32>
      %cst_20 = arith.constant -1.000000e+30 : f32
      %39 = vector.broadcast %cst_20 : f32 to vector<128x128xf32>
      %40 = arith.select %38, %29, %39 : vector<128x128xi1>, vector<128x128xf32>
      %c0_21 = arith.constant 0 : index
      %c0_22 = arith.constant 0 : index
      %41 = vector.load %arg9[%c0_21, %c0_22] : memref<128x1xf32, #tpu.memory_space<vmem>>, vector<128x1xf32>
      %cst_23 = arith.constant dense<0xFF800000> : vector<128xf32>
      %42 = vector.multi_reduction <maximumf>, %40, %cst_23 [1] : vector<128x128xf32> to vector<128xf32>
      %43 = vector.shape_cast %42 : vector<128xf32> to vector<128x1xf32>
      %44 = arith.maximumf %41, %43 : vector<128x1xf32>
      %45 = arith.subf %41, %44 : vector<128x1xf32>
      %46 = math.exp %45 : vector<128x1xf32>
      %47 = vector.broadcast %44 : vector<128x1xf32> to vector<128x128xf32>
      %48 = arith.subf %40, %47 : vector<128x128xf32>
      %49 = math.exp %48 : vector<128x128xf32>
      %c0_24 = arith.constant 0 : index
      %c0_25 = arith.constant 0 : index
      %50 = vector.load %arg10[%c0_24, %c0_25] : memref<128x1xf32, #tpu.memory_space<vmem>>, vector<128x1xf32>
      %51 = arith.mulf %46, %50 : vector<128x1xf32>
      %cst_26 = arith.constant dense<0.000000e+00> : vector<128xf32>
      %52 = vector.multi_reduction <add>, %49, %cst_26 [1] : vector<128x128xf32> to vector<128xf32>
      %53 = vector.shape_cast %52 : vector<128xf32> to vector<128x1xf32>
      %54 = arith.addf %51, %53 : vector<128x1xf32>
      %c0_27 = arith.constant 0 : index
      %c0_28 = arith.constant 0 : index
      %55 = vector.load %arg10[%c0_27, %c0_28] : memref<128x1xf32, #tpu.memory_space<vmem>>, vector<128x1xf32>
      tpu.vector_store %arg10[%c0_27, %c0_28], %54 {strides = array<i32>} : memref<128x1xf32, #tpu.memory_space<vmem>>, vector<128x1xf32>,
      %c0_29 = arith.constant 0 : index
      %c0_30 = arith.constant 0 : index
      %56 = vector.load %arg11[%c0_29, %c0_30] : memref<128x64xf32, #tpu.memory_space<vmem>>, vector<128x64xf32>
      %57 = vector.broadcast %46 : vector<128x1xf32> to vector<128x64xf32>
      %58 = arith.mulf %57, %56 : vector<128x64xf32>
      %59 = arith.truncf %49 : vector<128x128xf32> to vector<128x128xbf16>
      %c0_31 = arith.constant 0 : index
      %c0_32 = arith.constant 0 : index
      %c0_33 = arith.constant 0 : index
      %60 = vector.load %arg7[%c0_31, %c0_32, %c0_33] : memref<1x128x64xbf16, #tpu.memory_space<vmem>>, vector<1x128x64xbf16>
      %61 = vector.shape_cast %60 : vector<1x128x64xbf16> to vector<128x64xbf16>
      %cst_34 = arith.constant dense<0.000000e+00> : vector<128x64xf32>
      %62 = tpu.matmul %59, %61, %cst_34 {dimension_numbers = #tpu.dot_dimension_numbers<[1], [0], [0], [1], [0, 0, 1, 1], [], []>} : vector<128x128xbf16>, vector<128x64xbf16>, vector<128x64xf32> -> vector<128x64xf32>
      %63 = arith.addf %58, %62 : vector<128x64xf32>
      %c0_35 = arith.constant 0 : index
      %c0_36 = arith.constant 0 : index
      %64 = vector.load %arg11[%c0_35, %c0_36] : memref<128x64xf32, #tpu.memory_space<vmem>>, vector<128x64xf32>
      tpu.vector_store %arg11[%c0_35, %c0_36], %63 {strides = array<i32>} : memref<128x64xf32, #tpu.memory_space<vmem>>, vector<128x64xf32>,
      %c0_37 = arith.constant 0 : index
      %c0_38 = arith.constant 0 : index
      %65 = vector.load %arg9[%c0_37, %c0_38] : memref<128x1xf32, #tpu.memory_space<vmem>>, vector<128x1xf32>
      tpu.vector_store %arg9[%c0_37, %c0_38], %44 {strides = array<i32>} : memref<128x1xf32, #tpu.memory_space<vmem>>, vector<128x1xf32>,
    } else {
    }
    %c1_i32_3 = arith.constant 1 : i32
    %9 = arith.cmpi eq, %arg2, %c1_i32_3 : i32
    %10 = arith.extui %9 : i1 to i32
    %c0_i32_4 = arith.constant 0 : i32
    %11 = arith.cmpi ne, %10, %c0_i32_4 : i32
    scf.if %11 {
      %c0 = arith.constant 0 : index
      %c0_5 = arith.constant 0 : index
      %12 = vector.load %arg10[%c0, %c0_5] : memref<128x1xf32, #tpu.memory_space<vmem>>, vector<128x1xf32>
      %13 = tpu.reciprocal %12 {approx = true} : vector<128x1xf32> -> vector<128x1xf32>
      %c0_6 = arith.constant 0 : index
      %c0_7 = arith.constant 0 : index
      %14 = vector.load %arg11[%c0_6, %c0_7] : memref<128x64xf32, #tpu.memory_space<vmem>>, vector<128x64xf32>
      %15 = vector.broadcast %13 : vector<128x1xf32> to vector<128x64xf32>
      %16 = arith.mulf %14, %15 : vector<128x64xf32>
      %17 = arith.truncf %16 : vector<128x64xf32> to vector<128x64xbf16>
      %c0_8 = arith.constant 0 : index
      %c0_9 = arith.constant 0 : index
      %c0_10 = arith.constant 0 : index
      %18 = vector.load %arg8[%c0_8, %c0_9, %c0_10] : memref<1x128x64xbf16, #tpu.memory_space<vmem>>, vector<1x128x64xbf16>
      %19 = vector.shape_cast %18 : vector<1x128x64xbf16> to vector<128x64xbf16>
      %20 = vector.shape_cast %17 : vector<128x64xbf16> to vector<1x128x64xbf16>
      tpu.vector_store %arg8[%c0_8, %c0_9, %c0_10], %20 {strides = array<i32>} : memref<1x128x64xbf16, #tpu.memory_space<vmem>>, vector<1x128x64xbf16>,
    } else {
    }
    return
  }
  func.func @transform_0(%arg0: i32, %arg1: i32, %arg2: i32) -> (i32, i32, i32) {
    %c0_i32 = arith.constant 0 : i32
    %c0_i32_0 = arith.constant 0 : i32
    return %arg0, %arg1, %c0_i32 : i32, i32, i32
  }
  func.func @transform_1(%arg0: i32, %arg1: i32, %arg2: i32) -> (i32, i32, i32) {
    %c0_i32 = arith.constant 0 : i32
    %c0_i32_0 = arith.constant 0 : i32
    return %arg0, %arg1, %c0_i32 : i32, i32, i32
  }
  func.func @transform_2(%arg0: i32, %arg1: i32, %arg2: i32) -> (i32, i32, i32) {
    %c0_i32 = arith.constant 0 : i32
    %c0_i32_0 = arith.constant 0 : i32
    return %arg0, %arg2, %c0_i32 : i32, i32, i32
  }
  func.func @transform_3(%arg0: i32, %arg1: i32, %arg2: i32) -> (i32, i32) {
    %c0_i32 = arith.constant 0 : i32
    %c0_i32_0 = arith.constant 0 : i32
    return %arg2, %c0_i32 : i32, i32
  }
  func.func @transform_4(%arg0: i32, %arg1: i32, %arg2: i32) -> (i32, i32, i32) {
    %c0_i32 = arith.constant 0 : i32
    %c0_i32_0 = arith.constant 0 : i32
    return %arg0, %arg2, %c0_i32 : i32, i32, i32
  }
  func.func @transform_5(%arg0: i32, %arg1: i32, %arg2: i32) -> (i32, i32, i32) {
    %c0_i32 = arith.constant 0 : i32
    %c0_i32_0 = arith.constant 0 : i32
    return %arg0, %arg1, %c0_i32 : i32, i32, i32
  }
}

module attributes {stable_mosaic.version = 11 : i64} {
  func.func @_mlp_kernel(%arg0: i32, %arg1: i32, %arg2: memref<128x256xbf16, #tpu.memory_space<vmem>>, %arg3: memref<256x256xbf16, #tpu.memory_space<vmem>>, %arg4: memref<256x256xbf16, #tpu.memory_space<vmem>>, %arg5: memref<256x256xbf16, #tpu.memory_space<vmem>>, %arg6: memref<128x256xf32, #tpu.memory_space<vmem>>, %arg7: memref<128x256xf32, #tpu.memory_space<vmem>>) attributes {dimension_semantics = [#tpu.dimension_semantics<parallel>, #tpu.dimension_semantics<arbitrary>], iteration_bounds = array<i64: 2, 1>, scalar_prefetch = 0 : i64, scratch_operands = 1 : i64, tpu.core_type = #tpu.core_type<tc>, window_params = [{transform_indices = @transform_0, window_bounds = array<i64: 128, 256>}, {transform_indices = @transform_1, window_bounds = array<i64: 256, 256>}, {transform_indices = @transform_2, window_bounds = array<i64: 256, 256>}, {transform_indices = @transform_3, window_bounds = array<i64: 256, 256>}, {transform_indices = @transform_4, window_bounds = array<i64: 128, 256>}]} {
    %c0_i32 = arith.constant 0 : i32
    %0 = arith.cmpi eq, %arg1, %c0_i32 : i32
    %1 = arith.extui %0 : i1 to i32
    %c0_i32_0 = arith.constant 0 : i32
    %2 = arith.cmpi ne, %1, %c0_i32_0 : i32
    scf.if %2 {
      %cst_17 = arith.constant 0.000000e+00 : f32
      %24 = vector.broadcast %cst_17 : f32 to vector<128x256xf32>
      %c0_18 = arith.constant 0 : index
      %c0_19 = arith.constant 0 : index
      %25 = vector.load %arg7[%c0_18, %c0_19] : memref<128x256xf32, #tpu.memory_space<vmem>>, vector<128x256xf32>
      tpu.vector_store %arg7[%c0_18, %c0_19], %24 {strides = array<i32>} : memref<128x256xf32, #tpu.memory_space<vmem>>, vector<128x256xf32>,
    } else {
    }
    %c0 = arith.constant 0 : index
    %c0_1 = arith.constant 0 : index
    %3 = vector.load %arg2[%c0, %c0_1] : memref<128x256xbf16, #tpu.memory_space<vmem>>, vector<128x256xbf16>
    %c0_2 = arith.constant 0 : index
    %c0_3 = arith.constant 0 : index
    %4 = vector.load %arg3[%c0_2, %c0_3] : memref<256x256xbf16, #tpu.memory_space<vmem>>, vector<256x256xbf16>
    %cst = arith.constant dense<0.000000e+00> : vector<128x256xf32>
    %5 = tpu.matmul %3, %4, %cst {dimension_numbers = #tpu.dot_dimension_numbers<[1], [0], [0], [1], [0, 0, 1, 1], [], []>} : vector<128x256xbf16>, vector<256x256xbf16>, vector<128x256xf32> -> vector<128x256xf32>
    %c0_4 = arith.constant 0 : index
    %c0_5 = arith.constant 0 : index
    %6 = vector.load %arg4[%c0_4, %c0_5] : memref<256x256xbf16, #tpu.memory_space<vmem>>, vector<256x256xbf16>
    %cst_6 = arith.constant dense<0.000000e+00> : vector<128x256xf32>
    %7 = tpu.matmul %3, %6, %cst_6 {dimension_numbers = #tpu.dot_dimension_numbers<[1], [0], [0], [1], [0, 0, 1, 1], [], []>} : vector<128x256xbf16>, vector<256x256xbf16>, vector<128x256xf32> -> vector<128x256xf32>
    %8 = arith.negf %5 : vector<128x256xf32>
    %9 = math.exp %8 : vector<128x256xf32>
    %cst_7 = arith.constant 1.000000e+00 : f32
    %10 = vector.broadcast %cst_7 : f32 to vector<128x256xf32>
    %11 = arith.addf %10, %9 : vector<128x256xf32>
    %12 = arith.divf %10, %11 : vector<128x256xf32>
    %13 = arith.mulf %5, %12 : vector<128x256xf32>
    %14 = arith.mulf %13, %7 : vector<128x256xf32>
    %15 = arith.truncf %14 : vector<128x256xf32> to vector<128x256xbf16>
    %c0_8 = arith.constant 0 : index
    %c0_9 = arith.constant 0 : index
    %16 = vector.load %arg7[%c0_8, %c0_9] : memref<128x256xf32, #tpu.memory_space<vmem>>, vector<128x256xf32>
    %c0_10 = arith.constant 0 : index
    %c0_11 = arith.constant 0 : index
    %17 = vector.load %arg5[%c0_10, %c0_11] : memref<256x256xbf16, #tpu.memory_space<vmem>>, vector<256x256xbf16>
    %cst_12 = arith.constant dense<0.000000e+00> : vector<128x256xf32>
    %18 = tpu.matmul %15, %17, %cst_12 {dimension_numbers = #tpu.dot_dimension_numbers<[1], [0], [0], [1], [0, 0, 1, 1], [], []>} : vector<128x256xbf16>, vector<256x256xbf16>, vector<128x256xf32> -> vector<128x256xf32>
    %19 = arith.addf %16, %18 : vector<128x256xf32>
    %c0_13 = arith.constant 0 : index
    %c0_14 = arith.constant 0 : index
    %20 = vector.load %arg7[%c0_13, %c0_14] : memref<128x256xf32, #tpu.memory_space<vmem>>, vector<128x256xf32>
    tpu.vector_store %arg7[%c0_13, %c0_14], %19 {strides = array<i32>} : memref<128x256xf32, #tpu.memory_space<vmem>>, vector<128x256xf32>,
    %c0_i32_15 = arith.constant 0 : i32
    %21 = arith.cmpi eq, %arg1, %c0_i32_15 : i32
    %22 = arith.extui %21 : i1 to i32
    %c0_i32_16 = arith.constant 0 : i32
    %23 = arith.cmpi ne, %22, %c0_i32_16 : i32
    scf.if %23 {
      %c0_17 = arith.constant 0 : index
      %c0_18 = arith.constant 0 : index
      %24 = vector.load %arg7[%c0_17, %c0_18] : memref<128x256xf32, #tpu.memory_space<vmem>>, vector<128x256xf32>
      %c0_19 = arith.constant 0 : index
      %c0_20 = arith.constant 0 : index
      %25 = vector.load %arg6[%c0_19, %c0_20] : memref<128x256xf32, #tpu.memory_space<vmem>>, vector<128x256xf32>
      tpu.vector_store %arg6[%c0_19, %c0_20], %24 {strides = array<i32>} : memref<128x256xf32, #tpu.memory_space<vmem>>, vector<128x256xf32>,
    } else {
    }
    return
  }
  func.func @transform_0(%arg0: i32, %arg1: i32) -> (i32, i32) {
    %c0_i32 = arith.constant 0 : i32
    %c0_i32_0 = arith.constant 0 : i32
    return %arg0, %c0_i32 : i32, i32
  }
  func.func @transform_1(%arg0: i32, %arg1: i32) -> (i32, i32) {
    %c0_i32 = arith.constant 0 : i32
    %c0_i32_0 = arith.constant 0 : i32
    return %c0_i32, %arg1 : i32, i32
  }
  func.func @transform_2(%arg0: i32, %arg1: i32) -> (i32, i32) {
    %c0_i32 = arith.constant 0 : i32
    %c0_i32_0 = arith.constant 0 : i32
    return %c0_i32, %arg1 : i32, i32
  }
  func.func @transform_3(%arg0: i32, %arg1: i32) -> (i32, i32) {
    %c0_i32 = arith.constant 0 : i32
    %c0_i32_0 = arith.constant 0 : i32
    return %arg1, %c0_i32 : i32, i32
  }
  func.func @transform_4(%arg0: i32, %arg1: i32) -> (i32, i32) {
    %c0_i32 = arith.constant 0 : i32
    %c0_i32_0 = arith.constant 0 : i32
    return %arg0, %c0_i32 : i32, i32
  }
}

</mosaic_0001>

<llo_original>
// kernel: _lambda_.6
$region0: #{_lambda_.6}
  #allocation0 [shape = 'u32[]', space=smem, size = 0x4, offset = 0x4, fixed_abs, tag = 'smem constant byte address 0x4 - core index']
  #allocation1 [shape = 'u32[144,128]{1,0:T(1,128)}', space=vmem, size = 0x12000, scoped, tag = 'internal scratch']
  %s0 = inlined_call_operand.vmem [shape: f32[256,256], index: 0, kind: input, shape index: {}]
  %s1 = inlined_call_operand.vmem [shape: f32[1,256], index: 1, kind: input, shape index: {}]
  %s2 = inlined_call_operand.vmem [shape: bf16[256,288], index: 2, kind: input, shape index: {}]
  %s3 = inlined_call_operand.vmem [shape: bf16[256,288], index: 3, kind: output, shape index: {}]
  %s4 = sld [smem:[#allocation0]]
  $region45: #{_lambda_.6} parent=0
    _
  %s6 = ssub.s32 1, %s4
  %s7 = scalar_select 0, %s6, %s4
  loop: start=0, step=1, limit=4
  $region2: #{_lambda_.6} parent=0 // loop_pre_header
    _
  $region3: #{_lambda_.6} parent=0 // loop_header
    %s9 = sphi 0, %s13
    %p10 = scmp.ge.s32.totalorder %s9, 4
    %s16 = sphi 0, %s28
    %s17 = sphi 0, %s24
    %s18 = sphi 0, %s16
    %s19 = sphi 0, %s17
    %s20 = sphi 0, %s18
    %s21 = sphi 0, %s19
    %s31 = sphi 0, %s33
    %s34 = sphi 0, %s31
    %s35 = sphi 0, %s34
    %s51 = sphi 0, %s35
    %s55 = sphi 0, %s55
    %s57 = sphi 0, %s55
    %s58 = sphi 0, %s57
    %s72 = sphi 0, %s58
    %s78 = sphi 0, %s80
    %s81 = sphi 0, %s78
    %s82 = sphi 0, %s81
    %s98 = sphi 0, %s82
    %s106 = sphi 0, %s108
    %s109 = sphi 0, %s106
    %s110 = sphi 0, %s109
    %s126 = sphi 0, %s110
  $region4: #{_lambda_.6} parent=0 // loop_header_branch
    %12 = sbr.rel (%p10) target = $region8
  $region5: #{_lambda_.6} parent=0 // loop_body
    %s14 = ssub.s32 %s9, 1
    %s15 = ssub.s32 %s9, 2
    %s22 = sadd.s32 1, %s17
    %p23 = scmp.ge.s32.totalorder %s22, 1
    %s24 = scalar_select %p23, 0, %s22
    %s25 = sadd.s32 1, %s16
    %s26 = scalar_select %p23, %s25, %s16
    %p27 = scmp.ge.s32.totalorder %s26, 2
    %s28 = scalar_select %p27, 0, %s26
    %s29 = ssub.s32 %s16, %s28
    %p30 = scmp.eq.s32.totalorder %s29, 0
    %s32 = sadd.s32 %s31, 1
    %s33 = scalar_select %p30, %s31, %s32
    %p36 = pneg %p30
    %p37 = scmp.eq.s32.totalorder %s9, 1
    %p38 = por %p36, %p37
    %p39 = scmp.ne.s32.totalorder %s31, %s34
    %p40 = scmp.eq.s32.totalorder %s9, 0
    %p41 = por %p39, %p40
    %p42 = scmp.ne.s32.totalorder %s31, %s34
    %p43 = scmp.eq.s32.totalorder %s14, 1
    %p44 = por %p42, %p43
    %p45 = scmp.ne.s32.totalorder %s34, %s35
    %p46 = scmp.eq.s32.totalorder %s14, 0
    %p47 = por %p45, %p46
    %p48 = scmp.ne.s32.totalorder %s34, %s35
    %p49 = scmp.eq.s32.totalorder %s15, 1
    %p50 = por %p48, %p49
    %p52 = scmp.ne.s32.totalorder %s35, %s51
    %p53 = scmp.eq.s32.totalorder %s15, 0
    %p54 = por %p52, %p53
    %s56 = sadd.s32 %s55, 1
    %p59 = scmp.eq.s32.totalorder %s9, 1
    %p60 = scmp.ne.s32.totalorder %s55, %s57
    %p61 = scmp.eq.s32.totalorder %s9, 0
    %p62 = por %p60, %p61
    %p63 = scmp.ne.s32.totalorder %s55, %s57
    %p64 = scmp.eq.s32.totalorder %s14, 1
    %p65 = por %p63, %p64
    %p66 = scmp.ne.s32.totalorder %s57, %s58
    %p67 = scmp.eq.s32.totalorder %s14, 0
    %p68 = por %p66, %p67
    %p69 = scmp.ne.s32.totalorder %s57, %s58
    %p70 = scmp.eq.s32.totalorder %s15, 1
    %p71 = por %p69, %p70
    %p73 = scmp.ne.s32.totalorder %s58, %s72
    %p74 = scmp.eq.s32.totalorder %s15, 0
    %p75 = por %p73, %p74
    %s76 = ssub.s32 %s17, %s24
    %p77 = scmp.eq.s32.totalorder %s76, 0
    %s79 = sadd.s32 %s78, 1
    %s80 = scalar_select %p77, %s78, %s79
    %p83 = pneg %p77
    %p84 = scmp.eq.s32.totalorder %s9, 1
    %p85 = por %p83, %p84
    %p86 = scmp.ne.s32.totalorder %s78, %s81
    %p87 = scmp.eq.s32.totalorder %s9, 0
    %p88 = por %p86, %p87
    %p89 = scmp.ne.s32.totalorder %s78, %s81
    %p90 = scmp.eq.s32.totalorder %s14, 1
    %p91 = por %p89, %p90
    %p92 = scmp.ne.s32.totalorder %s81, %s82
    %p93 = scmp.eq.s32.totalorder %s14, 0
    %p94 = por %p92, %p93
    %p95 = scmp.ne.s32.totalorder %s81, %s82
    %p96 = scmp.eq.s32.totalorder %s15, 1
    %p97 = por %p95, %p96
    %p99 = scmp.ne.s32.totalorder %s82, %s98
    %p100 = scmp.eq.s32.totalorder %s15, 0
    %p101 = por %p99, %p100
    %s102 = ssub.s32 %s16, %s28
    %s103 = ssub.s32 %s17, %s24
    %s104 = sor.u32 %s102, %s103
    %p105 = scmp.eq.s32.totalorder %s104, 0
    %s107 = sadd.s32 %s106, 1
    %s108 = scalar_select %p105, %s106, %s107
    %p111 = pneg %p105
    %p112 = scmp.eq.s32.totalorder %s9, 1
    %p113 = por %p111, %p112
    %p114 = scmp.ne.s32.totalorder %s106, %s109
    %p115 = scmp.eq.s32.totalorder %s9, 0
    %p116 = por %p114, %p115
    %p117 = scmp.ne.s32.totalorder %s106, %s109
    %p118 = scmp.eq.s32.totalorder %s14, 1
    %p119 = por %p117, %p118
    %p120 = scmp.ne.s32.totalorder %s109, %s110
    %p121 = scmp.eq.s32.totalorder %s14, 0
    %p122 = por %p120, %p121
    %p123 = scmp.ne.s32.totalorder %s109, %s110
    %p124 = scmp.eq.s32.totalorder %s15, 1
    %p125 = por %p123, %p124
    %p127 = scmp.ne.s32.totalorder %s110, %s126
    %p128 = scmp.eq.s32.totalorder %s15, 0
    %p129 = por %p127, %p128
    %p130 = scmp.le.s32.totalorder 1, %s9
    %p131 = scmp.lt.s32.totalorder %s9, 3
    %p132 = pnand %p130, %p131
    %p133 = pneg %p132
    // Predicated region
    $region9: #{_lambda_.6} parent=5 // pred_check
      _
    $region10: #{_lambda_.6} parent=5 // pred_check_branch
      %135 = sbr.rel (%p132) target = $region12
    $region11: #{_lambda_.6} parent=5 // pred_region
      %s136 = ssub.s32 %s9, 1
      // Predicated region
      $region13: #{_lambda_.6} parent=11 // pred_check
        %p137 = pneg %p68
      $region14: #{_lambda_.6} parent=11 // pred_check_branch
        %139 = sbr.rel (%p137) target = $region16
      $region15: #{_lambda_.6} parent=11 // pred_region
        _
      $region16: #{_lambda_.6} parent=11 // pred_fallthru
        _
      // Predicated region
      $region17: #{_lambda_.6} parent=11 // pred_check
        %p140 = pneg %p94
      $region18: #{_lambda_.6} parent=11 // pred_check_branch
        %142 = sbr.rel (%p140) target = $region20
      $region19: #{_lambda_.6} parent=11 // pred_region
        %s143 = smul.u32 3, %s19
        %p144 = scmp.lt.s32.totalorder %s143, 2
        %s145 = scalar_select %p144, %s143, 2
        %s146 = smul.addr %s145, 4
        %s147 = scalar_lea.vmem %s2, %s146
        %s148 = smul.u32 3, %s19
      $region20: #{_lambda_.6} parent=11 // pred_fallthru
        _
    $region12: #{_lambda_.6} parent=5 // pred_fallthru
      _
    %p149 = scmp.lt.s32.totalorder %s9, 2
    // Predicated region
    $region21: #{_lambda_.6} parent=5 // pred_check
      %p150 = pneg %p149
    $region22: #{_lambda_.6} parent=5 // pred_check_branch
      %152 = sbr.rel (%p150) target = $region24
    $region23: #{_lambda_.6} parent=5 // pred_region
      // Predicated region
      $region25: #{_lambda_.6} parent=23 // pred_check
        %p153 = pneg %p41
      $region26: #{_lambda_.6} parent=23 // pred_check_branch
        %155 = sbr.rel (%p153) target = $region28
      $region27: #{_lambda_.6} parent=23 // pred_region
        %s156 = smul.u32 16, %s16
        %p157 = scmp.lt.s32.totalorder %s156, 31
        %s158 = scalar_select %p157, %s156, 31
        %s159 = smul.addr %s158, 2
        %s160 = smul.addr %s159, 8
        %s161 = scalar_lea.vmem %s0, %s160
        %s162 = smul.u32 16, %s16
      $region28: #{_lambda_.6} parent=23 // pred_fallthru
        _
    $region24: #{_lambda_.6} parent=5 // pred_fallthru
      _
    %p163 = scmp.le.s32.totalorder 1, %s9
    %p164 = scmp.lt.s32.totalorder %s9, 3
    %p165 = pnand %p163, %p164
    %p166 = pneg %p165
    // Predicated region
    $region29: #{_lambda_.6} parent=5 // pred_check
      _
    $region30: #{_lambda_.6} parent=5 // pred_check_branch
      %168 = sbr.rel (%p165) target = $region32
    $region31: #{_lambda_.6} parent=5 // pred_region
      %s169 = ssub.s32 %s9, 1
      %s170 = smul.u32 16, %s18
      %p171 = scmp.lt.s32.totalorder %s170, 31
      %s172 = scalar_select %p171, %s170, 31
      %s173 = smul.addr %s172, 2
      %s174 = smul.addr %s173, 8
      %s175 = scalar_lea.vmem %s0, %s174
      %p176 = pneg %p47
      %p177 = pneg %p44
      %p178 = pneg %p68
      %p179 = pneg %p65
      %s180 = smul.u32 3, %s19
      %p181 = scmp.lt.s32.totalorder %s180, 2
      %s182 = scalar_select %p181, %s180, 2
      %s183 = smul.addr %s182, 4
      %s184 = scalar_lea.vmem %s2, %s183
      %p185 = pneg %p94
      %p186 = pneg %p91
      %p187 = pneg %p122
      %p188 = pneg %p119
      %s189 = smul.u32 16, %s18
      %s190 = smul.u32 3, %s19
      %p191 = scmp.lt.s32.totalorder %s189, 31
      %s192 = scalar_select %p191, %s189, 31
      %p193 = scmp.lt.s32.totalorder %s190, 2
      %s194 = scalar_select %p193, %s190, 2
      %s195 = smul.addr %s192, 3
      %s196 = sadd.s32 %s194, %s195
      %s197 = smul.addr %s196, 4
      %s198 = scalar_lea.vmem %s3, %s197
      %s199 = smul.u32 16, %s18
      %p200 = scmp.lt.s32.totalorder %s199, 31
      %s201 = scalar_select %p200, %s199, 31
      %s202 = smul.addr %s201, 2
      %s203 = smul.addr %s202, 8
      %s204 = scalar_lea.vmem %s0, %s203
      %s205 = smul.u32 16, %s18
      %s206 = smul.u32 3, %s19
      %p207 = scmp.lt.s32.totalorder %s206, 2
      %s208 = scalar_select %p207, %s206, 2
      %s209 = smul.addr %s208, 4
      %s210 = scalar_lea.vmem %s2, %s209
      %s211 = smul.u32 3, %s19
      %s212 = smul.u32 16, %s18
      %s213 = smul.u32 3, %s19
      %p214 = scmp.lt.s32.totalorder %s212, 31
      %s215 = scalar_select %p214, %s212, 31
      %p216 = scmp.lt.s32.totalorder %s213, 2
      %s217 = scalar_select %p216, %s213, 2
      %s218 = smul.addr %s215, 3
      %s219 = sadd.s32 %s217, %s218
      %s220 = smul.addr %s219, 4
      %s221 = scalar_lea.vmem %s3, %s220
      %s222 = smul.u32 16, %s18
      %s223 = smul.u32 3, %s19
      %v225 = vld [vmem:[%s204] sm:$0xff]
      %v226 = vld [vmem:[%s204 + $0x8] sm:$0xff]
      %v227 = vld [vmem:[%s204 + $0x10] sm:$0xff]
      %v228 = vld [vmem:[%s204 + $0x18] sm:$0xff]
      %v229 = vld [vmem:[%s204 + $0x20] sm:$0xff]
      %v230 = vld [vmem:[%s204 + $0x28] sm:$0xff]
      %v231 = vld [vmem:[%s204 + $0x30] sm:$0xff]
      %v232 = vld [vmem:[%s204 + $0x38] sm:$0xff]
      %v233 = vld [vmem:[%s204 + $0x40] sm:$0xff]
      %v234 = vld [vmem:[%s204 + $0x48] sm:$0xff]
      %v235 = vld [vmem:[%s204 + $0x50] sm:$0xff]
      %v236 = vld [vmem:[%s204 + $0x58] sm:$0xff]
      %v237 = vld [vmem:[%s204 + $0x60] sm:$0xff]
      %v238 = vld [vmem:[%s204 + $0x68] sm:$0xff]
      %v239 = vld [vmem:[%s204 + $0x70] sm:$0xff]
      %v240 = vld [vmem:[%s204 + $0x78] sm:$0xff]
      %v241 = vld [vmem:[%s204 + $0x80] sm:$0xff]
      %v242 = vld [vmem:[%s204 + $0x88] sm:$0xff]
      %v243 = vld [vmem:[%s204 + $0x90] sm:$0xff]
      %v244 = vld [vmem:[%s204 + $0x98] sm:$0xff]
      %v245 = vld [vmem:[%s204 + $0xa0] sm:$0xff]
      %v246 = vld [vmem:[%s204 + $0xa8] sm:$0xff]
      %v247 = vld [vmem:[%s204 + $0xb0] sm:$0xff]
      %v248 = vld [vmem:[%s204 + $0xb8] sm:$0xff]
      %v249 = vld [vmem:[%s204 + $0xc0] sm:$0xff]
      %v250 = vld [vmem:[%s204 + $0xc8] sm:$0xff]
      %v251 = vld [vmem:[%s204 + $0xd0] sm:$0xff]
      %v252 = vld [vmem:[%s204 + $0xd8] sm:$0xff]
      %v253 = vld [vmem:[%s204 + $0xe0] sm:$0xff]
      %v254 = vld [vmem:[%s204 + $0xe8] sm:$0xff]
      %v255 = vld [vmem:[%s204 + $0xf0] sm:$0xff]
      %v256 = vld [vmem:[%s204 + $0xf8] sm:$0xff]
      %v257 = vmul.f32 %v225, %v225
      %v258 = vmul.f32 %v226, %v226
      %v259 = vmul.f32 %v227, %v227
      %v260 = vmul.f32 %v228, %v228
      %v261 = vmul.f32 %v229, %v229
      %v262 = vmul.f32 %v230, %v230
      %v263 = vmul.f32 %v231, %v231
      %v264 = vmul.f32 %v232, %v232
      %v265 = vmul.f32 %v233, %v233
      %v266 = vmul.f32 %v234, %v234
      %v267 = vmul.f32 %v235, %v235
      %v268 = vmul.f32 %v236, %v236
      %v269 = vmul.f32 %v237, %v237
      %v270 = vmul.f32 %v238, %v238
      %v271 = vmul.f32 %v239, %v239
      %v272 = vmul.f32 %v240, %v240
      %v273 = vmul.f32 %v241, %v241
      %v274 = vmul.f32 %v242, %v242
      %v275 = vmul.f32 %v243, %v243
      %v276 = vmul.f32 %v244, %v244
      %v277 = vmul.f32 %v245, %v245
      %v278 = vmul.f32 %v246, %v246
      %v279 = vmul.f32 %v247, %v247
      %v280 = vmul.f32 %v248, %v248
      %v281 = vmul.f32 %v249, %v249
      %v282 = vmul.f32 %v250, %v250
      %v283 = vmul.f32 %v251, %v251
      %v284 = vmul.f32 %v252, %v252
      %v285 = vmul.f32 %v253, %v253
      %v286 = vmul.f32 %v254, %v254
      %v287 = vmul.f32 %v255, %v255
      %v288 = vmul.f32 %v256, %v256
      %v289 = vadd.f32 %v257, %v258
      %290 = vadd.xlane.f32.xlu0 %v289
      %v291 = vpop.xlane.xlu0 %290
      %v292 = vadd.f32 %v259, %v260
      %293 = vadd.xlane.f32.xlu0 %v292
      %v294 = vpop.xlane.xlu0 %293
      %v295 = vadd.f32 %v261, %v262
      %296 = vadd.xlane.f32.xlu0 %v295
      %v297 = vpop.xlane.xlu0 %296
      %v298 = vadd.f32 %v263, %v264
      %299 = vadd.xlane.f32.xlu0 %v298
      %v300 = vpop.xlane.xlu0 %299
      %v301 = vadd.f32 %v265, %v266
      %302 = vadd.xlane.f32.xlu0 %v301
      %v303 = vpop.xlane.xlu0 %302
      %v304 = vadd.f32 %v267, %v268
      %305 = vadd.xlane.f32.xlu0 %v304
      %v306 = vpop.xlane.xlu0 %305
      %v307 = vadd.f32 %v269, %v270
      %308 = vadd.xlane.f32.xlu0 %v307
      %v309 = vpop.xlane.xlu0 %308
      %v310 = vadd.f32 %v271, %v272
      %311 = vadd.xlane.f32.xlu0 %v310
      %v312 = vpop.xlane.xlu0 %311
      %v313 = vadd.f32 %v273, %v274
      %314 = vadd.xlane.f32.xlu0 %v313
      %v315 = vpop.xlane.xlu0 %314
      %v316 = vadd.f32 %v275, %v276
      %317 = vadd.xlane.f32.xlu0 %v316
      %v318 = vpop.xlane.xlu0 %317
      %v319 = vadd.f32 %v277, %v278
      %320 = vadd.xlane.f32.xlu0 %v319
      %v321 = vpop.xlane.xlu0 %320
      %v322 = vadd.f32 %v279, %v280
      %323 = vadd.xlane.f32.xlu0 %v322
      %v324 = vpop.xlane.xlu0 %323
      %v325 = vadd.f32 %v281, %v282
      %326 = vadd.xlane.f32.xlu0 %v325
      %v327 = vpop.xlane.xlu0 %326
      %v328 = vadd.f32 %v283, %v284
      %329 = vadd.xlane.f32.xlu0 %v328
      %v330 = vpop.xlane.xlu0 %329
      %v331 = vadd.f32 %v285, %v286
      %332 = vadd.xlane.f32.xlu0 %v331
      %v333 = vpop.xlane.xlu0 %332
      %v334 = vadd.f32 %v287, %v288
      %335 = vadd.xlane.f32.xlu0 %v334
      %v336 = vpop.xlane.xlu0 %335
      %v337 = vrcp.pop 256.0
      %v338 = vmul.f32 %v291, %v337
      %v339 = vmul.f32 %v294, %v337
      %v340 = vmul.f32 %v297, %v337
      %v341 = vmul.f32 %v300, %v337
      %v342 = vmul.f32 %v303, %v337
      %v343 = vmul.f32 %v306, %v337
      %v344 = vmul.f32 %v309, %v337
      %v345 = vmul.f32 %v312, %v337
      %v346 = vmul.f32 %v315, %v337
      %v347 = vmul.f32 %v318, %v337
      %v348 = vmul.f32 %v321, %v337
      %v349 = vmul.f32 %v324, %v337
      %v350 = vmul.f32 %v327, %v337
      %v351 = vmul.f32 %v330, %v337
      %v352 = vmul.f32 %v333, %v337
      %v353 = vmul.f32 %v336, %v337
      %v354 = vadd.f32 %v338, 1e-06
      %v355 = vadd.f32 %v339, 1e-06
      %v356 = vadd.f32 %v340, 1e-06
      %v357 = vadd.f32 %v341, 1e-06
      %v358 = vadd.f32 %v342, 1e-06
      %v359 = vadd.f32 %v343, 1e-06
      %v360 = vadd.f32 %v344, 1e-06
      %v361 = vadd.f32 %v345, 1e-06
      %v362 = vadd.f32 %v346, 1e-06
      %v363 = vadd.f32 %v347, 1e-06
      %v364 = vadd.f32 %v348, 1e-06
      %v365 = vadd.f32 %v349, 1e-06
      %v366 = vadd.f32 %v350, 1e-06
      %v367 = vadd.f32 %v351, 1e-06
      %v368 = vadd.f32 %v352, 1e-06
      %v369 = vadd.f32 %v353, 1e-06
      %v370 = vrsqrt.pop %v354
      %v371 = vrsqrt.pop %v355
      %v372 = vrsqrt.pop %v356
      %v373 = vrsqrt.pop %v357
      %v374 = vrsqrt.pop %v358
      %v375 = vrsqrt.pop %v359
      %v376 = vrsqrt.pop %v360
      %v377 = vrsqrt.pop %v361
      %v378 = vrsqrt.pop %v362
      %v379 = vrsqrt.pop %v363
      %v380 = vrsqrt.pop %v364
      %v381 = vrsqrt.pop %v365
      %v382 = vrsqrt.pop %v366
      %v383 = vrsqrt.pop %v367
      %v384 = vrsqrt.pop %v368
      %v385 = vrsqrt.pop %v369
      %v386 = vmul.f32 %v225, %v370
      %v387 = vmul.f32 %v226, %v370
      %v388 = vmul.f32 %v227, %v371
      %v389 = vmul.f32 %v228, %v371
      %v390 = vmul.f32 %v229, %v372
      %v391 = vmul.f32 %v230, %v372
      %v392 = vmul.f32 %v231, %v373
      %v393 = vmul.f32 %v232, %v373
      %v394 = vmul.f32 %v233, %v374
      %v395 = vmul.f32 %v234, %v374
      %v396 = vmul.f32 %v235, %v375
      %v397 = vmul.f32 %v236, %v375
      %v398 = vmul.f32 %v237, %v376
      %v399 = vmul.f32 %v238, %v376
      %v400 = vmul.f32 %v239, %v377
      %v401 = vmul.f32 %v240, %v377
      %v402 = vmul.f32 %v241, %v378
      %v403 = vmul.f32 %v242, %v378
      %v404 = vmul.f32 %v243, %v379
      %v405 = vmul.f32 %v244, %v379
      %v406 = vmul.f32 %v245, %v380
      %v407 = vmul.f32 %v246, %v380
      %v408 = vmul.f32 %v247, %v381
      %v409 = vmul.f32 %v248, %v381
      %v410 = vmul.f32 %v249, %v382
      %v411 = vmul.f32 %v250, %v382
      %v412 = vmul.f32 %v251, %v383
      %v413 = vmul.f32 %v252, %v383
      %v414 = vmul.f32 %v253, %v384
      %v415 = vmul.f32 %v254, %v384
      %v416 = vmul.f32 %v255, %v385
      %v417 = vmul.f32 %v256, %v385
      %v418 = vld [vmem:[%s1] sm:$0x3]
      %v420 = vlaneseq
      %v421 = vshrl.u32 %v420, 7
      %v422 = vsub.s32 0, %v421
      %v423 = vrot.slane %v418, %v422
      %v424 = vlaneseq
      %v425 = vshrl.u32 %v424, 7
      %v426 = vsub.s32 1, %v425
      %v427 = vrot.slane %v418, %v426
      %v430 = vmul.f32 %v386, %v423
      %v431 = vmul.f32 %v387, %v427
      %v432 = vmul.f32 %v388, %v423
      %v433 = vmul.f32 %v389, %v427
      %v434 = vmul.f32 %v390, %v423
      %v435 = vmul.f32 %v391, %v427
      %v436 = vmul.f32 %v392, %v423
      %v437 = vmul.f32 %v393, %v427
      %v438 = vmul.f32 %v394, %v423
      %v439 = vmul.f32 %v395, %v427
      %v440 = vmul.f32 %v396, %v423
      %v441 = vmul.f32 %v397, %v427
      %v442 = vmul.f32 %v398, %v423
      %v443 = vmul.f32 %v399, %v427
      %v444 = vmul.f32 %v400, %v423
      %v445 = vmul.f32 %v401, %v427
      %v446 = vmul.f32 %v402, %v423
      %v447 = vmul.f32 %v403, %v427
      %v448 = vmul.f32 %v404, %v423
      %v449 = vmul.f32 %v405, %v427
      %v450 = vmul.f32 %v406, %v423
      %v451 = vmul.f32 %v407, %v427
      %v452 = vmul.f32 %v408, %v423
      %v453 = vmul.f32 %v409, %v427
      %v454 = vmul.f32 %v410, %v423
      %v455 = vmul.f32 %v411, %v427
      %v456 = vmul.f32 %v412, %v423
      %v457 = vmul.f32 %v413, %v427
      %v458 = vmul.f32 %v414, %v423
      %v459 = vmul.f32 %v415, %v427
      %v460 = vmul.f32 %v416, %v423
      %v461 = vmul.f32 %v417, %v427
      %v462 = vpack.c.bf16 %v432, %v430
      %v463 = vpack.c.bf16 %v433, %v431
      %v464 = vpack.c.bf16 %v436, %v434
      %v465 = vpack.c.bf16 %v437, %v435
      %v466 = vpack.c.bf16 %v440, %v438
      %v467 = vpack.c.bf16 %v441, %v439
      %v468 = vpack.c.bf16 %v444, %v442
      %v469 = vpack.c.bf16 %v445, %v443
      %v470 = vpack.c.bf16 %v448, %v446
      %v471 = vpack.c.bf16 %v449, %v447
      %v472 = vpack.c.bf16 %v452, %v450
      %v473 = vpack.c.bf16 %v453, %v451
      %v474 = vpack.c.bf16 %v456, %v454
      %v475 = vpack.c.bf16 %v457, %v455
      %v476 = vpack.c.bf16 %v460, %v458
      %v477 = vpack.c.bf16 %v461, %v459
      %v478 = vld [vmem:[%s210] sm:$0xff]
      %v479 = vld [vmem:[%s210 + $0x8] sm:$0xf]
      %v480 = vld [vmem:[%s210 + $0xc] sm:$0xff]
      %v481 = vld [vmem:[%s210 + $0x14] sm:$0xf]
      %v482 = vld [vmem:[%s210 + $0x18] sm:$0xff]
      %v483 = vld [vmem:[%s210 + $0x20] sm:$0xf]
      %v484 = vld [vmem:[%s210 + $0x24] sm:$0xff]
      %v485 = vld [vmem:[%s210 + $0x2c] sm:$0xf]
      %v486 = vld [vmem:[%s210 + $0x30] sm:$0xff]
      %v487 = vld [vmem:[%s210 + $0x38] sm:$0xf]
      %v488 = vld [vmem:[%s210 + $0x3c] sm:$0xff]
      %v489 = vld [vmem:[%s210 + $0x44] sm:$0xf]
      %v490 = vld [vmem:[%s210 + $0x48] sm:$0xff]
      %v491 = vld [vmem:[%s210 + $0x50] sm:$0xf]
      %v492 = vld [vmem:[%s210 + $0x54] sm:$0xff]
      %v493 = vld [vmem:[%s210 + $0x5c] sm:$0xf]
      %v494 = vld [vmem:[%s210 + $0x60] sm:$0xff]
      %v495 = vld [vmem:[%s210 + $0x68] sm:$0xf]
      %v496 = vld [vmem:[%s210 + $0x6c] sm:$0xff]
      %v497 = vld [vmem:[%s210 + $0x74] sm:$0xf]
      %v498 = vld [vmem:[%s210 + $0x78] sm:$0xff]
      %v499 = vld [vmem:[%s210 + $0x80] sm:$0xf]
      %v500 = vld [vmem:[%s210 + $0x84] sm:$0xff]
      %v501 = vld [vmem:[%s210 + $0x8c] sm:$0xf]
      %v502 = vld [vmem:[%s210 + $0x90] sm:$0xff]
      %v503 = vld [vmem:[%s210 + $0x98] sm:$0xf]
      %v504 = vld [vmem:[%s210 + $0x9c] sm:$0xff]
      %v505 = vld [vmem:[%s210 + $0xa4] sm:$0xf]
      %v506 = vld [vmem:[%s210 + $0xa8] sm:$0xff]
      %v507 = vld [vmem:[%s210 + $0xb0] sm:$0xf]
      %v508 = vld [vmem:[%s210 + $0xb4] sm:$0xff]
      %v509 = vld [vmem:[%s210 + $0xbc] sm:$0xf]
      %v510 = vld [vmem:[%s210 + $0xc0] sm:$0xff]
      %v511 = vld [vmem:[%s210 + $0xc8] sm:$0xf]
      %v512 = vld [vmem:[%s210 + $0xcc] sm:$0xff]
      %v513 = vld [vmem:[%s210 + $0xd4] sm:$0xf]
      %v514 = vld [vmem:[%s210 + $0xd8] sm:$0xff]
      %v515 = vld [vmem:[%s210 + $0xe0] sm:$0xf]
      %v516 = vld [vmem:[%s210 + $0xe4] sm:$0xff]
      %v517 = vld [vmem:[%s210 + $0xec] sm:$0xf]
      %v518 = vld [vmem:[%s210 + $0xf0] sm:$0xff]
      %v519 = vld [vmem:[%s210 + $0xf8] sm:$0xf]
      %v520 = vld [vmem:[%s210 + $0xfc] sm:$0xff]
      %v521 = vld [vmem:[%s210 + $0x104] sm:$0xf]
      %v522 = vld [vmem:[%s210 + $0x108] sm:$0xff]
      %v523 = vld [vmem:[%s210 + $0x110] sm:$0xf]
      %v524 = vld [vmem:[%s210 + $0x114] sm:$0xff]
      %v525 = vld [vmem:[%s210 + $0x11c] sm:$0xf]
      %v526 = vld [vmem:[%s210 + $0x120] sm:$0xff]
      %v527 = vld [vmem:[%s210 + $0x128] sm:$0xf]
      %v528 = vld [vmem:[%s210 + $0x12c] sm:$0xff]
      %v529 = vld [vmem:[%s210 + $0x134] sm:$0xf]
      %v530 = vld [vmem:[%s210 + $0x138] sm:$0xff]
      %v531 = vld [vmem:[%s210 + $0x140] sm:$0xf]
      %v532 = vld [vmem:[%s210 + $0x144] sm:$0xff]
      %v533 = vld [vmem:[%s210 + $0x14c] sm:$0xf]
      %v534 = vld [vmem:[%s210 + $0x150] sm:$0xff]
      %v535 = vld [vmem:[%s210 + $0x158] sm:$0xf]
      %v536 = vld [vmem:[%s210 + $0x15c] sm:$0xff]
      %v537 = vld [vmem:[%s210 + $0x164] sm:$0xf]
      %v538 = vld [vmem:[%s210 + $0x168] sm:$0xff]
      %v539 = vld [vmem:[%s210 + $0x170] sm:$0xf]
      %v540 = vld [vmem:[%s210 + $0x174] sm:$0xff]
      %v541 = vld [vmem:[%s210 + $0x17c] sm:$0xf]
      %v606 = vunpack.c.l.b16 %v478
      %v607 = vunpack.c.h.b16 %v478
      %v608 = vunpack.c.l.b16 %v479
      %v609 = vunpack.c.l.b16 %v480
      %v610 = vunpack.c.h.b16 %v480
      %v611 = vunpack.c.l.b16 %v481
      %v612 = vunpack.c.l.b16 %v482
      %v613 = vunpack.c.h.b16 %v482
      %v614 = vunpack.c.l.b16 %v483
      %v615 = vunpack.c.l.b16 %v484
      %v616 = vunpack.c.h.b16 %v484
      %v617 = vunpack.c.l.b16 %v485
      %v618 = vunpack.c.l.b16 %v486
      %v619 = vunpack.c.h.b16 %v486
      %v620 = vunpack.c.l.b16 %v487
      %v621 = vunpack.c.l.b16 %v488
      %v622 = vunpack.c.h.b16 %v488
      %v623 = vunpack.c.l.b16 %v489
      %v624 = vunpack.c.l.b16 %v490
      %v625 = vunpack.c.h.b16 %v490
      %v626 = vunpack.c.l.b16 %v491
      %v627 = vunpack.c.l.b16 %v492
      %v628 = vunpack.c.h.b16 %v492
      %v629 = vunpack.c.l.b16 %v493
      %v630 = vunpack.c.l.b16 %v494
      %v631 = vunpack.c.h.b16 %v494
      %v632 = vunpack.c.l.b16 %v495
      %v633 = vunpack.c.l.b16 %v496
      %v634 = vunpack.c.h.b16 %v496
      %v635 = vunpack.c.l.b16 %v497
      %v636 = vunpack.c.l.b16 %v498
      %v637 = vunpack.c.h.b16 %v498
      %v638 = vunpack.c.l.b16 %v499
      %v639 = vunpack.c.l.b16 %v500
      %v640 = vunpack.c.h.b16 %v500
      %v641 = vunpack.c.l.b16 %v501
      %v642 = vunpack.c.l.b16 %v502
      %v643 = vunpack.c.h.b16 %v502
      %v644 = vunpack.c.l.b16 %v503
      %v645 = vunpack.c.l.b16 %v504
      %v646 = vunpack.c.h.b16 %v504
      %v647 = vunpack.c.l.b16 %v505
      %v648 = vunpack.c.l.b16 %v506
      %v649 = vunpack.c.h.b16 %v506
      %v650 = vunpack.c.l.b16 %v507
      %v651 = vunpack.c.l.b16 %v508
      %v652 = vunpack.c.h.b16 %v508
      %v653 = vunpack.c.l.b16 %v509
      %v654 = vunpack.c.l.b16 %v510
      %v655 = vunpack.c.h.b16 %v510
      %v656 = vunpack.c.l.b16 %v511
      %v657 = vunpack.c.l.b16 %v512
      %v658 = vunpack.c.h.b16 %v512
      %v659 = vunpack.c.l.b16 %v513
      %v660 = vunpack.c.l.b16 %v514
      %v661 = vunpack.c.h.b16 %v514
      %v662 = vunpack.c.l.b16 %v515
      %v663 = vunpack.c.l.b16 %v516
      %v664 = vunpack.c.h.b16 %v516
      %v665 = vunpack.c.l.b16 %v517
      %v666 = vunpack.c.l.b16 %v518
      %v667 = vunpack.c.h.b16 %v518
      %v668 = vunpack.c.l.b16 %v519
      %v669 = vunpack.c.l.b16 %v520
      %v670 = vunpack.c.h.b16 %v520
      %v671 = vunpack.c.l.b16 %v521
      %v672 = vunpack.c.l.b16 %v522
      %v673 = vunpack.c.h.b16 %v522
      %v674 = vunpack.c.l.b16 %v523
      %v675 = vunpack.c.l.b16 %v524
      %v676 = vunpack.c.h.b16 %v524
      %v677 = vunpack.c.l.b16 %v525
      %v678 = vunpack.c.l.b16 %v526
      %v679 = vunpack.c.h.b16 %v526
      %v680 = vunpack.c.l.b16 %v527
      %v681 = vunpack.c.l.b16 %v528
      %v682 = vunpack.c.h.b16 %v528
      %v683 = vunpack.c.l.b16 %v529
      %v684 = vunpack.c.l.b16 %v530
      %v685 = vunpack.c.h.b16 %v530
      %v686 = vunpack.c.l.b16 %v531
      %v687 = vunpack.c.l.b16 %v532
      %v688 = vunpack.c.h.b16 %v532
      %v689 = vunpack.c.l.b16 %v533
      %v690 = vunpack.c.l.b16 %v534
      %v691 = vunpack.c.h.b16 %v534
      %v692 = vunpack.c.l.b16 %v535
      %v693 = vunpack.c.l.b16 %v536
      %v694 = vunpack.c.h.b16 %v536
      %v695 = vunpack.c.l.b16 %v537
      %v696 = vunpack.c.l.b16 %v538
      %v697 = vunpack.c.h.b16 %v538
      %v698 = vunpack.c.l.b16 %v539
      %v699 = vunpack.c.l.b16 %v540
      %v700 = vunpack.c.h.b16 %v540
      %v701 = vunpack.c.l.b16 %v541
      %v702 = vpack.c.b16 %v609, %v606
      %v703 = vpack.c.b16 %v610, %v607
      %v704 = vpack.c.b16 %v611, %v608
      %v705 = vpack.c.b16 %v615, %v612
      %v706 = vpack.c.b16 %v616, %v613
      %v707 = vpack.c.b16 %v617, %v614
      %v708 = vpack.c.b16 %v621, %v618
      %v709 = vpack.c.b16 %v622, %v619
      %v710 = vpack.c.b16 %v623, %v620
      %v711 = vpack.c.b16 %v627, %v624
      %v712 = vpack.c.b16 %v628, %v625
      %v713 = vpack.c.b16 %v629, %v626
      %v714 = vpack.c.b16 %v633, %v630
      %v715 = vpack.c.b16 %v634, %v631
      %v716 = vpack.c.b16 %v635, %v632
      %v717 = vpack.c.b16 %v639, %v636
      %v718 = vpack.c.b16 %v640, %v637
      %v719 = vpack.c.b16 %v641, %v638
      %v720 = vpack.c.b16 %v645, %v642
      %v721 = vpack.c.b16 %v646, %v643
      %v722 = vpack.c.b16 %v647, %v644
      %v723 = vpack.c.b16 %v651, %v648
      %v724 = vpack.c.b16 %v652, %v649
      %v725 = vpack.c.b16 %v653, %v650
      %v726 = vpack.c.b16 %v657, %v654
      %v727 = vpack.c.b16 %v658, %v655
      %v728 = vpack.c.b16 %v659, %v656
      %v729 = vpack.c.b16 %v663, %v660
      %v730 = vpack.c.b16 %v664, %v661
      %v731 = vpack.c.b16 %v665, %v662
      %v732 = vpack.c.b16 %v669, %v666
      %v733 = vpack.c.b16 %v670, %v667
      %v734 = vpack.c.b16 %v671, %v668
      %v735 = vpack.c.b16 %v675, %v672
      %v736 = vpack.c.b16 %v676, %v673
      %v737 = vpack.c.b16 %v677, %v674
      %v738 = vpack.c.b16 %v681, %v678
      %v739 = vpack.c.b16 %v682, %v679
      %v740 = vpack.c.b16 %v683, %v680
      %v741 = vpack.c.b16 %v687, %v684
      %v742 = vpack.c.b16 %v688, %v685
      %v743 = vpack.c.b16 %v689, %v686
      %v744 = vpack.c.b16 %v693, %v690
      %v745 = vpack.c.b16 %v694, %v691
      %v746 = vpack.c.b16 %v695, %v692
      %v747 = vpack.c.b16 %v699, %v696
      %v748 = vpack.c.b16 %v700, %v697
      %v749 = vpack.c.b16 %v701, %v698
      %798 = vmatprep.subr.bf16.mxu0 %v703
      %799 = vmatpush1.bf16.msra.mxu0 %v702
      %800 = vmatprep.subr.bf16.mxu0 %v706
      %801 = vmatpush1.bf16.msra.mxu0 %v705
      %802 = vmatprep.subr.bf16.mxu0 %v709
      %803 = vmatpush1.bf16.msra.mxu0 %v708
      %804 = vmatprep.subr.bf16.mxu0 %v712
      %805 = vmatpush1.bf16.msra.mxu0 %v711
      %806 = vmatprep.subr.bf16.mxu0 %v715
      %807 = vmatpush1.bf16.msra.mxu0 %v714
      %808 = vmatprep.subr.bf16.mxu0 %v718
      %809 = vmatpush1.bf16.msra.mxu0 %v717
      %810 = vmatprep.subr.bf16.mxu0 %v721
      %811 = vmatpush1.bf16.msra.mxu0 %v720
      %812 = vmatprep.subr.bf16.mxu0 %v724
      %813 = vmatpush1.bf16.msra.mxu0 %v723
      %814 = vmatprep.subr.bf16.mxu0 %v727
      %815 = vmatpush1.bf16.msra.mxu0 %v726
      %816 = vmatprep.subr.bf16.mxu0 %v730
      %817 = vmatpush1.bf16.msra.mxu0 %v729
      %818 = vmatprep.subr.bf16.mxu0 %v733
      %819 = vmatpush1.bf16.msra.mxu0 %v732
      %820 = vmatprep.subr.bf16.mxu0 %v736
      %821 = vmatpush1.bf16.msra.mxu0 %v735
      %822 = vmatprep.subr.bf16.mxu0 %v739
      %823 = vmatpush1.bf16.msra.mxu0 %v738
      %824 = vmatprep.subr.bf16.mxu0 %v742
      %825 = vmatpush1.bf16.msra.mxu0 %v741
      %826 = vmatprep.subr.bf16.mxu0 %v745
      %827 = vmatpush1.bf16.msra.mxu0 %v744
      %828 = vmatprep.subr.bf16.mxu0 %v748
      %829 = vmatpush1.bf16.msra.mxu0 %v747
      %830 = vmatprep.mubr.bf16.mxu0 %v463
      %831 = vmatmul.mubr.bf16.gmra.mrb[0].mxu0 %v462
      %v832 = vpop.f32.mrb[0].mxu0
      %v833 = vadd.f32 0.0, %v832
      %v834 = vpop.f32.mrb[0].mxu0
      %v835 = vadd.f32 0.0, %v834
      %v836 = vpop.f32.mrb[0].mxu0
      %v837 = vadd.f32 0.0, %v836
      %v838 = vpop.f32.mrb[0].mxu0
      %v839 = vadd.f32 0.0, %v838
      %840 = vmatprep.mubr.bf16.mxu0 %v465
      %841 = vmatmul.mubr.bf16.gmra.mrb[0].mxu0 %v464
      %v842 = vpop.f32.mrb[0].mxu0
      %v843 = vadd.f32 0.0, %v842
      %v844 = vpop.f32.mrb[0].mxu0
      %v845 = vadd.f32 0.0, %v844
      %v846 = vpop.f32.mrb[0].mxu0
      %v847 = vadd.f32 0.0, %v846
      %v848 = vpop.f32.mrb[0].mxu0
      %v849 = vadd.f32 0.0, %v848
      %850 = vmatprep.mubr.bf16.mxu0 %v467
      %851 = vmatmul.mubr.bf16.gmra.mrb[0].mxu0 %v466
      %v852 = vpop.f32.mrb[0].mxu0
      %v853 = vadd.f32 0.0, %v852
      %v854 = vpop.f32.mrb[0].mxu0
      %v855 = vadd.f32 0.0, %v854
      %v856 = vpop.f32.mrb[0].mxu0
      %v857 = vadd.f32 0.0, %v856
      %v858 = vpop.f32.mrb[0].mxu0
      %v859 = vadd.f32 0.0, %v858
      %860 = vmatprep.mubr.bf16.mxu0 %v469
      %861 = vmatmul.mubr.bf16.gmra.mrb[0].mxu0 %v468
      %v862 = vpop.f32.mrb[0].mxu0
      %v863 = vadd.f32 0.0, %v862
      %v864 = vpop.f32.mrb[0].mxu0
      %v865 = vadd.f32 0.0, %v864
      %v866 = vpop.f32.mrb[0].mxu0
      %v867 = vadd.f32 0.0, %v866
      %v868 = vpop.f32.mrb[0].mxu0
      %v869 = vadd.f32 0.0, %v868
      %870 = vmatprep.mubr.bf16.mxu0 %v471
      %871 = vmatmul.mubr.bf16.gmra.mrb[0].mxu0 %v470
      %v872 = vpop.f32.mrb[0].mxu0
      %v873 = vadd.f32 0.0, %v872
      %v874 = vpop.f32.mrb[0].mxu0
      %v875 = vadd.f32 0.0, %v874
      %v876 = vpop.f32.mrb[0].mxu0
      %v877 = vadd.f32 0.0, %v876
      %v878 = vpop.f32.mrb[0].mxu0
      %v879 = vadd.f32 0.0, %v878
      %880 = vmatprep.mubr.bf16.mxu0 %v473
      %881 = vmatmul.mubr.bf16.gmra.mrb[0].mxu0 %v472
      %v882 = vpop.f32.mrb[0].mxu0
      %v883 = vadd.f32 0.0, %v882
      %v884 = vpop.f32.mrb[0].mxu0
      %v885 = vadd.f32 0.0, %v884
      %v886 = vpop.f32.mrb[0].mxu0
      %v887 = vadd.f32 0.0, %v886
      %v888 = vpop.f32.mrb[0].mxu0
      %v889 = vadd.f32 0.0, %v888
      %890 = vmatprep.mubr.bf16.mxu0 %v475
      %891 = vmatmul.mubr.bf16.gmra.mrb[0].mxu0 %v474
      %v892 = vpop.f32.mrb[0].mxu0
      %v893 = vadd.f32 0.0, %v892
      %v894 = vpop.f32.mrb[0].mxu0
      %v895 = vadd.f32 0.0, %v894
      %v896 = vpop.f32.mrb[0].mxu0
      %v897 = vadd.f32 0.0, %v896
      %v898 = vpop.f32.mrb[0].mxu0
      %v899 = vadd.f32 0.0, %v898
      %900 = vmatprep.mubr.bf16.mxu0 %v477
      %901 = vmatmul.mubr.bf16.gmra.mrb[0].mxu0 %v476
      %v902 = vpop.f32.mrb[0].mxu0
      %v903 = vadd.f32 0.0, %v902
      %v904 = vpop.f32.mrb[0].mxu0
      %v905 = vadd.f32 0.0, %v904
      %v906 = vpop.f32.mrb[0].mxu0
      %v907 = vadd.f32 0.0, %v906
      %v908 = vpop.f32.mrb[0].mxu0
      %v909 = vadd.f32 0.0, %v908
      %910 = vdwg.mxu0
      %911 = vmatprep.subr.bf16.mxu0 0
      %912 = vmatpush1.bf16.msra.mxu0 %v704
      %913 = vmatprep.subr.bf16.mxu0 0
      %914 = vmatpush1.bf16.msra.mxu0 %v707
      %915 = vmatprep.subr.bf16.mxu0 0
      %916 = vmatpush1.bf16.msra.mxu0 %v710
      %917 = vmatprep.subr.bf16.mxu0 0
      %918 = vmatpush1.bf16.msra.mxu0 %v713
      %919 = vmatprep.subr.bf16.mxu0 0
      %920 = vmatpush1.bf16.msra.mxu0 %v716
      %921 = vmatprep.subr.bf16.mxu0 0
      %922 = vmatpush1.bf16.msra.mxu0 %v719
      %923 = vmatprep.subr.bf16.mxu0 0
      %924 = vmatpush1.bf16.msra.mxu0 %v722
      %925 = vmatprep.subr.bf16.mxu0 0
      %926 = vmatpush1.bf16.msra.mxu0 %v725
      %927 = vmatprep.subr.bf16.mxu0 0
      %928 = vmatpush1.bf16.msra.mxu0 %v728
      %929 = vmatprep.subr.bf16.mxu0 0
      %930 = vmatpush1.bf16.msra.mxu0 %v731
      %931 = vmatprep.subr.bf16.mxu0 0
      %932 = vmatpush1.bf16.msra.mxu0 %v734
      %933 = vmatprep.subr.bf16.mxu0 0
      %934 = vmatpush1.bf16.msra.mxu0 %v737
      %935 = vmatprep.subr.bf16.mxu0 0
      %936 = vmatpush1.bf16.msra.mxu0 %v740
      %937 = vmatprep.subr.bf16.mxu0 0
      %938 = vmatpush1.bf16.msra.mxu0 %v743
      %939 = vmatprep.subr.bf16.mxu0 0
      %940 = vmatpush1.bf16.msra.mxu0 %v746
      %941 = vmatprep.subr.bf16.mxu0 0
      %942 = vmatpush1.bf16.msra.mxu0 %v749
      %943 = vmatprep.mubr.bf16.mxu0 %v463
      %944 = vmatmul.mubr.bf16.gmra.mrb[0].mxu0 %v462
      %v945 = vpop.f32.mrb[0].mxu0
      %v946 = vadd.f32 0.0, %v945
      %v947 = vpop.f32.mrb[0].mxu0
      %v948 = vpop.f32.mrb[0].mxu0
      %v949 = vadd.f32 0.0, %v948
      %v950 = vpop.f32.mrb[0].mxu0
      %951 = vmatprep.mubr.bf16.mxu0 %v465
      %952 = vmatmul.mubr.bf16.gmra.mrb[0].mxu0 %v464
      %v953 = vpop.f32.mrb[0].mxu0
      %v954 = vadd.f32 0.0, %v953
      %v955 = vpop.f32.mrb[0].mxu0
      %v956 = vpop.f32.mrb[0].mxu0
      %v957 = vadd.f32 0.0, %v956
      %v958 = vpop.f32.mrb[0].mxu0
      %959 = vmatprep.mubr.bf16.mxu0 %v467
      %960 = vmatmul.mubr.bf16.gmra.mrb[0].mxu0 %v466
      %v961 = vpop.f32.mrb[0].mxu0
      %v962 = vadd.f32 0.0, %v961
      %v963 = vpop.f32.mrb[0].mxu0
      %v964 = vpop.f32.mrb[0].mxu0
      %v965 = vadd.f32 0.0, %v964
      %v966 = vpop.f32.mrb[0].mxu0
      %967 = vmatprep.mubr.bf16.mxu0 %v469
      %968 = vmatmul.mubr.bf16.gmra.mrb[0].mxu0 %v468
      %v969 = vpop.f32.mrb[0].mxu0
      %v970 = vadd.f32 0.0, %v969
      %v971 = vpop.f32.mrb[0].mxu0
      %v972 = vpop.f32.mrb[0].mxu0
      %v973 = vadd.f32 0.0, %v972
      %v974 = vpop.f32.mrb[0].mxu0
      %975 = vmatprep.mubr.bf16.mxu0 %v471
      %976 = vmatmul.mubr.bf16.gmra.mrb[0].mxu0 %v470
      %v977 = vpop.f32.mrb[0].mxu0
      %v978 = vadd.f32 0.0, %v977
      %v979 = vpop.f32.mrb[0].mxu0
      %v980 = vpop.f32.mrb[0].mxu0
      %v981 = vadd.f32 0.0, %v980
      %v982 = vpop.f32.mrb[0].mxu0
      %983 = vmatprep.mubr.bf16.mxu0 %v473
      %984 = vmatmul.mubr.bf16.gmra.mrb[0].mxu0 %v472
      %v985 = vpop.f32.mrb[0].mxu0
      %v986 = vadd.f32 0.0, %v985
      %v987 = vpop.f32.mrb[0].mxu0
      %v988 = vpop.f32.mrb[0].mxu0
      %v989 = vadd.f32 0.0, %v988
      %v990 = vpop.f32.mrb[0].mxu0
      %991 = vmatprep.mubr.bf16.mxu0 %v475
      %992 = vmatmul.mubr.bf16.gmra.mrb[0].mxu0 %v474
      %v993 = vpop.f32.mrb[0].mxu0
      %v994 = vadd.f32 0.0, %v993
      %v995 = vpop.f32.mrb[0].mxu0
      %v996 = vpop.f32.mrb[0].mxu0
      %v997 = vadd.f32 0.0, %v996
      %v998 = vpop.f32.mrb[0].mxu0
      %999 = vmatprep.mubr.bf16.mxu0 %v477
      %1000 = vmatmul.mubr.bf16.gmra.mrb[0].mxu0 %v476
      %v1001 = vpop.f32.mrb[0].mxu0
      %v1002 = vadd.f32 0.0, %v1001
      %v1003 = vpop.f32.mrb[0].mxu0
      %v1004 = vpop.f32.mrb[0].mxu0
      %v1005 = vadd.f32 0.0, %v1004
      %v1006 = vpop.f32.mrb[0].mxu0
      %1007 = vdwg.mxu0
      %v1008 = vpack.c.bf16 %v837, %v833
      %v1009 = vpack.c.bf16 %v839, %v835
      %v1010 = vpack.c.bf16 %v949, %v946
      %v1011 = vpack.c.bf16 %v847, %v843
      %v1012 = vpack.c.bf16 %v849, %v845
      %v1013 = vpack.c.bf16 %v957, %v954
      %v1014 = vpack.c.bf16 %v857, %v853
      %v1015 = vpack.c.bf16 %v859, %v855
      %v1016 = vpack.c.bf16 %v965, %v962
      %v1017 = vpack.c.bf16 %v867, %v863
      %v1018 = vpack.c.bf16 %v869, %v865
      %v1019 = vpack.c.bf16 %v973, %v970
      %v1020 = vpack.c.bf16 %v877, %v873
      %v1021 = vpack.c.bf16 %v879, %v875
      %v1022 = vpack.c.bf16 %v981, %v978
      %v1023 = vpack.c.bf16 %v887, %v883
      %v1024 = vpack.c.bf16 %v889, %v885
      %v1025 = vpack.c.bf16 %v989, %v986
      %v1026 = vpack.c.bf16 %v897, %v893
      %v1027 = vpack.c.bf16 %v899, %v895
      %v1028 = vpack.c.bf16 %v997, %v994
      %v1029 = vpack.c.bf16 %v907, %v903
      %v1030 = vpack.c.bf16 %v909, %v905
      %v1031 = vpack.c.bf16 %v1005, %v1002
      %v1056 = vunpack.c.l.b16 %v1008
      %v1057 = vunpack.c.l.b16 %v1009
      %v1058 = vunpack.c.l.b16 %v1010
      %v1059 = vunpack.c.h.b16 %v1008
      %v1060 = vunpack.c.h.b16 %v1009
      %v1061 = vunpack.c.h.b16 %v1010
      %v1062 = vunpack.c.l.b16 %v1011
      %v1063 = vunpack.c.l.b16 %v1012
      %v1064 = vunpack.c.l.b16 %v1013
      %v1065 = vunpack.c.h.b16 %v1011
      %v1066 = vunpack.c.h.b16 %v1012
      %v1067 = vunpack.c.h.b16 %v1013
      %v1068 = vunpack.c.l.b16 %v1014
      %v1069 = vunpack.c.l.b16 %v1015
      %v1070 = vunpack.c.l.b16 %v1016
      %v1071 = vunpack.c.h.b16 %v1014
      %v1072 = vunpack.c.h.b16 %v1015
      %v1073 = vunpack.c.h.b16 %v1016
      %v1074 = vunpack.c.l.b16 %v1017
      %v1075 = vunpack.c.l.b16 %v1018
      %v1076 = vunpack.c.l.b16 %v1019
      %v1077 = vunpack.c.h.b16 %v1017
      %v1078 = vunpack.c.h.b16 %v1018
      %v1079 = vunpack.c.h.b16 %v1019
      %v1080 = vunpack.c.l.b16 %v1020
      %v1081 = vunpack.c.l.b16 %v1021
      %v1082 = vunpack.c.l.b16 %v1022
      %v1083 = vunpack.c.h.b16 %v1020
      %v1084 = vunpack.c.h.b16 %v1021
      %v1085 = vunpack.c.h.b16 %v1022
      %v1086 = vunpack.c.l.b16 %v1023
      %v1087 = vunpack.c.l.b16 %v1024
      %v1088 = vunpack.c.l.b16 %v1025
      %v1089 = vunpack.c.h.b16 %v1023
      %v1090 = vunpack.c.h.b16 %v1024
      %v1091 = vunpack.c.h.b16 %v1025
      %v1092 = vunpack.c.l.b16 %v1026
      %v1093 = vunpack.c.l.b16 %v1027
      %v1094 = vunpack.c.l.b16 %v1028
      %v1095 = vunpack.c.h.b16 %v1026
      %v1096 = vunpack.c.h.b16 %v1027
      %v1097 = vunpack.c.h.b16 %v1028
      %v1098 = vunpack.c.l.b16 %v1029
      %v1099 = vunpack.c.l.b16 %v1030
      %v1100 = vunpack.c.l.b16 %v1031
      %v1101 = vunpack.c.h.b16 %v1029
      %v1102 = vunpack.c.h.b16 %v1030
      %v1103 = vunpack.c.h.b16 %v1031
      %v1104 = vpack.c.b16 %v1057, %v1056
      %v1105 = vpack.c.b16 %v1058, %v1058
      %v1106 = vpack.c.b16 %v1060, %v1059
      %v1107 = vpack.c.b16 %v1061, %v1061
      %v1108 = vpack.c.b16 %v1063, %v1062
      %v1109 = vpack.c.b16 %v1064, %v1064
      %v1110 = vpack.c.b16 %v1066, %v1065
      %v1111 = vpack.c.b16 %v1067, %v1067
      %v1112 = vpack.c.b16 %v1069, %v1068
      %v1113 = vpack.c.b16 %v1070, %v1070
      %v1114 = vpack.c.b16 %v1072, %v1071
      %v1115 = vpack.c.b16 %v1073, %v1073
      %v1116 = vpack.c.b16 %v1075, %v1074
      %v1117 = vpack.c.b16 %v1076, %v1076
      %v1118 = vpack.c.b16 %v1078, %v1077
      %v1119 = vpack.c.b16 %v1079, %v1079
      %v1120 = vpack.c.b16 %v1081, %v1080
      %v1121 = vpack.c.b16 %v1082, %v1082
      %v1122 = vpack.c.b16 %v1084, %v1083
      %v1123 = vpack.c.b16 %v1085, %v1085
      %v1124 = vpack.c.b16 %v1087, %v1086
      %v1125 = vpack.c.b16 %v1088, %v1088
      %v1126 = vpack.c.b16 %v1090, %v1089
      %v1127 = vpack.c.b16 %v1091, %v1091
      %v1128 = vpack.c.b16 %v1093, %v1092
      %v1129 = vpack.c.b16 %v1094, %v1094
      %v1130 = vpack.c.b16 %v1096, %v1095
      %v1131 = vpack.c.b16 %v1097, %v1097
      %v1132 = vpack.c.b16 %v1099, %v1098
      %v1133 = vpack.c.b16 %v1100, %v1100
      %v1134 = vpack.c.b16 %v1102, %v1101
      %v1135 = vpack.c.b16 %v1103, %v1103
      %1168 = vst [vmem:[%s221] sm:$0xff] %v1104
      %vm1169 = vcmask 257024
      %1170 = vst.msk [vmem:[%s221 + $0x8] sm:$0xf] %vm1169, %v1105
      %1171 = vst [vmem:[%s221 + $0xc] sm:$0xff] %v1106
      %1172 = vst.msk [vmem:[%s221 + $0x14] sm:$0xf] %vm1169, %v1107
      %1173 = vst [vmem:[%s221 + $0x18] sm:$0xff] %v1108
      %1174 = vst.msk [vmem:[%s221 + $0x20] sm:$0xf] %vm1169, %v1109
      %1175 = vst [vmem:[%s221 + $0x24] sm:$0xff] %v1110
      %1176 = vst.msk [vmem:[%s221 + $0x2c] sm:$0xf] %vm1169, %v1111
      %1177 = vst [vmem:[%s221 + $0x30] sm:$0xff] %v1112
      %1178 = vst.msk [vmem:[%s221 + $0x38] sm:$0xf] %vm1169, %v1113
      %1179 = vst [vmem:[%s221 + $0x3c] sm:$0xff] %v1114
      %1180 = vst.msk [vmem:[%s221 + $0x44] sm:$0xf] %vm1169, %v1115
      %1181 = vst [vmem:[%s221 + $0x48] sm:$0xff] %v1116
      %1182 = vst.msk [vmem:[%s221 + $0x50] sm:$0xf] %vm1169, %v1117
      %1183 = vst [vmem:[%s221 + $0x54] sm:$0xff] %v1118
      %1184 = vst.msk [vmem:[%s221 + $0x5c] sm:$0xf] %vm1169, %v1119
      %1185 = vst [vmem:[%s221 + $0x60] sm:$0xff] %v1120
      %1186 = vst.msk [vmem:[%s221 + $0x68] sm:$0xf] %vm1169, %v1121
      %1187 = vst [vmem:[%s221 + $0x6c] sm:$0xff] %v1122
      %1188 = vst.msk [vmem:[%s221 + $0x74] sm:$0xf] %vm1169, %v1123
      %1189 = vst [vmem:[%s221 + $0x78] sm:$0xff] %v1124
      %1190 = vst.msk [vmem:[%s221 + $0x80] sm:$0xf] %vm1169, %v1125
      %1191 = vst [vmem:[%s221 + $0x84] sm:$0xff] %v1126
      %1192 = vst.msk [vmem:[%s221 + $0x8c] sm:$0xf] %vm1169, %v1127
      %1193 = vst [vmem:[%s221 + $0x90] sm:$0xff] %v1128
      %1194 = vst.msk [vmem:[%s221 + $0x98] sm:$0xf] %vm1169, %v1129
      %1195 = vst [vmem:[%s221 + $0x9c] sm:$0xff] %v1130
      %1196 = vst.msk [vmem:[%s221 + $0xa4] sm:$0xf] %vm1169, %v1131
      %1197 = vst [vmem:[%s221 + $0xa8] sm:$0xff] %v1132
      %1198 = vst.msk [vmem:[%s221 + $0xb0] sm:$0xf] %vm1169, %v1133
      %1199 = vst [vmem:[%s221 + $0xb4] sm:$0xff] %v1134
      %1200 = vst.msk [vmem:[%s221 + $0xbc] sm:$0xf] %vm1169, %v1135
      %s1201 = smul.u32 16, %s18
      %s1202 = smul.u32 3, %s19
      %p1203 = scmp.lt.s32.totalorder %s1201, 31
      %s1204 = scalar_select %p1203, %s1201, 31
      %p1205 = scmp.lt.s32.totalorder %s1202, 2
      %s1206 = scalar_select %p1205, %s1202, 2
      %s1207 = smul.addr %s1204, 3
      %s1208 = sadd.s32 %s1206, %s1207
      %s1209 = smul.addr %s1208, 4
      %s1210 = scalar_lea.vmem %s3, %s1209
      // Predicated region
      $region33: #{_lambda_.6} parent=31 // pred_check
        %p1211 = pneg %p119
      $region34: #{_lambda_.6} parent=31 // pred_check_branch
        %1213 = sbr.rel (%p1211) target = $region36
      $region35: #{_lambda_.6} parent=31 // pred_region
        %s1214 = smul.u32 16, %s18
        %s1215 = smul.u32 3, %s19
      $region36: #{_lambda_.6} parent=31 // pred_fallthru
        _
    $region32: #{_lambda_.6} parent=5 // pred_fallthru
      _
    %p1216 = scmp.le.s32.totalorder 2, %s9
    // Predicated region
    $region37: #{_lambda_.6} parent=5 // pred_check
      %p1217 = pneg %p1216
    $region38: #{_lambda_.6} parent=5 // pred_check_branch
      %1219 = sbr.rel (%p1217) target = $region40
    $region39: #{_lambda_.6} parent=5 // pred_region
      %s1220 = ssub.s32 %s9, 2
      // Predicated region
      $region41: #{_lambda_.6} parent=39 // pred_check
        %p1221 = pneg %p125
      $region42: #{_lambda_.6} parent=39 // pred_check_branch
        %1223 = sbr.rel (%p1221) target = $region44
      $region43: #{_lambda_.6} parent=39 // pred_region
        %s1224 = smul.u32 16, %s20
        %s1225 = smul.u32 3, %s21
        %p1226 = scmp.lt.s32.totalorder %s1224, 31
        %s1227 = scalar_select %p1226, %s1224, 31
        %p1228 = scmp.lt.s32.totalorder %s1225, 2
        %s1229 = scalar_select %p1228, %s1225, 2
        %s1230 = smul.addr %s1227, 3
        %s1231 = sadd.s32 %s1229, %s1230
        %s1232 = smul.addr %s1231, 4
        %s1233 = scalar_lea.vmem %s3, %s1232
      $region44: #{_lambda_.6} parent=39 // pred_fallthru
        _
    $region40: #{_lambda_.6} parent=5 // pred_fallthru
      _
  $region6: #{_lambda_.6} parent=0 // loop_footer
    %s13 = sadd.s32 1, %s9
  $region7: #{_lambda_.6} parent=0 // loop_footer_branch
    %8 = sbr.rel target = $region3
  $region8: #{_lambda_.6} parent=0 // loop_exit
    _

// kernel: _lambda_.7
$region0: #{_lambda_.7}
  #allocation0 [shape = 'u32[]', space=smem, size = 0x4, offset = 0x4, fixed_abs, tag = 'smem constant byte address 0x4 - core index']
  #allocation1 [shape = 'u32[144,128]{1,0:T(1,128)}', space=vmem, size = 0x12000, scoped, tag = 'internal scratch']
  %s0 = inlined_call_operand.vmem [shape: bf16[256,128], index: 0, kind: input, shape index: {}]
  %s1 = inlined_call_operand.vmem [shape: f32[1,128], index: 1, kind: input, shape index: {}]
  %s2 = inlined_call_operand.vmem [shape: bf16[2,128,96], index: 2, kind: input, shape index: {}]
  %s3 = inlined_call_operand.vmem [shape: bf16[2,256,96], index: 3, kind: output, shape index: {}]
  %s4 = sld [smem:[#allocation0]]
  $region45: #{_lambda_.7} parent=0
    _
  %s6 = ssub.s32 1, %s4
  %s7 = scalar_select 0, %s6, %s4
  loop: start=0, step=1, limit=6
  $region2: #{_lambda_.7} parent=0 // loop_pre_header
    _
  $region3: #{_lambda_.7} parent=0 // loop_header
    %s9 = sphi 0, %s13
    %p10 = scmp.ge.s32.totalorder %s9, 6
    %s16 = sphi 0, %s28
    %s17 = sphi 0, %s24
    %s18 = sphi 0, %s16
    %s19 = sphi 0, %s17
    %s20 = sphi 0, %s18
    %s21 = sphi 0, %s19
    %s31 = sphi 0, %s33
    %s34 = sphi 0, %s31
    %s35 = sphi 0, %s34
    %s51 = sphi 0, %s35
    %s55 = sphi 0, %s55
    %s57 = sphi 0, %s55
    %s58 = sphi 0, %s57
    %s72 = sphi 0, %s58
    %s78 = sphi 0, %s80
    %s81 = sphi 0, %s78
    %s82 = sphi 0, %s81
    %s98 = sphi 0, %s82
    %s106 = sphi 0, %s108
    %s109 = sphi 0, %s106
    %s110 = sphi 0, %s109
    %s126 = sphi 0, %s110
  $region4: #{_lambda_.7} parent=0 // loop_header_branch
    %12 = sbr.rel (%p10) target = $region8
  $region5: #{_lambda_.7} parent=0 // loop_body
    %s14 = ssub.s32 %s9, 1
    %s15 = ssub.s32 %s9, 2
    %s22 = sadd.s32 1, %s17
    %p23 = scmp.ge.s32.totalorder %s22, 2
    %s24 = scalar_select %p23, 0, %s22
    %s25 = sadd.s32 1, %s16
    %s26 = scalar_select %p23, %s25, %s16
    %p27 = scmp.ge.s32.totalorder %s26, 2
    %s28 = scalar_select %p27, 0, %s26
    %s29 = ssub.s32 %s17, %s24
    %p30 = scmp.eq.s32.totalorder %s29, 0
    %s32 = sadd.s32 %s31, 1
    %s33 = scalar_select %p30, %s31, %s32
    %p36 = pneg %p30
    %p37 = scmp.eq.s32.totalorder %s9, 3
    %p38 = por %p36, %p37
    %p39 = scmp.ne.s32.totalorder %s31, %s34
    %p40 = scmp.eq.s32.totalorder %s9, 0
    %p41 = por %p39, %p40
    %p42 = scmp.ne.s32.totalorder %s31, %s34
    %p43 = scmp.eq.s32.totalorder %s14, 3
    %p44 = por %p42, %p43
    %p45 = scmp.ne.s32.totalorder %s34, %s35
    %p46 = scmp.eq.s32.totalorder %s14, 0
    %p47 = por %p45, %p46
    %p48 = scmp.ne.s32.totalorder %s34, %s35
    %p49 = scmp.eq.s32.totalorder %s15, 3
    %p50 = por %p48, %p49
    %p52 = scmp.ne.s32.totalorder %s35, %s51
    %p53 = scmp.eq.s32.totalorder %s15, 0
    %p54 = por %p52, %p53
    %s56 = sadd.s32 %s55, 1
    %p59 = scmp.eq.s32.totalorder %s9, 3
    %p60 = scmp.ne.s32.totalorder %s55, %s57
    %p61 = scmp.eq.s32.totalorder %s9, 0
    %p62 = por %p60, %p61
    %p63 = scmp.ne.s32.totalorder %s55, %s57
    %p64 = scmp.eq.s32.totalorder %s14, 3
    %p65 = por %p63, %p64
    %p66 = scmp.ne.s32.totalorder %s57, %s58
    %p67 = scmp.eq.s32.totalorder %s14, 0
    %p68 = por %p66, %p67
    %p69 = scmp.ne.s32.totalorder %s57, %s58
    %p70 = scmp.eq.s32.totalorder %s15, 3
    %p71 = por %p69, %p70
    %p73 = scmp.ne.s32.totalorder %s58, %s72
    %p74 = scmp.eq.s32.totalorder %s15, 0
    %p75 = por %p73, %p74
    %s76 = ssub.s32 %s16, %s28
    %p77 = scmp.eq.s32.totalorder %s76, 0
    %s79 = sadd.s32 %s78, 1
    %s80 = scalar_select %p77, %s78, %s79
    %p83 = pneg %p77
    %p84 = scmp.eq.s32.totalorder %s9, 3
    %p85 = por %p83, %p84
    %p86 = scmp.ne.s32.totalorder %s78, %s81
    %p87 = scmp.eq.s32.totalorder %s9, 0
    %p88 = por %p86, %p87
    %p89 = scmp.ne.s32.totalorder %s78, %s81
    %p90 = scmp.eq.s32.totalorder %s14, 3
    %p91 = por %p89, %p90
    %p92 = scmp.ne.s32.totalorder %s81, %s82
    %p93 = scmp.eq.s32.totalorder %s14, 0
    %p94 = por %p92, %p93
    %p95 = scmp.ne.s32.totalorder %s81, %s82
    %p96 = scmp.eq.s32.totalorder %s15, 3
    %p97 = por %p95, %p96
    %p99 = scmp.ne.s32.totalorder %s82, %s98
    %p100 = scmp.eq.s32.totalorder %s15, 0
    %p101 = por %p99, %p100
    %s102 = ssub.s32 %s16, %s28
    %s103 = ssub.s32 %s17, %s24
    %s104 = sor.u32 %s102, %s103
    %p105 = scmp.eq.s32.totalorder %s104, 0
    %s107 = sadd.s32 %s106, 1
    %s108 = scalar_select %p105, %s106, %s107
    %p111 = pneg %p105
    %p112 = scmp.eq.s32.totalorder %s9, 3
    %p113 = por %p111, %p112
    %p114 = scmp.ne.s32.totalorder %s106, %s109
    %p115 = scmp.eq.s32.totalorder %s9, 0
    %p116 = por %p114, %p115
    %p117 = scmp.ne.s32.totalorder %s106, %s109
    %p118 = scmp.eq.s32.totalorder %s14, 3
    %p119 = por %p117, %p118
    %p120 = scmp.ne.s32.totalorder %s109, %s110
    %p121 = scmp.eq.s32.totalorder %s14, 0
    %p122 = por %p120, %p121
    %p123 = scmp.ne.s32.totalorder %s109, %s110
    %p124 = scmp.eq.s32.totalorder %s15, 3
    %p125 = por %p123, %p124
    %p127 = scmp.ne.s32.totalorder %s110, %s126
    %p128 = scmp.eq.s32.totalorder %s15, 0
    %p129 = por %p127, %p128
    %p130 = scmp.le.s32.totalorder 1, %s9
    %p131 = scmp.lt.s32.totalorder %s9, 5
    %p132 = pnand %p130, %p131
    %p133 = pneg %p132
    // Predicated region
    $region9: #{_lambda_.7} parent=5 // pred_check
      _
    $region10: #{_lambda_.7} parent=5 // pred_check_branch
      %135 = sbr.rel (%p132) target = $region12
    $region11: #{_lambda_.7} parent=5 // pred_region
      %s136 = ssub.s32 %s9, 1
      // Predicated region
      $region13: #{_lambda_.7} parent=11 // pred_check
        %p137 = pneg %p68
      $region14: #{_lambda_.7} parent=11 // pred_check_branch
        %139 = sbr.rel (%p137) target = $region16
      $region15: #{_lambda_.7} parent=11 // pred_region
        _
      $region16: #{_lambda_.7} parent=11 // pred_fallthru
        _
    $region12: #{_lambda_.7} parent=5 // pred_fallthru
      _
    %p140 = scmp.lt.s32.totalorder %s9, 4
    // Predicated region
    $region17: #{_lambda_.7} parent=5 // pred_check
      %p141 = pneg %p140
    $region18: #{_lambda_.7} parent=5 // pred_check_branch
      %143 = sbr.rel (%p141) target = $region20
    $region19: #{_lambda_.7} parent=5 // pred_region
      // Predicated region
      $region21: #{_lambda_.7} parent=19 // pred_check
        %p144 = pneg %p41
      $region22: #{_lambda_.7} parent=19 // pred_check_branch
        %146 = sbr.rel (%p144) target = $region24
      $region23: #{_lambda_.7} parent=19 // pred_region
        %s147 = smul.u32 16, %s17
        %p148 = scmp.lt.s32.totalorder %s147, 31
        %s149 = scalar_select %p148, %s147, 31
        %s150 = smul.addr %s149, 4
        %s151 = scalar_lea.vmem %s0, %s150
        %s152 = smul.u32 16, %s17
      $region24: #{_lambda_.7} parent=19 // pred_fallthru
        _
      // Predicated region
      $region25: #{_lambda_.7} parent=19 // pred_check
        %p153 = pneg %p88
      $region26: #{_lambda_.7} parent=19 // pred_check_branch
        %155 = sbr.rel (%p153) target = $region28
      $region27: #{_lambda_.7} parent=19 // pred_region
        %p156 = scmp.lt.s32.totalorder %s16, 1
        %s157 = scalar_select %p156, %s16, 1
        %s158 = smul.addr %s157, 16
        %s159 = smul.addr %s158, 4
        %s160 = scalar_lea.vmem %s2, %s159
      $region28: #{_lambda_.7} parent=19 // pred_fallthru
        _
    $region20: #{_lambda_.7} parent=5 // pred_fallthru
      _
    %p161 = scmp.le.s32.totalorder 1, %s9
    %p162 = scmp.lt.s32.totalorder %s9, 5
    %p163 = pnand %p161, %p162
    %p164 = pneg %p163
    // Predicated region
    $region29: #{_lambda_.7} parent=5 // pred_check
      _
    $region30: #{_lambda_.7} parent=5 // pred_check_branch
      %166 = sbr.rel (%p163) target = $region32
    $region31: #{_lambda_.7} parent=5 // pred_region
      %s167 = ssub.s32 %s9, 1
      %s168 = smul.u32 16, %s19
      %p169 = scmp.lt.s32.totalorder %s168, 31
      %s170 = scalar_select %p169, %s168, 31
      %s171 = smul.addr %s170, 4
      %s172 = scalar_lea.vmem %s0, %s171
      %p173 = pneg %p47
      %p174 = pneg %p44
      %p175 = pneg %p68
      %p176 = pneg %p65
      %p177 = scmp.lt.s32.totalorder %s18, 1
      %s178 = scalar_select %p177, %s18, 1
      %s179 = smul.addr %s178, 16
      %s180 = smul.addr %s179, 4
      %s181 = scalar_lea.vmem %s2, %s180
      %p182 = pneg %p94
      %p183 = pneg %p91
      %p184 = pneg %p122
      %p185 = pneg %p119
      %s186 = smul.u32 16, %s19
      %p187 = scmp.lt.s32.totalorder %s18, 1
      %s188 = scalar_select %p187, %s18, 1
      %p189 = scmp.lt.s32.totalorder %s186, 31
      %s190 = scalar_select %p189, %s186, 31
      %s191 = smul.addr %s188, 32
      %s192 = sadd.s32 %s190, %s191
      %s193 = smul.addr %s192, 4
      %s194 = scalar_lea.vmem %s3, %s193
      %s195 = smul.u32 16, %s19
      %p196 = scmp.lt.s32.totalorder %s195, 31
      %s197 = scalar_select %p196, %s195, 31
      %s198 = smul.addr %s197, 4
      %s199 = scalar_lea.vmem %s0, %s198
      %s200 = smul.u32 16, %s19
      %p201 = scmp.lt.s32.totalorder %s18, 1
      %s202 = scalar_select %p201, %s18, 1
      %s203 = smul.addr %s202, 16
      %s204 = smul.addr %s203, 4
      %s205 = scalar_lea.vmem %s2, %s204
      %s206 = smul.u32 16, %s19
      %p207 = scmp.lt.s32.totalorder %s18, 1
      %s208 = scalar_select %p207, %s18, 1
      %p209 = scmp.lt.s32.totalorder %s206, 31
      %s210 = scalar_select %p209, %s206, 31
      %s211 = smul.addr %s208, 32
      %s212 = sadd.s32 %s210, %s211
      %s213 = smul.addr %s212, 4
      %s214 = scalar_lea.vmem %s3, %s213
      %s215 = smul.u32 16, %s19
      %v217 = vld [vmem:[%s199] sm:$0xf]
      %v218 = vld [vmem:[%s199 + $0x4] sm:$0xf]
      %v219 = vld [vmem:[%s199 + $0x8] sm:$0xf]
      %v220 = vld [vmem:[%s199 + $0xc] sm:$0xf]
      %v221 = vld [vmem:[%s199 + $0x10] sm:$0xf]
      %v222 = vld [vmem:[%s199 + $0x14] sm:$0xf]
      %v223 = vld [vmem:[%s199 + $0x18] sm:$0xf]
      %v224 = vld [vmem:[%s199 + $0x1c] sm:$0xf]
      %v225 = vld [vmem:[%s199 + $0x20] sm:$0xf]
      %v226 = vld [vmem:[%s199 + $0x24] sm:$0xf]
      %v227 = vld [vmem:[%s199 + $0x28] sm:$0xf]
      %v228 = vld [vmem:[%s199 + $0x2c] sm:$0xf]
      %v229 = vld [vmem:[%s199 + $0x30] sm:$0xf]
      %v230 = vld [vmem:[%s199 + $0x34] sm:$0xf]
      %v231 = vld [vmem:[%s199 + $0x38] sm:$0xf]
      %v232 = vld [vmem:[%s199 + $0x3c] sm:$0xf]
      %v233 = vunpack.c.l.bf16 %v217
      %v234 = vunpack.c.l.bf16 %v218
      %v235 = vunpack.c.l.bf16 %v219
      %v236 = vunpack.c.l.bf16 %v220
      %v237 = vunpack.c.l.bf16 %v221
      %v238 = vunpack.c.l.bf16 %v222
      %v239 = vunpack.c.l.bf16 %v223
      %v240 = vunpack.c.l.bf16 %v224
      %v241 = vunpack.c.l.bf16 %v225
      %v242 = vunpack.c.l.bf16 %v226
      %v243 = vunpack.c.l.bf16 %v227
      %v244 = vunpack.c.l.bf16 %v228
      %v245 = vunpack.c.l.bf16 %v229
      %v246 = vunpack.c.l.bf16 %v230
      %v247 = vunpack.c.l.bf16 %v231
      %v248 = vunpack.c.l.bf16 %v232
      %v249 = vmul.f32 %v233, %v233
      %v250 = vmul.f32 %v234, %v234
      %v251 = vmul.f32 %v235, %v235
      %v252 = vmul.f32 %v236, %v236
      %v253 = vmul.f32 %v237, %v237
      %v254 = vmul.f32 %v238, %v238
      %v255 = vmul.f32 %v239, %v239
      %v256 = vmul.f32 %v240, %v240
      %v257 = vmul.f32 %v241, %v241
      %v258 = vmul.f32 %v242, %v242
      %v259 = vmul.f32 %v243, %v243
      %v260 = vmul.f32 %v244, %v244
      %v261 = vmul.f32 %v245, %v245
      %v262 = vmul.f32 %v246, %v246
      %v263 = vmul.f32 %v247, %v247
      %v264 = vmul.f32 %v248, %v248
      %265 = vadd.xlane.f32.xlu0 %v249
      %v266 = vpop.xlane.xlu0 %265
      %267 = vadd.xlane.f32.xlu0 %v250
      %v268 = vpop.xlane.xlu0 %267
      %269 = vadd.xlane.f32.xlu0 %v251
      %v270 = vpop.xlane.xlu0 %269
      %271 = vadd.xlane.f32.xlu0 %v252
      %v272 = vpop.xlane.xlu0 %271
      %273 = vadd.xlane.f32.xlu0 %v253
      %v274 = vpop.xlane.xlu0 %273
      %275 = vadd.xlane.f32.xlu0 %v254
      %v276 = vpop.xlane.xlu0 %275
      %277 = vadd.xlane.f32.xlu0 %v255
      %v278 = vpop.xlane.xlu0 %277
      %279 = vadd.xlane.f32.xlu0 %v256
      %v280 = vpop.xlane.xlu0 %279
      %281 = vadd.xlane.f32.xlu0 %v257
      %v282 = vpop.xlane.xlu0 %281
      %283 = vadd.xlane.f32.xlu0 %v258
      %v284 = vpop.xlane.xlu0 %283
      %285 = vadd.xlane.f32.xlu0 %v259
      %v286 = vpop.xlane.xlu0 %285
      %287 = vadd.xlane.f32.xlu0 %v260
      %v288 = vpop.xlane.xlu0 %287
      %289 = vadd.xlane.f32.xlu0 %v261
      %v290 = vpop.xlane.xlu0 %289
      %291 = vadd.xlane.f32.xlu0 %v262
      %v292 = vpop.xlane.xlu0 %291
      %293 = vadd.xlane.f32.xlu0 %v263
      %v294 = vpop.xlane.xlu0 %293
      %295 = vadd.xlane.f32.xlu0 %v264
      %v296 = vpop.xlane.xlu0 %295
      %v297 = vrcp.pop 128.0
      %v298 = vmul.f32 %v266, %v297
      %v299 = vmul.f32 %v268, %v297
      %v300 = vmul.f32 %v270, %v297
      %v301 = vmul.f32 %v272, %v297
      %v302 = vmul.f32 %v274, %v297
      %v303 = vmul.f32 %v276, %v297
      %v304 = vmul.f32 %v278, %v297
      %v305 = vmul.f32 %v280, %v297
      %v306 = vmul.f32 %v282, %v297
      %v307 = vmul.f32 %v284, %v297
      %v308 = vmul.f32 %v286, %v297
      %v309 = vmul.f32 %v288, %v297
      %v310 = vmul.f32 %v290, %v297
      %v311 = vmul.f32 %v292, %v297
      %v312 = vmul.f32 %v294, %v297
      %v313 = vmul.f32 %v296, %v297
      %v314 = vadd.f32 %v298, 1e-06
      %v315 = vadd.f32 %v299, 1e-06
      %v316 = vadd.f32 %v300, 1e-06
      %v317 = vadd.f32 %v301, 1e-06
      %v318 = vadd.f32 %v302, 1e-06
      %v319 = vadd.f32 %v303, 1e-06
      %v320 = vadd.f32 %v304, 1e-06
      %v321 = vadd.f32 %v305, 1e-06
      %v322 = vadd.f32 %v306, 1e-06
      %v323 = vadd.f32 %v307, 1e-06
      %v324 = vadd.f32 %v308, 1e-06
      %v325 = vadd.f32 %v309, 1e-06
      %v326 = vadd.f32 %v310, 1e-06
      %v327 = vadd.f32 %v311, 1e-06
      %v328 = vadd.f32 %v312, 1e-06
      %v329 = vadd.f32 %v313, 1e-06
      %v330 = vrsqrt.pop %v314
      %v331 = vrsqrt.pop %v315
      %v332 = vrsqrt.pop %v316
      %v333 = vrsqrt.pop %v317
      %v334 = vrsqrt.pop %v318
      %v335 = vrsqrt.pop %v319
      %v336 = vrsqrt.pop %v320
      %v337 = vrsqrt.pop %v321
      %v338 = vrsqrt.pop %v322
      %v339 = vrsqrt.pop %v323
      %v340 = vrsqrt.pop %v324
      %v341 = vrsqrt.pop %v325
      %v342 = vrsqrt.pop %v326
      %v343 = vrsqrt.pop %v327
      %v344 = vrsqrt.pop %v328
      %v345 = vrsqrt.pop %v329
      %v346 = vmul.f32 %v233, %v330
      %v347 = vmul.f32 %v234, %v331
      %v348 = vmul.f32 %v235, %v332
      %v349 = vmul.f32 %v236, %v333
      %v350 = vmul.f32 %v237, %v334
      %v351 = vmul.f32 %v238, %v335
      %v352 = vmul.f32 %v239, %v336
      %v353 = vmul.f32 %v240, %v337
      %v354 = vmul.f32 %v241, %v338
      %v355 = vmul.f32 %v242, %v339
      %v356 = vmul.f32 %v243, %v340
      %v357 = vmul.f32 %v244, %v341
      %v358 = vmul.f32 %v245, %v342
      %v359 = vmul.f32 %v246, %v343
      %v360 = vmul.f32 %v247, %v344
      %v361 = vmul.f32 %v248, %v345
      %v362 = vld [vmem:[%s1] sm:$0x1]
      %v364 = vlaneseq
      %v365 = vshrl.u32 %v364, 7
      %v366 = vsub.s32 0, %v365
      %v367 = vrot.slane %v362, %v366
      %v369 = vmul.f32 %v346, %v367
      %v370 = vmul.f32 %v347, %v367
      %v371 = vmul.f32 %v348, %v367
      %v372 = vmul.f32 %v349, %v367
      %v373 = vmul.f32 %v350, %v367
      %v374 = vmul.f32 %v351, %v367
      %v375 = vmul.f32 %v352, %v367
      %v376 = vmul.f32 %v353, %v367
      %v377 = vmul.f32 %v354, %v367
      %v378 = vmul.f32 %v355, %v367
      %v379 = vmul.f32 %v356, %v367
      %v380 = vmul.f32 %v357, %v367
      %v381 = vmul.f32 %v358, %v367
      %v382 = vmul.f32 %v359, %v367
      %v383 = vmul.f32 %v360, %v367
      %v384 = vmul.f32 %v361, %v367
      %v385 = vpack.c.bf16 %v370, %v369
      %v386 = vpack.c.bf16 %v372, %v371
      %v387 = vpack.c.bf16 %v374, %v373
      %v388 = vpack.c.bf16 %v376, %v375
      %v389 = vpack.c.bf16 %v378, %v377
      %v390 = vpack.c.bf16 %v380, %v379
      %v391 = vpack.c.bf16 %v382, %v381
      %v392 = vpack.c.bf16 %v384, %v383
      %v393 = vld [vmem:[%s205] sm:$0xf]
      %v394 = vld [vmem:[%s205 + $0x4] sm:$0xf]
      %v395 = vld [vmem:[%s205 + $0x8] sm:$0xf]
      %v396 = vld [vmem:[%s205 + $0xc] sm:$0xf]
      %v397 = vld [vmem:[%s205 + $0x10] sm:$0xf]
      %v398 = vld [vmem:[%s205 + $0x14] sm:$0xf]
      %v399 = vld [vmem:[%s205 + $0x18] sm:$0xf]
      %v400 = vld [vmem:[%s205 + $0x1c] sm:$0xf]
      %v401 = vld [vmem:[%s205 + $0x20] sm:$0xf]
      %v402 = vld [vmem:[%s205 + $0x24] sm:$0xf]
      %v403 = vld [vmem:[%s205 + $0x28] sm:$0xf]
      %v404 = vld [vmem:[%s205 + $0x2c] sm:$0xf]
      %v405 = vld [vmem:[%s205 + $0x30] sm:$0xf]
      %v406 = vld [vmem:[%s205 + $0x34] sm:$0xf]
      %v407 = vld [vmem:[%s205 + $0x38] sm:$0xf]
      %v408 = vld [vmem:[%s205 + $0x3c] sm:$0xf]
      %v425 = vunpack.c.l.b16 %v393
      %v426 = vunpack.c.l.b16 %v394
      %v427 = vunpack.c.l.b16 %v395
      %v428 = vunpack.c.l.b16 %v396
      %v429 = vunpack.c.l.b16 %v397
      %v430 = vunpack.c.l.b16 %v398
      %v431 = vunpack.c.l.b16 %v399
      %v432 = vunpack.c.l.b16 %v400
      %v433 = vunpack.c.l.b16 %v401
      %v434 = vunpack.c.l.b16 %v402
      %v435 = vunpack.c.l.b16 %v403
      %v436 = vunpack.c.l.b16 %v404
      %v437 = vunpack.c.l.b16 %v405
      %v438 = vunpack.c.l.b16 %v406
      %v439 = vunpack.c.l.b16 %v407
      %v440 = vunpack.c.l.b16 %v408
      %v441 = vpack.c.b16 %v426, %v425
      %v442 = vpack.c.b16 %v428, %v427
      %v443 = vpack.c.b16 %v430, %v429
      %v444 = vpack.c.b16 %v432, %v431
      %v445 = vpack.c.b16 %v434, %v433
      %v446 = vpack.c.b16 %v436, %v435
      %v447 = vpack.c.b16 %v438, %v437
      %v448 = vpack.c.b16 %v440, %v439
      %457 = vmatprep.subr.bf16.mxu0 0
      %458 = vmatpush1.bf16.msra.mxu0 %v441
      %459 = vmatprep.subr.bf16.mxu0 0
      %460 = vmatpush1.bf16.msra.mxu0 %v442
      %461 = vmatprep.subr.bf16.mxu0 0
      %462 = vmatpush1.bf16.msra.mxu0 %v443
      %463 = vmatprep.subr.bf16.mxu0 0
      %464 = vmatpush1.bf16.msra.mxu0 %v444
      %465 = vmatprep.subr.bf16.mxu0 0
      %466 = vmatpush1.bf16.msra.mxu0 %v445
      %467 = vmatprep.subr.bf16.mxu0 0
      %468 = vmatpush1.bf16.msra.mxu0 %v446
      %469 = vmatprep.subr.bf16.mxu0 0
      %470 = vmatpush1.bf16.msra.mxu0 %v447
      %471 = vmatprep.subr.bf16.mxu0 0
      %472 = vmatpush1.bf16.msra.mxu0 %v448
      %473 = vmatprep.subr.bf16.mxu0 0
      %474 = vmatpush1.bf16.msra.mxu0 0
      %475 = vmatprep.subr.bf16.mxu0 0
      %476 = vmatpush1.bf16.msra.mxu0 0
      %477 = vmatprep.subr.bf16.mxu0 0
      %478 = vmatpush1.bf16.msra.mxu0 0
      %479 = vmatprep.subr.bf16.mxu0 0
      %480 = vmatpush1.bf16.msra.mxu0 0
      %481 = vmatprep.subr.bf16.mxu0 0
      %482 = vmatpush1.bf16.msra.mxu0 0
      %483 = vmatprep.subr.bf16.mxu0 0
      %484 = vmatpush1.bf16.msra.mxu0 0
      %485 = vmatprep.subr.bf16.mxu0 0
      %486 = vmatpush1.bf16.msra.mxu0 0
      %487 = vmatprep.subr.bf16.mxu0 0
      %488 = vmatpush1.bf16.msra.mxu0 0
      %489 = vmatprep.mubr.bf16.mxu0 0
      %490 = vmatmul.mubr.bf16.gmra.mrb[0].mxu0 %v385
      %v491 = vpop.f32.mrb[0].mxu0
      %v492 = vadd.f32 0.0, %v491
      %v493 = vpop.f32.mrb[0].mxu0
      %v494 = vpop.f32.mrb[0].mxu0
      %v495 = vadd.f32 0.0, %v494
      %v496 = vpop.f32.mrb[0].mxu0
      %497 = vmatprep.mubr.bf16.mxu0 0
      %498 = vmatmul.mubr.bf16.gmra.mrb[0].mxu0 %v386
      %v499 = vpop.f32.mrb[0].mxu0
      %v500 = vadd.f32 0.0, %v499
      %v501 = vpop.f32.mrb[0].mxu0
      %v502 = vpop.f32.mrb[0].mxu0
      %v503 = vadd.f32 0.0, %v502
      %v504 = vpop.f32.mrb[0].mxu0
      %505 = vmatprep.mubr.bf16.mxu0 0
      %506 = vmatmul.mubr.bf16.gmra.mrb[0].mxu0 %v387
      %v507 = vpop.f32.mrb[0].mxu0
      %v508 = vadd.f32 0.0, %v507
      %v509 = vpop.f32.mrb[0].mxu0
      %v510 = vpop.f32.mrb[0].mxu0
      %v511 = vadd.f32 0.0, %v510
      %v512 = vpop.f32.mrb[0].mxu0
      %513 = vmatprep.mubr.bf16.mxu0 0
      %514 = vmatmul.mubr.bf16.gmra.mrb[0].mxu0 %v388
      %v515 = vpop.f32.mrb[0].mxu0
      %v516 = vadd.f32 0.0, %v515
      %v517 = vpop.f32.mrb[0].mxu0
      %v518 = vpop.f32.mrb[0].mxu0
      %v519 = vadd.f32 0.0, %v518
      %v520 = vpop.f32.mrb[0].mxu0
      %521 = vmatprep.mubr.bf16.mxu0 0
      %522 = vmatmul.mubr.bf16.gmra.mrb[0].mxu0 %v389
      %v523 = vpop.f32.mrb[0].mxu0
      %v524 = vadd.f32 0.0, %v523
      %v525 = vpop.f32.mrb[0].mxu0
      %v526 = vpop.f32.mrb[0].mxu0
      %v527 = vadd.f32 0.0, %v526
      %v528 = vpop.f32.mrb[0].mxu0
      %529 = vmatprep.mubr.bf16.mxu0 0
      %530 = vmatmul.mubr.bf16.gmra.mrb[0].mxu0 %v390
      %v531 = vpop.f32.mrb[0].mxu0
      %v532 = vadd.f32 0.0, %v531
      %v533 = vpop.f32.mrb[0].mxu0
      %v534 = vpop.f32.mrb[0].mxu0
      %v535 = vadd.f32 0.0, %v534
      %v536 = vpop.f32.mrb[0].mxu0
      %537 = vmatprep.mubr.bf16.mxu0 0
      %538 = vmatmul.mubr.bf16.gmra.mrb[0].mxu0 %v391
      %v539 = vpop.f32.mrb[0].mxu0
      %v540 = vadd.f32 0.0, %v539
      %v541 = vpop.f32.mrb[0].mxu0
      %v542 = vpop.f32.mrb[0].mxu0
      %v543 = vadd.f32 0.0, %v542
      %v544 = vpop.f32.mrb[0].mxu0
      %545 = vmatprep.mubr.bf16.mxu0 0
      %546 = vmatmul.mubr.bf16.gmra.mrb[0].mxu0 %v392
      %v547 = vpop.f32.mrb[0].mxu0
      %v548 = vadd.f32 0.0, %v547
      %v549 = vpop.f32.mrb[0].mxu0
      %v550 = vpop.f32.mrb[0].mxu0
      %v551 = vadd.f32 0.0, %v550
      %v552 = vpop.f32.mrb[0].mxu0
      %553 = vdwg.mxu0
      %v554 = vpack.c.bf16 %v495, %v492
      %v555 = vpack.c.bf16 %v503, %v500
      %v556 = vpack.c.bf16 %v511, %v508
      %v557 = vpack.c.bf16 %v519, %v516
      %v558 = vpack.c.bf16 %v527, %v524
      %v559 = vpack.c.bf16 %v535, %v532
      %v560 = vpack.c.bf16 %v543, %v540
      %v561 = vpack.c.bf16 %v551, %v548
      %v570 = vunpack.c.l.b16 %v554
      %v571 = vunpack.c.h.b16 %v554
      %v572 = vunpack.c.l.b16 %v555
      %v573 = vunpack.c.h.b16 %v555
      %v574 = vunpack.c.l.b16 %v556
      %v575 = vunpack.c.h.b16 %v556
      %v576 = vunpack.c.l.b16 %v557
      %v577 = vunpack.c.h.b16 %v557
      %v578 = vunpack.c.l.b16 %v558
      %v579 = vunpack.c.h.b16 %v558
      %v580 = vunpack.c.l.b16 %v559
      %v581 = vunpack.c.h.b16 %v559
      %v582 = vunpack.c.l.b16 %v560
      %v583 = vunpack.c.h.b16 %v560
      %v584 = vunpack.c.l.b16 %v561
      %v585 = vunpack.c.h.b16 %v561
      %v586 = vpack.c.b16 %v570, %v570
      %v587 = vpack.c.b16 %v571, %v571
      %v588 = vpack.c.b16 %v572, %v572
      %v589 = vpack.c.b16 %v573, %v573
      %v590 = vpack.c.b16 %v574, %v574
      %v591 = vpack.c.b16 %v575, %v575
      %v592 = vpack.c.b16 %v576, %v576
      %v593 = vpack.c.b16 %v577, %v577
      %v594 = vpack.c.b16 %v578, %v578
      %v595 = vpack.c.b16 %v579, %v579
      %v596 = vpack.c.b16 %v580, %v580
      %v597 = vpack.c.b16 %v581, %v581
      %v598 = vpack.c.b16 %v582, %v582
      %v599 = vpack.c.b16 %v583, %v583
      %v600 = vpack.c.b16 %v584, %v584
      %v601 = vpack.c.b16 %v585, %v585
      %vm618 = vcmask 781312
      %619 = vst.msk [vmem:[%s214] sm:$0xf] %vm618, %v586
      %620 = vst.msk [vmem:[%s214 + $0x4] sm:$0xf] %vm618, %v587
      %621 = vst.msk [vmem:[%s214 + $0x8] sm:$0xf] %vm618, %v588
      %622 = vst.msk [vmem:[%s214 + $0xc] sm:$0xf] %vm618, %v589
      %623 = vst.msk [vmem:[%s214 + $0x10] sm:$0xf] %vm618, %v590
      %624 = vst.msk [vmem:[%s214 + $0x14] sm:$0xf] %vm618, %v591
      %625 = vst.msk [vmem:[%s214 + $0x18] sm:$0xf] %vm618, %v592
      %626 = vst.msk [vmem:[%s214 + $0x1c] sm:$0xf] %vm618, %v593
      %627 = vst.msk [vmem:[%s214 + $0x20] sm:$0xf] %vm618, %v594
      %628 = vst.msk [vmem:[%s214 + $0x24] sm:$0xf] %vm618, %v595
      %629 = vst.msk [vmem:[%s214 + $0x28] sm:$0xf] %vm618, %v596
      %630 = vst.msk [vmem:[%s214 + $0x2c] sm:$0xf] %vm618, %v597
      %631 = vst.msk [vmem:[%s214 + $0x30] sm:$0xf] %vm618, %v598
      %632 = vst.msk [vmem:[%s214 + $0x34] sm:$0xf] %vm618, %v599
      %633 = vst.msk [vmem:[%s214 + $0x38] sm:$0xf] %vm618, %v600
      %634 = vst.msk [vmem:[%s214 + $0x3c] sm:$0xf] %vm618, %v601
      %s635 = smul.u32 16, %s19
      %p636 = scmp.lt.s32.totalorder %s18, 1
      %s637 = scalar_select %p636, %s18, 1
      %p638 = scmp.lt.s32.totalorder %s635, 31
      %s639 = scalar_select %p638, %s635, 31
      %s640 = smul.addr %s637, 32
      %s641 = sadd.s32 %s639, %s640
      %s642 = smul.addr %s641, 4
      %s643 = scalar_lea.vmem %s3, %s642
      // Predicated region
      $region33: #{_lambda_.7} parent=31 // pred_check
        %p644 = pneg %p119
      $region34: #{_lambda_.7} parent=31 // pred_check_branch
        %646 = sbr.rel (%p644) target = $region36
      $region35: #{_lambda_.7} parent=31 // pred_region
        %s647 = smul.u32 16, %s19
      $region36: #{_lambda_.7} parent=31 // pred_fallthru
        _
    $region32: #{_lambda_.7} parent=5 // pred_fallthru
      _
    %p648 = scmp.le.s32.totalorder 2, %s9
    // Predicated region
    $region37: #{_lambda_.7} parent=5 // pred_check
      %p649 = pneg %p648
    $region38: #{_lambda_.7} parent=5 // pred_check_branch
      %651 = sbr.rel (%p649) target = $region40
    $region39: #{_lambda_.7} parent=5 // pred_region
      %s652 = ssub.s32 %s9, 2
      // Predicated region
      $region41: #{_lambda_.7} parent=39 // pred_check
        %p653 = pneg %p125
      $region42: #{_lambda_.7} parent=39 // pred_check_branch
        %655 = sbr.rel (%p653) target = $region44
      $region43: #{_lambda_.7} parent=39 // pred_region
        %s656 = smul.u32 16, %s21
        %p657 = scmp.lt.s32.totalorder %s20, 1
        %s658 = scalar_select %p657, %s20, 1
        %p659 = scmp.lt.s32.totalorder %s656, 31
        %s660 = scalar_select %p659, %s656, 31
        %s661 = smul.addr %s658, 32
        %s662 = sadd.s32 %s660, %s661
        %s663 = smul.addr %s662, 4
        %s664 = scalar_lea.vmem %s3, %s663
      $region44: #{_lambda_.7} parent=39 // pred_fallthru
        _
    $region40: #{_lambda_.7} parent=5 // pred_fallthru
      _
  $region6: #{_lambda_.7} parent=0 // loop_footer
    %s13 = sadd.s32 1, %s9
  $region7: #{_lambda_.7} parent=0 // loop_footer_branch
    %8 = sbr.rel target = $region3
  $region8: #{_lambda_.7} parent=0 // loop_exit
    _

// kernel: _lambda_.8
$region0: #{_lambda_.8}
  #allocation0 [shape = 'u32[]', space=smem, size = 0x4, offset = 0x4, fixed_abs, tag = 'smem constant byte address 0x4 - core index']
  #allocation1 [shape = 'u32[144,128]{1,0:T(1,128)}', space=vmem, size = 0x12000, scoped, tag = 'internal scratch']
  %s0 = inlined_call_operand.vmem [shape: bf16[256,128], index: 0, kind: input, shape index: {}]
  %s1 = inlined_call_operand.vmem [shape: f32[1,128], index: 1, kind: input, shape index: {}]
  %s2 = inlined_call_operand.vmem [shape: bf16[2,128,128], index: 2, kind: input, shape index: {}]
  %s3 = inlined_call_operand.vmem [shape: bf16[2,256,128], index: 3, kind: output, shape index: {}]
  %s4 = sld [smem:[#allocation0]]
  $region45: #{_lambda_.8} parent=0
    _
  %s6 = ssub.s32 1, %s4
  %s7 = scalar_select 0, %s6, %s4
  loop: start=0, step=1, limit=6
  $region2: #{_lambda_.8} parent=0 // loop_pre_header
    _
  $region3: #{_lambda_.8} parent=0 // loop_header
    %s9 = sphi 0, %s13
    %p10 = scmp.ge.s32.totalorder %s9, 6
    %s16 = sphi 0, %s28
    %s17 = sphi 0, %s24
    %s18 = sphi 0, %s16
    %s19 = sphi 0, %s17
    %s20 = sphi 0, %s18
    %s21 = sphi 0, %s19
    %s31 = sphi 0, %s33
    %s34 = sphi 0, %s31
    %s35 = sphi 0, %s34
    %s51 = sphi 0, %s35
    %s55 = sphi 0, %s55
    %s57 = sphi 0, %s55
    %s58 = sphi 0, %s57
    %s72 = sphi 0, %s58
    %s78 = sphi 0, %s80
    %s81 = sphi 0, %s78
    %s82 = sphi 0, %s81
    %s98 = sphi 0, %s82
    %s106 = sphi 0, %s108
    %s109 = sphi 0, %s106
    %s110 = sphi 0, %s109
    %s126 = sphi 0, %s110
  $region4: #{_lambda_.8} parent=0 // loop_header_branch
    %12 = sbr.rel (%p10) target = $region8
  $region5: #{_lambda_.8} parent=0 // loop_body
    %s14 = ssub.s32 %s9, 1
    %s15 = ssub.s32 %s9, 2
    %s22 = sadd.s32 1, %s17
    %p23 = scmp.ge.s32.totalorder %s22, 2
    %s24 = scalar_select %p23, 0, %s22
    %s25 = sadd.s32 1, %s16
    %s26 = scalar_select %p23, %s25, %s16
    %p27 = scmp.ge.s32.totalorder %s26, 2
    %s28 = scalar_select %p27, 0, %s26
    %s29 = ssub.s32 %s17, %s24
    %p30 = scmp.eq.s32.totalorder %s29, 0
    %s32 = sadd.s32 %s31, 1
    %s33 = scalar_select %p30, %s31, %s32
    %p36 = pneg %p30
    %p37 = scmp.eq.s32.totalorder %s9, 3
    %p38 = por %p36, %p37
    %p39 = scmp.ne.s32.totalorder %s31, %s34
    %p40 = scmp.eq.s32.totalorder %s9, 0
    %p41 = por %p39, %p40
    %p42 = scmp.ne.s32.totalorder %s31, %s34
    %p43 = scmp.eq.s32.totalorder %s14, 3
    %p44 = por %p42, %p43
    %p45 = scmp.ne.s32.totalorder %s34, %s35
    %p46 = scmp.eq.s32.totalorder %s14, 0
    %p47 = por %p45, %p46
    %p48 = scmp.ne.s32.totalorder %s34, %s35
    %p49 = scmp.eq.s32.totalorder %s15, 3
    %p50 = por %p48, %p49
    %p52 = scmp.ne.s32.totalorder %s35, %s51
    %p53 = scmp.eq.s32.totalorder %s15, 0
    %p54 = por %p52, %p53
    %s56 = sadd.s32 %s55, 1
    %p59 = scmp.eq.s32.totalorder %s9, 3
    %p60 = scmp.ne.s32.totalorder %s55, %s57
    %p61 = scmp.eq.s32.totalorder %s9, 0
    %p62 = por %p60, %p61
    %p63 = scmp.ne.s32.totalorder %s55, %s57
    %p64 = scmp.eq.s32.totalorder %s14, 3
    %p65 = por %p63, %p64
    %p66 = scmp.ne.s32.totalorder %s57, %s58
    %p67 = scmp.eq.s32.totalorder %s14, 0
    %p68 = por %p66, %p67
    %p69 = scmp.ne.s32.totalorder %s57, %s58
    %p70 = scmp.eq.s32.totalorder %s15, 3
    %p71 = por %p69, %p70
    %p73 = scmp.ne.s32.totalorder %s58, %s72
    %p74 = scmp.eq.s32.totalorder %s15, 0
    %p75 = por %p73, %p74
    %s76 = ssub.s32 %s16, %s28
    %p77 = scmp.eq.s32.totalorder %s76, 0
    %s79 = sadd.s32 %s78, 1
    %s80 = scalar_select %p77, %s78, %s79
    %p83 = pneg %p77
    %p84 = scmp.eq.s32.totalorder %s9, 3
    %p85 = por %p83, %p84
    %p86 = scmp.ne.s32.totalorder %s78, %s81
    %p87 = scmp.eq.s32.totalorder %s9, 0
    %p88 = por %p86, %p87
    %p89 = scmp.ne.s32.totalorder %s78, %s81
    %p90 = scmp.eq.s32.totalorder %s14, 3
    %p91 = por %p89, %p90
    %p92 = scmp.ne.s32.totalorder %s81, %s82
    %p93 = scmp.eq.s32.totalorder %s14, 0
    %p94 = por %p92, %p93
    %p95 = scmp.ne.s32.totalorder %s81, %s82
    %p96 = scmp.eq.s32.totalorder %s15, 3
    %p97 = por %p95, %p96
    %p99 = scmp.ne.s32.totalorder %s82, %s98
    %p100 = scmp.eq.s32.totalorder %s15, 0
    %p101 = por %p99, %p100
    %s102 = ssub.s32 %s16, %s28
    %s103 = ssub.s32 %s17, %s24
    %s104 = sor.u32 %s102, %s103
    %p105 = scmp.eq.s32.totalorder %s104, 0
    %s107 = sadd.s32 %s106, 1
    %s108 = scalar_select %p105, %s106, %s107
    %p111 = pneg %p105
    %p112 = scmp.eq.s32.totalorder %s9, 3
    %p113 = por %p111, %p112
    %p114 = scmp.ne.s32.totalorder %s106, %s109
    %p115 = scmp.eq.s32.totalorder %s9, 0
    %p116 = por %p114, %p115
    %p117 = scmp.ne.s32.totalorder %s106, %s109
    %p118 = scmp.eq.s32.totalorder %s14, 3
    %p119 = por %p117, %p118
    %p120 = scmp.ne.s32.totalorder %s109, %s110
    %p121 = scmp.eq.s32.totalorder %s14, 0
    %p122 = por %p120, %p121
    %p123 = scmp.ne.s32.totalorder %s109, %s110
    %p124 = scmp.eq.s32.totalorder %s15, 3
    %p125 = por %p123, %p124
    %p127 = scmp.ne.s32.totalorder %s110, %s126
    %p128 = scmp.eq.s32.totalorder %s15, 0
    %p129 = por %p127, %p128
    %p130 = scmp.le.s32.totalorder 1, %s9
    %p131 = scmp.lt.s32.totalorder %s9, 5
    %p132 = pnand %p130, %p131
    %p133 = pneg %p132
    // Predicated region
    $region9: #{_lambda_.8} parent=5 // pred_check
      _
    $region10: #{_lambda_.8} parent=5 // pred_check_branch
      %135 = sbr.rel (%p132) target = $region12
    $region11: #{_lambda_.8} parent=5 // pred_region
      %s136 = ssub.s32 %s9, 1
      // Predicated region
      $region13: #{_lambda_.8} parent=11 // pred_check
        %p137 = pneg %p68
      $region14: #{_lambda_.8} parent=11 // pred_check_branch
        %139 = sbr.rel (%p137) target = $region16
      $region15: #{_lambda_.8} parent=11 // pred_region
        _
      $region16: #{_lambda_.8} parent=11 // pred_fallthru
        _
    $region12: #{_lambda_.8} parent=5 // pred_fallthru
      _
    %p140 = scmp.lt.s32.totalorder %s9, 4
    // Predicated region
    $region17: #{_lambda_.8} parent=5 // pred_check
      %p141 = pneg %p140
    $region18: #{_lambda_.8} parent=5 // pred_check_branch
      %143 = sbr.rel (%p141) target = $region20
    $region19: #{_lambda_.8} parent=5 // pred_region
      // Predicated region
      $region21: #{_lambda_.8} parent=19 // pred_check
        %p144 = pneg %p41
      $region22: #{_lambda_.8} parent=19 // pred_check_branch
        %146 = sbr.rel (%p144) target = $region24
      $region23: #{_lambda_.8} parent=19 // pred_region
        %s147 = smul.u32 16, %s17
        %p148 = scmp.lt.s32.totalorder %s147, 31
        %s149 = scalar_select %p148, %s147, 31
        %s150 = smul.addr %s149, 4
        %s151 = scalar_lea.vmem %s0, %s150
        %s152 = smul.u32 16, %s17
      $region24: #{_lambda_.8} parent=19 // pred_fallthru
        _
      // Predicated region
      $region25: #{_lambda_.8} parent=19 // pred_check
        %p153 = pneg %p88
      $region26: #{_lambda_.8} parent=19 // pred_check_branch
        %155 = sbr.rel (%p153) target = $region28
      $region27: #{_lambda_.8} parent=19 // pred_region
        %p156 = scmp.lt.s32.totalorder %s16, 1
        %s157 = scalar_select %p156, %s16, 1
        %s158 = smul.addr %s157, 16
        %s159 = smul.addr %s158, 4
        %s160 = scalar_lea.vmem %s2, %s159
      $region28: #{_lambda_.8} parent=19 // pred_fallthru
        _
    $region20: #{_lambda_.8} parent=5 // pred_fallthru
      _
    %p161 = scmp.le.s32.totalorder 1, %s9
    %p162 = scmp.lt.s32.totalorder %s9, 5
    %p163 = pnand %p161, %p162
    %p164 = pneg %p163
    // Predicated region
    $region29: #{_lambda_.8} parent=5 // pred_check
      _
    $region30: #{_lambda_.8} parent=5 // pred_check_branch
      %166 = sbr.rel (%p163) target = $region32
    $region31: #{_lambda_.8} parent=5 // pred_region
      %s167 = ssub.s32 %s9, 1
      %s168 = smul.u32 16, %s19
      %p169 = scmp.lt.s32.totalorder %s168, 31
      %s170 = scalar_select %p169, %s168, 31
      %s171 = smul.addr %s170, 4
      %s172 = scalar_lea.vmem %s0, %s171
      %p173 = pneg %p47
      %p174 = pneg %p44
      %p175 = pneg %p68
      %p176 = pneg %p65
      %p177 = scmp.lt.s32.totalorder %s18, 1
      %s178 = scalar_select %p177, %s18, 1
      %s179 = smul.addr %s178, 16
      %s180 = smul.addr %s179, 4
      %s181 = scalar_lea.vmem %s2, %s180
      %p182 = pneg %p94
      %p183 = pneg %p91
      %p184 = pneg %p122
      %p185 = pneg %p119
      %s186 = smul.u32 16, %s19
      %p187 = scmp.lt.s32.totalorder %s18, 1
      %s188 = scalar_select %p187, %s18, 1
      %p189 = scmp.lt.s32.totalorder %s186, 31
      %s190 = scalar_select %p189, %s186, 31
      %s191 = smul.addr %s188, 32
      %s192 = sadd.s32 %s190, %s191
      %s193 = smul.addr %s192, 4
      %s194 = scalar_lea.vmem %s3, %s193
      %s195 = smul.u32 16, %s19
      %p196 = scmp.lt.s32.totalorder %s195, 31
      %s197 = scalar_select %p196, %s195, 31
      %s198 = smul.addr %s197, 4
      %s199 = scalar_lea.vmem %s0, %s198
      %s200 = smul.u32 16, %s19
      %p201 = scmp.lt.s32.totalorder %s18, 1
      %s202 = scalar_select %p201, %s18, 1
      %s203 = smul.addr %s202, 16
      %s204 = smul.addr %s203, 4
      %s205 = scalar_lea.vmem %s2, %s204
      %s206 = smul.u32 16, %s19
      %p207 = scmp.lt.s32.totalorder %s18, 1
      %s208 = scalar_select %p207, %s18, 1
      %p209 = scmp.lt.s32.totalorder %s206, 31
      %s210 = scalar_select %p209, %s206, 31
      %s211 = smul.addr %s208, 32
      %s212 = sadd.s32 %s210, %s211
      %s213 = smul.addr %s212, 4
      %s214 = scalar_lea.vmem %s3, %s213
      %s215 = smul.u32 16, %s19
      %v217 = vld [vmem:[%s199] sm:$0xf]
      %v218 = vld [vmem:[%s199 + $0x4] sm:$0xf]
      %v219 = vld [vmem:[%s199 + $0x8] sm:$0xf]
      %v220 = vld [vmem:[%s199 + $0xc] sm:$0xf]
      %v221 = vld [vmem:[%s199 + $0x10] sm:$0xf]
      %v222 = vld [vmem:[%s199 + $0x14] sm:$0xf]
      %v223 = vld [vmem:[%s199 + $0x18] sm:$0xf]
      %v224 = vld [vmem:[%s199 + $0x1c] sm:$0xf]
      %v225 = vld [vmem:[%s199 + $0x20] sm:$0xf]
      %v226 = vld [vmem:[%s199 + $0x24] sm:$0xf]
      %v227 = vld [vmem:[%s199 + $0x28] sm:$0xf]
      %v228 = vld [vmem:[%s199 + $0x2c] sm:$0xf]
      %v229 = vld [vmem:[%s199 + $0x30] sm:$0xf]
      %v230 = vld [vmem:[%s199 + $0x34] sm:$0xf]
      %v231 = vld [vmem:[%s199 + $0x38] sm:$0xf]
      %v232 = vld [vmem:[%s199 + $0x3c] sm:$0xf]
      %v233 = vunpack.c.l.bf16 %v217
      %v234 = vunpack.c.l.bf16 %v218
      %v235 = vunpack.c.l.bf16 %v219
      %v236 = vunpack.c.l.bf16 %v220
      %v237 = vunpack.c.l.bf16 %v221
      %v238 = vunpack.c.l.bf16 %v222
      %v239 = vunpack.c.l.bf16 %v223
      %v240 = vunpack.c.l.bf16 %v224
      %v241 = vunpack.c.l.bf16 %v225
      %v242 = vunpack.c.l.bf16 %v226
      %v243 = vunpack.c.l.bf16 %v227
      %v244 = vunpack.c.l.bf16 %v228
      %v245 = vunpack.c.l.bf16 %v229
      %v246 = vunpack.c.l.bf16 %v230
      %v247 = vunpack.c.l.bf16 %v231
      %v248 = vunpack.c.l.bf16 %v232
      %v249 = vmul.f32 %v233, %v233
      %v250 = vmul.f32 %v234, %v234
      %v251 = vmul.f32 %v235, %v235
      %v252 = vmul.f32 %v236, %v236
      %v253 = vmul.f32 %v237, %v237
      %v254 = vmul.f32 %v238, %v238
      %v255 = vmul.f32 %v239, %v239
      %v256 = vmul.f32 %v240, %v240
      %v257 = vmul.f32 %v241, %v241
      %v258 = vmul.f32 %v242, %v242
      %v259 = vmul.f32 %v243, %v243
      %v260 = vmul.f32 %v244, %v244
      %v261 = vmul.f32 %v245, %v245
      %v262 = vmul.f32 %v246, %v246
      %v263 = vmul.f32 %v247, %v247
      %v264 = vmul.f32 %v248, %v248
      %265 = vadd.xlane.f32.xlu0 %v249
      %v266 = vpop.xlane.xlu0 %265
      %267 = vadd.xlane.f32.xlu0 %v250
      %v268 = vpop.xlane.xlu0 %267
      %269 = vadd.xlane.f32.xlu0 %v251
      %v270 = vpop.xlane.xlu0 %269
      %271 = vadd.xlane.f32.xlu0 %v252
      %v272 = vpop.xlane.xlu0 %271
      %273 = vadd.xlane.f32.xlu0 %v253
      %v274 = vpop.xlane.xlu0 %273
      %275 = vadd.xlane.f32.xlu0 %v254
      %v276 = vpop.xlane.xlu0 %275
      %277 = vadd.xlane.f32.xlu0 %v255
      %v278 = vpop.xlane.xlu0 %277
      %279 = vadd.xlane.f32.xlu0 %v256
      %v280 = vpop.xlane.xlu0 %279
      %281 = vadd.xlane.f32.xlu0 %v257
      %v282 = vpop.xlane.xlu0 %281
      %283 = vadd.xlane.f32.xlu0 %v258
      %v284 = vpop.xlane.xlu0 %283
      %285 = vadd.xlane.f32.xlu0 %v259
      %v286 = vpop.xlane.xlu0 %285
      %287 = vadd.xlane.f32.xlu0 %v260
      %v288 = vpop.xlane.xlu0 %287
      %289 = vadd.xlane.f32.xlu0 %v261
      %v290 = vpop.xlane.xlu0 %289
      %291 = vadd.xlane.f32.xlu0 %v262
      %v292 = vpop.xlane.xlu0 %291
      %293 = vadd.xlane.f32.xlu0 %v263
      %v294 = vpop.xlane.xlu0 %293
      %295 = vadd.xlane.f32.xlu0 %v264
      %v296 = vpop.xlane.xlu0 %295
      %v297 = vrcp.pop 128.0
      %v298 = vmul.f32 %v266, %v297
      %v299 = vmul.f32 %v268, %v297
      %v300 = vmul.f32 %v270, %v297
      %v301 = vmul.f32 %v272, %v297
      %v302 = vmul.f32 %v274, %v297
      %v303 = vmul.f32 %v276, %v297
      %v304 = vmul.f32 %v278, %v297
      %v305 = vmul.f32 %v280, %v297
      %v306 = vmul.f32 %v282, %v297
      %v307 = vmul.f32 %v284, %v297
      %v308 = vmul.f32 %v286, %v297
      %v309 = vmul.f32 %v288, %v297
      %v310 = vmul.f32 %v290, %v297
      %v311 = vmul.f32 %v292, %v297
      %v312 = vmul.f32 %v294, %v297
      %v313 = vmul.f32 %v296, %v297
      %v314 = vadd.f32 %v298, 1e-06
      %v315 = vadd.f32 %v299, 1e-06
      %v316 = vadd.f32 %v300, 1e-06
      %v317 = vadd.f32 %v301, 1e-06
      %v318 = vadd.f32 %v302, 1e-06
      %v319 = vadd.f32 %v303, 1e-06
      %v320 = vadd.f32 %v304, 1e-06
      %v321 = vadd.f32 %v305, 1e-06
      %v322 = vadd.f32 %v306, 1e-06
      %v323 = vadd.f32 %v307, 1e-06
      %v324 = vadd.f32 %v308, 1e-06
      %v325 = vadd.f32 %v309, 1e-06
      %v326 = vadd.f32 %v310, 1e-06
      %v327 = vadd.f32 %v311, 1e-06
      %v328 = vadd.f32 %v312, 1e-06
      %v329 = vadd.f32 %v313, 1e-06
      %v330 = vrsqrt.pop %v314
      %v331 = vrsqrt.pop %v315
      %v332 = vrsqrt.pop %v316
      %v333 = vrsqrt.pop %v317
      %v334 = vrsqrt.pop %v318
      %v335 = vrsqrt.pop %v319
      %v336 = vrsqrt.pop %v320
      %v337 = vrsqrt.pop %v321
      %v338 = vrsqrt.pop %v322
      %v339 = vrsqrt.pop %v323
      %v340 = vrsqrt.pop %v324
      %v341 = vrsqrt.pop %v325
      %v342 = vrsqrt.pop %v326
      %v343 = vrsqrt.pop %v327
      %v344 = vrsqrt.pop %v328
      %v345 = vrsqrt.pop %v329
      %v346 = vmul.f32 %v233, %v330
      %v347 = vmul.f32 %v234, %v331
      %v348 = vmul.f32 %v235, %v332
      %v349 = vmul.f32 %v236, %v333
      %v350 = vmul.f32 %v237, %v334
      %v351 = vmul.f32 %v238, %v335
      %v352 = vmul.f32 %v239, %v336
      %v353 = vmul.f32 %v240, %v337
      %v354 = vmul.f32 %v241, %v338
      %v355 = vmul.f32 %v242, %v339
      %v356 = vmul.f32 %v243, %v340
      %v357 = vmul.f32 %v244, %v341
      %v358 = vmul.f32 %v245, %v342
      %v359 = vmul.f32 %v246, %v343
      %v360 = vmul.f32 %v247, %v344
      %v361 = vmul.f32 %v248, %v345
      %v362 = vld [vmem:[%s1] sm:$0x1]
      %v364 = vlaneseq
      %v365 = vshrl.u32 %v364, 7
      %v366 = vsub.s32 0, %v365
      %v367 = vrot.slane %v362, %v366
      %v369 = vmul.f32 %v346, %v367
      %v370 = vmul.f32 %v347, %v367
      %v371 = vmul.f32 %v348, %v367
      %v372 = vmul.f32 %v349, %v367
      %v373 = vmul.f32 %v350, %v367
      %v374 = vmul.f32 %v351, %v367
      %v375 = vmul.f32 %v352, %v367
      %v376 = vmul.f32 %v353, %v367
      %v377 = vmul.f32 %v354, %v367
      %v378 = vmul.f32 %v355, %v367
      %v379 = vmul.f32 %v356, %v367
      %v380 = vmul.f32 %v357, %v367
      %v381 = vmul.f32 %v358, %v367
      %v382 = vmul.f32 %v359, %v367
      %v383 = vmul.f32 %v360, %v367
      %v384 = vmul.f32 %v361, %v367
      %v385 = vpack.c.bf16 %v370, %v369
      %v386 = vpack.c.bf16 %v372, %v371
      %v387 = vpack.c.bf16 %v374, %v373
      %v388 = vpack.c.bf16 %v376, %v375
      %v389 = vpack.c.bf16 %v378, %v377
      %v390 = vpack.c.bf16 %v380, %v379
      %v391 = vpack.c.bf16 %v382, %v381
      %v392 = vpack.c.bf16 %v384, %v383
      %v393 = vld [vmem:[%s205] sm:$0xf]
      %v394 = vld [vmem:[%s205 + $0x4] sm:$0xf]
      %v395 = vld [vmem:[%s205 + $0x8] sm:$0xf]
      %v396 = vld [vmem:[%s205 + $0xc] sm:$0xf]
      %v397 = vld [vmem:[%s205 + $0x10] sm:$0xf]
      %v398 = vld [vmem:[%s205 + $0x14] sm:$0xf]
      %v399 = vld [vmem:[%s205 + $0x18] sm:$0xf]
      %v400 = vld [vmem:[%s205 + $0x1c] sm:$0xf]
      %v401 = vld [vmem:[%s205 + $0x20] sm:$0xf]
      %v402 = vld [vmem:[%s205 + $0x24] sm:$0xf]
      %v403 = vld [vmem:[%s205 + $0x28] sm:$0xf]
      %v404 = vld [vmem:[%s205 + $0x2c] sm:$0xf]
      %v405 = vld [vmem:[%s205 + $0x30] sm:$0xf]
      %v406 = vld [vmem:[%s205 + $0x34] sm:$0xf]
      %v407 = vld [vmem:[%s205 + $0x38] sm:$0xf]
      %v408 = vld [vmem:[%s205 + $0x3c] sm:$0xf]
      %v425 = vunpack.c.l.b16 %v393
      %v426 = vunpack.c.l.b16 %v394
      %v427 = vunpack.c.l.b16 %v395
      %v428 = vunpack.c.l.b16 %v396
      %v429 = vunpack.c.l.b16 %v397
      %v430 = vunpack.c.l.b16 %v398
      %v431 = vunpack.c.l.b16 %v399
      %v432 = vunpack.c.l.b16 %v400
      %v433 = vunpack.c.l.b16 %v401
      %v434 = vunpack.c.l.b16 %v402
      %v435 = vunpack.c.l.b16 %v403
      %v436 = vunpack.c.l.b16 %v404
      %v437 = vunpack.c.l.b16 %v405
      %v438 = vunpack.c.l.b16 %v406
      %v439 = vunpack.c.l.b16 %v407
      %v440 = vunpack.c.l.b16 %v408
      %v441 = vpack.c.b16 %v426, %v425
      %v442 = vpack.c.b16 %v428, %v427
      %v443 = vpack.c.b16 %v430, %v429
      %v444 = vpack.c.b16 %v432, %v431
      %v445 = vpack.c.b16 %v434, %v433
      %v446 = vpack.c.b16 %v436, %v435
      %v447 = vpack.c.b16 %v438, %v437
      %v448 = vpack.c.b16 %v440, %v439
      %457 = vmatprep.subr.bf16.mxu0 0
      %458 = vmatpush1.bf16.msra.mxu0 %v441
      %459 = vmatprep.subr.bf16.mxu0 0
      %460 = vmatpush1.bf16.msra.mxu0 %v442
      %461 = vmatprep.subr.bf16.mxu0 0
      %462 = vmatpush1.bf16.msra.mxu0 %v443
      %463 = vmatprep.subr.bf16.mxu0 0
      %464 = vmatpush1.bf16.msra.mxu0 %v444
      %465 = vmatprep.subr.bf16.mxu0 0
      %466 = vmatpush1.bf16.msra.mxu0 %v445
      %467 = vmatprep.subr.bf16.mxu0 0
      %468 = vmatpush1.bf16.msra.mxu0 %v446
      %469 = vmatprep.subr.bf16.mxu0 0
      %470 = vmatpush1.bf16.msra.mxu0 %v447
      %471 = vmatprep.subr.bf16.mxu0 0
      %472 = vmatpush1.bf16.msra.mxu0 %v448
      %473 = vmatprep.subr.bf16.mxu0 0
      %474 = vmatpush1.bf16.msra.mxu0 0
      %475 = vmatprep.subr.bf16.mxu0 0
      %476 = vmatpush1.bf16.msra.mxu0 0
      %477 = vmatprep.subr.bf16.mxu0 0
      %478 = vmatpush1.bf16.msra.mxu0 0
      %479 = vmatprep.subr.bf16.mxu0 0
      %480 = vmatpush1.bf16.msra.mxu0 0
      %481 = vmatprep.subr.bf16.mxu0 0
      %482 = vmatpush1.bf16.msra.mxu0 0
      %483 = vmatprep.subr.bf16.mxu0 0
      %484 = vmatpush1.bf16.msra.mxu0 0
      %485 = vmatprep.subr.bf16.mxu0 0
      %486 = vmatpush1.bf16.msra.mxu0 0
      %487 = vmatprep.subr.bf16.mxu0 0
      %488 = vmatpush1.bf16.msra.mxu0 0
      %489 = vmatprep.mubr.bf16.mxu0 0
      %490 = vmatmul.mubr.bf16.gmra.mrb[0].mxu0 %v385
      %v491 = vpop.f32.mrb[0].mxu0
      %v492 = vadd.f32 0.0, %v491
      %v493 = vpop.f32.mrb[0].mxu0
      %v494 = vpop.f32.mrb[0].mxu0
      %v495 = vadd.f32 0.0, %v494
      %v496 = vpop.f32.mrb[0].mxu0
      %497 = vmatprep.mubr.bf16.mxu0 0
      %498 = vmatmul.mubr.bf16.gmra.mrb[0].mxu0 %v386
      %v499 = vpop.f32.mrb[0].mxu0
      %v500 = vadd.f32 0.0, %v499
      %v501 = vpop.f32.mrb[0].mxu0
      %v502 = vpop.f32.mrb[0].mxu0
      %v503 = vadd.f32 0.0, %v502
      %v504 = vpop.f32.mrb[0].mxu0
      %505 = vmatprep.mubr.bf16.mxu0 0
      %506 = vmatmul.mubr.bf16.gmra.mrb[0].mxu0 %v387
      %v507 = vpop.f32.mrb[0].mxu0
      %v508 = vadd.f32 0.0, %v507
      %v509 = vpop.f32.mrb[0].mxu0
      %v510 = vpop.f32.mrb[0].mxu0
      %v511 = vadd.f32 0.0, %v510
      %v512 = vpop.f32.mrb[0].mxu0
      %513 = vmatprep.mubr.bf16.mxu0 0
      %514 = vmatmul.mubr.bf16.gmra.mrb[0].mxu0 %v388
      %v515 = vpop.f32.mrb[0].mxu0
      %v516 = vadd.f32 0.0, %v515
      %v517 = vpop.f32.mrb[0].mxu0
      %v518 = vpop.f32.mrb[0].mxu0
      %v519 = vadd.f32 0.0, %v518
      %v520 = vpop.f32.mrb[0].mxu0
      %521 = vmatprep.mubr.bf16.mxu0 0
      %522 = vmatmul.mubr.bf16.gmra.mrb[0].mxu0 %v389
      %v523 = vpop.f32.mrb[0].mxu0
      %v524 = vadd.f32 0.0, %v523
      %v525 = vpop.f32.mrb[0].mxu0
      %v526 = vpop.f32.mrb[0].mxu0
      %v527 = vadd.f32 0.0, %v526
      %v528 = vpop.f32.mrb[0].mxu0
      %529 = vmatprep.mubr.bf16.mxu0 0
      %530 = vmatmul.mubr.bf16.gmra.mrb[0].mxu0 %v390
      %v531 = vpop.f32.mrb[0].mxu0
      %v532 = vadd.f32 0.0, %v531
      %v533 = vpop.f32.mrb[0].mxu0
      %v534 = vpop.f32.mrb[0].mxu0
      %v535 = vadd.f32 0.0, %v534
      %v536 = vpop.f32.mrb[0].mxu0
      %537 = vmatprep.mubr.bf16.mxu0 0
      %538 = vmatmul.mubr.bf16.gmra.mrb[0].mxu0 %v391
      %v539 = vpop.f32.mrb[0].mxu0
      %v540 = vadd.f32 0.0, %v539
      %v541 = vpop.f32.mrb[0].mxu0
      %v542 = vpop.f32.mrb[0].mxu0
      %v543 = vadd.f32 0.0, %v542
      %v544 = vpop.f32.mrb[0].mxu0
      %545 = vmatprep.mubr.bf16.mxu0 0
      %546 = vmatmul.mubr.bf16.gmra.mrb[0].mxu0 %v392
      %v547 = vpop.f32.mrb[0].mxu0
      %v548 = vadd.f32 0.0, %v547
      %v549 = vpop.f32.mrb[0].mxu0
      %v550 = vpop.f32.mrb[0].mxu0
      %v551 = vadd.f32 0.0, %v550
      %v552 = vpop.f32.mrb[0].mxu0
      %553 = vdwg.mxu0
      %v554 = vpack.c.bf16 %v495, %v492
      %v555 = vpack.c.bf16 %v503, %v500
      %v556 = vpack.c.bf16 %v511, %v508
      %v557 = vpack.c.bf16 %v519, %v516
      %v558 = vpack.c.bf16 %v527, %v524
      %v559 = vpack.c.bf16 %v535, %v532
      %v560 = vpack.c.bf16 %v543, %v540
      %v561 = vpack.c.bf16 %v551, %v548
      %v570 = vunpack.c.l.b16 %v554
      %v571 = vunpack.c.h.b16 %v554
      %v572 = vunpack.c.l.b16 %v555
      %v573 = vunpack.c.h.b16 %v555
      %v574 = vunpack.c.l.b16 %v556
      %v575 = vunpack.c.h.b16 %v556
      %v576 = vunpack.c.l.b16 %v557
      %v577 = vunpack.c.h.b16 %v557
      %v578 = vunpack.c.l.b16 %v558
      %v579 = vunpack.c.h.b16 %v558
      %v580 = vunpack.c.l.b16 %v559
      %v581 = vunpack.c.h.b16 %v559
      %v582 = vunpack.c.l.b16 %v560
      %v583 = vunpack.c.h.b16 %v560
      %v584 = vunpack.c.l.b16 %v561
      %v585 = vunpack.c.h.b16 %v561
      %v586 = vpack.c.b16 %v570, %v570
      %v587 = vpack.c.b16 %v571, %v571
      %v588 = vpack.c.b16 %v572, %v572
      %v589 = vpack.c.b16 %v573, %v573
      %v590 = vpack.c.b16 %v574, %v574
      %v591 = vpack.c.b16 %v575, %v575
      %v592 = vpack.c.b16 %v576, %v576
      %v593 = vpack.c.b16 %v577, %v577
      %v594 = vpack.c.b16 %v578, %v578
      %v595 = vpack.c.b16 %v579, %v579
      %v596 = vpack.c.b16 %v580, %v580
      %v597 = vpack.c.b16 %v581, %v581
      %v598 = vpack.c.b16 %v582, %v582
      %v599 = vpack.c.b16 %v583, %v583
      %v600 = vpack.c.b16 %v584, %v584
      %v601 = vpack.c.b16 %v585, %v585
      %618 = vst [vmem:[%s214] sm:$0xf] %v586
      %619 = vst [vmem:[%s214 + $0x4] sm:$0xf] %v587
      %620 = vst [vmem:[%s214 + $0x8] sm:$0xf] %v588
      %621 = vst [vmem:[%s214 + $0xc] sm:$0xf] %v589
      %622 = vst [vmem:[%s214 + $0x10] sm:$0xf] %v590
      %623 = vst [vmem:[%s214 + $0x14] sm:$0xf] %v591
      %624 = vst [vmem:[%s214 + $0x18] sm:$0xf] %v592
      %625 = vst [vmem:[%s214 + $0x1c] sm:$0xf] %v593
      %626 = vst [vmem:[%s214 + $0x20] sm:$0xf] %v594
      %627 = vst [vmem:[%s214 + $0x24] sm:$0xf] %v595
      %628 = vst [vmem:[%s214 + $0x28] sm:$0xf] %v596
      %629 = vst [vmem:[%s214 + $0x2c] sm:$0xf] %v597
      %630 = vst [vmem:[%s214 + $0x30] sm:$0xf] %v598
      %631 = vst [vmem:[%s214 + $0x34] sm:$0xf] %v599
      %632 = vst [vmem:[%s214 + $0x38] sm:$0xf] %v600
      %633 = vst [vmem:[%s214 + $0x3c] sm:$0xf] %v601
      %s634 = smul.u32 16, %s19
      %p635 = scmp.lt.s32.totalorder %s18, 1
      %s636 = scalar_select %p635, %s18, 1
      %p637 = scmp.lt.s32.totalorder %s634, 31
      %s638 = scalar_select %p637, %s634, 31
      %s639 = smul.addr %s636, 32
      %s640 = sadd.s32 %s638, %s639
      %s641 = smul.addr %s640, 4
      %s642 = scalar_lea.vmem %s3, %s641
      // Predicated region
      $region33: #{_lambda_.8} parent=31 // pred_check
        %p643 = pneg %p119
      $region34: #{_lambda_.8} parent=31 // pred_check_branch
        %645 = sbr.rel (%p643) target = $region36
      $region35: #{_lambda_.8} parent=31 // pred_region
        %s646 = smul.u32 16, %s19
      $region36: #{_lambda_.8} parent=31 // pred_fallthru
        _
    $region32: #{_lambda_.8} parent=5 // pred_fallthru
      _
    %p647 = scmp.le.s32.totalorder 2, %s9
    // Predicated region
    $region37: #{_lambda_.8} parent=5 // pred_check
      %p648 = pneg %p647
    $region38: #{_lambda_.8} parent=5 // pred_check_branch
      %650 = sbr.rel (%p648) target = $region40
    $region39: #{_lambda_.8} parent=5 // pred_region
      %s651 = ssub.s32 %s9, 2
      // Predicated region
      $region41: #{_lambda_.8} parent=39 // pred_check
        %p652 = pneg %p125
      $region42: #{_lambda_.8} parent=39 // pred_check_branch
        %654 = sbr.rel (%p652) target = $region44
      $region43: #{_lambda_.8} parent=39 // pred_region
        %s655 = smul.u32 16, %s21
        %p656 = scmp.lt.s32.totalorder %s20, 1
        %s657 = scalar_select %p656, %s20, 1
        %p658 = scmp.lt.s32.totalorder %s655, 31
        %s659 = scalar_select %p658, %s655, 31
        %s660 = smul.addr %s657, 32
        %s661 = sadd.s32 %s659, %s660
        %s662 = smul.addr %s661, 4
        %s663 = scalar_lea.vmem %s3, %s662
      $region44: #{_lambda_.8} parent=39 // pred_fallthru
        _
    $region40: #{_lambda_.8} parent=5 // pred_fallthru
      _
  $region6: #{_lambda_.8} parent=0 // loop_footer
    %s13 = sadd.s32 1, %s9
  $region7: #{_lambda_.8} parent=0 // loop_footer_branch
    %8 = sbr.rel target = $region3
  $region8: #{_lambda_.8} parent=0 // loop_exit
    _

// kernel: _lambda_.10
$region0: #{_lambda_.10}
  #allocation0 [shape = 'u32[]', space=smem, size = 0x4, offset = 0x4, fixed_abs, tag = 'smem constant byte address 0x4 - core index']
  #allocation1 [shape = 'u32[144,128]{1,0:T(1,128)}', space=vmem, size = 0x12000, scoped, tag = 'internal scratch']
  #allocation2 [shape = 'f32[128,256]{1,0:T(8,128)}', space=vmem, size = 0x20000, scoped, tag = 'scratch operand']
  %s0 = inlined_call_operand.vmem [shape: bf16[2,256,64], index: 0, kind: input, shape index: {}]
  %s1 = inlined_call_operand.vmem [shape: bf16[2,64,256], index: 1, kind: input, shape index: {}]
  %s2 = inlined_call_operand.vmem [shape: f32[256,256], index: 2, kind: input, shape index: {}]
  %s3 = inlined_call_operand.vmem [shape: f32[1,256], index: 3, kind: input, shape index: {}]
  %s4 = inlined_call_operand.vmem [shape: bf16[256,256], index: 4, kind: output, shape index: {0}]
  %s5 = inlined_call_operand.hbm [shape: f32[256,256], index: 5, kind: output, shape index: {1}]
  %6 = xla_tuple %s4, %s5
  %s7 = sld [smem:[#allocation0]]
  $region65: #{_lambda_.10} parent=0
    _
  %s9 = ssub.s32 1, %s7
  %s10 = scalar_select 0, %s9, %s7
  $region1: #{_lambda_.10} parent=0
    #allocation3 [shape = 'u8[262144]{0}', space=vmem, size = 0x40000, scoped, tag = 'output window, operand 1']
    #allocation4 [shape = 's32[2]{0}', space=sflag, size = 0x8, scoped, tag = 'scoped memory for _lambda_.10']
    %11 = vsyncpa [#allocation4], 0
    %s12 = scalar_lea.sflag [#allocation4], 1
    %13 = vsyncpa %s12, 0
    loop: start=0, step=1, limit=6
    $region2: #{_lambda_.10} parent=1 // loop_pre_header
      _
    $region3: #{_lambda_.10} parent=1 // loop_header
      %s15 = sphi 0, %s19
      %p16 = scmp.ge.s32.totalorder %s15, 6
      %s22 = sphi 0, %s34
      %s23 = sphi 0, %s30
      %s24 = sphi 0, %s22
      %s25 = sphi 0, %s23
      %s26 = sphi 0, %s24
      %s27 = sphi 0, %s25
      %s39 = sphi 0, %s41
      %s42 = sphi 0, %s39
      %s43 = sphi 0, %s42
      %s59 = sphi 0, %s43
      %s65 = sphi 0, %s67
      %s68 = sphi 0, %s65
      %s69 = sphi 0, %s68
      %s85 = sphi 0, %s69
      %s91 = sphi 0, %s93
      %s94 = sphi 0, %s91
      %s95 = sphi 0, %s94
      %s111 = sphi 0, %s95
      %s115 = sphi 0, %s115
      %s117 = sphi 0, %s115
      %s118 = sphi 0, %s117
      %s132 = sphi 0, %s118
      %s138 = sphi 0, %s140
      %s141 = sphi 0, %s138
      %s142 = sphi 0, %s141
      %s158 = sphi 0, %s142
      %s164 = sphi 0, %s166
      %s167 = sphi 0, %s164
      %s168 = sphi 0, %s167
      %s184 = sphi 0, %s168
    $region4: #{_lambda_.10} parent=1 // loop_header_branch
      %18 = sbr.rel (%p16) target = $region8
    $region5: #{_lambda_.10} parent=1 // loop_body
      %s20 = ssub.s32 %s15, 1
      %s21 = ssub.s32 %s15, 2
      %s28 = sadd.s32 1, %s23
      %p29 = scmp.ge.s32.totalorder %s28, 2
      %s30 = scalar_select %p29, 0, %s28
      %s31 = sadd.s32 1, %s22
      %s32 = scalar_select %p29, %s31, %s22
      %p33 = scmp.ge.s32.totalorder %s32, 2
      %s34 = scalar_select %p33, 0, %s32
      %s35 = ssub.s32 %s23, %s30
      %s36 = ssub.s32 %s22, %s34
      %s37 = sor.u32 %s35, %s36
      %p38 = scmp.eq.s32.totalorder %s37, 0
      %s40 = sadd.s32 %s39, 1
      %s41 = scalar_select %p38, %s39, %s40
      %p44 = pneg %p38
      %p45 = scmp.eq.s32.totalorder %s15, 3
      %p46 = por %p44, %p45
      %p47 = scmp.ne.s32.totalorder %s39, %s42
      %p48 = scmp.eq.s32.totalorder %s15, 0
      %p49 = por %p47, %p48
      %p50 = scmp.ne.s32.totalorder %s39, %s42
      %p51 = scmp.eq.s32.totalorder %s20, 3
      %p52 = por %p50, %p51
      %p53 = scmp.ne.s32.totalorder %s42, %s43
      %p54 = scmp.eq.s32.totalorder %s20, 0
      %p55 = por %p53, %p54
      %p56 = scmp.ne.s32.totalorder %s42, %s43
      %p57 = scmp.eq.s32.totalorder %s21, 3
      %p58 = por %p56, %p57
      %p60 = scmp.ne.s32.totalorder %s43, %s59
      %p61 = scmp.eq.s32.totalorder %s21, 0
      %p62 = por %p60, %p61
      %s63 = ssub.s32 %s23, %s30
      %p64 = scmp.eq.s32.totalorder %s63, 0
      %s66 = sadd.s32 %s65, 1
      %s67 = scalar_select %p64, %s65, %s66
      %p70 = pneg %p64
      %p71 = scmp.eq.s32.totalorder %s15, 3
      %p72 = por %p70, %p71
      %p73 = scmp.ne.s32.totalorder %s65, %s68
      %p74 = scmp.eq.s32.totalorder %s15, 0
      %p75 = por %p73, %p74
      %p76 = scmp.ne.s32.totalorder %s65, %s68
      %p77 = scmp.eq.s32.totalorder %s20, 3
      %p78 = por %p76, %p77
      %p79 = scmp.ne.s32.totalorder %s68, %s69
      %p80 = scmp.eq.s32.totalorder %s20, 0
      %p81 = por %p79, %p80
      %p82 = scmp.ne.s32.totalorder %s68, %s69
      %p83 = scmp.eq.s32.totalorder %s21, 3
      %p84 = por %p82, %p83
      %p86 = scmp.ne.s32.totalorder %s69, %s85
      %p87 = scmp.eq.s32.totalorder %s21, 0
      %p88 = por %p86, %p87
      %s89 = ssub.s32 %s22, %s34
      %p90 = scmp.eq.s32.totalorder %s89, 0
      %s92 = sadd.s32 %s91, 1
      %s93 = scalar_select %p90, %s91, %s92
      %p96 = pneg %p90
      %p97 = scmp.eq.s32.totalorder %s15, 3
      %p98 = por %p96, %p97
      %p99 = scmp.ne.s32.totalorder %s91, %s94
      %p100 = scmp.eq.s32.totalorder %s15, 0
      %p101 = por %p99, %p100
      %p102 = scmp.ne.s32.totalorder %s91, %s94
      %p103 = scmp.eq.s32.totalorder %s20, 3
      %p104 = por %p102, %p103
      %p105 = scmp.ne.s32.totalorder %s94, %s95
      %p106 = scmp.eq.s32.totalorder %s20, 0
      %p107 = por %p105, %p106
      %p108 = scmp.ne.s32.totalorder %s94, %s95
      %p109 = scmp.eq.s32.totalorder %s21, 3
      %p110 = por %p108, %p109
      %p112 = scmp.ne.s32.totalorder %s95, %s111
      %p113 = scmp.eq.s32.totalorder %s21, 0
      %p114 = por %p112, %p113
      %s116 = sadd.s32 %s115, 1
      %p119 = scmp.eq.s32.totalorder %s15, 3
      %p120 = scmp.ne.s32.totalorder %s115, %s117
      %p121 = scmp.eq.s32.totalorder %s15, 0
      %p122 = por %p120, %p121
      %p123 = scmp.ne.s32.totalorder %s115, %s117
      %p124 = scmp.eq.s32.totalorder %s20, 3
      %p125 = por %p123, %p124
      %p126 = scmp.ne.s32.totalorder %s117, %s118
      %p127 = scmp.eq.s32.totalorder %s20, 0
      %p128 = por %p126, %p127
      %p129 = scmp.ne.s32.totalorder %s117, %s118
      %p130 = scmp.eq.s32.totalorder %s21, 3
      %p131 = por %p129, %p130
      %p133 = scmp.ne.s32.totalorder %s118, %s132
      %p134 = scmp.eq.s32.totalorder %s21, 0
      %p135 = por %p133, %p134
      %s136 = ssub.s32 %s22, %s34
      %p137 = scmp.eq.s32.totalorder %s136, 0
      %s139 = sadd.s32 %s138, 1
      %s140 = scalar_select %p137, %s138, %s139
      %p143 = pneg %p137
      %p144 = scmp.eq.s32.totalorder %s15, 3
      %p145 = por %p143, %p144
      %p146 = scmp.ne.s32.totalorder %s138, %s141
      %p147 = scmp.eq.s32.totalorder %s15, 0
      %p148 = por %p146, %p147
      %p149 = scmp.ne.s32.totalorder %s138, %s141
      %p150 = scmp.eq.s32.totalorder %s20, 3
      %p151 = por %p149, %p150
      %p152 = scmp.ne.s32.totalorder %s141, %s142
      %p153 = scmp.eq.s32.totalorder %s20, 0
      %p154 = por %p152, %p153
      %p155 = scmp.ne.s32.totalorder %s141, %s142
      %p156 = scmp.eq.s32.totalorder %s21, 3
      %p157 = por %p155, %p156
      %p159 = scmp.ne.s32.totalorder %s142, %s158
      %p160 = scmp.eq.s32.totalorder %s21, 0
      %p161 = por %p159, %p160
      %s162 = ssub.s32 %s22, %s34
      %p163 = scmp.eq.s32.totalorder %s162, 0
      %s165 = sadd.s32 %s164, 1
      %s166 = scalar_select %p163, %s164, %s165
      %p169 = pneg %p163
      %p170 = scmp.eq.s32.totalorder %s15, 3
      %p171 = por %p169, %p170
      %p172 = scmp.ne.s32.totalorder %s164, %s167
      %p173 = scmp.eq.s32.totalorder %s15, 0
      %p174 = por %p172, %p173
      %p175 = scmp.ne.s32.totalorder %s164, %s167
      %p176 = scmp.eq.s32.totalorder %s20, 3
      %p177 = por %p175, %p176
      %p178 = scmp.ne.s32.totalorder %s167, %s168
      %p179 = scmp.eq.s32.totalorder %s20, 0
      %p180 = por %p178, %p179
      %p181 = scmp.ne.s32.totalorder %s167, %s168
      %p182 = scmp.eq.s32.totalorder %s21, 3
      %p183 = por %p181, %p182
      %p185 = scmp.ne.s32.totalorder %s168, %s184
      %p186 = scmp.eq.s32.totalorder %s21, 0
      %p187 = por %p185, %p186
      %p188 = scmp.le.s32.totalorder 1, %s15
      %p189 = scmp.lt.s32.totalorder %s15, 5
      %p190 = pnand %p188, %p189
      %p191 = pneg %p190
      // Predicated region
      $region9: #{_lambda_.10} parent=5 // pred_check
        _
      $region10: #{_lambda_.10} parent=5 // pred_check_branch
        %193 = sbr.rel (%p190) target = $region12
      $region11: #{_lambda_.10} parent=5 // pred_region
        %s194 = ssub.s32 %s15, 1
        // Predicated region
        $region13: #{_lambda_.10} parent=11 // pred_check
          %p195 = pneg %p128
        $region14: #{_lambda_.10} parent=11 // pred_check_branch
          %197 = sbr.rel (%p195) target = $region16
        $region15: #{_lambda_.10} parent=11 // pred_region
          _
        $region16: #{_lambda_.10} parent=11 // pred_fallthru
          _
      $region12: #{_lambda_.10} parent=5 // pred_fallthru
        _
      %p198 = scmp.lt.s32.totalorder %s15, 4
      // Predicated region
      $region17: #{_lambda_.10} parent=5 // pred_check
        %p199 = pneg %p198
      $region18: #{_lambda_.10} parent=5 // pred_check_branch
        %201 = sbr.rel (%p199) target = $region20
      $region19: #{_lambda_.10} parent=5 // pred_region
        // Predicated region
        $region21: #{_lambda_.10} parent=19 // pred_check
          %p202 = pneg %p49
        $region22: #{_lambda_.10} parent=19 // pred_check_branch
          %204 = sbr.rel (%p202) target = $region24
        $region23: #{_lambda_.10} parent=19 // pred_region
          %s205 = smul.u32 16, %s22
          %p206 = scmp.lt.s32.totalorder %s23, 1
          %s207 = scalar_select %p206, %s23, 1
          %p208 = scmp.lt.s32.totalorder %s205, 31
          %s209 = scalar_select %p208, %s205, 31
          %s210 = smul.addr %s207, 32
          %s211 = sadd.s32 %s209, %s210
          %s212 = smul.addr %s211, 4
          %s213 = scalar_lea.vmem %s0, %s212
          %s214 = smul.u32 16, %s22
        $region24: #{_lambda_.10} parent=19 // pred_fallthru
          _
        // Predicated region
        $region25: #{_lambda_.10} parent=19 // pred_check
          %p215 = pneg %p75
        $region26: #{_lambda_.10} parent=19 // pred_check_branch
          %217 = sbr.rel (%p215) target = $region28
        $region27: #{_lambda_.10} parent=19 // pred_region
          %p218 = scmp.lt.s32.totalorder %s23, 1
          %s219 = scalar_select %p218, %s23, 1
          %s220 = smul.addr %s219, 16
          %s221 = smul.addr %s220, 4
          %s222 = scalar_lea.vmem %s1, %s221
        $region28: #{_lambda_.10} parent=19 // pred_fallthru
          _
        // Predicated region
        $region29: #{_lambda_.10} parent=19 // pred_check
          %p223 = pneg %p101
        $region30: #{_lambda_.10} parent=19 // pred_check_branch
          %225 = sbr.rel (%p223) target = $region32
        $region31: #{_lambda_.10} parent=19 // pred_region
          %s226 = smul.u32 16, %s22
          %p227 = scmp.lt.s32.totalorder %s226, 31
          %s228 = scalar_select %p227, %s226, 31
          %s229 = smul.addr %s228, 2
          %s230 = smul.addr %s229, 8
          %s231 = scalar_lea.vmem %s2, %s230
          %s232 = smul.u32 16, %s22
        $region32: #{_lambda_.10} parent=19 // pred_fallthru
          _
      $region20: #{_lambda_.10} parent=5 // pred_fallthru
        _
      %p233 = scmp.le.s32.totalorder 1, %s15
      %p234 = scmp.lt.s32.totalorder %s15, 5
      %p235 = pnand %p233, %p234
      %p236 = pneg %p235
      // Predicated region
      $region33: #{_lambda_.10} parent=5 // pred_check
        _
      $region34: #{_lambda_.10} parent=5 // pred_check_branch
        %238 = sbr.rel (%p235) target = $region36
      $region35: #{_lambda_.10} parent=5 // pred_region
        %s239 = ssub.s32 %s15, 1
        %s240 = smul.u32 16, %s24
        %p241 = scmp.lt.s32.totalorder %s25, 1
        %s242 = scalar_select %p241, %s25, 1
        %p243 = scmp.lt.s32.totalorder %s240, 31
        %s244 = scalar_select %p243, %s240, 31
        %s245 = smul.addr %s242, 32
        %s246 = sadd.s32 %s244, %s245
        %s247 = smul.addr %s246, 4
        %s248 = scalar_lea.vmem %s0, %s247
        %p249 = pneg %p55
        %p250 = pneg %p52
        %p251 = scmp.lt.s32.totalorder %s25, 1
        %s252 = scalar_select %p251, %s25, 1
        %s253 = smul.addr %s252, 16
        %s254 = smul.addr %s253, 4
        %s255 = scalar_lea.vmem %s1, %s254
        %p256 = pneg %p81
        %p257 = pneg %p78
        %s258 = smul.u32 16, %s24
        %p259 = scmp.lt.s32.totalorder %s258, 31
        %s260 = scalar_select %p259, %s258, 31
        %s261 = smul.addr %s260, 2
        %s262 = smul.addr %s261, 8
        %s263 = scalar_lea.vmem %s2, %s262
        %p264 = pneg %p107
        %p265 = pneg %p104
        %p266 = pneg %p128
        %p267 = pneg %p125
        %p268 = pneg %p154
        %p269 = pneg %p151
        %s270 = smul.u32 16, %s24
        %p271 = scmp.lt.s32.totalorder %s270, 31
        %s272 = scalar_select %p271, %s270, 31
        %s273 = smul.addr %s272, 2
        %s274 = smul.addr %s273, 4
        %s275 = scalar_lea.vmem %s4, %s274
        %p276 = pneg %p180
        %p277 = pneg %p177
        %s278 = sand.u32 %s167, 1
        %s279 = scalar_lea.sflag [#allocation4], %s278
        %s280 = sand.u32 %s167, 1
        %s281 = smul.addr %s280, 256
        %s282 = scalar_lea.vmem [#allocation3], %s281
        %s283 = smul.u32 16, %s24
        %p284 = scmp.lt.s32.totalorder %s25, 1
        %s285 = scalar_select %p284, %s25, 1
        %p286 = scmp.lt.s32.totalorder %s283, 31
        %s287 = scalar_select %p286, %s283, 31
        %s288 = smul.addr %s285, 32
        %s289 = sadd.s32 %s287, %s288
        %s290 = smul.addr %s289, 4
        %s291 = scalar_lea.vmem %s0, %s290
        %s292 = smul.u32 16, %s24
        %p293 = scmp.lt.s32.totalorder %s25, 1
        %s294 = scalar_select %p293, %s25, 1
        %s295 = smul.addr %s294, 16
        %s296 = smul.addr %s295, 4
        %s297 = scalar_lea.vmem %s1, %s296
        %s298 = smul.u32 16, %s24
        %p299 = scmp.lt.s32.totalorder %s298, 31
        %s300 = scalar_select %p299, %s298, 31
        %s301 = smul.addr %s300, 2
        %s302 = smul.addr %s301, 8
        %s303 = scalar_lea.vmem %s2, %s302
        %s304 = smul.u32 16, %s24
        %s305 = smul.u32 16, %s24
        %p306 = scmp.lt.s32.totalorder %s305, 31
        %s307 = scalar_select %p306, %s305, 31
        %s308 = smul.addr %s307, 2
        %s309 = smul.addr %s308, 4
        %s310 = scalar_lea.vmem %s4, %s309
        %s311 = smul.u32 16, %s24
        %s312 = smul.u32 16, %s24
        %p314 = scmp.eq.s32.totalorder %s25, 0
        // Predicated region
        $region37: #{_lambda_.10} parent=35 // pred_check
          %p315 = pneg %p314
        $region38: #{_lambda_.10} parent=35 // pred_check_branch
          %317 = sbr.rel (%p315) target = $region40
        $region39: #{_lambda_.10} parent=35 // pred_region
          %318 = vst [vmem:[#allocation2] sm:$0xff] 0.0
          %319 = vst [vmem:[#allocation2 + $0x8] sm:$0xff] 0.0
          %320 = vst [vmem:[#allocation2 + $0x10] sm:$0xff] 0.0
          %321 = vst [vmem:[#allocation2 + $0x18] sm:$0xff] 0.0
          %322 = vst [vmem:[#allocation2 + $0x20] sm:$0xff] 0.0
          %323 = vst [vmem:[#allocation2 + $0x28] sm:$0xff] 0.0
          %324 = vst [vmem:[#allocation2 + $0x30] sm:$0xff] 0.0
          %325 = vst [vmem:[#allocation2 + $0x38] sm:$0xff] 0.0
          %326 = vst [vmem:[#allocation2 + $0x40] sm:$0xff] 0.0
          %327 = vst [vmem:[#allocation2 + $0x48] sm:$0xff] 0.0
          %328 = vst [vmem:[#allocation2 + $0x50] sm:$0xff] 0.0
          %329 = vst [vmem:[#allocation2 + $0x58] sm:$0xff] 0.0
          %330 = vst [vmem:[#allocation2 + $0x60] sm:$0xff] 0.0
          %331 = vst [vmem:[#allocation2 + $0x68] sm:$0xff] 0.0
          %332 = vst [vmem:[#allocation2 + $0x70] sm:$0xff] 0.0
          %333 = vst [vmem:[#allocation2 + $0x78] sm:$0xff] 0.0
          %334 = vst [vmem:[#allocation2 + $0x80] sm:$0xff] 0.0
          %335 = vst [vmem:[#allocation2 + $0x88] sm:$0xff] 0.0
          %336 = vst [vmem:[#allocation2 + $0x90] sm:$0xff] 0.0
          %337 = vst [vmem:[#allocation2 + $0x98] sm:$0xff] 0.0
          %338 = vst [vmem:[#allocation2 + $0xa0] sm:$0xff] 0.0
          %339 = vst [vmem:[#allocation2 + $0xa8] sm:$0xff] 0.0
          %340 = vst [vmem:[#allocation2 + $0xb0] sm:$0xff] 0.0
          %341 = vst [vmem:[#allocation2 + $0xb8] sm:$0xff] 0.0
          %342 = vst [vmem:[#allocation2 + $0xc0] sm:$0xff] 0.0
          %343 = vst [vmem:[#allocation2 + $0xc8] sm:$0xff] 0.0
          %344 = vst [vmem:[#allocation2 + $0xd0] sm:$0xff] 0.0
          %345 = vst [vmem:[#allocation2 + $0xd8] sm:$0xff] 0.0
          %346 = vst [vmem:[#allocation2 + $0xe0] sm:$0xff] 0.0
          %347 = vst [vmem:[#allocation2 + $0xe8] sm:$0xff] 0.0
          %348 = vst [vmem:[#allocation2 + $0xf0] sm:$0xff] 0.0
          %349 = vst [vmem:[#allocation2 + $0xf8] sm:$0xff] 0.0
        $region40: #{_lambda_.10} parent=35 // pred_fallthru
          _
        %v350 = vld [vmem:[#allocation2] sm:$0xff]
        %v351 = vld [vmem:[#allocation2 + $0x8] sm:$0xff]
        %v352 = vld [vmem:[#allocation2 + $0x10] sm:$0xff]
        %v353 = vld [vmem:[#allocation2 + $0x18] sm:$0xff]
        %v354 = vld [vmem:[#allocation2 + $0x20] sm:$0xff]
        %v355 = vld [vmem:[#allocation2 + $0x28] sm:$0xff]
        %v356 = vld [vmem:[#allocation2 + $0x30] sm:$0xff]
        %v357 = vld [vmem:[#allocation2 + $0x38] sm:$0xff]
        %v358 = vld [vmem:[#allocation2 + $0x40] sm:$0xff]
        %v359 = vld [vmem:[#allocation2 + $0x48] sm:$0xff]
        %v360 = vld [vmem:[#allocation2 + $0x50] sm:$0xff]
        %v361 = vld [vmem:[#allocation2 + $0x58] sm:$0xff]
        %v362 = vld [vmem:[#allocation2 + $0x60] sm:$0xff]
        %v363 = vld [vmem:[#allocation2 + $0x68] sm:$0xff]
        %v364 = vld [vmem:[#allocation2 + $0x70] sm:$0xff]
        %v365 = vld [vmem:[#allocation2 + $0x78] sm:$0xff]
        %v366 = vld [vmem:[#allocation2 + $0x80] sm:$0xff]
        %v367 = vld [vmem:[#allocation2 + $0x88] sm:$0xff]
        %v368 = vld [vmem:[#allocation2 + $0x90] sm:$0xff]
        %v369 = vld [vmem:[#allocation2 + $0x98] sm:$0xff]
        %v370 = vld [vmem:[#allocation2 + $0xa0] sm:$0xff]
        %v371 = vld [vmem:[#allocation2 + $0xa8] sm:$0xff]
        %v372 = vld [vmem:[#allocation2 + $0xb0] sm:$0xff]
        %v373 = vld [vmem:[#allocation2 + $0xb8] sm:$0xff]
        %v374 = vld [vmem:[#allocation2 + $0xc0] sm:$0xff]
        %v375 = vld [vmem:[#allocation2 + $0xc8] sm:$0xff]
        %v376 = vld [vmem:[#allocation2 + $0xd0] sm:$0xff]
        %v377 = vld [vmem:[#allocation2 + $0xd8] sm:$0xff]
        %v378 = vld [vmem:[#allocation2 + $0xe0] sm:$0xff]
        %v379 = vld [vmem:[#allocation2 + $0xe8] sm:$0xff]
        %v380 = vld [vmem:[#allocation2 + $0xf0] sm:$0xff]
        %v381 = vld [vmem:[#allocation2 + $0xf8] sm:$0xff]
        %v382 = vld [vmem:[%s291] sm:$0xf]
        %v383 = vld [vmem:[%s291 + $0x4] sm:$0xf]
        %v384 = vld [vmem:[%s291 + $0x8] sm:$0xf]
        %v385 = vld [vmem:[%s291 + $0xc] sm:$0xf]
        %v386 = vld [vmem:[%s291 + $0x10] sm:$0xf]
        %v387 = vld [vmem:[%s291 + $0x14] sm:$0xf]
        %v388 = vld [vmem:[%s291 + $0x18] sm:$0xf]
        %v389 = vld [vmem:[%s291 + $0x1c] sm:$0xf]
        %v390 = vld [vmem:[%s291 + $0x20] sm:$0xf]
        %v391 = vld [vmem:[%s291 + $0x24] sm:$0xf]
        %v392 = vld [vmem:[%s291 + $0x28] sm:$0xf]
        %v393 = vld [vmem:[%s291 + $0x2c] sm:$0xf]
        %v394 = vld [vmem:[%s291 + $0x30] sm:$0xf]
        %v395 = vld [vmem:[%s291 + $0x34] sm:$0xf]
        %v396 = vld [vmem:[%s291 + $0x38] sm:$0xf]
        %v397 = vld [vmem:[%s291 + $0x3c] sm:$0xf]
        %v398 = vld [vmem:[%s297] sm:$0xff]
        %v399 = vld [vmem:[%s297 + $0x8] sm:$0xff]
        %v400 = vld [vmem:[%s297 + $0x10] sm:$0xff]
        %v401 = vld [vmem:[%s297 + $0x18] sm:$0xff]
        %v402 = vld [vmem:[%s297 + $0x20] sm:$0xff]
        %v403 = vld [vmem:[%s297 + $0x28] sm:$0xff]
        %v404 = vld [vmem:[%s297 + $0x30] sm:$0xff]
        %v405 = vld [vmem:[%s297 + $0x38] sm:$0xff]
        %v422 = vunpack.c.l.b16 %v382
        %v423 = vunpack.c.l.b16 %v383
        %v424 = vunpack.c.l.b16 %v384
        %v425 = vunpack.c.l.b16 %v385
        %v426 = vunpack.c.l.b16 %v386
        %v427 = vunpack.c.l.b16 %v387
        %v428 = vunpack.c.l.b16 %v388
        %v429 = vunpack.c.l.b16 %v389
        %v430 = vunpack.c.l.b16 %v390
        %v431 = vunpack.c.l.b16 %v391
        %v432 = vunpack.c.l.b16 %v392
        %v433 = vunpack.c.l.b16 %v393
        %v434 = vunpack.c.l.b16 %v394
        %v435 = vunpack.c.l.b16 %v395
        %v436 = vunpack.c.l.b16 %v396
        %v437 = vunpack.c.l.b16 %v397
        %v438 = vpack.c.b16 %v423, %v422
        %v439 = vpack.c.b16 %v425, %v424
        %v440 = vpack.c.b16 %v427, %v426
        %v441 = vpack.c.b16 %v429, %v428
        %v442 = vpack.c.b16 %v431, %v430
        %v443 = vpack.c.b16 %v433, %v432
        %v444 = vpack.c.b16 %v435, %v434
        %v445 = vpack.c.b16 %v437, %v436
        %v454 = vunpack.c.l.b16 %v398
        %v455 = vunpack.c.h.b16 %v398
        %v456 = vunpack.c.l.b16 %v399
        %v457 = vunpack.c.h.b16 %v399
        %v458 = vunpack.c.l.b16 %v400
        %v459 = vunpack.c.h.b16 %v400
        %v460 = vunpack.c.l.b16 %v401
        %v461 = vunpack.c.h.b16 %v401
        %v462 = vunpack.c.l.b16 %v402
        %v463 = vunpack.c.h.b16 %v402
        %v464 = vunpack.c.l.b16 %v403
        %v465 = vunpack.c.h.b16 %v403
        %v466 = vunpack.c.l.b16 %v404
        %v467 = vunpack.c.h.b16 %v404
        %v468 = vunpack.c.l.b16 %v405
        %v469 = vunpack.c.h.b16 %v405
        %v470 = vpack.c.b16 %v456, %v454
        %v471 = vpack.c.b16 %v457, %v455
        %v472 = vpack.c.b16 %v460, %v458
        %v473 = vpack.c.b16 %v461, %v459
        %v474 = vpack.c.b16 %v464, %v462
        %v475 = vpack.c.b16 %v465, %v463
        %v476 = vpack.c.b16 %v468, %v466
        %v477 = vpack.c.b16 %v469, %v467
        %vm486 = vcmask 523264
        %v488 = vsel %vm486, %v438, 0
        %v491 = vsel %vm486, %v439, 0
        %v494 = vsel %vm486, %v440, 0
        %v497 = vsel %vm486, %v441, 0
        %v500 = vsel %vm486, %v442, 0
        %v503 = vsel %vm486, %v443, 0
        %v506 = vsel %vm486, %v444, 0
        %v509 = vsel %vm486, %v445, 0
        %511 = vmatprep.subr.bf16.mxu0 %v471
        %512 = vmatpush1.bf16.msra.mxu0 %v470
        %513 = vmatprep.subr.bf16.mxu0 %v473
        %514 = vmatpush1.bf16.msra.mxu0 %v472
        %515 = vmatprep.subr.bf16.mxu0 %v475
        %516 = vmatpush1.bf16.msra.mxu0 %v474
        %517 = vmatprep.subr.bf16.mxu0 %v477
        %518 = vmatpush1.bf16.msra.mxu0 %v476
        %519 = vmatprep.subr.bf16.mxu0 0
        %520 = vmatpush1.bf16.msra.mxu0 0
        %521 = vmatprep.subr.bf16.mxu0 0
        %522 = vmatpush1.bf16.msra.mxu0 0
        %523 = vmatprep.subr.bf16.mxu0 0
        %524 = vmatpush1.bf16.msra.mxu0 0
        %525 = vmatprep.subr.bf16.mxu0 0
        %526 = vmatpush1.bf16.msra.mxu0 0
        %527 = vmatprep.subr.bf16.mxu0 0
        %528 = vmatpush1.bf16.msra.mxu0 0
        %529 = vmatprep.subr.bf16.mxu0 0
        %530 = vmatpush1.bf16.msra.mxu0 0
        %531 = vmatprep.subr.bf16.mxu0 0
        %532 = vmatpush1.bf16.msra.mxu0 0
        %533 = vmatprep.subr.bf16.mxu0 0
        %534 = vmatpush1.bf16.msra.mxu0 0
        %535 = vmatprep.subr.bf16.mxu0 0
        %536 = vmatpush1.bf16.msra.mxu0 0
        %537 = vmatprep.subr.bf16.mxu0 0
        %538 = vmatpush1.bf16.msra.mxu0 0
        %539 = vmatprep.subr.bf16.mxu0 0
        %540 = vmatpush1.bf16.msra.mxu0 0
        %541 = vmatprep.subr.bf16.mxu0 0
        %542 = vmatpush1.bf16.msra.mxu0 0
        %543 = vmatprep.mubr.bf16.mxu0 0
        %544 = vmatmul.mubr.bf16.gmra.mrb[0].mxu0 %v488
        %v545 = vpop.f32.mrb[0].mxu0
        %v546 = vadd.f32 0.0, %v545
        %v547 = vpop.f32.mrb[0].mxu0
        %v548 = vadd.f32 0.0, %v547
        %v549 = vpop.f32.mrb[0].mxu0
        %v550 = vadd.f32 0.0, %v549
        %v551 = vpop.f32.mrb[0].mxu0
        %v552 = vadd.f32 0.0, %v551
        %553 = vmatprep.mubr.bf16.mxu0 0
        %554 = vmatmul.mubr.bf16.gmra.mrb[0].mxu0 %v491
        %v555 = vpop.f32.mrb[0].mxu0
        %v556 = vadd.f32 0.0, %v555
        %v557 = vpop.f32.mrb[0].mxu0
        %v558 = vadd.f32 0.0, %v557
        %v559 = vpop.f32.mrb[0].mxu0
        %v560 = vadd.f32 0.0, %v559
        %v561 = vpop.f32.mrb[0].mxu0
        %v562 = vadd.f32 0.0, %v561
        %563 = vmatprep.mubr.bf16.mxu0 0
        %564 = vmatmul.mubr.bf16.gmra.mrb[0].mxu0 %v494
        %v565 = vpop.f32.mrb[0].mxu0
        %v566 = vadd.f32 0.0, %v565
        %v567 = vpop.f32.mrb[0].mxu0
        %v568 = vadd.f32 0.0, %v567
        %v569 = vpop.f32.mrb[0].mxu0
        %v570 = vadd.f32 0.0, %v569
        %v571 = vpop.f32.mrb[0].mxu0
        %v572 = vadd.f32 0.0, %v571
        %573 = vmatprep.mubr.bf16.mxu0 0
        %574 = vmatmul.mubr.bf16.gmra.mrb[0].mxu0 %v497
        %v575 = vpop.f32.mrb[0].mxu0
        %v576 = vadd.f32 0.0, %v575
        %v577 = vpop.f32.mrb[0].mxu0
        %v578 = vadd.f32 0.0, %v577
        %v579 = vpop.f32.mrb[0].mxu0
        %v580 = vadd.f32 0.0, %v579
        %v581 = vpop.f32.mrb[0].mxu0
        %v582 = vadd.f32 0.0, %v581
        %583 = vmatprep.mubr.bf16.mxu0 0
        %584 = vmatmul.mubr.bf16.gmra.mrb[0].mxu0 %v500
        %v585 = vpop.f32.mrb[0].mxu0
        %v586 = vadd.f32 0.0, %v585
        %v587 = vpop.f32.mrb[0].mxu0
        %v588 = vadd.f32 0.0, %v587
        %v589 = vpop.f32.mrb[0].mxu0
        %v590 = vadd.f32 0.0, %v589
        %v591 = vpop.f32.mrb[0].mxu0
        %v592 = vadd.f32 0.0, %v591
        %593 = vmatprep.mubr.bf16.mxu0 0
        %594 = vmatmul.mubr.bf16.gmra.mrb[0].mxu0 %v503
        %v595 = vpop.f32.mrb[0].mxu0
        %v596 = vadd.f32 0.0, %v595
        %v597 = vpop.f32.mrb[0].mxu0
        %v598 = vadd.f32 0.0, %v597
        %v599 = vpop.f32.mrb[0].mxu0
        %v600 = vadd.f32 0.0, %v599
        %v601 = vpop.f32.mrb[0].mxu0
        %v602 = vadd.f32 0.0, %v601
        %603 = vmatprep.mubr.bf16.mxu0 0
        %604 = vmatmul.mubr.bf16.gmra.mrb[0].mxu0 %v506
        %v605 = vpop.f32.mrb[0].mxu0
        %v606 = vadd.f32 0.0, %v605
        %v607 = vpop.f32.mrb[0].mxu0
        %v608 = vadd.f32 0.0, %v607
        %v609 = vpop.f32.mrb[0].mxu0
        %v610 = vadd.f32 0.0, %v609
        %v611 = vpop.f32.mrb[0].mxu0
        %v612 = vadd.f32 0.0, %v611
        %613 = vmatprep.mubr.bf16.mxu0 0
        %614 = vmatmul.mubr.bf16.gmra.mrb[0].mxu0 %v509
        %v615 = vpop.f32.mrb[0].mxu0
        %v616 = vadd.f32 0.0, %v615
        %v617 = vpop.f32.mrb[0].mxu0
        %v618 = vadd.f32 0.0, %v617
        %v619 = vpop.f32.mrb[0].mxu0
        %v620 = vadd.f32 0.0, %v619
        %v621 = vpop.f32.mrb[0].mxu0
        %v622 = vadd.f32 0.0, %v621
        %623 = vdwg.mxu0
        %v624 = vadd.f32 %v350, %v546
        %v625 = vadd.f32 %v351, %v548
        %v626 = vadd.f32 %v352, %v550
        %v627 = vadd.f32 %v353, %v552
        %v628 = vadd.f32 %v354, %v556
        %v629 = vadd.f32 %v355, %v558
        %v630 = vadd.f32 %v356, %v560
        %v631 = vadd.f32 %v357, %v562
        %v632 = vadd.f32 %v358, %v566
        %v633 = vadd.f32 %v359, %v568
        %v634 = vadd.f32 %v360, %v570
        %v635 = vadd.f32 %v361, %v572
        %v636 = vadd.f32 %v362, %v576
        %v637 = vadd.f32 %v363, %v578
        %v638 = vadd.f32 %v364, %v580
        %v639 = vadd.f32 %v365, %v582
        %v640 = vadd.f32 %v366, %v586
        %v641 = vadd.f32 %v367, %v588
        %v642 = vadd.f32 %v368, %v590
        %v643 = vadd.f32 %v369, %v592
        %v644 = vadd.f32 %v370, %v596
        %v645 = vadd.f32 %v371, %v598
        %v646 = vadd.f32 %v372, %v600
        %v647 = vadd.f32 %v373, %v602
        %v648 = vadd.f32 %v374, %v606
        %v649 = vadd.f32 %v375, %v608
        %v650 = vadd.f32 %v376, %v610
        %v651 = vadd.f32 %v377, %v612
        %v652 = vadd.f32 %v378, %v616
        %v653 = vadd.f32 %v379, %v618
        %v654 = vadd.f32 %v380, %v620
        %v655 = vadd.f32 %v381, %v622
        %656 = vst [vmem:[#allocation2] sm:$0xff] %v624
        %657 = vst [vmem:[#allocation2 + $0x8] sm:$0xff] %v625
        %658 = vst [vmem:[#allocation2 + $0x10] sm:$0xff] %v626
        %659 = vst [vmem:[#allocation2 + $0x18] sm:$0xff] %v627
        %660 = vst [vmem:[#allocation2 + $0x20] sm:$0xff] %v628
        %661 = vst [vmem:[#allocation2 + $0x28] sm:$0xff] %v629
        %662 = vst [vmem:[#allocation2 + $0x30] sm:$0xff] %v630
        %663 = vst [vmem:[#allocation2 + $0x38] sm:$0xff] %v631
        %664 = vst [vmem:[#allocation2 + $0x40] sm:$0xff] %v632
        %665 = vst [vmem:[#allocation2 + $0x48] sm:$0xff] %v633
        %666 = vst [vmem:[#allocation2 + $0x50] sm:$0xff] %v634
        %667 = vst [vmem:[#allocation2 + $0x58] sm:$0xff] %v635
        %668 = vst [vmem:[#allocation2 + $0x60] sm:$0xff] %v636
        %669 = vst [vmem:[#allocation2 + $0x68] sm:$0xff] %v637
        %670 = vst [vmem:[#allocation2 + $0x70] sm:$0xff] %v638
        %671 = vst [vmem:[#allocation2 + $0x78] sm:$0xff] %v639
        %672 = vst [vmem:[#allocation2 + $0x80] sm:$0xff] %v640
        %673 = vst [vmem:[#allocation2 + $0x88] sm:$0xff] %v641
        %674 = vst [vmem:[#allocation2 + $0x90] sm:$0xff] %v642
        %675 = vst [vmem:[#allocation2 + $0x98] sm:$0xff] %v643
        %676 = vst [vmem:[#allocation2 + $0xa0] sm:$0xff] %v644
        %677 = vst [vmem:[#allocation2 + $0xa8] sm:$0xff] %v645
        %678 = vst [vmem:[#allocation2 + $0xb0] sm:$0xff] %v646
        %679 = vst [vmem:[#allocation2 + $0xb8] sm:$0xff] %v647
        %680 = vst [vmem:[#allocation2 + $0xc0] sm:$0xff] %v648
        %681 = vst [vmem:[#allocation2 + $0xc8] sm:$0xff] %v649
        %682 = vst [vmem:[#allocation2 + $0xd0] sm:$0xff] %v650
        %683 = vst [vmem:[#allocation2 + $0xd8] sm:$0xff] %v651
        %684 = vst [vmem:[#allocation2 + $0xe0] sm:$0xff] %v652
        %685 = vst [vmem:[#allocation2 + $0xe8] sm:$0xff] %v653
        %686 = vst [vmem:[#allocation2 + $0xf0] sm:$0xff] %v654
        %687 = vst [vmem:[#allocation2 + $0xf8] sm:$0xff] %v655
        %p688 = scmp.eq.s32.totalorder %s25, 1
        // Predicated region
        $region41: #{_lambda_.10} parent=35 // pred_check
          %p689 = pneg %p688
        $region42: #{_lambda_.10} parent=35 // pred_check_branch
          %691 = sbr.rel (%p689) target = $region44
        $region43: #{_lambda_.10} parent=35 // pred_region
          %v692 = vld [vmem:[#allocation2] sm:$0xff]
          %v693 = vld [vmem:[#allocation2 + $0x8] sm:$0xff]
          %v694 = vld [vmem:[#allocation2 + $0x10] sm:$0xff]
          %v695 = vld [vmem:[#allocation2 + $0x18] sm:$0xff]
          %v696 = vld [vmem:[#allocation2 + $0x20] sm:$0xff]
          %v697 = vld [vmem:[#allocation2 + $0x28] sm:$0xff]
          %v698 = vld [vmem:[#allocation2 + $0x30] sm:$0xff]
          %v699 = vld [vmem:[#allocation2 + $0x38] sm:$0xff]
          %v700 = vld [vmem:[#allocation2 + $0x40] sm:$0xff]
          %v701 = vld [vmem:[#allocation2 + $0x48] sm:$0xff]
          %v702 = vld [vmem:[#allocation2 + $0x50] sm:$0xff]
          %v703 = vld [vmem:[#allocation2 + $0x58] sm:$0xff]
          %v704 = vld [vmem:[#allocation2 + $0x60] sm:$0xff]
          %v705 = vld [vmem:[#allocation2 + $0x68] sm:$0xff]
          %v706 = vld [vmem:[#allocation2 + $0x70] sm:$0xff]
          %v707 = vld [vmem:[#allocation2 + $0x78] sm:$0xff]
          %v708 = vld [vmem:[#allocation2 + $0x80] sm:$0xff]
          %v709 = vld [vmem:[#allocation2 + $0x88] sm:$0xff]
          %v710 = vld [vmem:[#allocation2 + $0x90] sm:$0xff]
          %v711 = vld [vmem:[#allocation2 + $0x98] sm:$0xff]
          %v712 = vld [vmem:[#allocation2 + $0xa0] sm:$0xff]
          %v713 = vld [vmem:[#allocation2 + $0xa8] sm:$0xff]
          %v714 = vld [vmem:[#allocation2 + $0xb0] sm:$0xff]
          %v715 = vld [vmem:[#allocation2 + $0xb8] sm:$0xff]
          %v716 = vld [vmem:[#allocation2 + $0xc0] sm:$0xff]
          %v717 = vld [vmem:[#allocation2 + $0xc8] sm:$0xff]
          %v718 = vld [vmem:[#allocation2 + $0xd0] sm:$0xff]
          %v719 = vld [vmem:[#allocation2 + $0xd8] sm:$0xff]
          %v720 = vld [vmem:[#allocation2 + $0xe0] sm:$0xff]
          %v721 = vld [vmem:[#allocation2 + $0xe8] sm:$0xff]
          %v722 = vld [vmem:[#allocation2 + $0xf0] sm:$0xff]
          %v723 = vld [vmem:[#allocation2 + $0xf8] sm:$0xff]
          %v724 = vld [vmem:[%s303] sm:$0xff]
          %v725 = vld [vmem:[%s303 + $0x8] sm:$0xff]
          %v726 = vld [vmem:[%s303 + $0x10] sm:$0xff]
          %v727 = vld [vmem:[%s303 + $0x18] sm:$0xff]
          %v728 = vld [vmem:[%s303 + $0x20] sm:$0xff]
          %v729 = vld [vmem:[%s303 + $0x28] sm:$0xff]
          %v730 = vld [vmem:[%s303 + $0x30] sm:$0xff]
          %v731 = vld [vmem:[%s303 + $0x38] sm:$0xff]
          %v732 = vld [vmem:[%s303 + $0x40] sm:$0xff]
          %v733 = vld [vmem:[%s303 + $0x48] sm:$0xff]
          %v734 = vld [vmem:[%s303 + $0x50] sm:$0xff]
          %v735 = vld [vmem:[%s303 + $0x58] sm:$0xff]
          %v736 = vld [vmem:[%s303 + $0x60] sm:$0xff]
          %v737 = vld [vmem:[%s303 + $0x68] sm:$0xff]
          %v738 = vld [vmem:[%s303 + $0x70] sm:$0xff]
          %v739 = vld [vmem:[%s303 + $0x78] sm:$0xff]
          %v740 = vld [vmem:[%s303 + $0x80] sm:$0xff]
          %v741 = vld [vmem:[%s303 + $0x88] sm:$0xff]
          %v742 = vld [vmem:[%s303 + $0x90] sm:$0xff]
          %v743 = vld [vmem:[%s303 + $0x98] sm:$0xff]
          %v744 = vld [vmem:[%s303 + $0xa0] sm:$0xff]
          %v745 = vld [vmem:[%s303 + $0xa8] sm:$0xff]
          %v746 = vld [vmem:[%s303 + $0xb0] sm:$0xff]
          %v747 = vld [vmem:[%s303 + $0xb8] sm:$0xff]
          %v748 = vld [vmem:[%s303 + $0xc0] sm:$0xff]
          %v749 = vld [vmem:[%s303 + $0xc8] sm:$0xff]
          %v750 = vld [vmem:[%s303 + $0xd0] sm:$0xff]
          %v751 = vld [vmem:[%s303 + $0xd8] sm:$0xff]
          %v752 = vld [vmem:[%s303 + $0xe0] sm:$0xff]
          %v753 = vld [vmem:[%s303 + $0xe8] sm:$0xff]
          %v754 = vld [vmem:[%s303 + $0xf0] sm:$0xff]
          %v755 = vld [vmem:[%s303 + $0xf8] sm:$0xff]
          %v756 = vadd.f32 %v692, %v724
          %v757 = vadd.f32 %v693, %v725
          %v758 = vadd.f32 %v694, %v726
          %v759 = vadd.f32 %v695, %v727
          %v760 = vadd.f32 %v696, %v728
          %v761 = vadd.f32 %v697, %v729
          %v762 = vadd.f32 %v698, %v730
          %v763 = vadd.f32 %v699, %v731
          %v764 = vadd.f32 %v700, %v732
          %v765 = vadd.f32 %v701, %v733
          %v766 = vadd.f32 %v702, %v734
          %v767 = vadd.f32 %v703, %v735
          %v768 = vadd.f32 %v704, %v736
          %v769 = vadd.f32 %v705, %v737
          %v770 = vadd.f32 %v706, %v738
          %v771 = vadd.f32 %v707, %v739
          %v772 = vadd.f32 %v708, %v740
          %v773 = vadd.f32 %v709, %v741
          %v774 = vadd.f32 %v710, %v742
          %v775 = vadd.f32 %v711, %v743
          %v776 = vadd.f32 %v712, %v744
          %v777 = vadd.f32 %v713, %v745
          %v778 = vadd.f32 %v714, %v746
          %v779 = vadd.f32 %v715, %v747
          %v780 = vadd.f32 %v716, %v748
          %v781 = vadd.f32 %v717, %v749
          %v782 = vadd.f32 %v718, %v750
          %v783 = vadd.f32 %v719, %v751
          %v784 = vadd.f32 %v720, %v752
          %v785 = vadd.f32 %v721, %v753
          %v786 = vadd.f32 %v722, %v754
          %v787 = vadd.f32 %v723, %v755
          %788 = vst [vmem:[%s282] sm:$0xff] %v756
          %789 = vst [vmem:[%s282 + $0x8] sm:$0xff] %v757
          %790 = vst [vmem:[%s282 + $0x10] sm:$0xff] %v758
          %791 = vst [vmem:[%s282 + $0x18] sm:$0xff] %v759
          %792 = vst [vmem:[%s282 + $0x20] sm:$0xff] %v760
          %793 = vst [vmem:[%s282 + $0x28] sm:$0xff] %v761
          %794 = vst [vmem:[%s282 + $0x30] sm:$0xff] %v762
          %795 = vst [vmem:[%s282 + $0x38] sm:$0xff] %v763
          %796 = vst [vmem:[%s282 + $0x40] sm:$0xff] %v764
          %797 = vst [vmem:[%s282 + $0x48] sm:$0xff] %v765
          %798 = vst [vmem:[%s282 + $0x50] sm:$0xff] %v766
          %799 = vst [vmem:[%s282 + $0x58] sm:$0xff] %v767
          %800 = vst [vmem:[%s282 + $0x60] sm:$0xff] %v768
          %801 = vst [vmem:[%s282 + $0x68] sm:$0xff] %v769
          %802 = vst [vmem:[%s282 + $0x70] sm:$0xff] %v770
          %803 = vst [vmem:[%s282 + $0x78] sm:$0xff] %v771
          %804 = vst [vmem:[%s282 + $0x80] sm:$0xff] %v772
          %805 = vst [vmem:[%s282 + $0x88] sm:$0xff] %v773
          %806 = vst [vmem:[%s282 + $0x90] sm:$0xff] %v774
          %807 = vst [vmem:[%s282 + $0x98] sm:$0xff] %v775
          %808 = vst [vmem:[%s282 + $0xa0] sm:$0xff] %v776
          %809 = vst [vmem:[%s282 + $0xa8] sm:$0xff] %v777
          %810 = vst [vmem:[%s282 + $0xb0] sm:$0xff] %v778
          %811 = vst [vmem:[%s282 + $0xb8] sm:$0xff] %v779
          %812 = vst [vmem:[%s282 + $0xc0] sm:$0xff] %v780
          %813 = vst [vmem:[%s282 + $0xc8] sm:$0xff] %v781
          %814 = vst [vmem:[%s282 + $0xd0] sm:$0xff] %v782
          %815 = vst [vmem:[%s282 + $0xd8] sm:$0xff] %v783
          %816 = vst [vmem:[%s282 + $0xe0] sm:$0xff] %v784
          %817 = vst [vmem:[%s282 + $0xe8] sm:$0xff] %v785
          %818 = vst [vmem:[%s282 + $0xf0] sm:$0xff] %v786
          %819 = vst [vmem:[%s282 + $0xf8] sm:$0xff] %v787
          %v820 = vmul.f32 %v756, %v756
          %v821 = vmul.f32 %v757, %v757
          %v822 = vmul.f32 %v758, %v758
          %v823 = vmul.f32 %v759, %v759
          %v824 = vmul.f32 %v760, %v760
          %v825 = vmul.f32 %v761, %v761
          %v826 = vmul.f32 %v762, %v762
          %v827 = vmul.f32 %v763, %v763
          %v828 = vmul.f32 %v764, %v764
          %v829 = vmul.f32 %v765, %v765
          %v830 = vmul.f32 %v766, %v766
          %v831 = vmul.f32 %v767, %v767
          %v832 = vmul.f32 %v768, %v768
          %v833 = vmul.f32 %v769, %v769
          %v834 = vmul.f32 %v770, %v770
          %v835 = vmul.f32 %v771, %v771
          %v836 = vmul.f32 %v772, %v772
          %v837 = vmul.f32 %v773, %v773
          %v838 = vmul.f32 %v774, %v774
          %v839 = vmul.f32 %v775, %v775
          %v840 = vmul.f32 %v776, %v776
          %v841 = vmul.f32 %v777, %v777
          %v842 = vmul.f32 %v778, %v778
          %v843 = vmul.f32 %v779, %v779
          %v844 = vmul.f32 %v780, %v780
          %v845 = vmul.f32 %v781, %v781
          %v846 = vmul.f32 %v782, %v782
          %v847 = vmul.f32 %v783, %v783
          %v848 = vmul.f32 %v784, %v784
          %v849 = vmul.f32 %v785, %v785
          %v850 = vmul.f32 %v786, %v786
          %v851 = vmul.f32 %v787, %v787
          %v852 = vadd.f32 %v820, %v821
          %853 = vadd.xlane.f32.xlu0 %v852
          %v854 = vpop.xlane.xlu0 %853
          %v855 = vadd.f32 %v822, %v823
          %856 = vadd.xlane.f32.xlu0 %v855
          %v857 = vpop.xlane.xlu0 %856
          %v858 = vadd.f32 %v824, %v825
          %859 = vadd.xlane.f32.xlu0 %v858
          %v860 = vpop.xlane.xlu0 %859
          %v861 = vadd.f32 %v826, %v827
          %862 = vadd.xlane.f32.xlu0 %v861
          %v863 = vpop.xlane.xlu0 %862
          %v864 = vadd.f32 %v828, %v829
          %865 = vadd.xlane.f32.xlu0 %v864
          %v866 = vpop.xlane.xlu0 %865
          %v867 = vadd.f32 %v830, %v831
          %868 = vadd.xlane.f32.xlu0 %v867
          %v869 = vpop.xlane.xlu0 %868
          %v870 = vadd.f32 %v832, %v833
          %871 = vadd.xlane.f32.xlu0 %v870
          %v872 = vpop.xlane.xlu0 %871
          %v873 = vadd.f32 %v834, %v835
          %874 = vadd.xlane.f32.xlu0 %v873
          %v875 = vpop.xlane.xlu0 %874
          %v876 = vadd.f32 %v836, %v837
          %877 = vadd.xlane.f32.xlu0 %v876
          %v878 = vpop.xlane.xlu0 %877
          %v879 = vadd.f32 %v838, %v839
          %880 = vadd.xlane.f32.xlu0 %v879
          %v881 = vpop.xlane.xlu0 %880
          %v882 = vadd.f32 %v840, %v841
          %883 = vadd.xlane.f32.xlu0 %v882
          %v884 = vpop.xlane.xlu0 %883
          %v885 = vadd.f32 %v842, %v843
          %886 = vadd.xlane.f32.xlu0 %v885
          %v887 = vpop.xlane.xlu0 %886
          %v888 = vadd.f32 %v844, %v845
          %889 = vadd.xlane.f32.xlu0 %v888
          %v890 = vpop.xlane.xlu0 %889
          %v891 = vadd.f32 %v846, %v847
          %892 = vadd.xlane.f32.xlu0 %v891
          %v893 = vpop.xlane.xlu0 %892
          %v894 = vadd.f32 %v848, %v849
          %895 = vadd.xlane.f32.xlu0 %v894
          %v896 = vpop.xlane.xlu0 %895
          %v897 = vadd.f32 %v850, %v851
          %898 = vadd.xlane.f32.xlu0 %v897
          %v899 = vpop.xlane.xlu0 %898
          %v900 = vrcp.pop 256.0
          %v901 = vmul.f32 %v854, %v900
          %v902 = vmul.f32 %v857, %v900
          %v903 = vmul.f32 %v860, %v900
          %v904 = vmul.f32 %v863, %v900
          %v905 = vmul.f32 %v866, %v900
          %v906 = vmul.f32 %v869, %v900
          %v907 = vmul.f32 %v872, %v900
          %v908 = vmul.f32 %v875, %v900
          %v909 = vmul.f32 %v878, %v900
          %v910 = vmul.f32 %v881, %v900
          %v911 = vmul.f32 %v884, %v900
          %v912 = vmul.f32 %v887, %v900
          %v913 = vmul.f32 %v890, %v900
          %v914 = vmul.f32 %v893, %v900
          %v915 = vmul.f32 %v896, %v900
          %v916 = vmul.f32 %v899, %v900
          %v917 = vadd.f32 %v901, 1e-06
          %v918 = vadd.f32 %v902, 1e-06
          %v919 = vadd.f32 %v903, 1e-06
          %v920 = vadd.f32 %v904, 1e-06
          %v921 = vadd.f32 %v905, 1e-06
          %v922 = vadd.f32 %v906, 1e-06
          %v923 = vadd.f32 %v907, 1e-06
          %v924 = vadd.f32 %v908, 1e-06
          %v925 = vadd.f32 %v909, 1e-06
          %v926 = vadd.f32 %v910, 1e-06
          %v927 = vadd.f32 %v911, 1e-06
          %v928 = vadd.f32 %v912, 1e-06
          %v929 = vadd.f32 %v913, 1e-06
          %v930 = vadd.f32 %v914, 1e-06
          %v931 = vadd.f32 %v915, 1e-06
          %v932 = vadd.f32 %v916, 1e-06
          %v933 = vrsqrt.pop %v917
          %v934 = vrsqrt.pop %v918
          %v935 = vrsqrt.pop %v919
          %v936 = vrsqrt.pop %v920
          %v937 = vrsqrt.pop %v921
          %v938 = vrsqrt.pop %v922
          %v939 = vrsqrt.pop %v923
          %v940 = vrsqrt.pop %v924
          %v941 = vrsqrt.pop %v925
          %v942 = vrsqrt.pop %v926
          %v943 = vrsqrt.pop %v927
          %v944 = vrsqrt.pop %v928
          %v945 = vrsqrt.pop %v929
          %v946 = vrsqrt.pop %v930
          %v947 = vrsqrt.pop %v931
          %v948 = vrsqrt.pop %v932
          %v949 = vmul.f32 %v756, %v933
          %v950 = vmul.f32 %v757, %v933
          %v951 = vmul.f32 %v758, %v934
          %v952 = vmul.f32 %v759, %v934
          %v953 = vmul.f32 %v760, %v935
          %v954 = vmul.f32 %v761, %v935
          %v955 = vmul.f32 %v762, %v936
          %v956 = vmul.f32 %v763, %v936
          %v957 = vmul.f32 %v764, %v937
          %v958 = vmul.f32 %v765, %v937
          %v959 = vmul.f32 %v766, %v938
          %v960 = vmul.f32 %v767, %v938
          %v961 = vmul.f32 %v768, %v939
          %v962 = vmul.f32 %v769, %v939
          %v963 = vmul.f32 %v770, %v940
          %v964 = vmul.f32 %v771, %v940
          %v965 = vmul.f32 %v772, %v941
          %v966 = vmul.f32 %v773, %v941
          %v967 = vmul.f32 %v774, %v942
          %v968 = vmul.f32 %v775, %v942
          %v969 = vmul.f32 %v776, %v943
          %v970 = vmul.f32 %v777, %v943
          %v971 = vmul.f32 %v778, %v944
          %v972 = vmul.f32 %v779, %v944
          %v973 = vmul.f32 %v780, %v945
          %v974 = vmul.f32 %v781, %v945
          %v975 = vmul.f32 %v782, %v946
          %v976 = vmul.f32 %v783, %v946
          %v977 = vmul.f32 %v784, %v947
          %v978 = vmul.f32 %v785, %v947
          %v979 = vmul.f32 %v786, %v948
          %v980 = vmul.f32 %v787, %v948
          %v981 = vld [vmem:[%s3] sm:$0x3]
          %v983 = vlaneseq
          %v984 = vshrl.u32 %v983, 7
          %v985 = vsub.s32 0, %v984
          %v986 = vrot.slane %v981, %v985
          %v987 = vlaneseq
          %v988 = vshrl.u32 %v987, 7
          %v989 = vsub.s32 1, %v988
          %v990 = vrot.slane %v981, %v989
          %v993 = vmul.f32 %v949, %v986
          %v994 = vmul.f32 %v950, %v990
          %v995 = vmul.f32 %v951, %v986
          %v996 = vmul.f32 %v952, %v990
          %v997 = vmul.f32 %v953, %v986
          %v998 = vmul.f32 %v954, %v990
          %v999 = vmul.f32 %v955, %v986
          %v1000 = vmul.f32 %v956, %v990
          %v1001 = vmul.f32 %v957, %v986
          %v1002 = vmul.f32 %v958, %v990
          %v1003 = vmul.f32 %v959, %v986
          %v1004 = vmul.f32 %v960, %v990
          %v1005 = vmul.f32 %v961, %v986
          %v1006 = vmul.f32 %v962, %v990
          %v1007 = vmul.f32 %v963, %v986
          %v1008 = vmul.f32 %v964, %v990
          %v1009 = vmul.f32 %v965, %v986
          %v1010 = vmul.f32 %v966, %v990
          %v1011 = vmul.f32 %v967, %v986
          %v1012 = vmul.f32 %v968, %v990
          %v1013 = vmul.f32 %v969, %v986
          %v1014 = vmul.f32 %v970, %v990
          %v1015 = vmul.f32 %v971, %v986
          %v1016 = vmul.f32 %v972, %v990
          %v1017 = vmul.f32 %v973, %v986
          %v1018 = vmul.f32 %v974, %v990
          %v1019 = vmul.f32 %v975, %v986
          %v1020 = vmul.f32 %v976, %v990
          %v1021 = vmul.f32 %v977, %v986
          %v1022 = vmul.f32 %v978, %v990
          %v1023 = vmul.f32 %v979, %v986
          %v1024 = vmul.f32 %v980, %v990
          %v1025 = vpack.c.bf16 %v995, %v993
          %v1026 = vpack.c.bf16 %v996, %v994
          %v1027 = vpack.c.bf16 %v999, %v997
          %v1028 = vpack.c.bf16 %v1000, %v998
          %v1029 = vpack.c.bf16 %v1003, %v1001
          %v1030 = vpack.c.bf16 %v1004, %v1002
          %v1031 = vpack.c.bf16 %v1007, %v1005
          %v1032 = vpack.c.bf16 %v1008, %v1006
          %v1033 = vpack.c.bf16 %v1011, %v1009
          %v1034 = vpack.c.bf16 %v1012, %v1010
          %v1035 = vpack.c.bf16 %v1015, %v1013
          %v1036 = vpack.c.bf16 %v1016, %v1014
          %v1037 = vpack.c.bf16 %v1019, %v1017
          %v1038 = vpack.c.bf16 %v1020, %v1018
          %v1039 = vpack.c.bf16 %v1023, %v1021
          %v1040 = vpack.c.bf16 %v1024, %v1022
          %v1057 = vunpack.c.l.b16 %v1025
          %v1058 = vunpack.c.l.b16 %v1026
          %v1059 = vunpack.c.h.b16 %v1025
          %v1060 = vunpack.c.h.b16 %v1026
          %v1061 = vunpack.c.l.b16 %v1027
          %v1062 = vunpack.c.l.b16 %v1028
          %v1063 = vunpack.c.h.b16 %v1027
          %v1064 = vunpack.c.h.b16 %v1028
          %v1065 = vunpack.c.l.b16 %v1029
          %v1066 = vunpack.c.l.b16 %v1030
          %v1067 = vunpack.c.h.b16 %v1029
          %v1068 = vunpack.c.h.b16 %v1030
          %v1069 = vunpack.c.l.b16 %v1031
          %v1070 = vunpack.c.l.b16 %v1032
          %v1071 = vunpack.c.h.b16 %v1031
          %v1072 = vunpack.c.h.b16 %v1032
          %v1073 = vunpack.c.l.b16 %v1033
          %v1074 = vunpack.c.l.b16 %v1034
          %v1075 = vunpack.c.h.b16 %v1033
          %v1076 = vunpack.c.h.b16 %v1034
          %v1077 = vunpack.c.l.b16 %v1035
          %v1078 = vunpack.c.l.b16 %v1036
          %v1079 = vunpack.c.h.b16 %v1035
          %v1080 = vunpack.c.h.b16 %v1036
          %v1081 = vunpack.c.l.b16 %v1037
          %v1082 = vunpack.c.l.b16 %v1038
          %v1083 = vunpack.c.h.b16 %v1037
          %v1084 = vunpack.c.h.b16 %v1038
          %v1085 = vunpack.c.l.b16 %v1039
          %v1086 = vunpack.c.l.b16 %v1040
          %v1087 = vunpack.c.h.b16 %v1039
          %v1088 = vunpack.c.h.b16 %v1040
          %v1089 = vpack.c.b16 %v1058, %v1057
          %v1090 = vpack.c.b16 %v1060, %v1059
          %v1091 = vpack.c.b16 %v1062, %v1061
          %v1092 = vpack.c.b16 %v1064, %v1063
          %v1093 = vpack.c.b16 %v1066, %v1065
          %v1094 = vpack.c.b16 %v1068, %v1067
          %v1095 = vpack.c.b16 %v1070, %v1069
          %v1096 = vpack.c.b16 %v1072, %v1071
          %v1097 = vpack.c.b16 %v1074, %v1073
          %v1098 = vpack.c.b16 %v1076, %v1075
          %v1099 = vpack.c.b16 %v1078, %v1077
          %v1100 = vpack.c.b16 %v1080, %v1079
          %v1101 = vpack.c.b16 %v1082, %v1081
          %v1102 = vpack.c.b16 %v1084, %v1083
          %v1103 = vpack.c.b16 %v1086, %v1085
          %v1104 = vpack.c.b16 %v1088, %v1087
          %1121 = vst [vmem:[%s310] sm:$0xff] %v1089
          %1122 = vst [vmem:[%s310 + $0x8] sm:$0xff] %v1090
          %1123 = vst [vmem:[%s310 + $0x10] sm:$0xff] %v1091
          %1124 = vst [vmem:[%s310 + $0x18] sm:$0xff] %v1092
          %1125 = vst [vmem:[%s310 + $0x20] sm:$0xff] %v1093
          %1126 = vst [vmem:[%s310 + $0x28] sm:$0xff] %v1094
          %1127 = vst [vmem:[%s310 + $0x30] sm:$0xff] %v1095
          %1128 = vst [vmem:[%s310 + $0x38] sm:$0xff] %v1096
          %1129 = vst [vmem:[%s310 + $0x40] sm:$0xff] %v1097
          %1130 = vst [vmem:[%s310 + $0x48] sm:$0xff] %v1098
          %1131 = vst [vmem:[%s310 + $0x50] sm:$0xff] %v1099
          %1132 = vst [vmem:[%s310 + $0x58] sm:$0xff] %v1100
          %1133 = vst [vmem:[%s310 + $0x60] sm:$0xff] %v1101
          %1134 = vst [vmem:[%s310 + $0x68] sm:$0xff] %v1102
          %1135 = vst [vmem:[%s310 + $0x70] sm:$0xff] %v1103
          %1136 = vst [vmem:[%s310 + $0x78] sm:$0xff] %v1104
        $region44: #{_lambda_.10} parent=35 // pred_fallthru
          _
        %s1137 = smul.u32 16, %s24
        %p1138 = scmp.lt.s32.totalorder %s1137, 31
        %s1139 = scalar_select %p1138, %s1137, 31
        %s1140 = smul.addr %s1139, 2
        %s1141 = smul.addr %s1140, 4
        %s1142 = scalar_lea.vmem %s4, %s1141
        %s1143 = sand.u32 %s167, 1
        %s1144 = scalar_lea.sflag [#allocation4], %s1143
        %s1145 = sand.u32 %s167, 1
        %s1146 = smul.addr %s1145, 256
        %s1147 = scalar_lea.vmem [#allocation3], %s1146
        // Predicated region
        $region45: #{_lambda_.10} parent=35 // pred_check
          %p1148 = pneg %p151
        $region46: #{_lambda_.10} parent=35 // pred_check_branch
          %1150 = sbr.rel (%p1148) target = $region48
        $region47: #{_lambda_.10} parent=35 // pred_region
          %s1151 = smul.u32 16, %s24
        $region48: #{_lambda_.10} parent=35 // pred_fallthru
          _
        // Predicated region
        $region49: #{_lambda_.10} parent=35 // pred_check
          %p1152 = pneg %p177
        $region50: #{_lambda_.10} parent=35 // pred_check_branch
          %1154 = sbr.rel (%p1152) target = $region52
        $region51: #{_lambda_.10} parent=35 // pred_region
          %s1155 = smul.u32 16, %s24
          %s1157 = ssub.s32 4096, 4096
          %1158 = vsyncadd %s1144, %s1157
          %s1159 = smul.addr %s1155, 2
          %s1160 = smul.addr %s1159, 128
          %s1161 = scalar_lea.hbm %s5, %s1160
          %s1162 = sshll.u32 %s1147, 4
          %s1163 = int_to_ptr.vmem [resolvable:$true] %s1162
          %1168 = dma.vmem_to_hbm [thread:$0]  %s1163, 4096, %s1161, %s1144, 256, 256, 16
        $region52: #{_lambda_.10} parent=35 // pred_fallthru
          _
      $region36: #{_lambda_.10} parent=5 // pred_fallthru
        _
      %p1169 = scmp.le.s32.totalorder 2, %s15
      // Predicated region
      $region53: #{_lambda_.10} parent=5 // pred_check
        %p1170 = pneg %p1169
      $region54: #{_lambda_.10} parent=5 // pred_check_branch
        %1172 = sbr.rel (%p1170) target = $region56
      $region55: #{_lambda_.10} parent=5 // pred_region
        %s1173 = ssub.s32 %s15, 2
        // Predicated region
        $region57: #{_lambda_.10} parent=55 // pred_check
          %p1174 = pneg %p157
        $region58: #{_lambda_.10} parent=55 // pred_check_branch
          %1176 = sbr.rel (%p1174) target = $region60
        $region59: #{_lambda_.10} parent=55 // pred_region
          %s1177 = smul.u32 16, %s26
          %p1178 = scmp.lt.s32.totalorder %s1177, 31
          %s1179 = scalar_select %p1178, %s1177, 31
          %s1180 = smul.addr %s1179, 2
          %s1181 = smul.addr %s1180, 4
          %s1182 = scalar_lea.vmem %s4, %s1181
        $region60: #{_lambda_.10} parent=55 // pred_fallthru
          _
        // Predicated region
        $region61: #{_lambda_.10} parent=55 // pred_check
          %p1183 = pneg %p183
        $region62: #{_lambda_.10} parent=55 // pred_check_branch
          %1185 = sbr.rel (%p1183) target = $region64
        $region63: #{_lambda_.10} parent=55 // pred_region
          %s1186 = sand.u32 %s168, 1
          %s1187 = scalar_lea.sflag [#allocation4], %s1186
          %s1188 = sand.u32 %s168, 1
          %s1189 = smul.addr %s1188, 256
          %s1190 = scalar_lea.vmem [#allocation3], %s1189
          %1191 = dma.done %s1187, 4096
        $region64: #{_lambda_.10} parent=55 // pred_fallthru
          _
      $region56: #{_lambda_.10} parent=5 // pred_fallthru
        _
    $region6: #{_lambda_.10} parent=1 // loop_footer
      %s19 = sadd.s32 1, %s15
    $region7: #{_lambda_.10} parent=1 // loop_footer_branch
      %14 = sbr.rel target = $region3
    $region8: #{_lambda_.10} parent=1 // loop_exit
      _
    %1192 = vsyncpa [#allocation4], 1
    %s1193 = scalar_lea.sflag [#allocation4], 1
    %1194 = vsyncpa %s1193, 1

// kernel: _lambda_.11
$region0: #{_lambda_.11}
  #allocation0 [shape = 'u32[]', space=smem, size = 0x4, offset = 0x4, fixed_abs, tag = 'smem constant byte address 0x4 - core index']
  #allocation1 [shape = 'u32[144,128]{1,0:T(1,128)}', space=vmem, size = 0x12000, scoped, tag = 'internal scratch']
  #allocation2 [shape = 'f32[128,256]{1,0:T(8,128)}', space=vmem, size = 0x20000, scoped, tag = 'scratch operand']
  %s0 = inlined_call_operand.vmem [shape: bf16[256,256], index: 0, kind: input, shape index: {}]
  %s1 = inlined_call_operand.vmem [shape: bf16[256,256], index: 1, kind: input, shape index: {}]
  %s2 = inlined_call_operand.vmem [shape: bf16[256,256], index: 2, kind: input, shape index: {}]
  %s3 = inlined_call_operand.vmem [shape: bf16[256,256], index: 3, kind: input, shape index: {}]
  %s4 = inlined_call_operand.hbm [shape: f32[256,256], index: 4, kind: output, shape index: {}]
  %s5 = sld [smem:[#allocation0]]
  $region57: #{_lambda_.11} parent=0
    _
  %s7 = ssub.s32 1, %s5
  %s8 = scalar_select 0, %s7, %s5
  $region1: #{_lambda_.11} parent=0
    #allocation3 [shape = 'u8[262144]{0}', space=vmem, size = 0x40000, scoped, tag = 'output window, operand 0']
    #allocation4 [shape = 's32[2]{0}', space=sflag, size = 0x8, scoped, tag = 'scoped memory for _lambda_.11']
    %9 = vsyncpa [#allocation4], 0
    %s10 = scalar_lea.sflag [#allocation4], 1
    %11 = vsyncpa %s10, 0
    loop: start=0, step=1, limit=4
    $region2: #{_lambda_.11} parent=1 // loop_pre_header
      _
    $region3: #{_lambda_.11} parent=1 // loop_header
      %s13 = sphi 0, %s17
      %p14 = scmp.ge.s32.totalorder %s13, 4
      %s20 = sphi 0, %s32
      %s21 = sphi 0, %s28
      %s22 = sphi 0, %s20
      %s23 = sphi 0, %s21
      %s24 = sphi 0, %s22
      %s25 = sphi 0, %s23
      %s35 = sphi 0, %s37
      %s38 = sphi 0, %s35
      %s39 = sphi 0, %s38
      %s55 = sphi 0, %s39
      %s61 = sphi 0, %s63
      %s64 = sphi 0, %s61
      %s65 = sphi 0, %s64
      %s81 = sphi 0, %s65
      %s87 = sphi 0, %s89
      %s90 = sphi 0, %s87
      %s91 = sphi 0, %s90
      %s107 = sphi 0, %s91
      %s113 = sphi 0, %s115
      %s116 = sphi 0, %s113
      %s117 = sphi 0, %s116
      %s133 = sphi 0, %s117
      %s139 = sphi 0, %s141
      %s142 = sphi 0, %s139
      %s143 = sphi 0, %s142
      %s159 = sphi 0, %s143
    $region4: #{_lambda_.11} parent=1 // loop_header_branch
      %16 = sbr.rel (%p14) target = $region8
    $region5: #{_lambda_.11} parent=1 // loop_body
      %s18 = ssub.s32 %s13, 1
      %s19 = ssub.s32 %s13, 2
      %s26 = sadd.s32 1, %s21
      %p27 = scmp.ge.s32.totalorder %s26, 1
      %s28 = scalar_select %p27, 0, %s26
      %s29 = sadd.s32 1, %s20
      %s30 = scalar_select %p27, %s29, %s20
      %p31 = scmp.ge.s32.totalorder %s30, 2
      %s32 = scalar_select %p31, 0, %s30
      %s33 = ssub.s32 %s20, %s32
      %p34 = scmp.eq.s32.totalorder %s33, 0
      %s36 = sadd.s32 %s35, 1
      %s37 = scalar_select %p34, %s35, %s36
      %p40 = pneg %p34
      %p41 = scmp.eq.s32.totalorder %s13, 1
      %p42 = por %p40, %p41
      %p43 = scmp.ne.s32.totalorder %s35, %s38
      %p44 = scmp.eq.s32.totalorder %s13, 0
      %p45 = por %p43, %p44
      %p46 = scmp.ne.s32.totalorder %s35, %s38
      %p47 = scmp.eq.s32.totalorder %s18, 1
      %p48 = por %p46, %p47
      %p49 = scmp.ne.s32.totalorder %s38, %s39
      %p50 = scmp.eq.s32.totalorder %s18, 0
      %p51 = por %p49, %p50
      %p52 = scmp.ne.s32.totalorder %s38, %s39
      %p53 = scmp.eq.s32.totalorder %s19, 1
      %p54 = por %p52, %p53
      %p56 = scmp.ne.s32.totalorder %s39, %s55
      %p57 = scmp.eq.s32.totalorder %s19, 0
      %p58 = por %p56, %p57
      %s59 = ssub.s32 %s21, %s28
      %p60 = scmp.eq.s32.totalorder %s59, 0
      %s62 = sadd.s32 %s61, 1
      %s63 = scalar_select %p60, %s61, %s62
      %p66 = pneg %p60
      %p67 = scmp.eq.s32.totalorder %s13, 1
      %p68 = por %p66, %p67
      %p69 = scmp.ne.s32.totalorder %s61, %s64
      %p70 = scmp.eq.s32.totalorder %s13, 0
      %p71 = por %p69, %p70
      %p72 = scmp.ne.s32.totalorder %s61, %s64
      %p73 = scmp.eq.s32.totalorder %s18, 1
      %p74 = por %p72, %p73
      %p75 = scmp.ne.s32.totalorder %s64, %s65
      %p76 = scmp.eq.s32.totalorder %s18, 0
      %p77 = por %p75, %p76
      %p78 = scmp.ne.s32.totalorder %s64, %s65
      %p79 = scmp.eq.s32.totalorder %s19, 1
      %p80 = por %p78, %p79
      %p82 = scmp.ne.s32.totalorder %s65, %s81
      %p83 = scmp.eq.s32.totalorder %s19, 0
      %p84 = por %p82, %p83
      %s85 = ssub.s32 %s21, %s28
      %p86 = scmp.eq.s32.totalorder %s85, 0
      %s88 = sadd.s32 %s87, 1
      %s89 = scalar_select %p86, %s87, %s88
      %p92 = pneg %p86
      %p93 = scmp.eq.s32.totalorder %s13, 1
      %p94 = por %p92, %p93
      %p95 = scmp.ne.s32.totalorder %s87, %s90
      %p96 = scmp.eq.s32.totalorder %s13, 0
      %p97 = por %p95, %p96
      %p98 = scmp.ne.s32.totalorder %s87, %s90
      %p99 = scmp.eq.s32.totalorder %s18, 1
      %p100 = por %p98, %p99
      %p101 = scmp.ne.s32.totalorder %s90, %s91
      %p102 = scmp.eq.s32.totalorder %s18, 0
      %p103 = por %p101, %p102
      %p104 = scmp.ne.s32.totalorder %s90, %s91
      %p105 = scmp.eq.s32.totalorder %s19, 1
      %p106 = por %p104, %p105
      %p108 = scmp.ne.s32.totalorder %s91, %s107
      %p109 = scmp.eq.s32.totalorder %s19, 0
      %p110 = por %p108, %p109
      %s111 = ssub.s32 %s21, %s28
      %p112 = scmp.eq.s32.totalorder %s111, 0
      %s114 = sadd.s32 %s113, 1
      %s115 = scalar_select %p112, %s113, %s114
      %p118 = pneg %p112
      %p119 = scmp.eq.s32.totalorder %s13, 1
      %p120 = por %p118, %p119
      %p121 = scmp.ne.s32.totalorder %s113, %s116
      %p122 = scmp.eq.s32.totalorder %s13, 0
      %p123 = por %p121, %p122
      %p124 = scmp.ne.s32.totalorder %s113, %s116
      %p125 = scmp.eq.s32.totalorder %s18, 1
      %p126 = por %p124, %p125
      %p127 = scmp.ne.s32.totalorder %s116, %s117
      %p128 = scmp.eq.s32.totalorder %s18, 0
      %p129 = por %p127, %p128
      %p130 = scmp.ne.s32.totalorder %s116, %s117
      %p131 = scmp.eq.s32.totalorder %s19, 1
      %p132 = por %p130, %p131
      %p134 = scmp.ne.s32.totalorder %s117, %s133
      %p135 = scmp.eq.s32.totalorder %s19, 0
      %p136 = por %p134, %p135
      %s137 = ssub.s32 %s20, %s32
      %p138 = scmp.eq.s32.totalorder %s137, 0
      %s140 = sadd.s32 %s139, 1
      %s141 = scalar_select %p138, %s139, %s140
      %p144 = pneg %p138
      %p145 = scmp.eq.s32.totalorder %s13, 1
      %p146 = por %p144, %p145
      %p147 = scmp.ne.s32.totalorder %s139, %s142
      %p148 = scmp.eq.s32.totalorder %s13, 0
      %p149 = por %p147, %p148
      %p150 = scmp.ne.s32.totalorder %s139, %s142
      %p151 = scmp.eq.s32.totalorder %s18, 1
      %p152 = por %p150, %p151
      %p153 = scmp.ne.s32.totalorder %s142, %s143
      %p154 = scmp.eq.s32.totalorder %s18, 0
      %p155 = por %p153, %p154
      %p156 = scmp.ne.s32.totalorder %s142, %s143
      %p157 = scmp.eq.s32.totalorder %s19, 1
      %p158 = por %p156, %p157
      %p160 = scmp.ne.s32.totalorder %s143, %s159
      %p161 = scmp.eq.s32.totalorder %s19, 0
      %p162 = por %p160, %p161
      %p163 = scmp.le.s32.totalorder 1, %s13
      %p164 = scmp.lt.s32.totalorder %s13, 3
      %p165 = pnand %p163, %p164
      %p166 = pneg %p165
      // Predicated region
      $region9: #{_lambda_.11} parent=5 // pred_check
        _
      $region10: #{_lambda_.11} parent=5 // pred_check_branch
        %168 = sbr.rel (%p165) target = $region12
      $region11: #{_lambda_.11} parent=5 // pred_region
        %s169 = ssub.s32 %s13, 1
        // Predicated region
        $region13: #{_lambda_.11} parent=11 // pred_check
          %p170 = pneg %p77
        $region14: #{_lambda_.11} parent=11 // pred_check_branch
          %172 = sbr.rel (%p170) target = $region16
        $region15: #{_lambda_.11} parent=11 // pred_region
          %s173 = smul.u32 2, %s23
          %p174 = scmp.lt.s32.totalorder %s173, 1
          %s175 = scalar_select %p174, %s173, 1
          %s176 = smul.addr %s175, 4
          %s177 = scalar_lea.vmem %s1, %s176
          %s178 = smul.u32 2, %s23
        $region16: #{_lambda_.11} parent=11 // pred_fallthru
          _
        // Predicated region
        $region17: #{_lambda_.11} parent=11 // pred_check
          %p179 = pneg %p103
        $region18: #{_lambda_.11} parent=11 // pred_check_branch
          %181 = sbr.rel (%p179) target = $region20
        $region19: #{_lambda_.11} parent=11 // pred_region
          %s182 = smul.u32 2, %s23
          %p183 = scmp.lt.s32.totalorder %s182, 1
          %s184 = scalar_select %p183, %s182, 1
          %s185 = smul.addr %s184, 4
          %s186 = scalar_lea.vmem %s2, %s185
          %s187 = smul.u32 2, %s23
        $region20: #{_lambda_.11} parent=11 // pred_fallthru
          _
        // Predicated region
        $region21: #{_lambda_.11} parent=11 // pred_check
          %p188 = pneg %p129
        $region22: #{_lambda_.11} parent=11 // pred_check_branch
          %190 = sbr.rel (%p188) target = $region24
        $region23: #{_lambda_.11} parent=11 // pred_region
          %s191 = smul.u32 32, %s23
          %p192 = scmp.lt.s32.totalorder %s191, 31
          %s193 = scalar_select %p192, %s191, 31
          %s194 = smul.addr %s193, 2
          %s195 = smul.addr %s194, 4
          %s196 = scalar_lea.vmem %s3, %s195
          %s197 = smul.u32 32, %s23
        $region24: #{_lambda_.11} parent=11 // pred_fallthru
          _
      $region12: #{_lambda_.11} parent=5 // pred_fallthru
        _
      %p198 = scmp.lt.s32.totalorder %s13, 2
      // Predicated region
      $region25: #{_lambda_.11} parent=5 // pred_check
        %p199 = pneg %p198
      $region26: #{_lambda_.11} parent=5 // pred_check_branch
        %201 = sbr.rel (%p199) target = $region28
      $region27: #{_lambda_.11} parent=5 // pred_region
        // Predicated region
        $region29: #{_lambda_.11} parent=27 // pred_check
          %p202 = pneg %p45
        $region30: #{_lambda_.11} parent=27 // pred_check_branch
          %204 = sbr.rel (%p202) target = $region32
        $region31: #{_lambda_.11} parent=27 // pred_region
          %s205 = smul.u32 16, %s20
          %p206 = scmp.lt.s32.totalorder %s205, 31
          %s207 = scalar_select %p206, %s205, 31
          %s208 = smul.addr %s207, 2
          %s209 = smul.addr %s208, 4
          %s210 = scalar_lea.vmem %s0, %s209
          %s211 = smul.u32 16, %s20
        $region32: #{_lambda_.11} parent=27 // pred_fallthru
          _
      $region28: #{_lambda_.11} parent=5 // pred_fallthru
        _
      %p212 = scmp.le.s32.totalorder 1, %s13
      %p213 = scmp.lt.s32.totalorder %s13, 3
      %p214 = pnand %p212, %p213
      %p215 = pneg %p214
      // Predicated region
      $region33: #{_lambda_.11} parent=5 // pred_check
        _
      $region34: #{_lambda_.11} parent=5 // pred_check_branch
        %217 = sbr.rel (%p214) target = $region36
      $region35: #{_lambda_.11} parent=5 // pred_region
        %s218 = ssub.s32 %s13, 1
        %s219 = smul.u32 16, %s22
        %p220 = scmp.lt.s32.totalorder %s219, 31
        %s221 = scalar_select %p220, %s219, 31
        %s222 = smul.addr %s221, 2
        %s223 = smul.addr %s222, 4
        %s224 = scalar_lea.vmem %s0, %s223
        %p225 = pneg %p51
        %p226 = pneg %p48
        %s227 = smul.u32 2, %s23
        %p228 = scmp.lt.s32.totalorder %s227, 1
        %s229 = scalar_select %p228, %s227, 1
        %s230 = smul.addr %s229, 4
        %s231 = scalar_lea.vmem %s1, %s230
        %p232 = pneg %p77
        %p233 = pneg %p74
        %s234 = smul.u32 2, %s23
        %p235 = scmp.lt.s32.totalorder %s234, 1
        %s236 = scalar_select %p235, %s234, 1
        %s237 = smul.addr %s236, 4
        %s238 = scalar_lea.vmem %s2, %s237
        %p239 = pneg %p103
        %p240 = pneg %p100
        %s241 = smul.u32 32, %s23
        %p242 = scmp.lt.s32.totalorder %s241, 31
        %s243 = scalar_select %p242, %s241, 31
        %s244 = smul.addr %s243, 2
        %s245 = smul.addr %s244, 4
        %s246 = scalar_lea.vmem %s3, %s245
        %p247 = pneg %p129
        %p248 = pneg %p126
        %p249 = pneg %p155
        %p250 = pneg %p152
        %s251 = sand.u32 %s142, 1
        %s252 = scalar_lea.sflag [#allocation4], %s251
        %s253 = sand.u32 %s142, 1
        %s254 = smul.addr %s253, 256
        %s255 = scalar_lea.vmem [#allocation3], %s254
        %s256 = smul.u32 16, %s22
        %p257 = scmp.lt.s32.totalorder %s256, 31
        %s258 = scalar_select %p257, %s256, 31
        %s259 = smul.addr %s258, 2
        %s260 = smul.addr %s259, 4
        %s261 = scalar_lea.vmem %s0, %s260
        %s262 = smul.u32 16, %s22
        %s263 = smul.u32 2, %s23
        %p264 = scmp.lt.s32.totalorder %s263, 1
        %s265 = scalar_select %p264, %s263, 1
        %s266 = smul.addr %s265, 4
        %s267 = scalar_lea.vmem %s1, %s266
        %s268 = smul.u32 2, %s23
        %s269 = smul.u32 2, %s23
        %p270 = scmp.lt.s32.totalorder %s269, 1
        %s271 = scalar_select %p270, %s269, 1
        %s272 = smul.addr %s271, 4
        %s273 = scalar_lea.vmem %s2, %s272
        %s274 = smul.u32 2, %s23
        %s275 = smul.u32 32, %s23
        %p276 = scmp.lt.s32.totalorder %s275, 31
        %s277 = scalar_select %p276, %s275, 31
        %s278 = smul.addr %s277, 2
        %s279 = smul.addr %s278, 4
        %s280 = scalar_lea.vmem %s3, %s279
        %s281 = smul.u32 32, %s23
        %s282 = smul.u32 16, %s22
        %p283 = scmp.eq.s32.totalorder %s23, 0
        // Predicated region
        $region37: #{_lambda_.11} parent=35 // pred_check
          %p284 = pneg %p283
        $region38: #{_lambda_.11} parent=35 // pred_check_branch
          %286 = sbr.rel (%p284) target = $region40
        $region39: #{_lambda_.11} parent=35 // pred_region
          %287 = vst [vmem:[#allocation2] sm:$0xff] 0.0
          %288 = vst [vmem:[#allocation2 + $0x8] sm:$0xff] 0.0
          %289 = vst [vmem:[#allocation2 + $0x10] sm:$0xff] 0.0
          %290 = vst [vmem:[#allocation2 + $0x18] sm:$0xff] 0.0
          %291 = vst [vmem:[#allocation2 + $0x20] sm:$0xff] 0.0
          %292 = vst [vmem:[#allocation2 + $0x28] sm:$0xff] 0.0
          %293 = vst [vmem:[#allocation2 + $0x30] sm:$0xff] 0.0
          %294 = vst [vmem:[#allocation2 + $0x38] sm:$0xff] 0.0
          %295 = vst [vmem:[#allocation2 + $0x40] sm:$0xff] 0.0
          %296 = vst [vmem:[#allocation2 + $0x48] sm:$0xff] 0.0
          %297 = vst [vmem:[#allocation2 + $0x50] sm:$0xff] 0.0
          %298 = vst [vmem:[#allocation2 + $0x58] sm:$0xff] 0.0
          %299 = vst [vmem:[#allocation2 + $0x60] sm:$0xff] 0.0
          %300 = vst [vmem:[#allocation2 + $0x68] sm:$0xff] 0.0
          %301 = vst [vmem:[#allocation2 + $0x70] sm:$0xff] 0.0
          %302 = vst [vmem:[#allocation2 + $0x78] sm:$0xff] 0.0
          %303 = vst [vmem:[#allocation2 + $0x80] sm:$0xff] 0.0
          %304 = vst [vmem:[#allocation2 + $0x88] sm:$0xff] 0.0
          %305 = vst [vmem:[#allocation2 + $0x90] sm:$0xff] 0.0
          %306 = vst [vmem:[#allocation2 + $0x98] sm:$0xff] 0.0
          %307 = vst [vmem:[#allocation2 + $0xa0] sm:$0xff] 0.0
          %308 = vst [vmem:[#allocation2 + $0xa8] sm:$0xff] 0.0
          %309 = vst [vmem:[#allocation2 + $0xb0] sm:$0xff] 0.0
          %310 = vst [vmem:[#allocation2 + $0xb8] sm:$0xff] 0.0
          %311 = vst [vmem:[#allocation2 + $0xc0] sm:$0xff] 0.0
          %312 = vst [vmem:[#allocation2 + $0xc8] sm:$0xff] 0.0
          %313 = vst [vmem:[#allocation2 + $0xd0] sm:$0xff] 0.0
          %314 = vst [vmem:[#allocation2 + $0xd8] sm:$0xff] 0.0
          %315 = vst [vmem:[#allocation2 + $0xe0] sm:$0xff] 0.0
          %316 = vst [vmem:[#allocation2 + $0xe8] sm:$0xff] 0.0
          %317 = vst [vmem:[#allocation2 + $0xf0] sm:$0xff] 0.0
          %318 = vst [vmem:[#allocation2 + $0xf8] sm:$0xff] 0.0
        $region40: #{_lambda_.11} parent=35 // pred_fallthru
          _
        %v319 = vld [vmem:[%s261] sm:$0xff]
        %v320 = vld [vmem:[%s261 + $0x8] sm:$0xff]
        %v321 = vld [vmem:[%s261 + $0x10] sm:$0xff]
        %v322 = vld [vmem:[%s261 + $0x18] sm:$0xff]
        %v323 = vld [vmem:[%s261 + $0x20] sm:$0xff]
        %v324 = vld [vmem:[%s261 + $0x28] sm:$0xff]
        %v325 = vld [vmem:[%s261 + $0x30] sm:$0xff]
        %v326 = vld [vmem:[%s261 + $0x38] sm:$0xff]
        %v327 = vld [vmem:[%s261 + $0x40] sm:$0xff]
        %v328 = vld [vmem:[%s261 + $0x48] sm:$0xff]
        %v329 = vld [vmem:[%s261 + $0x50] sm:$0xff]
        %v330 = vld [vmem:[%s261 + $0x58] sm:$0xff]
        %v331 = vld [vmem:[%s261 + $0x60] sm:$0xff]
        %v332 = vld [vmem:[%s261 + $0x68] sm:$0xff]
        %v333 = vld [vmem:[%s261 + $0x70] sm:$0xff]
        %v334 = vld [vmem:[%s261 + $0x78] sm:$0xff]
        %v335 = vld [vmem:[%s267] sm:$0xff]
        %v336 = vld [vmem:[%s267 + $0x8] sm:$0xff]
        %v337 = vld [vmem:[%s267 + $0x10] sm:$0xff]
        %v338 = vld [vmem:[%s267 + $0x18] sm:$0xff]
        %v339 = vld [vmem:[%s267 + $0x20] sm:$0xff]
        %v340 = vld [vmem:[%s267 + $0x28] sm:$0xff]
        %v341 = vld [vmem:[%s267 + $0x30] sm:$0xff]
        %v342 = vld [vmem:[%s267 + $0x38] sm:$0xff]
        %v343 = vld [vmem:[%s267 + $0x40] sm:$0xff]
        %v344 = vld [vmem:[%s267 + $0x48] sm:$0xff]
        %v345 = vld [vmem:[%s267 + $0x50] sm:$0xff]
        %v346 = vld [vmem:[%s267 + $0x58] sm:$0xff]
        %v347 = vld [vmem:[%s267 + $0x60] sm:$0xff]
        %v348 = vld [vmem:[%s267 + $0x68] sm:$0xff]
        %v349 = vld [vmem:[%s267 + $0x70] sm:$0xff]
        %v350 = vld [vmem:[%s267 + $0x78] sm:$0xff]
        %v351 = vld [vmem:[%s267 + $0x80] sm:$0xff]
        %v352 = vld [vmem:[%s267 + $0x88] sm:$0xff]
        %v353 = vld [vmem:[%s267 + $0x90] sm:$0xff]
        %v354 = vld [vmem:[%s267 + $0x98] sm:$0xff]
        %v355 = vld [vmem:[%s267 + $0xa0] sm:$0xff]
        %v356 = vld [vmem:[%s267 + $0xa8] sm:$0xff]
        %v357 = vld [vmem:[%s267 + $0xb0] sm:$0xff]
        %v358 = vld [vmem:[%s267 + $0xb8] sm:$0xff]
        %v359 = vld [vmem:[%s267 + $0xc0] sm:$0xff]
        %v360 = vld [vmem:[%s267 + $0xc8] sm:$0xff]
        %v361 = vld [vmem:[%s267 + $0xd0] sm:$0xff]
        %v362 = vld [vmem:[%s267 + $0xd8] sm:$0xff]
        %v363 = vld [vmem:[%s267 + $0xe0] sm:$0xff]
        %v364 = vld [vmem:[%s267 + $0xe8] sm:$0xff]
        %v365 = vld [vmem:[%s267 + $0xf0] sm:$0xff]
        %v366 = vld [vmem:[%s267 + $0xf8] sm:$0xff]
        %v383 = vunpack.c.l.b16 %v319
        %v384 = vunpack.c.h.b16 %v319
        %v385 = vunpack.c.l.b16 %v320
        %v386 = vunpack.c.h.b16 %v320
        %v387 = vunpack.c.l.b16 %v321
        %v388 = vunpack.c.h.b16 %v321
        %v389 = vunpack.c.l.b16 %v322
        %v390 = vunpack.c.h.b16 %v322
        %v391 = vunpack.c.l.b16 %v323
        %v392 = vunpack.c.h.b16 %v323
        %v393 = vunpack.c.l.b16 %v324
        %v394 = vunpack.c.h.b16 %v324
        %v395 = vunpack.c.l.b16 %v325
        %v396 = vunpack.c.h.b16 %v325
        %v397 = vunpack.c.l.b16 %v326
        %v398 = vunpack.c.h.b16 %v326
        %v399 = vunpack.c.l.b16 %v327
        %v400 = vunpack.c.h.b16 %v327
        %v401 = vunpack.c.l.b16 %v328
        %v402 = vunpack.c.h.b16 %v328
        %v403 = vunpack.c.l.b16 %v329
        %v404 = vunpack.c.h.b16 %v329
        %v405 = vunpack.c.l.b16 %v330
        %v406 = vunpack.c.h.b16 %v330
        %v407 = vunpack.c.l.b16 %v331
        %v408 = vunpack.c.h.b16 %v331
        %v409 = vunpack.c.l.b16 %v332
        %v410 = vunpack.c.h.b16 %v332
        %v411 = vunpack.c.l.b16 %v333
        %v412 = vunpack.c.h.b16 %v333
        %v413 = vunpack.c.l.b16 %v334
        %v414 = vunpack.c.h.b16 %v334
        %v415 = vpack.c.b16 %v385, %v383
        %v416 = vpack.c.b16 %v386, %v384
        %v417 = vpack.c.b16 %v389, %v387
        %v418 = vpack.c.b16 %v390, %v388
        %v419 = vpack.c.b16 %v393, %v391
        %v420 = vpack.c.b16 %v394, %v392
        %v421 = vpack.c.b16 %v397, %v395
        %v422 = vpack.c.b16 %v398, %v396
        %v423 = vpack.c.b16 %v401, %v399
        %v424 = vpack.c.b16 %v402, %v400
        %v425 = vpack.c.b16 %v405, %v403
        %v426 = vpack.c.b16 %v406, %v404
        %v427 = vpack.c.b16 %v409, %v407
        %v428 = vpack.c.b16 %v410, %v408
        %v429 = vpack.c.b16 %v413, %v411
        %v430 = vpack.c.b16 %v414, %v412
        %v479 = vunpack.c.l.b16 %v335
        %v480 = vunpack.c.h.b16 %v335
        %v481 = vunpack.c.l.b16 %v336
        %v482 = vunpack.c.h.b16 %v336
        %v483 = vunpack.c.l.b16 %v337
        %v484 = vunpack.c.h.b16 %v337
        %v485 = vunpack.c.l.b16 %v338
        %v486 = vunpack.c.h.b16 %v338
        %v487 = vunpack.c.l.b16 %v339
        %v488 = vunpack.c.h.b16 %v339
        %v489 = vunpack.c.l.b16 %v340
        %v490 = vunpack.c.h.b16 %v340
        %v491 = vunpack.c.l.b16 %v341
        %v492 = vunpack.c.h.b16 %v341
        %v493 = vunpack.c.l.b16 %v342
        %v494 = vunpack.c.h.b16 %v342
        %v495 = vunpack.c.l.b16 %v343
        %v496 = vunpack.c.h.b16 %v343
        %v497 = vunpack.c.l.b16 %v344
        %v498 = vunpack.c.h.b16 %v344
        %v499 = vunpack.c.l.b16 %v345
        %v500 = vunpack.c.h.b16 %v345
        %v501 = vunpack.c.l.b16 %v346
        %v502 = vunpack.c.h.b16 %v346
        %v503 = vunpack.c.l.b16 %v347
        %v504 = vunpack.c.h.b16 %v347
        %v505 = vunpack.c.l.b16 %v348
        %v506 = vunpack.c.h.b16 %v348
        %v507 = vunpack.c.l.b16 %v349
        %v508 = vunpack.c.h.b16 %v349
        %v509 = vunpack.c.l.b16 %v350
        %v510 = vunpack.c.h.b16 %v350
        %v511 = vunpack.c.l.b16 %v351
        %v512 = vunpack.c.h.b16 %v351
        %v513 = vunpack.c.l.b16 %v352
        %v514 = vunpack.c.h.b16 %v352
        %v515 = vunpack.c.l.b16 %v353
        %v516 = vunpack.c.h.b16 %v353
        %v517 = vunpack.c.l.b16 %v354
        %v518 = vunpack.c.h.b16 %v354
        %v519 = vunpack.c.l.b16 %v355
        %v520 = vunpack.c.h.b16 %v355
        %v521 = vunpack.c.l.b16 %v356
        %v522 = vunpack.c.h.b16 %v356
        %v523 = vunpack.c.l.b16 %v357
        %v524 = vunpack.c.h.b16 %v357
        %v525 = vunpack.c.l.b16 %v358
        %v526 = vunpack.c.h.b16 %v358
        %v527 = vunpack.c.l.b16 %v359
        %v528 = vunpack.c.h.b16 %v359
        %v529 = vunpack.c.l.b16 %v360
        %v530 = vunpack.c.h.b16 %v360
        %v531 = vunpack.c.l.b16 %v361
        %v532 = vunpack.c.h.b16 %v361
        %v533 = vunpack.c.l.b16 %v362
        %v534 = vunpack.c.h.b16 %v362
        %v535 = vunpack.c.l.b16 %v363
        %v536 = vunpack.c.h.b16 %v363
        %v537 = vunpack.c.l.b16 %v364
        %v538 = vunpack.c.h.b16 %v364
        %v539 = vunpack.c.l.b16 %v365
        %v540 = vunpack.c.h.b16 %v365
        %v541 = vunpack.c.l.b16 %v366
        %v542 = vunpack.c.h.b16 %v366
        %v543 = vpack.c.b16 %v481, %v479
        %v544 = vpack.c.b16 %v482, %v480
        %v545 = vpack.c.b16 %v485, %v483
        %v546 = vpack.c.b16 %v486, %v484
        %v547 = vpack.c.b16 %v489, %v487
        %v548 = vpack.c.b16 %v490, %v488
        %v549 = vpack.c.b16 %v493, %v491
        %v550 = vpack.c.b16 %v494, %v492
        %v551 = vpack.c.b16 %v497, %v495
        %v552 = vpack.c.b16 %v498, %v496
        %v553 = vpack.c.b16 %v501, %v499
        %v554 = vpack.c.b16 %v502, %v500
        %v555 = vpack.c.b16 %v505, %v503
        %v556 = vpack.c.b16 %v506, %v504
        %v557 = vpack.c.b16 %v509, %v507
        %v558 = vpack.c.b16 %v510, %v508
        %v559 = vpack.c.b16 %v513, %v511
        %v560 = vpack.c.b16 %v514, %v512
        %v561 = vpack.c.b16 %v517, %v515
        %v562 = vpack.c.b16 %v518, %v516
        %v563 = vpack.c.b16 %v521, %v519
        %v564 = vpack.c.b16 %v522, %v520
        %v565 = vpack.c.b16 %v525, %v523
        %v566 = vpack.c.b16 %v526, %v524
        %v567 = vpack.c.b16 %v529, %v527
        %v568 = vpack.c.b16 %v530, %v528
        %v569 = vpack.c.b16 %v533, %v531
        %v570 = vpack.c.b16 %v534, %v532
        %v571 = vpack.c.b16 %v537, %v535
        %v572 = vpack.c.b16 %v538, %v536
        %v573 = vpack.c.b16 %v541, %v539
        %v574 = vpack.c.b16 %v542, %v540
        %607 = vmatprep.subr.bf16.mxu0 %v544
        %608 = vmatpush1.bf16.msra.mxu0 %v543
        %609 = vmatprep.subr.bf16.mxu0 %v546
        %610 = vmatpush1.bf16.msra.mxu0 %v545
        %611 = vmatprep.subr.bf16.mxu0 %v548
        %612 = vmatpush1.bf16.msra.mxu0 %v547
        %613 = vmatprep.subr.bf16.mxu0 %v550
        %614 = vmatpush1.bf16.msra.mxu0 %v549
        %615 = vmatprep.subr.bf16.mxu0 %v552
        %616 = vmatpush1.bf16.msra.mxu0 %v551
        %617 = vmatprep.subr.bf16.mxu0 %v554
        %618 = vmatpush1.bf16.msra.mxu0 %v553
        %619 = vmatprep.subr.bf16.mxu0 %v556
        %620 = vmatpush1.bf16.msra.mxu0 %v555
        %621 = vmatprep.subr.bf16.mxu0 %v558
        %622 = vmatpush1.bf16.msra.mxu0 %v557
        %623 = vmatprep.subr.bf16.mxu0 %v560
        %624 = vmatpush1.bf16.msra.mxu0 %v559
        %625 = vmatprep.subr.bf16.mxu0 %v562
        %626 = vmatpush1.bf16.msra.mxu0 %v561
        %627 = vmatprep.subr.bf16.mxu0 %v564
        %628 = vmatpush1.bf16.msra.mxu0 %v563
        %629 = vmatprep.subr.bf16.mxu0 %v566
        %630 = vmatpush1.bf16.msra.mxu0 %v565
        %631 = vmatprep.subr.bf16.mxu0 %v568
        %632 = vmatpush1.bf16.msra.mxu0 %v567
        %633 = vmatprep.subr.bf16.mxu0 %v570
        %634 = vmatpush1.bf16.msra.mxu0 %v569
        %635 = vmatprep.subr.bf16.mxu0 %v572
        %636 = vmatpush1.bf16.msra.mxu0 %v571
        %637 = vmatprep.subr.bf16.mxu0 %v574
        %638 = vmatpush1.bf16.msra.mxu0 %v573
        %639 = vmatprep.mubr.bf16.mxu0 %v416
        %640 = vmatmul.mubr.bf16.gmra.mrb[0].mxu0 %v415
        %v641 = vpop.f32.mrb[0].mxu0
        %v642 = vadd.f32 0.0, %v641
        %v643 = vpop.f32.mrb[0].mxu0
        %v644 = vadd.f32 0.0, %v643
        %v645 = vpop.f32.mrb[0].mxu0
        %v646 = vadd.f32 0.0, %v645
        %v647 = vpop.f32.mrb[0].mxu0
        %v648 = vadd.f32 0.0, %v647
        %649 = vmatprep.mubr.bf16.mxu0 %v418
        %650 = vmatmul.mubr.bf16.gmra.mrb[0].mxu0 %v417
        %v651 = vpop.f32.mrb[0].mxu0
        %v652 = vadd.f32 0.0, %v651
        %v653 = vpop.f32.mrb[0].mxu0
        %v654 = vadd.f32 0.0, %v653
        %v655 = vpop.f32.mrb[0].mxu0
        %v656 = vadd.f32 0.0, %v655
        %v657 = vpop.f32.mrb[0].mxu0
        %v658 = vadd.f32 0.0, %v657
        %659 = vmatprep.mubr.bf16.mxu0 %v420
        %660 = vmatmul.mubr.bf16.gmra.mrb[0].mxu0 %v419
        %v661 = vpop.f32.mrb[0].mxu0
        %v662 = vadd.f32 0.0, %v661
        %v663 = vpop.f32.mrb[0].mxu0
        %v664 = vadd.f32 0.0, %v663
        %v665 = vpop.f32.mrb[0].mxu0
        %v666 = vadd.f32 0.0, %v665
        %v667 = vpop.f32.mrb[0].mxu0
        %v668 = vadd.f32 0.0, %v667
        %669 = vmatprep.mubr.bf16.mxu0 %v422
        %670 = vmatmul.mubr.bf16.gmra.mrb[0].mxu0 %v421
        %v671 = vpop.f32.mrb[0].mxu0
        %v672 = vadd.f32 0.0, %v671
        %v673 = vpop.f32.mrb[0].mxu0
        %v674 = vadd.f32 0.0, %v673
        %v675 = vpop.f32.mrb[0].mxu0
        %v676 = vadd.f32 0.0, %v675
        %v677 = vpop.f32.mrb[0].mxu0
        %v678 = vadd.f32 0.0, %v677
        %679 = vmatprep.mubr.bf16.mxu0 %v424
        %680 = vmatmul.mubr.bf16.gmra.mrb[0].mxu0 %v423
        %v681 = vpop.f32.mrb[0].mxu0
        %v682 = vadd.f32 0.0, %v681
        %v683 = vpop.f32.mrb[0].mxu0
        %v684 = vadd.f32 0.0, %v683
        %v685 = vpop.f32.mrb[0].mxu0
        %v686 = vadd.f32 0.0, %v685
        %v687 = vpop.f32.mrb[0].mxu0
        %v688 = vadd.f32 0.0, %v687
        %689 = vmatprep.mubr.bf16.mxu0 %v426
        %690 = vmatmul.mubr.bf16.gmra.mrb[0].mxu0 %v425
        %v691 = vpop.f32.mrb[0].mxu0
        %v692 = vadd.f32 0.0, %v691
        %v693 = vpop.f32.mrb[0].mxu0
        %v694 = vadd.f32 0.0, %v693
        %v695 = vpop.f32.mrb[0].mxu0
        %v696 = vadd.f32 0.0, %v695
        %v697 = vpop.f32.mrb[0].mxu0
        %v698 = vadd.f32 0.0, %v697
        %699 = vmatprep.mubr.bf16.mxu0 %v428
        %700 = vmatmul.mubr.bf16.gmra.mrb[0].mxu0 %v427
        %v701 = vpop.f32.mrb[0].mxu0
        %v702 = vadd.f32 0.0, %v701
        %v703 = vpop.f32.mrb[0].mxu0
        %v704 = vadd.f32 0.0, %v703
        %v705 = vpop.f32.mrb[0].mxu0
        %v706 = vadd.f32 0.0, %v705
        %v707 = vpop.f32.mrb[0].mxu0
        %v708 = vadd.f32 0.0, %v707
        %709 = vmatprep.mubr.bf16.mxu0 %v430
        %710 = vmatmul.mubr.bf16.gmra.mrb[0].mxu0 %v429
        %v711 = vpop.f32.mrb[0].mxu0
        %v712 = vadd.f32 0.0, %v711
        %v713 = vpop.f32.mrb[0].mxu0
        %v714 = vadd.f32 0.0, %v713
        %v715 = vpop.f32.mrb[0].mxu0
        %v716 = vadd.f32 0.0, %v715
        %v717 = vpop.f32.mrb[0].mxu0
        %v718 = vadd.f32 0.0, %v717
        %719 = vdwg.mxu0
        %v720 = vld [vmem:[%s273] sm:$0xff]
        %v721 = vld [vmem:[%s273 + $0x8] sm:$0xff]
        %v722 = vld [vmem:[%s273 + $0x10] sm:$0xff]
        %v723 = vld [vmem:[%s273 + $0x18] sm:$0xff]
        %v724 = vld [vmem:[%s273 + $0x20] sm:$0xff]
        %v725 = vld [vmem:[%s273 + $0x28] sm:$0xff]
        %v726 = vld [vmem:[%s273 + $0x30] sm:$0xff]
        %v727 = vld [vmem:[%s273 + $0x38] sm:$0xff]
        %v728 = vld [vmem:[%s273 + $0x40] sm:$0xff]
        %v729 = vld [vmem:[%s273 + $0x48] sm:$0xff]
        %v730 = vld [vmem:[%s273 + $0x50] sm:$0xff]
        %v731 = vld [vmem:[%s273 + $0x58] sm:$0xff]
        %v732 = vld [vmem:[%s273 + $0x60] sm:$0xff]
        %v733 = vld [vmem:[%s273 + $0x68] sm:$0xff]
        %v734 = vld [vmem:[%s273 + $0x70] sm:$0xff]
        %v735 = vld [vmem:[%s273 + $0x78] sm:$0xff]
        %v736 = vld [vmem:[%s273 + $0x80] sm:$0xff]
        %v737 = vld [vmem:[%s273 + $0x88] sm:$0xff]
        %v738 = vld [vmem:[%s273 + $0x90] sm:$0xff]
        %v739 = vld [vmem:[%s273 + $0x98] sm:$0xff]
        %v740 = vld [vmem:[%s273 + $0xa0] sm:$0xff]
        %v741 = vld [vmem:[%s273 + $0xa8] sm:$0xff]
        %v742 = vld [vmem:[%s273 + $0xb0] sm:$0xff]
        %v743 = vld [vmem:[%s273 + $0xb8] sm:$0xff]
        %v744 = vld [vmem:[%s273 + $0xc0] sm:$0xff]
        %v745 = vld [vmem:[%s273 + $0xc8] sm:$0xff]
        %v746 = vld [vmem:[%s273 + $0xd0] sm:$0xff]
        %v747 = vld [vmem:[%s273 + $0xd8] sm:$0xff]
        %v748 = vld [vmem:[%s273 + $0xe0] sm:$0xff]
        %v749 = vld [vmem:[%s273 + $0xe8] sm:$0xff]
        %v750 = vld [vmem:[%s273 + $0xf0] sm:$0xff]
        %v751 = vld [vmem:[%s273 + $0xf8] sm:$0xff]
        %v784 = vunpack.c.l.b16 %v720
        %v785 = vunpack.c.h.b16 %v720
        %v786 = vunpack.c.l.b16 %v721
        %v787 = vunpack.c.h.b16 %v721
        %v788 = vunpack.c.l.b16 %v722
        %v789 = vunpack.c.h.b16 %v722
        %v790 = vunpack.c.l.b16 %v723
        %v791 = vunpack.c.h.b16 %v723
        %v792 = vunpack.c.l.b16 %v724
        %v793 = vunpack.c.h.b16 %v724
        %v794 = vunpack.c.l.b16 %v725
        %v795 = vunpack.c.h.b16 %v725
        %v796 = vunpack.c.l.b16 %v726
        %v797 = vunpack.c.h.b16 %v726
        %v798 = vunpack.c.l.b16 %v727
        %v799 = vunpack.c.h.b16 %v727
        %v800 = vunpack.c.l.b16 %v728
        %v801 = vunpack.c.h.b16 %v728
        %v802 = vunpack.c.l.b16 %v729
        %v803 = vunpack.c.h.b16 %v729
        %v804 = vunpack.c.l.b16 %v730
        %v805 = vunpack.c.h.b16 %v730
        %v806 = vunpack.c.l.b16 %v731
        %v807 = vunpack.c.h.b16 %v731
        %v808 = vunpack.c.l.b16 %v732
        %v809 = vunpack.c.h.b16 %v732
        %v810 = vunpack.c.l.b16 %v733
        %v811 = vunpack.c.h.b16 %v733
        %v812 = vunpack.c.l.b16 %v734
        %v813 = vunpack.c.h.b16 %v734
        %v814 = vunpack.c.l.b16 %v735
        %v815 = vunpack.c.h.b16 %v735
        %v816 = vunpack.c.l.b16 %v736
        %v817 = vunpack.c.h.b16 %v736
        %v818 = vunpack.c.l.b16 %v737
        %v819 = vunpack.c.h.b16 %v737
        %v820 = vunpack.c.l.b16 %v738
        %v821 = vunpack.c.h.b16 %v738
        %v822 = vunpack.c.l.b16 %v739
        %v823 = vunpack.c.h.b16 %v739
        %v824 = vunpack.c.l.b16 %v740
        %v825 = vunpack.c.h.b16 %v740
        %v826 = vunpack.c.l.b16 %v741
        %v827 = vunpack.c.h.b16 %v741
        %v828 = vunpack.c.l.b16 %v742
        %v829 = vunpack.c.h.b16 %v742
        %v830 = vunpack.c.l.b16 %v743
        %v831 = vunpack.c.h.b16 %v743
        %v832 = vunpack.c.l.b16 %v744
        %v833 = vunpack.c.h.b16 %v744
        %v834 = vunpack.c.l.b16 %v745
        %v835 = vunpack.c.h.b16 %v745
        %v836 = vunpack.c.l.b16 %v746
        %v837 = vunpack.c.h.b16 %v746
        %v838 = vunpack.c.l.b16 %v747
        %v839 = vunpack.c.h.b16 %v747
        %v840 = vunpack.c.l.b16 %v748
        %v841 = vunpack.c.h.b16 %v748
        %v842 = vunpack.c.l.b16 %v749
        %v843 = vunpack.c.h.b16 %v749
        %v844 = vunpack.c.l.b16 %v750
        %v845 = vunpack.c.h.b16 %v750
        %v846 = vunpack.c.l.b16 %v751
        %v847 = vunpack.c.h.b16 %v751
        %v848 = vpack.c.b16 %v786, %v784
        %v849 = vpack.c.b16 %v787, %v785
        %v850 = vpack.c.b16 %v790, %v788
        %v851 = vpack.c.b16 %v791, %v789
        %v852 = vpack.c.b16 %v794, %v792
        %v853 = vpack.c.b16 %v795, %v793
        %v854 = vpack.c.b16 %v798, %v796
        %v855 = vpack.c.b16 %v799, %v797
        %v856 = vpack.c.b16 %v802, %v800
        %v857 = vpack.c.b16 %v803, %v801
        %v858 = vpack.c.b16 %v806, %v804
        %v859 = vpack.c.b16 %v807, %v805
        %v860 = vpack.c.b16 %v810, %v808
        %v861 = vpack.c.b16 %v811, %v809
        %v862 = vpack.c.b16 %v814, %v812
        %v863 = vpack.c.b16 %v815, %v813
        %v864 = vpack.c.b16 %v818, %v816
        %v865 = vpack.c.b16 %v819, %v817
        %v866 = vpack.c.b16 %v822, %v820
        %v867 = vpack.c.b16 %v823, %v821
        %v868 = vpack.c.b16 %v826, %v824
        %v869 = vpack.c.b16 %v827, %v825
        %v870 = vpack.c.b16 %v830, %v828
        %v871 = vpack.c.b16 %v831, %v829
        %v872 = vpack.c.b16 %v834, %v832
        %v873 = vpack.c.b16 %v835, %v833
        %v874 = vpack.c.b16 %v838, %v836
        %v875 = vpack.c.b16 %v839, %v837
        %v876 = vpack.c.b16 %v842, %v840
        %v877 = vpack.c.b16 %v843, %v841
        %v878 = vpack.c.b16 %v846, %v844
        %v879 = vpack.c.b16 %v847, %v845
        %912 = vmatprep.subr.bf16.mxu0 %v849
        %913 = vmatpush1.bf16.msra.mxu0 %v848
        %914 = vmatprep.subr.bf16.mxu0 %v851
        %915 = vmatpush1.bf16.msra.mxu0 %v850
        %916 = vmatprep.subr.bf16.mxu0 %v853
        %917 = vmatpush1.bf16.msra.mxu0 %v852
        %918 = vmatprep.subr.bf16.mxu0 %v855
        %919 = vmatpush1.bf16.msra.mxu0 %v854
        %920 = vmatprep.subr.bf16.mxu0 %v857
        %921 = vmatpush1.bf16.msra.mxu0 %v856
        %922 = vmatprep.subr.bf16.mxu0 %v859
        %923 = vmatpush1.bf16.msra.mxu0 %v858
        %924 = vmatprep.subr.bf16.mxu0 %v861
        %925 = vmatpush1.bf16.msra.mxu0 %v860
        %926 = vmatprep.subr.bf16.mxu0 %v863
        %927 = vmatpush1.bf16.msra.mxu0 %v862
        %928 = vmatprep.subr.bf16.mxu0 %v865
        %929 = vmatpush1.bf16.msra.mxu0 %v864
        %930 = vmatprep.subr.bf16.mxu0 %v867
        %931 = vmatpush1.bf16.msra.mxu0 %v866
        %932 = vmatprep.subr.bf16.mxu0 %v869
        %933 = vmatpush1.bf16.msra.mxu0 %v868
        %934 = vmatprep.subr.bf16.mxu0 %v871
        %935 = vmatpush1.bf16.msra.mxu0 %v870
        %936 = vmatprep.subr.bf16.mxu0 %v873
        %937 = vmatpush1.bf16.msra.mxu0 %v872
        %938 = vmatprep.subr.bf16.mxu0 %v875
        %939 = vmatpush1.bf16.msra.mxu0 %v874
        %940 = vmatprep.subr.bf16.mxu0 %v877
        %941 = vmatpush1.bf16.msra.mxu0 %v876
        %942 = vmatprep.subr.bf16.mxu0 %v879
        %943 = vmatpush1.bf16.msra.mxu0 %v878
        %944 = vmatprep.mubr.bf16.mxu0 %v416
        %945 = vmatmul.mubr.bf16.gmra.mrb[0].mxu0 %v415
        %v946 = vpop.f32.mrb[0].mxu0
        %v947 = vadd.f32 0.0, %v946
        %v948 = vpop.f32.mrb[0].mxu0
        %v949 = vadd.f32 0.0, %v948
        %v950 = vpop.f32.mrb[0].mxu0
        %v951 = vadd.f32 0.0, %v950
        %v952 = vpop.f32.mrb[0].mxu0
        %v953 = vadd.f32 0.0, %v952
        %954 = vmatprep.mubr.bf16.mxu0 %v418
        %955 = vmatmul.mubr.bf16.gmra.mrb[0].mxu0 %v417
        %v956 = vpop.f32.mrb[0].mxu0
        %v957 = vadd.f32 0.0, %v956
        %v958 = vpop.f32.mrb[0].mxu0
        %v959 = vadd.f32 0.0, %v958
        %v960 = vpop.f32.mrb[0].mxu0
        %v961 = vadd.f32 0.0, %v960
        %v962 = vpop.f32.mrb[0].mxu0
        %v963 = vadd.f32 0.0, %v962
        %964 = vmatprep.mubr.bf16.mxu0 %v420
        %965 = vmatmul.mubr.bf16.gmra.mrb[0].mxu0 %v419
        %v966 = vpop.f32.mrb[0].mxu0
        %v967 = vadd.f32 0.0, %v966
        %v968 = vpop.f32.mrb[0].mxu0
        %v969 = vadd.f32 0.0, %v968
        %v970 = vpop.f32.mrb[0].mxu0
        %v971 = vadd.f32 0.0, %v970
        %v972 = vpop.f32.mrb[0].mxu0
        %v973 = vadd.f32 0.0, %v972
        %974 = vmatprep.mubr.bf16.mxu0 %v422
        %975 = vmatmul.mubr.bf16.gmra.mrb[0].mxu0 %v421
        %v976 = vpop.f32.mrb[0].mxu0
        %v977 = vadd.f32 0.0, %v976
        %v978 = vpop.f32.mrb[0].mxu0
        %v979 = vadd.f32 0.0, %v978
        %v980 = vpop.f32.mrb[0].mxu0
        %v981 = vadd.f32 0.0, %v980
        %v982 = vpop.f32.mrb[0].mxu0
        %v983 = vadd.f32 0.0, %v982
        %984 = vmatprep.mubr.bf16.mxu0 %v424
        %985 = vmatmul.mubr.bf16.gmra.mrb[0].mxu0 %v423
        %v986 = vpop.f32.mrb[0].mxu0
        %v987 = vadd.f32 0.0, %v986
        %v988 = vpop.f32.mrb[0].mxu0
        %v989 = vadd.f32 0.0, %v988
        %v990 = vpop.f32.mrb[0].mxu0
        %v991 = vadd.f32 0.0, %v990
        %v992 = vpop.f32.mrb[0].mxu0
        %v993 = vadd.f32 0.0, %v992
        %994 = vmatprep.mubr.bf16.mxu0 %v426
        %995 = vmatmul.mubr.bf16.gmra.mrb[0].mxu0 %v425
        %v996 = vpop.f32.mrb[0].mxu0
        %v997 = vadd.f32 0.0, %v996
        %v998 = vpop.f32.mrb[0].mxu0
        %v999 = vadd.f32 0.0, %v998
        %v1000 = vpop.f32.mrb[0].mxu0
        %v1001 = vadd.f32 0.0, %v1000
        %v1002 = vpop.f32.mrb[0].mxu0
        %v1003 = vadd.f32 0.0, %v1002
        %1004 = vmatprep.mubr.bf16.mxu0 %v428
        %1005 = vmatmul.mubr.bf16.gmra.mrb[0].mxu0 %v427
        %v1006 = vpop.f32.mrb[0].mxu0
        %v1007 = vadd.f32 0.0, %v1006
        %v1008 = vpop.f32.mrb[0].mxu0
        %v1009 = vadd.f32 0.0, %v1008
        %v1010 = vpop.f32.mrb[0].mxu0
        %v1011 = vadd.f32 0.0, %v1010
        %v1012 = vpop.f32.mrb[0].mxu0
        %v1013 = vadd.f32 0.0, %v1012
        %1014 = vmatprep.mubr.bf16.mxu0 %v430
        %1015 = vmatmul.mubr.bf16.gmra.mrb[0].mxu0 %v429
        %v1016 = vpop.f32.mrb[0].mxu0
        %v1017 = vadd.f32 0.0, %v1016
        %v1018 = vpop.f32.mrb[0].mxu0
        %v1019 = vadd.f32 0.0, %v1018
        %v1020 = vpop.f32.mrb[0].mxu0
        %v1021 = vadd.f32 0.0, %v1020
        %v1022 = vpop.f32.mrb[0].mxu0
        %v1023 = vadd.f32 0.0, %v1022
        %1024 = vdwg.mxu0
        %v1025 = vxor.u32 %v642, 2147483648
        %v1026 = vxor.u32 %v644, 2147483648
        %v1027 = vxor.u32 %v646, 2147483648
        %v1028 = vxor.u32 %v648, 2147483648
        %v1029 = vxor.u32 %v652, 2147483648
        %v1030 = vxor.u32 %v654, 2147483648
        %v1031 = vxor.u32 %v656, 2147483648
        %v1032 = vxor.u32 %v658, 2147483648
        %v1033 = vxor.u32 %v662, 2147483648
        %v1034 = vxor.u32 %v664, 2147483648
        %v1035 = vxor.u32 %v666, 2147483648
        %v1036 = vxor.u32 %v668, 2147483648
        %v1037 = vxor.u32 %v672, 2147483648
        %v1038 = vxor.u32 %v674, 2147483648
        %v1039 = vxor.u32 %v676, 2147483648
        %v1040 = vxor.u32 %v678, 2147483648
        %v1041 = vxor.u32 %v682, 2147483648
        %v1042 = vxor.u32 %v684, 2147483648
        %v1043 = vxor.u32 %v686, 2147483648
        %v1044 = vxor.u32 %v688, 2147483648
        %v1045 = vxor.u32 %v692, 2147483648
        %v1046 = vxor.u32 %v694, 2147483648
        %v1047 = vxor.u32 %v696, 2147483648
        %v1048 = vxor.u32 %v698, 2147483648
        %v1049 = vxor.u32 %v702, 2147483648
        %v1050 = vxor.u32 %v704, 2147483648
        %v1051 = vxor.u32 %v706, 2147483648
        %v1052 = vxor.u32 %v708, 2147483648
        %v1053 = vxor.u32 %v712, 2147483648
        %v1054 = vxor.u32 %v714, 2147483648
        %v1055 = vxor.u32 %v716, 2147483648
        %v1056 = vxor.u32 %v718, 2147483648
        %v1057 = vmul.f32 %v1025, 1.442695
        %v1058 = vpow.pop %v1057
        %v1059 = vmul.f32 %v1026, 1.442695
        %v1060 = vpow.pop %v1059
        %v1061 = vmul.f32 %v1027, 1.442695
        %v1062 = vpow.pop %v1061
        %v1063 = vmul.f32 %v1028, 1.442695
        %v1064 = vpow.pop %v1063
        %v1065 = vmul.f32 %v1029, 1.442695
        %v1066 = vpow.pop %v1065
        %v1067 = vmul.f32 %v1030, 1.442695
        %v1068 = vpow.pop %v1067
        %v1069 = vmul.f32 %v1031, 1.442695
        %v1070 = vpow.pop %v1069
        %v1071 = vmul.f32 %v1032, 1.442695
        %v1072 = vpow.pop %v1071
        %v1073 = vmul.f32 %v1033, 1.442695
        %v1074 = vpow.pop %v1073
        %v1075 = vmul.f32 %v1034, 1.442695
        %v1076 = vpow.pop %v1075
        %v1077 = vmul.f32 %v1035, 1.442695
        %v1078 = vpow.pop %v1077
        %v1079 = vmul.f32 %v1036, 1.442695
        %v1080 = vpow.pop %v1079
        %v1081 = vmul.f32 %v1037, 1.442695
        %v1082 = vpow.pop %v1081
        %v1083 = vmul.f32 %v1038, 1.442695
        %v1084 = vpow.pop %v1083
        %v1085 = vmul.f32 %v1039, 1.442695
        %v1086 = vpow.pop %v1085
        %v1087 = vmul.f32 %v1040, 1.442695
        %v1088 = vpow.pop %v1087
        %v1089 = vmul.f32 %v1041, 1.442695
        %v1090 = vpow.pop %v1089
        %v1091 = vmul.f32 %v1042, 1.442695
        %v1092 = vpow.pop %v1091
        %v1093 = vmul.f32 %v1043, 1.442695
        %v1094 = vpow.pop %v1093
        %v1095 = vmul.f32 %v1044, 1.442695
        %v1096 = vpow.pop %v1095
        %v1097 = vmul.f32 %v1045, 1.442695
        %v1098 = vpow.pop %v1097
        %v1099 = vmul.f32 %v1046, 1.442695
        %v1100 = vpow.pop %v1099
        %v1101 = vmul.f32 %v1047, 1.442695
        %v1102 = vpow.pop %v1101
        %v1103 = vmul.f32 %v1048, 1.442695
        %v1104 = vpow.pop %v1103
        %v1105 = vmul.f32 %v1049, 1.442695
        %v1106 = vpow.pop %v1105
        %v1107 = vmul.f32 %v1050, 1.442695
        %v1108 = vpow.pop %v1107
        %v1109 = vmul.f32 %v1051, 1.442695
        %v1110 = vpow.pop %v1109
        %v1111 = vmul.f32 %v1052, 1.442695
        %v1112 = vpow.pop %v1111
        %v1113 = vmul.f32 %v1053, 1.442695
        %v1114 = vpow.pop %v1113
        %v1115 = vmul.f32 %v1054, 1.442695
        %v1116 = vpow.pop %v1115
        %v1117 = vmul.f32 %v1055, 1.442695
        %v1118 = vpow.pop %v1117
        %v1119 = vmul.f32 %v1056, 1.442695
        %v1120 = vpow.pop %v1119
        %v1121 = vadd.f32 %v1058, 1.0
        %v1122 = vadd.f32 %v1060, 1.0
        %v1123 = vadd.f32 %v1062, 1.0
        %v1124 = vadd.f32 %v1064, 1.0
        %v1125 = vadd.f32 %v1066, 1.0
        %v1126 = vadd.f32 %v1068, 1.0
        %v1127 = vadd.f32 %v1070, 1.0
        %v1128 = vadd.f32 %v1072, 1.0
        %v1129 = vadd.f32 %v1074, 1.0
        %v1130 = vadd.f32 %v1076, 1.0
        %v1131 = vadd.f32 %v1078, 1.0
        %v1132 = vadd.f32 %v1080, 1.0
        %v1133 = vadd.f32 %v1082, 1.0
        %v1134 = vadd.f32 %v1084, 1.0
        %v1135 = vadd.f32 %v1086, 1.0
        %v1136 = vadd.f32 %v1088, 1.0
        %v1137 = vadd.f32 %v1090, 1.0
        %v1138 = vadd.f32 %v1092, 1.0
        %v1139 = vadd.f32 %v1094, 1.0
        %v1140 = vadd.f32 %v1096, 1.0
        %v1141 = vadd.f32 %v1098, 1.0
        %v1142 = vadd.f32 %v1100, 1.0
        %v1143 = vadd.f32 %v1102, 1.0
        %v1144 = vadd.f32 %v1104, 1.0
        %v1145 = vadd.f32 %v1106, 1.0
        %v1146 = vadd.f32 %v1108, 1.0
        %v1147 = vadd.f32 %v1110, 1.0
        %v1148 = vadd.f32 %v1112, 1.0
        %v1149 = vadd.f32 %v1114, 1.0
        %v1150 = vadd.f32 %v1116, 1.0
        %v1151 = vadd.f32 %v1118, 1.0
        %v1152 = vadd.f32 %v1120, 1.0
        %v1153 = vrcp.pop %v1121
        %v1154 = vmul.f32 1.0, %v1153
        %v1155 = vrcp.pop %v1122
        %v1156 = vmul.f32 1.0, %v1155
        %v1157 = vrcp.pop %v1123
        %v1158 = vmul.f32 1.0, %v1157
        %v1159 = vrcp.pop %v1124
        %v1160 = vmul.f32 1.0, %v1159
        %v1161 = vrcp.pop %v1125
        %v1162 = vmul.f32 1.0, %v1161
        %v1163 = vrcp.pop %v1126
        %v1164 = vmul.f32 1.0, %v1163
        %v1165 = vrcp.pop %v1127
        %v1166 = vmul.f32 1.0, %v1165
        %v1167 = vrcp.pop %v1128
        %v1168 = vmul.f32 1.0, %v1167
        %v1169 = vrcp.pop %v1129
        %v1170 = vmul.f32 1.0, %v1169
        %v1171 = vrcp.pop %v1130
        %v1172 = vmul.f32 1.0, %v1171
        %v1173 = vrcp.pop %v1131
        %v1174 = vmul.f32 1.0, %v1173
        %v1175 = vrcp.pop %v1132
        %v1176 = vmul.f32 1.0, %v1175
        %v1177 = vrcp.pop %v1133
        %v1178 = vmul.f32 1.0, %v1177
        %v1179 = vrcp.pop %v1134
        %v1180 = vmul.f32 1.0, %v1179
        %v1181 = vrcp.pop %v1135
        %v1182 = vmul.f32 1.0, %v1181
        %v1183 = vrcp.pop %v1136
        %v1184 = vmul.f32 1.0, %v1183
        %v1185 = vrcp.pop %v1137
        %v1186 = vmul.f32 1.0, %v1185
        %v1187 = vrcp.pop %v1138
        %v1188 = vmul.f32 1.0, %v1187
        %v1189 = vrcp.pop %v1139
        %v1190 = vmul.f32 1.0, %v1189
        %v1191 = vrcp.pop %v1140
        %v1192 = vmul.f32 1.0, %v1191
        %v1193 = vrcp.pop %v1141
        %v1194 = vmul.f32 1.0, %v1193
        %v1195 = vrcp.pop %v1142
        %v1196 = vmul.f32 1.0, %v1195
        %v1197 = vrcp.pop %v1143
        %v1198 = vmul.f32 1.0, %v1197
        %v1199 = vrcp.pop %v1144
        %v1200 = vmul.f32 1.0, %v1199
        %v1201 = vrcp.pop %v1145
        %v1202 = vmul.f32 1.0, %v1201
        %v1203 = vrcp.pop %v1146
        %v1204 = vmul.f32 1.0, %v1203
        %v1205 = vrcp.pop %v1147
        %v1206 = vmul.f32 1.0, %v1205
        %v1207 = vrcp.pop %v1148
        %v1208 = vmul.f32 1.0, %v1207
        %v1209 = vrcp.pop %v1149
        %v1210 = vmul.f32 1.0, %v1209
        %v1211 = vrcp.pop %v1150
        %v1212 = vmul.f32 1.0, %v1211
        %v1213 = vrcp.pop %v1151
        %v1214 = vmul.f32 1.0, %v1213
        %v1215 = vrcp.pop %v1152
        %v1216 = vmul.f32 1.0, %v1215
        %v1217 = vmul.f32 %v642, %v1154
        %v1218 = vmul.f32 %v644, %v1156
        %v1219 = vmul.f32 %v646, %v1158
        %v1220 = vmul.f32 %v648, %v1160
        %v1221 = vmul.f32 %v652, %v1162
        %v1222 = vmul.f32 %v654, %v1164
        %v1223 = vmul.f32 %v656, %v1166
        %v1224 = vmul.f32 %v658, %v1168
        %v1225 = vmul.f32 %v662, %v1170
        %v1226 = vmul.f32 %v664, %v1172
        %v1227 = vmul.f32 %v666, %v1174
        %v1228 = vmul.f32 %v668, %v1176
        %v1229 = vmul.f32 %v672, %v1178
        %v1230 = vmul.f32 %v674, %v1180
        %v1231 = vmul.f32 %v676, %v1182
        %v1232 = vmul.f32 %v678, %v1184
        %v1233 = vmul.f32 %v682, %v1186
        %v1234 = vmul.f32 %v684, %v1188
        %v1235 = vmul.f32 %v686, %v1190
        %v1236 = vmul.f32 %v688, %v1192
        %v1237 = vmul.f32 %v692, %v1194
        %v1238 = vmul.f32 %v694, %v1196
        %v1239 = vmul.f32 %v696, %v1198
        %v1240 = vmul.f32 %v698, %v1200
        %v1241 = vmul.f32 %v702, %v1202
        %v1242 = vmul.f32 %v704, %v1204
        %v1243 = vmul.f32 %v706, %v1206
        %v1244 = vmul.f32 %v708, %v1208
        %v1245 = vmul.f32 %v712, %v1210
        %v1246 = vmul.f32 %v714, %v1212
        %v1247 = vmul.f32 %v716, %v1214
        %v1248 = vmul.f32 %v718, %v1216
        %v1249 = vmul.f32 %v1217, %v947
        %v1250 = vmul.f32 %v1218, %v949
        %v1251 = vmul.f32 %v1219, %v951
        %v1252 = vmul.f32 %v1220, %v953
        %v1253 = vmul.f32 %v1221, %v957
        %v1254 = vmul.f32 %v1222, %v959
        %v1255 = vmul.f32 %v1223, %v961
        %v1256 = vmul.f32 %v1224, %v963
        %v1257 = vmul.f32 %v1225, %v967
        %v1258 = vmul.f32 %v1226, %v969
        %v1259 = vmul.f32 %v1227, %v971
        %v1260 = vmul.f32 %v1228, %v973
        %v1261 = vmul.f32 %v1229, %v977
        %v1262 = vmul.f32 %v1230, %v979
        %v1263 = vmul.f32 %v1231, %v981
        %v1264 = vmul.f32 %v1232, %v983
        %v1265 = vmul.f32 %v1233, %v987
        %v1266 = vmul.f32 %v1234, %v989
        %v1267 = vmul.f32 %v1235, %v991
        %v1268 = vmul.f32 %v1236, %v993
        %v1269 = vmul.f32 %v1237, %v997
        %v1270 = vmul.f32 %v1238, %v999
        %v1271 = vmul.f32 %v1239, %v1001
        %v1272 = vmul.f32 %v1240, %v1003
        %v1273 = vmul.f32 %v1241, %v1007
        %v1274 = vmul.f32 %v1242, %v1009
        %v1275 = vmul.f32 %v1243, %v1011
        %v1276 = vmul.f32 %v1244, %v1013
        %v1277 = vmul.f32 %v1245, %v1017
        %v1278 = vmul.f32 %v1246, %v1019
        %v1279 = vmul.f32 %v1247, %v1021
        %v1280 = vmul.f32 %v1248, %v1023
        %v1281 = vpack.c.bf16 %v1251, %v1249
        %v1282 = vpack.c.bf16 %v1252, %v1250
        %v1283 = vpack.c.bf16 %v1255, %v1253
        %v1284 = vpack.c.bf16 %v1256, %v1254
        %v1285 = vpack.c.bf16 %v1259, %v1257
        %v1286 = vpack.c.bf16 %v1260, %v1258
        %v1287 = vpack.c.bf16 %v1263, %v1261
        %v1288 = vpack.c.bf16 %v1264, %v1262
        %v1289 = vpack.c.bf16 %v1267, %v1265
        %v1290 = vpack.c.bf16 %v1268, %v1266
        %v1291 = vpack.c.bf16 %v1271, %v1269
        %v1292 = vpack.c.bf16 %v1272, %v1270
        %v1293 = vpack.c.bf16 %v1275, %v1273
        %v1294 = vpack.c.bf16 %v1276, %v1274
        %v1295 = vpack.c.bf16 %v1279, %v1277
        %v1296 = vpack.c.bf16 %v1280, %v1278
        %v1297 = vld [vmem:[#allocation2] sm:$0xff]
        %v1298 = vld [vmem:[#allocation2 + $0x8] sm:$0xff]
        %v1299 = vld [vmem:[#allocation2 + $0x10] sm:$0xff]
        %v1300 = vld [vmem:[#allocation2 + $0x18] sm:$0xff]
        %v1301 = vld [vmem:[#allocation2 + $0x20] sm:$0xff]
        %v1302 = vld [vmem:[#allocation2 + $0x28] sm:$0xff]
        %v1303 = vld [vmem:[#allocation2 + $0x30] sm:$0xff]
        %v1304 = vld [vmem:[#allocation2 + $0x38] sm:$0xff]
        %v1305 = vld [vmem:[#allocation2 + $0x40] sm:$0xff]
        %v1306 = vld [vmem:[#allocation2 + $0x48] sm:$0xff]
        %v1307 = vld [vmem:[#allocation2 + $0x50] sm:$0xff]
        %v1308 = vld [vmem:[#allocation2 + $0x58] sm:$0xff]
        %v1309 = vld [vmem:[#allocation2 + $0x60] sm:$0xff]
        %v1310 = vld [vmem:[#allocation2 + $0x68] sm:$0xff]
        %v1311 = vld [vmem:[#allocation2 + $0x70] sm:$0xff]
        %v1312 = vld [vmem:[#allocation2 + $0x78] sm:$0xff]
        %v1313 = vld [vmem:[#allocation2 + $0x80] sm:$0xff]
        %v1314 = vld [vmem:[#allocation2 + $0x88] sm:$0xff]
        %v1315 = vld [vmem:[#allocation2 + $0x90] sm:$0xff]
        %v1316 = vld [vmem:[#allocation2 + $0x98] sm:$0xff]
        %v1317 = vld [vmem:[#allocation2 + $0xa0] sm:$0xff]
        %v1318 = vld [vmem:[#allocation2 + $0xa8] sm:$0xff]
        %v1319 = vld [vmem:[#allocation2 + $0xb0] sm:$0xff]
        %v1320 = vld [vmem:[#allocation2 + $0xb8] sm:$0xff]
        %v1321 = vld [vmem:[#allocation2 + $0xc0] sm:$0xff]
        %v1322 = vld [vmem:[#allocation2 + $0xc8] sm:$0xff]
        %v1323 = vld [vmem:[#allocation2 + $0xd0] sm:$0xff]
        %v1324 = vld [vmem:[#allocation2 + $0xd8] sm:$0xff]
        %v1325 = vld [vmem:[#allocation2 + $0xe0] sm:$0xff]
        %v1326 = vld [vmem:[#allocation2 + $0xe8] sm:$0xff]
        %v1327 = vld [vmem:[#allocation2 + $0xf0] sm:$0xff]
        %v1328 = vld [vmem:[#allocation2 + $0xf8] sm:$0xff]
        %v1329 = vld [vmem:[%s280] sm:$0xff]
        %v1330 = vld [vmem:[%s280 + $0x8] sm:$0xff]
        %v1331 = vld [vmem:[%s280 + $0x10] sm:$0xff]
        %v1332 = vld [vmem:[%s280 + $0x18] sm:$0xff]
        %v1333 = vld [vmem:[%s280 + $0x20] sm:$0xff]
        %v1334 = vld [vmem:[%s280 + $0x28] sm:$0xff]
        %v1335 = vld [vmem:[%s280 + $0x30] sm:$0xff]
        %v1336 = vld [vmem:[%s280 + $0x38] sm:$0xff]
        %v1337 = vld [vmem:[%s280 + $0x40] sm:$0xff]
        %v1338 = vld [vmem:[%s280 + $0x48] sm:$0xff]
        %v1339 = vld [vmem:[%s280 + $0x50] sm:$0xff]
        %v1340 = vld [vmem:[%s280 + $0x58] sm:$0xff]
        %v1341 = vld [vmem:[%s280 + $0x60] sm:$0xff]
        %v1342 = vld [vmem:[%s280 + $0x68] sm:$0xff]
        %v1343 = vld [vmem:[%s280 + $0x70] sm:$0xff]
        %v1344 = vld [vmem:[%s280 + $0x78] sm:$0xff]
        %v1345 = vld [vmem:[%s280 + $0x80] sm:$0xff]
        %v1346 = vld [vmem:[%s280 + $0x88] sm:$0xff]
        %v1347 = vld [vmem:[%s280 + $0x90] sm:$0xff]
        %v1348 = vld [vmem:[%s280 + $0x98] sm:$0xff]
        %v1349 = vld [vmem:[%s280 + $0xa0] sm:$0xff]
        %v1350 = vld [vmem:[%s280 + $0xa8] sm:$0xff]
        %v1351 = vld [vmem:[%s280 + $0xb0] sm:$0xff]
        %v1352 = vld [vmem:[%s280 + $0xb8] sm:$0xff]
        %v1353 = vld [vmem:[%s280 + $0xc0] sm:$0xff]
        %v1354 = vld [vmem:[%s280 + $0xc8] sm:$0xff]
        %v1355 = vld [vmem:[%s280 + $0xd0] sm:$0xff]
        %v1356 = vld [vmem:[%s280 + $0xd8] sm:$0xff]
        %v1357 = vld [vmem:[%s280 + $0xe0] sm:$0xff]
        %v1358 = vld [vmem:[%s280 + $0xe8] sm:$0xff]
        %v1359 = vld [vmem:[%s280 + $0xf0] sm:$0xff]
        %v1360 = vld [vmem:[%s280 + $0xf8] sm:$0xff]
        %v1393 = vunpack.c.l.b16 %v1329
        %v1394 = vunpack.c.h.b16 %v1329
        %v1395 = vunpack.c.l.b16 %v1330
        %v1396 = vunpack.c.h.b16 %v1330
        %v1397 = vunpack.c.l.b16 %v1331
        %v1398 = vunpack.c.h.b16 %v1331
        %v1399 = vunpack.c.l.b16 %v1332
        %v1400 = vunpack.c.h.b16 %v1332
        %v1401 = vunpack.c.l.b16 %v1333
        %v1402 = vunpack.c.h.b16 %v1333
        %v1403 = vunpack.c.l.b16 %v1334
        %v1404 = vunpack.c.h.b16 %v1334
        %v1405 = vunpack.c.l.b16 %v1335
        %v1406 = vunpack.c.h.b16 %v1335
        %v1407 = vunpack.c.l.b16 %v1336
        %v1408 = vunpack.c.h.b16 %v1336
        %v1409 = vunpack.c.l.b16 %v1337
        %v1410 = vunpack.c.h.b16 %v1337
        %v1411 = vunpack.c.l.b16 %v1338
        %v1412 = vunpack.c.h.b16 %v1338
        %v1413 = vunpack.c.l.b16 %v1339
        %v1414 = vunpack.c.h.b16 %v1339
        %v1415 = vunpack.c.l.b16 %v1340
        %v1416 = vunpack.c.h.b16 %v1340
        %v1417 = vunpack.c.l.b16 %v1341
        %v1418 = vunpack.c.h.b16 %v1341
        %v1419 = vunpack.c.l.b16 %v1342
        %v1420 = vunpack.c.h.b16 %v1342
        %v1421 = vunpack.c.l.b16 %v1343
        %v1422 = vunpack.c.h.b16 %v1343
        %v1423 = vunpack.c.l.b16 %v1344
        %v1424 = vunpack.c.h.b16 %v1344
        %v1425 = vunpack.c.l.b16 %v1345
        %v1426 = vunpack.c.h.b16 %v1345
        %v1427 = vunpack.c.l.b16 %v1346
        %v1428 = vunpack.c.h.b16 %v1346
        %v1429 = vunpack.c.l.b16 %v1347
        %v1430 = vunpack.c.h.b16 %v1347
        %v1431 = vunpack.c.l.b16 %v1348
        %v1432 = vunpack.c.h.b16 %v1348
        %v1433 = vunpack.c.l.b16 %v1349
        %v1434 = vunpack.c.h.b16 %v1349
        %v1435 = vunpack.c.l.b16 %v1350
        %v1436 = vunpack.c.h.b16 %v1350
        %v1437 = vunpack.c.l.b16 %v1351
        %v1438 = vunpack.c.h.b16 %v1351
        %v1439 = vunpack.c.l.b16 %v1352
        %v1440 = vunpack.c.h.b16 %v1352
        %v1441 = vunpack.c.l.b16 %v1353
        %v1442 = vunpack.c.h.b16 %v1353
        %v1443 = vunpack.c.l.b16 %v1354
        %v1444 = vunpack.c.h.b16 %v1354
        %v1445 = vunpack.c.l.b16 %v1355
        %v1446 = vunpack.c.h.b16 %v1355
        %v1447 = vunpack.c.l.b16 %v1356
        %v1448 = vunpack.c.h.b16 %v1356
        %v1449 = vunpack.c.l.b16 %v1357
        %v1450 = vunpack.c.h.b16 %v1357
        %v1451 = vunpack.c.l.b16 %v1358
        %v1452 = vunpack.c.h.b16 %v1358
        %v1453 = vunpack.c.l.b16 %v1359
        %v1454 = vunpack.c.h.b16 %v1359
        %v1455 = vunpack.c.l.b16 %v1360
        %v1456 = vunpack.c.h.b16 %v1360
        %v1457 = vpack.c.b16 %v1395, %v1393
        %v1458 = vpack.c.b16 %v1396, %v1394
        %v1459 = vpack.c.b16 %v1399, %v1397
        %v1460 = vpack.c.b16 %v1400, %v1398
        %v1461 = vpack.c.b16 %v1403, %v1401
        %v1462 = vpack.c.b16 %v1404, %v1402
        %v1463 = vpack.c.b16 %v1407, %v1405
        %v1464 = vpack.c.b16 %v1408, %v1406
        %v1465 = vpack.c.b16 %v1411, %v1409
        %v1466 = vpack.c.b16 %v1412, %v1410
        %v1467 = vpack.c.b16 %v1415, %v1413
        %v1468 = vpack.c.b16 %v1416, %v1414
        %v1469 = vpack.c.b16 %v1419, %v1417
        %v1470 = vpack.c.b16 %v1420, %v1418
        %v1471 = vpack.c.b16 %v1423, %v1421
        %v1472 = vpack.c.b16 %v1424, %v1422
        %v1473 = vpack.c.b16 %v1427, %v1425
        %v1474 = vpack.c.b16 %v1428, %v1426
        %v1475 = vpack.c.b16 %v1431, %v1429
        %v1476 = vpack.c.b16 %v1432, %v1430
        %v1477 = vpack.c.b16 %v1435, %v1433
        %v1478 = vpack.c.b16 %v1436, %v1434
        %v1479 = vpack.c.b16 %v1439, %v1437
        %v1480 = vpack.c.b16 %v1440, %v1438
        %v1481 = vpack.c.b16 %v1443, %v1441
        %v1482 = vpack.c.b16 %v1444, %v1442
        %v1483 = vpack.c.b16 %v1447, %v1445
        %v1484 = vpack.c.b16 %v1448, %v1446
        %v1485 = vpack.c.b16 %v1451, %v1449
        %v1486 = vpack.c.b16 %v1452, %v1450
        %v1487 = vpack.c.b16 %v1455, %v1453
        %v1488 = vpack.c.b16 %v1456, %v1454
        %1521 = vmatprep.subr.bf16.mxu0 %v1458
        %1522 = vmatpush1.bf16.msra.mxu0 %v1457
        %1523 = vmatprep.subr.bf16.mxu0 %v1460
        %1524 = vmatpush1.bf16.msra.mxu0 %v1459
        %1525 = vmatprep.subr.bf16.mxu0 %v1462
        %1526 = vmatpush1.bf16.msra.mxu0 %v1461
        %1527 = vmatprep.subr.bf16.mxu0 %v1464
        %1528 = vmatpush1.bf16.msra.mxu0 %v1463
        %1529 = vmatprep.subr.bf16.mxu0 %v1466
        %1530 = vmatpush1.bf16.msra.mxu0 %v1465
        %1531 = vmatprep.subr.bf16.mxu0 %v1468
        %1532 = vmatpush1.bf16.msra.mxu0 %v1467
        %1533 = vmatprep.subr.bf16.mxu0 %v1470
        %1534 = vmatpush1.bf16.msra.mxu0 %v1469
        %1535 = vmatprep.subr.bf16.mxu0 %v1472
        %1536 = vmatpush1.bf16.msra.mxu0 %v1471
        %1537 = vmatprep.subr.bf16.mxu0 %v1474
        %1538 = vmatpush1.bf16.msra.mxu0 %v1473
        %1539 = vmatprep.subr.bf16.mxu0 %v1476
        %1540 = vmatpush1.bf16.msra.mxu0 %v1475
        %1541 = vmatprep.subr.bf16.mxu0 %v1478
        %1542 = vmatpush1.bf16.msra.mxu0 %v1477
        %1543 = vmatprep.subr.bf16.mxu0 %v1480
        %1544 = vmatpush1.bf16.msra.mxu0 %v1479
        %1545 = vmatprep.subr.bf16.mxu0 %v1482
        %1546 = vmatpush1.bf16.msra.mxu0 %v1481
        %1547 = vmatprep.subr.bf16.mxu0 %v1484
        %1548 = vmatpush1.bf16.msra.mxu0 %v1483
        %1549 = vmatprep.subr.bf16.mxu0 %v1486
        %1550 = vmatpush1.bf16.msra.mxu0 %v1485
        %1551 = vmatprep.subr.bf16.mxu0 %v1488
        %1552 = vmatpush1.bf16.msra.mxu0 %v1487
        %1553 = vmatprep.mubr.bf16.mxu0 %v1282
        %1554 = vmatmul.mubr.bf16.gmra.mrb[0].mxu0 %v1281
        %v1555 = vpop.f32.mrb[0].mxu0
        %v1556 = vadd.f32 0.0, %v1555
        %v1557 = vpop.f32.mrb[0].mxu0
        %v1558 = vadd.f32 0.0, %v1557
        %v1559 = vpop.f32.mrb[0].mxu0
        %v1560 = vadd.f32 0.0, %v1559
        %v1561 = vpop.f32.mrb[0].mxu0
        %v1562 = vadd.f32 0.0, %v1561
        %1563 = vmatprep.mubr.bf16.mxu0 %v1284
        %1564 = vmatmul.mubr.bf16.gmra.mrb[0].mxu0 %v1283
        %v1565 = vpop.f32.mrb[0].mxu0
        %v1566 = vadd.f32 0.0, %v1565
        %v1567 = vpop.f32.mrb[0].mxu0
        %v1568 = vadd.f32 0.0, %v1567
        %v1569 = vpop.f32.mrb[0].mxu0
        %v1570 = vadd.f32 0.0, %v1569
        %v1571 = vpop.f32.mrb[0].mxu0
        %v1572 = vadd.f32 0.0, %v1571
        %1573 = vmatprep.mubr.bf16.mxu0 %v1286
        %1574 = vmatmul.mubr.bf16.gmra.mrb[0].mxu0 %v1285
        %v1575 = vpop.f32.mrb[0].mxu0
        %v1576 = vadd.f32 0.0, %v1575
        %v1577 = vpop.f32.mrb[0].mxu0
        %v1578 = vadd.f32 0.0, %v1577
        %v1579 = vpop.f32.mrb[0].mxu0
        %v1580 = vadd.f32 0.0, %v1579
        %v1581 = vpop.f32.mrb[0].mxu0
        %v1582 = vadd.f32 0.0, %v1581
        %1583 = vmatprep.mubr.bf16.mxu0 %v1288
        %1584 = vmatmul.mubr.bf16.gmra.mrb[0].mxu0 %v1287
        %v1585 = vpop.f32.mrb[0].mxu0
        %v1586 = vadd.f32 0.0, %v1585
        %v1587 = vpop.f32.mrb[0].mxu0
        %v1588 = vadd.f32 0.0, %v1587
        %v1589 = vpop.f32.mrb[0].mxu0
        %v1590 = vadd.f32 0.0, %v1589
        %v1591 = vpop.f32.mrb[0].mxu0
        %v1592 = vadd.f32 0.0, %v1591
        %1593 = vmatprep.mubr.bf16.mxu0 %v1290
        %1594 = vmatmul.mubr.bf16.gmra.mrb[0].mxu0 %v1289
        %v1595 = vpop.f32.mrb[0].mxu0
        %v1596 = vadd.f32 0.0, %v1595
        %v1597 = vpop.f32.mrb[0].mxu0
        %v1598 = vadd.f32 0.0, %v1597
        %v1599 = vpop.f32.mrb[0].mxu0
        %v1600 = vadd.f32 0.0, %v1599
        %v1601 = vpop.f32.mrb[0].mxu0
        %v1602 = vadd.f32 0.0, %v1601
        %1603 = vmatprep.mubr.bf16.mxu0 %v1292
        %1604 = vmatmul.mubr.bf16.gmra.mrb[0].mxu0 %v1291
        %v1605 = vpop.f32.mrb[0].mxu0
        %v1606 = vadd.f32 0.0, %v1605
        %v1607 = vpop.f32.mrb[0].mxu0
        %v1608 = vadd.f32 0.0, %v1607
        %v1609 = vpop.f32.mrb[0].mxu0
        %v1610 = vadd.f32 0.0, %v1609
        %v1611 = vpop.f32.mrb[0].mxu0
        %v1612 = vadd.f32 0.0, %v1611
        %1613 = vmatprep.mubr.bf16.mxu0 %v1294
        %1614 = vmatmul.mubr.bf16.gmra.mrb[0].mxu0 %v1293
        %v1615 = vpop.f32.mrb[0].mxu0
        %v1616 = vadd.f32 0.0, %v1615
        %v1617 = vpop.f32.mrb[0].mxu0
        %v1618 = vadd.f32 0.0, %v1617
        %v1619 = vpop.f32.mrb[0].mxu0
        %v1620 = vadd.f32 0.0, %v1619
        %v1621 = vpop.f32.mrb[0].mxu0
        %v1622 = vadd.f32 0.0, %v1621
        %1623 = vmatprep.mubr.bf16.mxu0 %v1296
        %1624 = vmatmul.mubr.bf16.gmra.mrb[0].mxu0 %v1295
        %v1625 = vpop.f32.mrb[0].mxu0
        %v1626 = vadd.f32 0.0, %v1625
        %v1627 = vpop.f32.mrb[0].mxu0
        %v1628 = vadd.f32 0.0, %v1627
        %v1629 = vpop.f32.mrb[0].mxu0
        %v1630 = vadd.f32 0.0, %v1629
        %v1631 = vpop.f32.mrb[0].mxu0
        %v1632 = vadd.f32 0.0, %v1631
        %1633 = vdwg.mxu0
        %v1634 = vadd.f32 %v1297, %v1556
        %v1635 = vadd.f32 %v1298, %v1558
        %v1636 = vadd.f32 %v1299, %v1560
        %v1637 = vadd.f32 %v1300, %v1562
        %v1638 = vadd.f32 %v1301, %v1566
        %v1639 = vadd.f32 %v1302, %v1568
        %v1640 = vadd.f32 %v1303, %v1570
        %v1641 = vadd.f32 %v1304, %v1572
        %v1642 = vadd.f32 %v1305, %v1576
        %v1643 = vadd.f32 %v1306, %v1578
        %v1644 = vadd.f32 %v1307, %v1580
        %v1645 = vadd.f32 %v1308, %v1582
        %v1646 = vadd.f32 %v1309, %v1586
        %v1647 = vadd.f32 %v1310, %v1588
        %v1648 = vadd.f32 %v1311, %v1590
        %v1649 = vadd.f32 %v1312, %v1592
        %v1650 = vadd.f32 %v1313, %v1596
        %v1651 = vadd.f32 %v1314, %v1598
        %v1652 = vadd.f32 %v1315, %v1600
        %v1653 = vadd.f32 %v1316, %v1602
        %v1654 = vadd.f32 %v1317, %v1606
        %v1655 = vadd.f32 %v1318, %v1608
        %v1656 = vadd.f32 %v1319, %v1610
        %v1657 = vadd.f32 %v1320, %v1612
        %v1658 = vadd.f32 %v1321, %v1616
        %v1659 = vadd.f32 %v1322, %v1618
        %v1660 = vadd.f32 %v1323, %v1620
        %v1661 = vadd.f32 %v1324, %v1622
        %v1662 = vadd.f32 %v1325, %v1626
        %v1663 = vadd.f32 %v1326, %v1628
        %v1664 = vadd.f32 %v1327, %v1630
        %v1665 = vadd.f32 %v1328, %v1632
        %1666 = vst [vmem:[#allocation2] sm:$0xff] %v1634
        %1667 = vst [vmem:[#allocation2 + $0x8] sm:$0xff] %v1635
        %1668 = vst [vmem:[#allocation2 + $0x10] sm:$0xff] %v1636
        %1669 = vst [vmem:[#allocation2 + $0x18] sm:$0xff] %v1637
        %1670 = vst [vmem:[#allocation2 + $0x20] sm:$0xff] %v1638
        %1671 = vst [vmem:[#allocation2 + $0x28] sm:$0xff] %v1639
        %1672 = vst [vmem:[#allocation2 + $0x30] sm:$0xff] %v1640
        %1673 = vst [vmem:[#allocation2 + $0x38] sm:$0xff] %v1641
        %1674 = vst [vmem:[#allocation2 + $0x40] sm:$0xff] %v1642
        %1675 = vst [vmem:[#allocation2 + $0x48] sm:$0xff] %v1643
        %1676 = vst [vmem:[#allocation2 + $0x50] sm:$0xff] %v1644
        %1677 = vst [vmem:[#allocation2 + $0x58] sm:$0xff] %v1645
        %1678 = vst [vmem:[#allocation2 + $0x60] sm:$0xff] %v1646
        %1679 = vst [vmem:[#allocation2 + $0x68] sm:$0xff] %v1647
        %1680 = vst [vmem:[#allocation2 + $0x70] sm:$0xff] %v1648
        %1681 = vst [vmem:[#allocation2 + $0x78] sm:$0xff] %v1649
        %1682 = vst [vmem:[#allocation2 + $0x80] sm:$0xff] %v1650
        %1683 = vst [vmem:[#allocation2 + $0x88] sm:$0xff] %v1651
        %1684 = vst [vmem:[#allocation2 + $0x90] sm:$0xff] %v1652
        %1685 = vst [vmem:[#allocation2 + $0x98] sm:$0xff] %v1653
        %1686 = vst [vmem:[#allocation2 + $0xa0] sm:$0xff] %v1654
        %1687 = vst [vmem:[#allocation2 + $0xa8] sm:$0xff] %v1655
        %1688 = vst [vmem:[#allocation2 + $0xb0] sm:$0xff] %v1656
        %1689 = vst [vmem:[#allocation2 + $0xb8] sm:$0xff] %v1657
        %1690 = vst [vmem:[#allocation2 + $0xc0] sm:$0xff] %v1658
        %1691 = vst [vmem:[#allocation2 + $0xc8] sm:$0xff] %v1659
        %1692 = vst [vmem:[#allocation2 + $0xd0] sm:$0xff] %v1660
        %1693 = vst [vmem:[#allocation2 + $0xd8] sm:$0xff] %v1661
        %1694 = vst [vmem:[#allocation2 + $0xe0] sm:$0xff] %v1662
        %1695 = vst [vmem:[#allocation2 + $0xe8] sm:$0xff] %v1663
        %1696 = vst [vmem:[#allocation2 + $0xf0] sm:$0xff] %v1664
        %1697 = vst [vmem:[#allocation2 + $0xf8] sm:$0xff] %v1665
        // Predicated region
        $region41: #{_lambda_.11} parent=35 // pred_check
          %p1698 = pneg %p283
        $region42: #{_lambda_.11} parent=35 // pred_check_branch
          %1700 = sbr.rel (%p1698) target = $region44
        $region43: #{_lambda_.11} parent=35 // pred_region
          %v1701 = vld [vmem:[#allocation2] sm:$0xff]
          %v1702 = vld [vmem:[#allocation2 + $0x8] sm:$0xff]
          %v1703 = vld [vmem:[#allocation2 + $0x10] sm:$0xff]
          %v1704 = vld [vmem:[#allocation2 + $0x18] sm:$0xff]
          %v1705 = vld [vmem:[#allocation2 + $0x20] sm:$0xff]
          %v1706 = vld [vmem:[#allocation2 + $0x28] sm:$0xff]
          %v1707 = vld [vmem:[#allocation2 + $0x30] sm:$0xff]
          %v1708 = vld [vmem:[#allocation2 + $0x38] sm:$0xff]
          %v1709 = vld [vmem:[#allocation2 + $0x40] sm:$0xff]
          %v1710 = vld [vmem:[#allocation2 + $0x48] sm:$0xff]
          %v1711 = vld [vmem:[#allocation2 + $0x50] sm:$0xff]
          %v1712 = vld [vmem:[#allocation2 + $0x58] sm:$0xff]
          %v1713 = vld [vmem:[#allocation2 + $0x60] sm:$0xff]
          %v1714 = vld [vmem:[#allocation2 + $0x68] sm:$0xff]
          %v1715 = vld [vmem:[#allocation2 + $0x70] sm:$0xff]
          %v1716 = vld [vmem:[#allocation2 + $0x78] sm:$0xff]
          %v1717 = vld [vmem:[#allocation2 + $0x80] sm:$0xff]
          %v1718 = vld [vmem:[#allocation2 + $0x88] sm:$0xff]
          %v1719 = vld [vmem:[#allocation2 + $0x90] sm:$0xff]
          %v1720 = vld [vmem:[#allocation2 + $0x98] sm:$0xff]
          %v1721 = vld [vmem:[#allocation2 + $0xa0] sm:$0xff]
          %v1722 = vld [vmem:[#allocation2 + $0xa8] sm:$0xff]
          %v1723 = vld [vmem:[#allocation2 + $0xb0] sm:$0xff]
          %v1724 = vld [vmem:[#allocation2 + $0xb8] sm:$0xff]
          %v1725 = vld [vmem:[#allocation2 + $0xc0] sm:$0xff]
          %v1726 = vld [vmem:[#allocation2 + $0xc8] sm:$0xff]
          %v1727 = vld [vmem:[#allocation2 + $0xd0] sm:$0xff]
          %v1728 = vld [vmem:[#allocation2 + $0xd8] sm:$0xff]
          %v1729 = vld [vmem:[#allocation2 + $0xe0] sm:$0xff]
          %v1730 = vld [vmem:[#allocation2 + $0xe8] sm:$0xff]
          %v1731 = vld [vmem:[#allocation2 + $0xf0] sm:$0xff]
          %v1732 = vld [vmem:[#allocation2 + $0xf8] sm:$0xff]
          %1733 = vst [vmem:[%s255] sm:$0xff] %v1701
          %1734 = vst [vmem:[%s255 + $0x8] sm:$0xff] %v1702
          %1735 = vst [vmem:[%s255 + $0x10] sm:$0xff] %v1703
          %1736 = vst [vmem:[%s255 + $0x18] sm:$0xff] %v1704
          %1737 = vst [vmem:[%s255 + $0x20] sm:$0xff] %v1705
          %1738 = vst [vmem:[%s255 + $0x28] sm:$0xff] %v1706
          %1739 = vst [vmem:[%s255 + $0x30] sm:$0xff] %v1707
          %1740 = vst [vmem:[%s255 + $0x38] sm:$0xff] %v1708
          %1741 = vst [vmem:[%s255 + $0x40] sm:$0xff] %v1709
          %1742 = vst [vmem:[%s255 + $0x48] sm:$0xff] %v1710
          %1743 = vst [vmem:[%s255 + $0x50] sm:$0xff] %v1711
          %1744 = vst [vmem:[%s255 + $0x58] sm:$0xff] %v1712
          %1745 = vst [vmem:[%s255 + $0x60] sm:$0xff] %v1713
          %1746 = vst [vmem:[%s255 + $0x68] sm:$0xff] %v1714
          %1747 = vst [vmem:[%s255 + $0x70] sm:$0xff] %v1715
          %1748 = vst [vmem:[%s255 + $0x78] sm:$0xff] %v1716
          %1749 = vst [vmem:[%s255 + $0x80] sm:$0xff] %v1717
          %1750 = vst [vmem:[%s255 + $0x88] sm:$0xff] %v1718
          %1751 = vst [vmem:[%s255 + $0x90] sm:$0xff] %v1719
          %1752 = vst [vmem:[%s255 + $0x98] sm:$0xff] %v1720
          %1753 = vst [vmem:[%s255 + $0xa0] sm:$0xff] %v1721
          %1754 = vst [vmem:[%s255 + $0xa8] sm:$0xff] %v1722
          %1755 = vst [vmem:[%s255 + $0xb0] sm:$0xff] %v1723
          %1756 = vst [vmem:[%s255 + $0xb8] sm:$0xff] %v1724
          %1757 = vst [vmem:[%s255 + $0xc0] sm:$0xff] %v1725
          %1758 = vst [vmem:[%s255 + $0xc8] sm:$0xff] %v1726
          %1759 = vst [vmem:[%s255 + $0xd0] sm:$0xff] %v1727
          %1760 = vst [vmem:[%s255 + $0xd8] sm:$0xff] %v1728
          %1761 = vst [vmem:[%s255 + $0xe0] sm:$0xff] %v1729
          %1762 = vst [vmem:[%s255 + $0xe8] sm:$0xff] %v1730
          %1763 = vst [vmem:[%s255 + $0xf0] sm:$0xff] %v1731
          %1764 = vst [vmem:[%s255 + $0xf8] sm:$0xff] %v1732
        $region44: #{_lambda_.11} parent=35 // pred_fallthru
          _
        %s1765 = sand.u32 %s142, 1
        %s1766 = scalar_lea.sflag [#allocation4], %s1765
        %s1767 = sand.u32 %s142, 1
        %s1768 = smul.addr %s1767, 256
        %s1769 = scalar_lea.vmem [#allocation3], %s1768
        // Predicated region
        $region45: #{_lambda_.11} parent=35 // pred_check
          %p1770 = pneg %p152
        $region46: #{_lambda_.11} parent=35 // pred_check_branch
          %1772 = sbr.rel (%p1770) target = $region48
        $region47: #{_lambda_.11} parent=35 // pred_region
          %s1773 = smul.u32 16, %s22
          %s1775 = ssub.s32 4096, 4096
          %1776 = vsyncadd %s1766, %s1775
          %s1777 = smul.addr %s1773, 2
          %s1778 = smul.addr %s1777, 128
          %s1779 = scalar_lea.hbm %s4, %s1778
          %s1780 = sshll.u32 %s1769, 4
          %s1781 = int_to_ptr.vmem [resolvable:$true] %s1780
          %1786 = dma.vmem_to_hbm [thread:$0]  %s1781, 4096, %s1779, %s1766, 256, 256, 16
        $region48: #{_lambda_.11} parent=35 // pred_fallthru
          _
      $region36: #{_lambda_.11} parent=5 // pred_fallthru
        _
      %p1787 = scmp.le.s32.totalorder 2, %s13
      // Predicated region
      $region49: #{_lambda_.11} parent=5 // pred_check
        %p1788 = pneg %p1787
      $region50: #{_lambda_.11} parent=5 // pred_check_branch
        %1790 = sbr.rel (%p1788) target = $region52
      $region51: #{_lambda_.11} parent=5 // pred_region
        %s1791 = ssub.s32 %s13, 2
        // Predicated region
        $region53: #{_lambda_.11} parent=51 // pred_check
          %p1792 = pneg %p158
        $region54: #{_lambda_.11} parent=51 // pred_check_branch
          %1794 = sbr.rel (%p1792) target = $region56
        $region55: #{_lambda_.11} parent=51 // pred_region
          %s1795 = sand.u32 %s143, 1
          %s1796 = scalar_lea.sflag [#allocation4], %s1795
          %s1797 = sand.u32 %s143, 1
          %s1798 = smul.addr %s1797, 256
          %s1799 = scalar_lea.vmem [#allocation3], %s1798
          %1800 = dma.done %s1796, 4096
        $region56: #{_lambda_.11} parent=51 // pred_fallthru
          _
      $region52: #{_lambda_.11} parent=5 // pred_fallthru
        _
    $region6: #{_lambda_.11} parent=1 // loop_footer
      %s17 = sadd.s32 1, %s13
    $region7: #{_lambda_.11} parent=1 // loop_footer_branch
      %12 = sbr.rel target = $region3
    $region8: #{_lambda_.11} parent=1 // loop_exit
      _
    %1801 = vsyncpa [#allocation4], 1
    %s1802 = scalar_lea.sflag [#allocation4], 1
    %1803 = vsyncpa %s1802, 1

// kernel: _lambda_.9
$region0: #{_lambda_.9}
  #allocation0 [shape = 'u32[]', space=smem, size = 0x4, offset = 0x4, fixed_abs, tag = 'smem constant byte address 0x4 - core index']
  #allocation1 [shape = 'u32[144,128]{1,0:T(1,128)}', space=vmem, size = 0x12000, scoped, tag = 'internal scratch']
  #allocation2 [shape = 'f32[128,1]{1,0:T(8,128)}', space=vmem, size = 0x10000, scoped, tag = 'scratch operand']
  #allocation3 [shape = 'f32[128,1]{1,0:T(8,128)}', space=vmem, size = 0x10000, scoped, tag = 'scratch operand']
  #allocation4 [shape = 'f32[128,64]{1,0:T(8,128)}', space=vmem, size = 0x10000, scoped, tag = 'scratch operand']
  %s0 = inlined_call_operand.vmem [shape: bf16[2,256,64], index: 0, kind: input, shape index: {}]
  %s1 = inlined_call_operand.vmem [shape: bf16[2,256,32], index: 1, kind: input, shape index: {}]
  %s2 = inlined_call_operand.vmem [shape: bf16[2,256,64], index: 2, kind: input, shape index: {}]
  %s3 = inlined_call_operand.vmem [shape: bf16[256,32], index: 3, kind: input, shape index: {}]
  %s4 = inlined_call_operand.vmem [shape: bf16[2,256,64], index: 4, kind: input, shape index: {}]
  %s5 = inlined_call_operand.vmem [shape: bf16[2,256,64], index: 5, kind: output, shape index: {}]
  %s6 = sld [smem:[#allocation0]]
  $region65: #{_lambda_.9} parent=0
    _
  %s8 = ssub.s32 1, %s6
  %s9 = scalar_select 0, %s8, %s6
  loop: start=0, step=1, limit=10
  $region2: #{_lambda_.9} parent=0 // loop_pre_header
    _
  $region3: #{_lambda_.9} parent=0 // loop_header
    %s11 = sphi 0, %s15
    %p12 = scmp.ge.s32.totalorder %s11, 10
    %s18 = sphi 0, %s37
    %s19 = sphi 0, %s33
    %s20 = sphi 0, %s29
    %s21 = sphi 0, %s18
    %s22 = sphi 0, %s19
    %s23 = sphi 0, %s20
    %s24 = sphi 0, %s21
    %s25 = sphi 0, %s22
    %s26 = sphi 0, %s23
    %s42 = sphi 0, %s44
    %s45 = sphi 0, %s42
    %s46 = sphi 0, %s45
    %s62 = sphi 0, %s46
    %s70 = sphi 0, %s72
    %s73 = sphi 0, %s70
    %s74 = sphi 0, %s73
    %s90 = sphi 0, %s74
    %s98 = sphi 0, %s100
    %s101 = sphi 0, %s98
    %s102 = sphi 0, %s101
    %s118 = sphi 0, %s102
    %s124 = sphi 0, %s126
    %s127 = sphi 0, %s124
    %s128 = sphi 0, %s127
    %s144 = sphi 0, %s128
    %s152 = sphi 0, %s154
    %s155 = sphi 0, %s152
    %s156 = sphi 0, %s155
    %s172 = sphi 0, %s156
    %s180 = sphi 0, %s182
    %s183 = sphi 0, %s180
    %s184 = sphi 0, %s183
    %s200 = sphi 0, %s184
  $region4: #{_lambda_.9} parent=0 // loop_header_branch
    %14 = sbr.rel (%p12) target = $region8
  $region5: #{_lambda_.9} parent=0 // loop_body
    %s16 = ssub.s32 %s11, 1
    %s17 = ssub.s32 %s11, 2
    %s27 = sadd.s32 1, %s20
    %p28 = scmp.ge.s32.totalorder %s27, 2
    %s29 = scalar_select %p28, 0, %s27
    %s30 = sadd.s32 1, %s19
    %s31 = scalar_select %p28, %s30, %s19
    %p32 = scmp.ge.s32.totalorder %s31, 2
    %s33 = scalar_select %p32, 0, %s31
    %s34 = sadd.s32 1, %s18
    %s35 = scalar_select %p32, %s34, %s18
    %p36 = scmp.ge.s32.totalorder %s35, 2
    %s37 = scalar_select %p36, 0, %s35
    %s38 = ssub.s32 %s18, %s37
    %s39 = ssub.s32 %s19, %s33
    %s40 = sor.u32 %s38, %s39
    %p41 = scmp.eq.s32.totalorder %s40, 0
    %s43 = sadd.s32 %s42, 1
    %s44 = scalar_select %p41, %s42, %s43
    %p47 = pneg %p41
    %p48 = scmp.eq.s32.totalorder %s11, 7
    %p49 = por %p47, %p48
    %p50 = scmp.ne.s32.totalorder %s42, %s45
    %p51 = scmp.eq.s32.totalorder %s11, 0
    %p52 = por %p50, %p51
    %p53 = scmp.ne.s32.totalorder %s42, %s45
    %p54 = scmp.eq.s32.totalorder %s16, 7
    %p55 = por %p53, %p54
    %p56 = scmp.ne.s32.totalorder %s45, %s46
    %p57 = scmp.eq.s32.totalorder %s16, 0
    %p58 = por %p56, %p57
    %p59 = scmp.ne.s32.totalorder %s45, %s46
    %p60 = scmp.eq.s32.totalorder %s17, 7
    %p61 = por %p59, %p60
    %p63 = scmp.ne.s32.totalorder %s46, %s62
    %p64 = scmp.eq.s32.totalorder %s17, 0
    %p65 = por %p63, %p64
    %s66 = ssub.s32 %s18, %s37
    %s67 = ssub.s32 %s19, %s33
    %s68 = sor.u32 %s66, %s67
    %p69 = scmp.eq.s32.totalorder %s68, 0
    %s71 = sadd.s32 %s70, 1
    %s72 = scalar_select %p69, %s70, %s71
    %p75 = pneg %p69
    %p76 = scmp.eq.s32.totalorder %s11, 7
    %p77 = por %p75, %p76
    %p78 = scmp.ne.s32.totalorder %s70, %s73
    %p79 = scmp.eq.s32.totalorder %s11, 0
    %p80 = por %p78, %p79
    %p81 = scmp.ne.s32.totalorder %s70, %s73
    %p82 = scmp.eq.s32.totalorder %s16, 7
    %p83 = por %p81, %p82
    %p84 = scmp.ne.s32.totalorder %s73, %s74
    %p85 = scmp.eq.s32.totalorder %s16, 0
    %p86 = por %p84, %p85
    %p87 = scmp.ne.s32.totalorder %s73, %s74
    %p88 = scmp.eq.s32.totalorder %s17, 7
    %p89 = por %p87, %p88
    %p91 = scmp.ne.s32.totalorder %s74, %s90
    %p92 = scmp.eq.s32.totalorder %s17, 0
    %p93 = por %p91, %p92
    %s94 = ssub.s32 %s18, %s37
    %s95 = ssub.s32 %s20, %s29
    %s96 = sor.u32 %s94, %s95
    %p97 = scmp.eq.s32.totalorder %s96, 0
    %s99 = sadd.s32 %s98, 1
    %s100 = scalar_select %p97, %s98, %s99
    %p103 = pneg %p97
    %p104 = scmp.eq.s32.totalorder %s11, 7
    %p105 = por %p103, %p104
    %p106 = scmp.ne.s32.totalorder %s98, %s101
    %p107 = scmp.eq.s32.totalorder %s11, 0
    %p108 = por %p106, %p107
    %p109 = scmp.ne.s32.totalorder %s98, %s101
    %p110 = scmp.eq.s32.totalorder %s16, 7
    %p111 = por %p109, %p110
    %p112 = scmp.ne.s32.totalorder %s101, %s102
    %p113 = scmp.eq.s32.totalorder %s16, 0
    %p114 = por %p112, %p113
    %p115 = scmp.ne.s32.totalorder %s101, %s102
    %p116 = scmp.eq.s32.totalorder %s17, 7
    %p117 = por %p115, %p116
    %p119 = scmp.ne.s32.totalorder %s102, %s118
    %p120 = scmp.eq.s32.totalorder %s17, 0
    %p121 = por %p119, %p120
    %s122 = ssub.s32 %s20, %s29
    %p123 = scmp.eq.s32.totalorder %s122, 0
    %s125 = sadd.s32 %s124, 1
    %s126 = scalar_select %p123, %s124, %s125
    %p129 = pneg %p123
    %p130 = scmp.eq.s32.totalorder %s11, 7
    %p131 = por %p129, %p130
    %p132 = scmp.ne.s32.totalorder %s124, %s127
    %p133 = scmp.eq.s32.totalorder %s11, 0
    %p134 = por %p132, %p133
    %p135 = scmp.ne.s32.totalorder %s124, %s127
    %p136 = scmp.eq.s32.totalorder %s16, 7
    %p137 = por %p135, %p136
    %p138 = scmp.ne.s32.totalorder %s127, %s128
    %p139 = scmp.eq.s32.totalorder %s16, 0
    %p140 = por %p138, %p139
    %p141 = scmp.ne.s32.totalorder %s127, %s128
    %p142 = scmp.eq.s32.totalorder %s17, 7
    %p143 = por %p141, %p142
    %p145 = scmp.ne.s32.totalorder %s128, %s144
    %p146 = scmp.eq.s32.totalorder %s17, 0
    %p147 = por %p145, %p146
    %s148 = ssub.s32 %s18, %s37
    %s149 = ssub.s32 %s20, %s29
    %s150 = sor.u32 %s148, %s149
    %p151 = scmp.eq.s32.totalorder %s150, 0
    %s153 = sadd.s32 %s152, 1
    %s154 = scalar_select %p151, %s152, %s153
    %p157 = pneg %p151
    %p158 = scmp.eq.s32.totalorder %s11, 7
    %p159 = por %p157, %p158
    %p160 = scmp.ne.s32.totalorder %s152, %s155
    %p161 = scmp.eq.s32.totalorder %s11, 0
    %p162 = por %p160, %p161
    %p163 = scmp.ne.s32.totalorder %s152, %s155
    %p164 = scmp.eq.s32.totalorder %s16, 7
    %p165 = por %p163, %p164
    %p166 = scmp.ne.s32.totalorder %s155, %s156
    %p167 = scmp.eq.s32.totalorder %s16, 0
    %p168 = por %p166, %p167
    %p169 = scmp.ne.s32.totalorder %s155, %s156
    %p170 = scmp.eq.s32.totalorder %s17, 7
    %p171 = por %p169, %p170
    %p173 = scmp.ne.s32.totalorder %s156, %s172
    %p174 = scmp.eq.s32.totalorder %s17, 0
    %p175 = por %p173, %p174
    %s176 = ssub.s32 %s18, %s37
    %s177 = ssub.s32 %s19, %s33
    %s178 = sor.u32 %s176, %s177
    %p179 = scmp.eq.s32.totalorder %s178, 0
    %s181 = sadd.s32 %s180, 1
    %s182 = scalar_select %p179, %s180, %s181
    %p185 = pneg %p179
    %p186 = scmp.eq.s32.totalorder %s11, 7
    %p187 = por %p185, %p186
    %p188 = scmp.ne.s32.totalorder %s180, %s183
    %p189 = scmp.eq.s32.totalorder %s11, 0
    %p190 = por %p188, %p189
    %p191 = scmp.ne.s32.totalorder %s180, %s183
    %p192 = scmp.eq.s32.totalorder %s16, 7
    %p193 = por %p191, %p192
    %p194 = scmp.ne.s32.totalorder %s183, %s184
    %p195 = scmp.eq.s32.totalorder %s16, 0
    %p196 = por %p194, %p195
    %p197 = scmp.ne.s32.totalorder %s183, %s184
    %p198 = scmp.eq.s32.totalorder %s17, 7
    %p199 = por %p197, %p198
    %p201 = scmp.ne.s32.totalorder %s184, %s200
    %p202 = scmp.eq.s32.totalorder %s17, 0
    %p203 = por %p201, %p202
    %p204 = scmp.le.s32.totalorder 1, %s11
    %p205 = scmp.lt.s32.totalorder %s11, 9
    %p206 = pnand %p204, %p205
    %p207 = pneg %p206
    // Predicated region
    $region9: #{_lambda_.9} parent=5 // pred_check
      _
    $region10: #{_lambda_.9} parent=5 // pred_check_branch
      %209 = sbr.rel (%p206) target = $region12
    $region11: #{_lambda_.9} parent=5 // pred_region
      %s210 = ssub.s32 %s11, 1
    $region12: #{_lambda_.9} parent=5 // pred_fallthru
      _
    %p211 = scmp.lt.s32.totalorder %s11, 8
    // Predicated region
    $region13: #{_lambda_.9} parent=5 // pred_check
      %p212 = pneg %p211
    $region14: #{_lambda_.9} parent=5 // pred_check_branch
      %214 = sbr.rel (%p212) target = $region16
    $region15: #{_lambda_.9} parent=5 // pred_region
      // Predicated region
      $region17: #{_lambda_.9} parent=15 // pred_check
        %p215 = pneg %p52
      $region18: #{_lambda_.9} parent=15 // pred_check_branch
        %217 = sbr.rel (%p215) target = $region20
      $region19: #{_lambda_.9} parent=15 // pred_region
        %s218 = smul.u32 16, %s19
        %p219 = scmp.lt.s32.totalorder %s18, 1
        %s220 = scalar_select %p219, %s18, 1
        %p221 = scmp.lt.s32.totalorder %s218, 31
        %s222 = scalar_select %p221, %s218, 31
        %s223 = smul.addr %s220, 32
        %s224 = sadd.s32 %s222, %s223
        %s225 = smul.addr %s224, 4
        %s226 = scalar_lea.vmem %s0, %s225
        %s227 = smul.u32 16, %s19
      $region20: #{_lambda_.9} parent=15 // pred_fallthru
        _
      // Predicated region
      $region21: #{_lambda_.9} parent=15 // pred_check
        %p228 = pneg %p80
      $region22: #{_lambda_.9} parent=15 // pred_check_branch
        %230 = sbr.rel (%p228) target = $region24
      $region23: #{_lambda_.9} parent=15 // pred_region
        %s231 = smul.u32 16, %s19
        %p232 = scmp.lt.s32.totalorder %s18, 1
        %s233 = scalar_select %p232, %s18, 1
        %p234 = scmp.lt.s32.totalorder %s231, 31
        %s235 = scalar_select %p234, %s231, 31
        %s236 = smul.addr %s233, 32
        %s237 = sadd.s32 %s235, %s236
        %s238 = smul.addr %s237, 4
        %s239 = scalar_lea.vmem %s1, %s238
        %s240 = smul.u32 16, %s19
      $region24: #{_lambda_.9} parent=15 // pred_fallthru
        _
      // Predicated region
      $region25: #{_lambda_.9} parent=15 // pred_check
        %p241 = pneg %p108
      $region26: #{_lambda_.9} parent=15 // pred_check_branch
        %243 = sbr.rel (%p241) target = $region28
      $region27: #{_lambda_.9} parent=15 // pred_region
        %s244 = smul.u32 16, %s20
        %p245 = scmp.lt.s32.totalorder %s18, 1
        %s246 = scalar_select %p245, %s18, 1
        %p247 = scmp.lt.s32.totalorder %s244, 31
        %s248 = scalar_select %p247, %s244, 31
        %s249 = smul.addr %s246, 32
        %s250 = sadd.s32 %s248, %s249
        %s251 = smul.addr %s250, 4
        %s252 = scalar_lea.vmem %s2, %s251
        %s253 = smul.u32 16, %s20
      $region28: #{_lambda_.9} parent=15 // pred_fallthru
        _
      // Predicated region
      $region29: #{_lambda_.9} parent=15 // pred_check
        %p254 = pneg %p134
      $region30: #{_lambda_.9} parent=15 // pred_check_branch
        %256 = sbr.rel (%p254) target = $region32
      $region31: #{_lambda_.9} parent=15 // pred_region
        %s257 = smul.u32 16, %s20
        %p258 = scmp.lt.s32.totalorder %s257, 31
        %s259 = scalar_select %p258, %s257, 31
        %s260 = smul.addr %s259, 4
        %s261 = scalar_lea.vmem %s3, %s260
        %s262 = smul.u32 16, %s20
      $region32: #{_lambda_.9} parent=15 // pred_fallthru
        _
      // Predicated region
      $region33: #{_lambda_.9} parent=15 // pred_check
        %p263 = pneg %p162
      $region34: #{_lambda_.9} parent=15 // pred_check_branch
        %265 = sbr.rel (%p263) target = $region36
      $region35: #{_lambda_.9} parent=15 // pred_region
        %s266 = smul.u32 16, %s20
        %p267 = scmp.lt.s32.totalorder %s18, 1
        %s268 = scalar_select %p267, %s18, 1
        %p269 = scmp.lt.s32.totalorder %s266, 31
        %s270 = scalar_select %p269, %s266, 31
        %s271 = smul.addr %s268, 32
        %s272 = sadd.s32 %s270, %s271
        %s273 = smul.addr %s272, 4
        %s274 = scalar_lea.vmem %s4, %s273
        %s275 = smul.u32 16, %s20
      $region36: #{_lambda_.9} parent=15 // pred_fallthru
        _
    $region16: #{_lambda_.9} parent=5 // pred_fallthru
      _
    %p276 = scmp.le.s32.totalorder 1, %s11
    %p277 = scmp.lt.s32.totalorder %s11, 9
    %p278 = pnand %p276, %p277
    %p279 = pneg %p278
    // Predicated region
    $region37: #{_lambda_.9} parent=5 // pred_check
      _
    $region38: #{_lambda_.9} parent=5 // pred_check_branch
      %281 = sbr.rel (%p278) target = $region40
    $region39: #{_lambda_.9} parent=5 // pred_region
      %s282 = ssub.s32 %s11, 1
      %s283 = smul.u32 16, %s22
      %p284 = scmp.lt.s32.totalorder %s21, 1
      %s285 = scalar_select %p284, %s21, 1
      %p286 = scmp.lt.s32.totalorder %s283, 31
      %s287 = scalar_select %p286, %s283, 31
      %s288 = smul.addr %s285, 32
      %s289 = sadd.s32 %s287, %s288
      %s290 = smul.addr %s289, 4
      %s291 = scalar_lea.vmem %s0, %s290
      %p292 = pneg %p58
      %p293 = pneg %p55
      %s294 = smul.u32 16, %s22
      %p295 = scmp.lt.s32.totalorder %s21, 1
      %s296 = scalar_select %p295, %s21, 1
      %p297 = scmp.lt.s32.totalorder %s294, 31
      %s298 = scalar_select %p297, %s294, 31
      %s299 = smul.addr %s296, 32
      %s300 = sadd.s32 %s298, %s299
      %s301 = smul.addr %s300, 4
      %s302 = scalar_lea.vmem %s1, %s301
      %p303 = pneg %p86
      %p304 = pneg %p83
      %s305 = smul.u32 16, %s23
      %p306 = scmp.lt.s32.totalorder %s21, 1
      %s307 = scalar_select %p306, %s21, 1
      %p308 = scmp.lt.s32.totalorder %s305, 31
      %s309 = scalar_select %p308, %s305, 31
      %s310 = smul.addr %s307, 32
      %s311 = sadd.s32 %s309, %s310
      %s312 = smul.addr %s311, 4
      %s313 = scalar_lea.vmem %s2, %s312
      %p314 = pneg %p114
      %p315 = pneg %p111
      %s316 = smul.u32 16, %s23
      %p317 = scmp.lt.s32.totalorder %s316, 31
      %s318 = scalar_select %p317, %s316, 31
      %s319 = smul.addr %s318, 4
      %s320 = scalar_lea.vmem %s3, %s319
      %p321 = pneg %p140
      %p322 = pneg %p137
      %s323 = smul.u32 16, %s23
      %p324 = scmp.lt.s32.totalorder %s21, 1
      %s325 = scalar_select %p324, %s21, 1
      %p326 = scmp.lt.s32.totalorder %s323, 31
      %s327 = scalar_select %p326, %s323, 31
      %s328 = smul.addr %s325, 32
      %s329 = sadd.s32 %s327, %s328
      %s330 = smul.addr %s329, 4
      %s331 = scalar_lea.vmem %s4, %s330
      %p332 = pneg %p168
      %p333 = pneg %p165
      %p334 = pneg %p196
      %p335 = pneg %p193
      %s336 = smul.u32 16, %s22
      %p337 = scmp.lt.s32.totalorder %s21, 1
      %s338 = scalar_select %p337, %s21, 1
      %p339 = scmp.lt.s32.totalorder %s336, 31
      %s340 = scalar_select %p339, %s336, 31
      %s341 = smul.addr %s338, 32
      %s342 = sadd.s32 %s340, %s341
      %s343 = smul.addr %s342, 4
      %s344 = scalar_lea.vmem %s5, %s343
      %s345 = smul.u32 16, %s22
      %p346 = scmp.lt.s32.totalorder %s21, 1
      %s347 = scalar_select %p346, %s21, 1
      %p348 = scmp.lt.s32.totalorder %s345, 31
      %s349 = scalar_select %p348, %s345, 31
      %s350 = smul.addr %s347, 32
      %s351 = sadd.s32 %s349, %s350
      %s352 = smul.addr %s351, 4
      %s353 = scalar_lea.vmem %s0, %s352
      %s354 = smul.u32 16, %s22
      %s355 = smul.u32 16, %s22
      %p356 = scmp.lt.s32.totalorder %s21, 1
      %s357 = scalar_select %p356, %s21, 1
      %p358 = scmp.lt.s32.totalorder %s355, 31
      %s359 = scalar_select %p358, %s355, 31
      %s360 = smul.addr %s357, 32
      %s361 = sadd.s32 %s359, %s360
      %s362 = smul.addr %s361, 4
      %s363 = scalar_lea.vmem %s1, %s362
      %s364 = smul.u32 16, %s22
      %s365 = smul.u32 16, %s23
      %p366 = scmp.lt.s32.totalorder %s21, 1
      %s367 = scalar_select %p366, %s21, 1
      %p368 = scmp.lt.s32.totalorder %s365, 31
      %s369 = scalar_select %p368, %s365, 31
      %s370 = smul.addr %s367, 32
      %s371 = sadd.s32 %s369, %s370
      %s372 = smul.addr %s371, 4
      %s373 = scalar_lea.vmem %s2, %s372
      %s374 = smul.u32 16, %s23
      %s375 = smul.u32 16, %s23
      %p376 = scmp.lt.s32.totalorder %s375, 31
      %s377 = scalar_select %p376, %s375, 31
      %s378 = smul.addr %s377, 4
      %s379 = scalar_lea.vmem %s3, %s378
      %s380 = smul.u32 16, %s23
      %s381 = smul.u32 16, %s23
      %p382 = scmp.lt.s32.totalorder %s21, 1
      %s383 = scalar_select %p382, %s21, 1
      %p384 = scmp.lt.s32.totalorder %s381, 31
      %s385 = scalar_select %p384, %s381, 31
      %s386 = smul.addr %s383, 32
      %s387 = sadd.s32 %s385, %s386
      %s388 = smul.addr %s387, 4
      %s389 = scalar_lea.vmem %s4, %s388
      %s390 = smul.u32 16, %s23
      %s391 = smul.u32 16, %s22
      %p392 = scmp.lt.s32.totalorder %s21, 1
      %s393 = scalar_select %p392, %s21, 1
      %p394 = scmp.lt.s32.totalorder %s391, 31
      %s395 = scalar_select %p394, %s391, 31
      %s396 = smul.addr %s393, 32
      %s397 = sadd.s32 %s395, %s396
      %s398 = smul.addr %s397, 4
      %s399 = scalar_lea.vmem %s5, %s398
      %s400 = smul.u32 16, %s22
      %p402 = scmp.eq.s32.totalorder %s23, 0
      // Predicated region
      $region41: #{_lambda_.9} parent=39 // pred_check
        %p403 = pneg %p402
      $region42: #{_lambda_.9} parent=39 // pred_check_branch
        %405 = sbr.rel (%p403) target = $region44
      $region43: #{_lambda_.9} parent=39 // pred_region
        %vm406 = vcmask 7168
        %407 = vst.msk [vmem:[#allocation2] sm:$0xff] %vm406, -1e+30
        %408 = vst.msk [vmem:[#allocation2 + $0x8] sm:$0xff] %vm406, -1e+30
        %409 = vst.msk [vmem:[#allocation2 + $0x10] sm:$0xff] %vm406, -1e+30
        %410 = vst.msk [vmem:[#allocation2 + $0x18] sm:$0xff] %vm406, -1e+30
        %411 = vst.msk [vmem:[#allocation2 + $0x20] sm:$0xff] %vm406, -1e+30
        %412 = vst.msk [vmem:[#allocation2 + $0x28] sm:$0xff] %vm406, -1e+30
        %413 = vst.msk [vmem:[#allocation2 + $0x30] sm:$0xff] %vm406, -1e+30
        %414 = vst.msk [vmem:[#allocation2 + $0x38] sm:$0xff] %vm406, -1e+30
        %415 = vst.msk [vmem:[#allocation2 + $0x40] sm:$0xff] %vm406, -1e+30
        %416 = vst.msk [vmem:[#allocation2 + $0x48] sm:$0xff] %vm406, -1e+30
        %417 = vst.msk [vmem:[#allocation2 + $0x50] sm:$0xff] %vm406, -1e+30
        %418 = vst.msk [vmem:[#allocation2 + $0x58] sm:$0xff] %vm406, -1e+30
        %419 = vst.msk [vmem:[#allocation2 + $0x60] sm:$0xff] %vm406, -1e+30
        %420 = vst.msk [vmem:[#allocation2 + $0x68] sm:$0xff] %vm406, -1e+30
        %421 = vst.msk [vmem:[#allocation2 + $0x70] sm:$0xff] %vm406, -1e+30
        %422 = vst.msk [vmem:[#allocation2 + $0x78] sm:$0xff] %vm406, -1e+30
        %423 = vst.msk [vmem:[#allocation3] sm:$0xff] %vm406, 0.0
        %424 = vst.msk [vmem:[#allocation3 + $0x8] sm:$0xff] %vm406, 0.0
        %425 = vst.msk [vmem:[#allocation3 + $0x10] sm:$0xff] %vm406, 0.0
        %426 = vst.msk [vmem:[#allocation3 + $0x18] sm:$0xff] %vm406, 0.0
        %427 = vst.msk [vmem:[#allocation3 + $0x20] sm:$0xff] %vm406, 0.0
        %428 = vst.msk [vmem:[#allocation3 + $0x28] sm:$0xff] %vm406, 0.0
        %429 = vst.msk [vmem:[#allocation3 + $0x30] sm:$0xff] %vm406, 0.0
        %430 = vst.msk [vmem:[#allocation3 + $0x38] sm:$0xff] %vm406, 0.0
        %431 = vst.msk [vmem:[#allocation3 + $0x40] sm:$0xff] %vm406, 0.0
        %432 = vst.msk [vmem:[#allocation3 + $0x48] sm:$0xff] %vm406, 0.0
        %433 = vst.msk [vmem:[#allocation3 + $0x50] sm:$0xff] %vm406, 0.0
        %434 = vst.msk [vmem:[#allocation3 + $0x58] sm:$0xff] %vm406, 0.0
        %435 = vst.msk [vmem:[#allocation3 + $0x60] sm:$0xff] %vm406, 0.0
        %436 = vst.msk [vmem:[#allocation3 + $0x68] sm:$0xff] %vm406, 0.0
        %437 = vst.msk [vmem:[#allocation3 + $0x70] sm:$0xff] %vm406, 0.0
        %438 = vst.msk [vmem:[#allocation3 + $0x78] sm:$0xff] %vm406, 0.0
        %vm439 = vcmask 523264
        %440 = vst.msk [vmem:[#allocation4] sm:$0xff] %vm439, 0.0
        %441 = vst.msk [vmem:[#allocation4 + $0x8] sm:$0xff] %vm439, 0.0
        %442 = vst.msk [vmem:[#allocation4 + $0x10] sm:$0xff] %vm439, 0.0
        %443 = vst.msk [vmem:[#allocation4 + $0x18] sm:$0xff] %vm439, 0.0
        %444 = vst.msk [vmem:[#allocation4 + $0x20] sm:$0xff] %vm439, 0.0
        %445 = vst.msk [vmem:[#allocation4 + $0x28] sm:$0xff] %vm439, 0.0
        %446 = vst.msk [vmem:[#allocation4 + $0x30] sm:$0xff] %vm439, 0.0
        %447 = vst.msk [vmem:[#allocation4 + $0x38] sm:$0xff] %vm439, 0.0
        %448 = vst.msk [vmem:[#allocation4 + $0x40] sm:$0xff] %vm439, 0.0
        %449 = vst.msk [vmem:[#allocation4 + $0x48] sm:$0xff] %vm439, 0.0
        %450 = vst.msk [vmem:[#allocation4 + $0x50] sm:$0xff] %vm439, 0.0
        %451 = vst.msk [vmem:[#allocation4 + $0x58] sm:$0xff] %vm439, 0.0
        %452 = vst.msk [vmem:[#allocation4 + $0x60] sm:$0xff] %vm439, 0.0
        %453 = vst.msk [vmem:[#allocation4 + $0x68] sm:$0xff] %vm439, 0.0
        %454 = vst.msk [vmem:[#allocation4 + $0x70] sm:$0xff] %vm439, 0.0
        %455 = vst.msk [vmem:[#allocation4 + $0x78] sm:$0xff] %vm439, 0.0
      $region44: #{_lambda_.9} parent=39 // pred_fallthru
        _
      %s456 = smul.u32 %s23, 128
      %s457 = sadd.s32 %s22, 1
      %s458 = smul.u32 %s457, 128
      %p459 = scmp.lt.s32.totalorder %s456, %s458
      // Predicated region
      $region45: #{_lambda_.9} parent=39 // pred_check
        %p460 = pneg %p459
      $region46: #{_lambda_.9} parent=39 // pred_check_branch
        %462 = sbr.rel (%p460) target = $region48
      $region47: #{_lambda_.9} parent=39 // pred_region
        %v463 = vld [vmem:[%s353] sm:$0xf]
        %v464 = vld [vmem:[%s353 + $0x4] sm:$0xf]
        %v465 = vld [vmem:[%s353 + $0x8] sm:$0xf]
        %v466 = vld [vmem:[%s353 + $0xc] sm:$0xf]
        %v467 = vld [vmem:[%s353 + $0x10] sm:$0xf]
        %v468 = vld [vmem:[%s353 + $0x14] sm:$0xf]
        %v469 = vld [vmem:[%s353 + $0x18] sm:$0xf]
        %v470 = vld [vmem:[%s353 + $0x1c] sm:$0xf]
        %v471 = vld [vmem:[%s353 + $0x20] sm:$0xf]
        %v472 = vld [vmem:[%s353 + $0x24] sm:$0xf]
        %v473 = vld [vmem:[%s353 + $0x28] sm:$0xf]
        %v474 = vld [vmem:[%s353 + $0x2c] sm:$0xf]
        %v475 = vld [vmem:[%s353 + $0x30] sm:$0xf]
        %v476 = vld [vmem:[%s353 + $0x34] sm:$0xf]
        %v477 = vld [vmem:[%s353 + $0x38] sm:$0xf]
        %v478 = vld [vmem:[%s353 + $0x3c] sm:$0xf]
        %v479 = vunpack.c.l.bf16 %v463
        %v480 = vunpack.c.l.bf16 %v464
        %v481 = vunpack.c.l.bf16 %v465
        %v482 = vunpack.c.l.bf16 %v466
        %v483 = vunpack.c.l.bf16 %v467
        %v484 = vunpack.c.l.bf16 %v468
        %v485 = vunpack.c.l.bf16 %v469
        %v486 = vunpack.c.l.bf16 %v470
        %v487 = vunpack.c.l.bf16 %v471
        %v488 = vunpack.c.l.bf16 %v472
        %v489 = vunpack.c.l.bf16 %v473
        %v490 = vunpack.c.l.bf16 %v474
        %v491 = vunpack.c.l.bf16 %v475
        %v492 = vunpack.c.l.bf16 %v476
        %v493 = vunpack.c.l.bf16 %v477
        %v494 = vunpack.c.l.bf16 %v478
        %v495 = vmul.f32 %v479, 0.10206208
        %v496 = vmul.f32 %v480, 0.10206208
        %v497 = vmul.f32 %v481, 0.10206208
        %v498 = vmul.f32 %v482, 0.10206208
        %v499 = vmul.f32 %v483, 0.10206208
        %v500 = vmul.f32 %v484, 0.10206208
        %v501 = vmul.f32 %v485, 0.10206208
        %v502 = vmul.f32 %v486, 0.10206208
        %v503 = vmul.f32 %v487, 0.10206208
        %v504 = vmul.f32 %v488, 0.10206208
        %v505 = vmul.f32 %v489, 0.10206208
        %v506 = vmul.f32 %v490, 0.10206208
        %v507 = vmul.f32 %v491, 0.10206208
        %v508 = vmul.f32 %v492, 0.10206208
        %v509 = vmul.f32 %v493, 0.10206208
        %v510 = vmul.f32 %v494, 0.10206208
        %v511 = vpack.c.bf16 %v496, %v495
        %v512 = vpack.c.bf16 %v498, %v497
        %v513 = vpack.c.bf16 %v500, %v499
        %v514 = vpack.c.bf16 %v502, %v501
        %v515 = vpack.c.bf16 %v504, %v503
        %v516 = vpack.c.bf16 %v506, %v505
        %v517 = vpack.c.bf16 %v508, %v507
        %v518 = vpack.c.bf16 %v510, %v509
        %v519 = vld [vmem:[%s363] sm:$0xf]
        %v520 = vld [vmem:[%s363 + $0x4] sm:$0xf]
        %v521 = vld [vmem:[%s363 + $0x8] sm:$0xf]
        %v522 = vld [vmem:[%s363 + $0xc] sm:$0xf]
        %v523 = vld [vmem:[%s363 + $0x10] sm:$0xf]
        %v524 = vld [vmem:[%s363 + $0x14] sm:$0xf]
        %v525 = vld [vmem:[%s363 + $0x18] sm:$0xf]
        %v526 = vld [vmem:[%s363 + $0x1c] sm:$0xf]
        %v527 = vld [vmem:[%s363 + $0x20] sm:$0xf]
        %v528 = vld [vmem:[%s363 + $0x24] sm:$0xf]
        %v529 = vld [vmem:[%s363 + $0x28] sm:$0xf]
        %v530 = vld [vmem:[%s363 + $0x2c] sm:$0xf]
        %v531 = vld [vmem:[%s363 + $0x30] sm:$0xf]
        %v532 = vld [vmem:[%s363 + $0x34] sm:$0xf]
        %v533 = vld [vmem:[%s363 + $0x38] sm:$0xf]
        %v534 = vld [vmem:[%s363 + $0x3c] sm:$0xf]
        %v535 = vunpack.c.l.bf16 %v519
        %v536 = vunpack.c.l.bf16 %v520
        %v537 = vunpack.c.l.bf16 %v521
        %v538 = vunpack.c.l.bf16 %v522
        %v539 = vunpack.c.l.bf16 %v523
        %v540 = vunpack.c.l.bf16 %v524
        %v541 = vunpack.c.l.bf16 %v525
        %v542 = vunpack.c.l.bf16 %v526
        %v543 = vunpack.c.l.bf16 %v527
        %v544 = vunpack.c.l.bf16 %v528
        %v545 = vunpack.c.l.bf16 %v529
        %v546 = vunpack.c.l.bf16 %v530
        %v547 = vunpack.c.l.bf16 %v531
        %v548 = vunpack.c.l.bf16 %v532
        %v549 = vunpack.c.l.bf16 %v533
        %v550 = vunpack.c.l.bf16 %v534
        %v551 = vmul.f32 %v535, 0.10206208
        %v552 = vmul.f32 %v536, 0.10206208
        %v553 = vmul.f32 %v537, 0.10206208
        %v554 = vmul.f32 %v538, 0.10206208
        %v555 = vmul.f32 %v539, 0.10206208
        %v556 = vmul.f32 %v540, 0.10206208
        %v557 = vmul.f32 %v541, 0.10206208
        %v558 = vmul.f32 %v542, 0.10206208
        %v559 = vmul.f32 %v543, 0.10206208
        %v560 = vmul.f32 %v544, 0.10206208
        %v561 = vmul.f32 %v545, 0.10206208
        %v562 = vmul.f32 %v546, 0.10206208
        %v563 = vmul.f32 %v547, 0.10206208
        %v564 = vmul.f32 %v548, 0.10206208
        %v565 = vmul.f32 %v549, 0.10206208
        %v566 = vmul.f32 %v550, 0.10206208
        %v567 = vpack.c.bf16 %v552, %v551
        %v568 = vpack.c.bf16 %v554, %v553
        %v569 = vpack.c.bf16 %v556, %v555
        %v570 = vpack.c.bf16 %v558, %v557
        %v571 = vpack.c.bf16 %v560, %v559
        %v572 = vpack.c.bf16 %v562, %v561
        %v573 = vpack.c.bf16 %v564, %v563
        %v574 = vpack.c.bf16 %v566, %v565
        %v575 = vld [vmem:[%s373] sm:$0xf]
        %v576 = vld [vmem:[%s373 + $0x4] sm:$0xf]
        %v577 = vld [vmem:[%s373 + $0x8] sm:$0xf]
        %v578 = vld [vmem:[%s373 + $0xc] sm:$0xf]
        %v579 = vld [vmem:[%s373 + $0x10] sm:$0xf]
        %v580 = vld [vmem:[%s373 + $0x14] sm:$0xf]
        %v581 = vld [vmem:[%s373 + $0x18] sm:$0xf]
        %v582 = vld [vmem:[%s373 + $0x1c] sm:$0xf]
        %v583 = vld [vmem:[%s373 + $0x20] sm:$0xf]
        %v584 = vld [vmem:[%s373 + $0x24] sm:$0xf]
        %v585 = vld [vmem:[%s373 + $0x28] sm:$0xf]
        %v586 = vld [vmem:[%s373 + $0x2c] sm:$0xf]
        %v587 = vld [vmem:[%s373 + $0x30] sm:$0xf]
        %v588 = vld [vmem:[%s373 + $0x34] sm:$0xf]
        %v589 = vld [vmem:[%s373 + $0x38] sm:$0xf]
        %v590 = vld [vmem:[%s373 + $0x3c] sm:$0xf]
        %v591 = vld [vmem:[%s379] sm:$0xf]
        %v592 = vld [vmem:[%s379 + $0x4] sm:$0xf]
        %v593 = vld [vmem:[%s379 + $0x8] sm:$0xf]
        %v594 = vld [vmem:[%s379 + $0xc] sm:$0xf]
        %v595 = vld [vmem:[%s379 + $0x10] sm:$0xf]
        %v596 = vld [vmem:[%s379 + $0x14] sm:$0xf]
        %v597 = vld [vmem:[%s379 + $0x18] sm:$0xf]
        %v598 = vld [vmem:[%s379 + $0x1c] sm:$0xf]
        %v599 = vld [vmem:[%s379 + $0x20] sm:$0xf]
        %v600 = vld [vmem:[%s379 + $0x24] sm:$0xf]
        %v601 = vld [vmem:[%s379 + $0x28] sm:$0xf]
        %v602 = vld [vmem:[%s379 + $0x2c] sm:$0xf]
        %v603 = vld [vmem:[%s379 + $0x30] sm:$0xf]
        %v604 = vld [vmem:[%s379 + $0x34] sm:$0xf]
        %v605 = vld [vmem:[%s379 + $0x38] sm:$0xf]
        %v606 = vld [vmem:[%s379 + $0x3c] sm:$0xf]
        %v623 = vunpack.c.l.b16 %v591
        %v624 = vunpack.c.l.b16 %v592
        %v625 = vunpack.c.l.b16 %v593
        %v626 = vunpack.c.l.b16 %v594
        %v627 = vunpack.c.l.b16 %v595
        %v628 = vunpack.c.l.b16 %v596
        %v629 = vunpack.c.l.b16 %v597
        %v630 = vunpack.c.l.b16 %v598
        %v631 = vunpack.c.l.b16 %v599
        %v632 = vunpack.c.l.b16 %v600
        %v633 = vunpack.c.l.b16 %v601
        %v634 = vunpack.c.l.b16 %v602
        %v635 = vunpack.c.l.b16 %v603
        %v636 = vunpack.c.l.b16 %v604
        %v637 = vunpack.c.l.b16 %v605
        %v638 = vunpack.c.l.b16 %v606
        %v639 = vpack.c.b16 %v624, %v623
        %v640 = vpack.c.b16 %v626, %v625
        %v641 = vpack.c.b16 %v628, %v627
        %v642 = vpack.c.b16 %v630, %v629
        %v643 = vpack.c.b16 %v632, %v631
        %v644 = vpack.c.b16 %v634, %v633
        %v645 = vpack.c.b16 %v636, %v635
        %v646 = vpack.c.b16 %v638, %v637
        %vm647 = vcmask 261120
        %v649 = vsel %vm647, %v567, 0
        %v652 = vsel %vm647, %v568, 0
        %v655 = vsel %vm647, %v569, 0
        %v658 = vsel %vm647, %v570, 0
        %v661 = vsel %vm647, %v571, 0
        %v664 = vsel %vm647, %v572, 0
        %v667 = vsel %vm647, %v573, 0
        %v670 = vsel %vm647, %v574, 0
        %v673 = vsel %vm647, %v639, 0
        %v676 = vsel %vm647, %v640, 0
        %v679 = vsel %vm647, %v641, 0
        %v682 = vsel %vm647, %v642, 0
        %v685 = vsel %vm647, %v643, 0
        %v688 = vsel %vm647, %v644, 0
        %v691 = vsel %vm647, %v645, 0
        %v694 = vsel %vm647, %v646, 0
        %696 = vmatprep.subr.bf16.mxu0 0
        %697 = vmatpush1.bf16.xpose.msra.mxu0 %v673
        %698 = vmatprep.subr.bf16.mxu0 0
        %699 = vmatpush1.bf16.xpose.msra.mxu0 %v676
        %700 = vmatprep.subr.bf16.mxu0 0
        %701 = vmatpush1.bf16.xpose.msra.mxu0 %v679
        %702 = vmatprep.subr.bf16.mxu0 0
        %703 = vmatpush1.bf16.xpose.msra.mxu0 %v682
        %704 = vmatprep.subr.bf16.mxu0 0
        %705 = vmatpush1.bf16.xpose.msra.mxu0 %v685
        %706 = vmatprep.subr.bf16.mxu0 0
        %707 = vmatpush1.bf16.xpose.msra.mxu0 %v688
        %708 = vmatprep.subr.bf16.mxu0 0
        %709 = vmatpush1.bf16.xpose.msra.mxu0 %v691
        %710 = vmatprep.subr.bf16.mxu0 0
        %711 = vmatpush1.bf16.xpose.msra.mxu0 %v694
        %712 = vmatprep.subr.bf16.mxu0 0
        %713 = vmatpush1.bf16.xpose.msra.mxu0 0
        %714 = vmatprep.subr.bf16.mxu0 0
        %715 = vmatpush1.bf16.xpose.msra.mxu0 0
        %716 = vmatprep.subr.bf16.mxu0 0
        %717 = vmatpush1.bf16.xpose.msra.mxu0 0
        %718 = vmatprep.subr.bf16.mxu0 0
        %719 = vmatpush1.bf16.xpose.msra.mxu0 0
        %720 = vmatprep.subr.bf16.mxu0 0
        %721 = vmatpush1.bf16.xpose.msra.mxu0 0
        %722 = vmatprep.subr.bf16.mxu0 0
        %723 = vmatpush1.bf16.xpose.msra.mxu0 0
        %724 = vmatprep.subr.bf16.mxu0 0
        %725 = vmatpush1.bf16.xpose.msra.mxu0 0
        %726 = vmatprep.subr.bf16.mxu0 0
        %727 = vmatpush1.bf16.xpose.msra.mxu0 0
        %728 = vmatprep.mubr.bf16.mxu0 0
        %729 = vmatmul.mubr.bf16.gmra.mrb[0].mxu0 %v649
        %v730 = vpop.f32.mrb[0].mxu0
        %v731 = vadd.f32 0.0, %v730
        %v732 = vpop.f32.mrb[0].mxu0
        %v733 = vpop.f32.mrb[0].mxu0
        %v734 = vadd.f32 0.0, %v733
        %v735 = vpop.f32.mrb[0].mxu0
        %736 = vmatprep.mubr.bf16.mxu0 0
        %737 = vmatmul.mubr.bf16.gmra.mrb[0].mxu0 %v652
        %v738 = vpop.f32.mrb[0].mxu0
        %v739 = vadd.f32 0.0, %v738
        %v740 = vpop.f32.mrb[0].mxu0
        %v741 = vpop.f32.mrb[0].mxu0
        %v742 = vadd.f32 0.0, %v741
        %v743 = vpop.f32.mrb[0].mxu0
        %744 = vmatprep.mubr.bf16.mxu0 0
        %745 = vmatmul.mubr.bf16.gmra.mrb[0].mxu0 %v655
        %v746 = vpop.f32.mrb[0].mxu0
        %v747 = vadd.f32 0.0, %v746
        %v748 = vpop.f32.mrb[0].mxu0
        %v749 = vpop.f32.mrb[0].mxu0
        %v750 = vadd.f32 0.0, %v749
        %v751 = vpop.f32.mrb[0].mxu0
        %752 = vmatprep.mubr.bf16.mxu0 0
        %753 = vmatmul.mubr.bf16.gmra.mrb[0].mxu0 %v658
        %v754 = vpop.f32.mrb[0].mxu0
        %v755 = vadd.f32 0.0, %v754
        %v756 = vpop.f32.mrb[0].mxu0
        %v757 = vpop.f32.mrb[0].mxu0
        %v758 = vadd.f32 0.0, %v757
        %v759 = vpop.f32.mrb[0].mxu0
        %760 = vmatprep.mubr.bf16.mxu0 0
        %761 = vmatmul.mubr.bf16.gmra.mrb[0].mxu0 %v661
        %v762 = vpop.f32.mrb[0].mxu0
        %v763 = vadd.f32 0.0, %v762
        %v764 = vpop.f32.mrb[0].mxu0
        %v765 = vpop.f32.mrb[0].mxu0
        %v766 = vadd.f32 0.0, %v765
        %v767 = vpop.f32.mrb[0].mxu0
        %768 = vmatprep.mubr.bf16.mxu0 0
        %769 = vmatmul.mubr.bf16.gmra.mrb[0].mxu0 %v664
        %v770 = vpop.f32.mrb[0].mxu0
        %v771 = vadd.f32 0.0, %v770
        %v772 = vpop.f32.mrb[0].mxu0
        %v773 = vpop.f32.mrb[0].mxu0
        %v774 = vadd.f32 0.0, %v773
        %v775 = vpop.f32.mrb[0].mxu0
        %776 = vmatprep.mubr.bf16.mxu0 0
        %777 = vmatmul.mubr.bf16.gmra.mrb[0].mxu0 %v667
        %v778 = vpop.f32.mrb[0].mxu0
        %v779 = vadd.f32 0.0, %v778
        %v780 = vpop.f32.mrb[0].mxu0
        %v781 = vpop.f32.mrb[0].mxu0
        %v782 = vadd.f32 0.0, %v781
        %v783 = vpop.f32.mrb[0].mxu0
        %784 = vmatprep.mubr.bf16.mxu0 0
        %785 = vmatmul.mubr.bf16.gmra.mrb[0].mxu0 %v670
        %v786 = vpop.f32.mrb[0].mxu0
        %v787 = vadd.f32 0.0, %v786
        %v788 = vpop.f32.mrb[0].mxu0
        %v789 = vpop.f32.mrb[0].mxu0
        %v790 = vadd.f32 0.0, %v789
        %v791 = vpop.f32.mrb[0].mxu0
        %792 = vdwg.mxu0
        %v809 = vunpack.c.l.b16 %v575
        %v810 = vunpack.c.l.b16 %v576
        %v811 = vunpack.c.l.b16 %v577
        %v812 = vunpack.c.l.b16 %v578
        %v813 = vunpack.c.l.b16 %v579
        %v814 = vunpack.c.l.b16 %v580
        %v815 = vunpack.c.l.b16 %v581
        %v816 = vunpack.c.l.b16 %v582
        %v817 = vunpack.c.l.b16 %v583
        %v818 = vunpack.c.l.b16 %v584
        %v819 = vunpack.c.l.b16 %v585
        %v820 = vunpack.c.l.b16 %v586
        %v821 = vunpack.c.l.b16 %v587
        %v822 = vunpack.c.l.b16 %v588
        %v823 = vunpack.c.l.b16 %v589
        %v824 = vunpack.c.l.b16 %v590
        %v825 = vpack.c.b16 %v810, %v809
        %v826 = vpack.c.b16 %v812, %v811
        %v827 = vpack.c.b16 %v814, %v813
        %v828 = vpack.c.b16 %v816, %v815
        %v829 = vpack.c.b16 %v818, %v817
        %v830 = vpack.c.b16 %v820, %v819
        %v831 = vpack.c.b16 %v822, %v821
        %v832 = vpack.c.b16 %v824, %v823
        %vm833 = vcmask 523264
        %v835 = vsel %vm833, %v511, 0
        %v838 = vsel %vm833, %v512, 0
        %v841 = vsel %vm833, %v513, 0
        %v844 = vsel %vm833, %v514, 0
        %v847 = vsel %vm833, %v515, 0
        %v850 = vsel %vm833, %v516, 0
        %v853 = vsel %vm833, %v517, 0
        %v856 = vsel %vm833, %v518, 0
        %v859 = vsel %vm833, %v825, 0
        %v862 = vsel %vm833, %v826, 0
        %v865 = vsel %vm833, %v827, 0
        %v868 = vsel %vm833, %v828, 0
        %v871 = vsel %vm833, %v829, 0
        %v874 = vsel %vm833, %v830, 0
        %v877 = vsel %vm833, %v831, 0
        %v880 = vsel %vm833, %v832, 0
        %882 = vmatprep.subr.bf16.mxu0 0
        %883 = vmatpush1.bf16.xpose.msra.mxu0 %v859
        %884 = vmatprep.subr.bf16.mxu0 0
        %885 = vmatpush1.bf16.xpose.msra.mxu0 %v862
        %886 = vmatprep.subr.bf16.mxu0 0
        %887 = vmatpush1.bf16.xpose.msra.mxu0 %v865
        %888 = vmatprep.subr.bf16.mxu0 0
        %889 = vmatpush1.bf16.xpose.msra.mxu0 %v868
        %890 = vmatprep.subr.bf16.mxu0 0
        %891 = vmatpush1.bf16.xpose.msra.mxu0 %v871
        %892 = vmatprep.subr.bf16.mxu0 0
        %893 = vmatpush1.bf16.xpose.msra.mxu0 %v874
        %894 = vmatprep.subr.bf16.mxu0 0
        %895 = vmatpush1.bf16.xpose.msra.mxu0 %v877
        %896 = vmatprep.subr.bf16.mxu0 0
        %897 = vmatpush1.bf16.xpose.msra.mxu0 %v880
        %898 = vmatprep.subr.bf16.mxu0 0
        %899 = vmatpush1.bf16.xpose.msra.mxu0 0
        %900 = vmatprep.subr.bf16.mxu0 0
        %901 = vmatpush1.bf16.xpose.msra.mxu0 0
        %902 = vmatprep.subr.bf16.mxu0 0
        %903 = vmatpush1.bf16.xpose.msra.mxu0 0
        %904 = vmatprep.subr.bf16.mxu0 0
        %905 = vmatpush1.bf16.xpose.msra.mxu0 0
        %906 = vmatprep.subr.bf16.mxu0 0
        %907 = vmatpush1.bf16.xpose.msra.mxu0 0
        %908 = vmatprep.subr.bf16.mxu0 0
        %909 = vmatpush1.bf16.xpose.msra.mxu0 0
        %910 = vmatprep.subr.bf16.mxu0 0
        %911 = vmatpush1.bf16.xpose.msra.mxu0 0
        %912 = vmatprep.subr.bf16.mxu0 0
        %913 = vmatpush1.bf16.xpose.msra.mxu0 0
        %914 = vmatprep.mubr.bf16.mxu0 0
        %915 = vmatmul.mubr.bf16.gmra.mrb[0].mxu0 %v835
        %v916 = vpop.f32.mrb[0].mxu0
        %v917 = vadd.f32 %v731, %v916
        %v918 = vpop.f32.mrb[0].mxu0
        %v919 = vpop.f32.mrb[0].mxu0
        %v920 = vadd.f32 %v734, %v919
        %v921 = vpop.f32.mrb[0].mxu0
        %922 = vmatprep.mubr.bf16.mxu0 0
        %923 = vmatmul.mubr.bf16.gmra.mrb[0].mxu0 %v838
        %v924 = vpop.f32.mrb[0].mxu0
        %v925 = vadd.f32 %v739, %v924
        %v926 = vpop.f32.mrb[0].mxu0
        %v927 = vpop.f32.mrb[0].mxu0
        %v928 = vadd.f32 %v742, %v927
        %v929 = vpop.f32.mrb[0].mxu0
        %930 = vmatprep.mubr.bf16.mxu0 0
        %931 = vmatmul.mubr.bf16.gmra.mrb[0].mxu0 %v841
        %v932 = vpop.f32.mrb[0].mxu0
        %v933 = vadd.f32 %v747, %v932
        %v934 = vpop.f32.mrb[0].mxu0
        %v935 = vpop.f32.mrb[0].mxu0
        %v936 = vadd.f32 %v750, %v935
        %v937 = vpop.f32.mrb[0].mxu0
        %938 = vmatprep.mubr.bf16.mxu0 0
        %939 = vmatmul.mubr.bf16.gmra.mrb[0].mxu0 %v844
        %v940 = vpop.f32.mrb[0].mxu0
        %v941 = vadd.f32 %v755, %v940
        %v942 = vpop.f32.mrb[0].mxu0
        %v943 = vpop.f32.mrb[0].mxu0
        %v944 = vadd.f32 %v758, %v943
        %v945 = vpop.f32.mrb[0].mxu0
        %946 = vmatprep.mubr.bf16.mxu0 0
        %947 = vmatmul.mubr.bf16.gmra.mrb[0].mxu0 %v847
        %v948 = vpop.f32.mrb[0].mxu0
        %v949 = vadd.f32 %v763, %v948
        %v950 = vpop.f32.mrb[0].mxu0
        %v951 = vpop.f32.mrb[0].mxu0
        %v952 = vadd.f32 %v766, %v951
        %v953 = vpop.f32.mrb[0].mxu0
        %954 = vmatprep.mubr.bf16.mxu0 0
        %955 = vmatmul.mubr.bf16.gmra.mrb[0].mxu0 %v850
        %v956 = vpop.f32.mrb[0].mxu0
        %v957 = vadd.f32 %v771, %v956
        %v958 = vpop.f32.mrb[0].mxu0
        %v959 = vpop.f32.mrb[0].mxu0
        %v960 = vadd.f32 %v774, %v959
        %v961 = vpop.f32.mrb[0].mxu0
        %962 = vmatprep.mubr.bf16.mxu0 0
        %963 = vmatmul.mubr.bf16.gmra.mrb[0].mxu0 %v853
        %v964 = vpop.f32.mrb[0].mxu0
        %v965 = vadd.f32 %v779, %v964
        %v966 = vpop.f32.mrb[0].mxu0
        %v967 = vpop.f32.mrb[0].mxu0
        %v968 = vadd.f32 %v782, %v967
        %v969 = vpop.f32.mrb[0].mxu0
        %970 = vmatprep.mubr.bf16.mxu0 0
        %971 = vmatmul.mubr.bf16.gmra.mrb[0].mxu0 %v856
        %v972 = vpop.f32.mrb[0].mxu0
        %v973 = vadd.f32 %v787, %v972
        %v974 = vpop.f32.mrb[0].mxu0
        %v975 = vpop.f32.mrb[0].mxu0
        %v976 = vadd.f32 %v790, %v975
        %v977 = vpop.f32.mrb[0].mxu0
        %978 = vdwg.mxu0
        %s979 = smul.u32 %s22, 128
        %v980 = vlaneseq
        %v981 = vshrl.u32 %v980, 7
        %v982 = vadd.s32 %v981, 8
        %v983 = vadd.s32 %v981, 16
        %v984 = vadd.s32 %v981, 24
        %v985 = vadd.s32 %v981, 32
        %v986 = vadd.s32 %v981, 40
        %v987 = vadd.s32 %v981, 48
        %v988 = vadd.s32 %v981, 56
        %v989 = vadd.s32 %v981, 64
        %v990 = vadd.s32 %v981, 72
        %v991 = vadd.s32 %v981, 80
        %v992 = vadd.s32 %v981, 88
        %v993 = vadd.s32 %v981, 96
        %v994 = vadd.s32 %v981, 104
        %v995 = vadd.s32 %v981, 112
        %v996 = vadd.s32 %v981, 120
        %v997 = vstv %s979
        %v998 = vadd.s32 %v997, %v981
        %v999 = vadd.s32 %v997, %v982
        %v1000 = vadd.s32 %v997, %v983
        %v1001 = vadd.s32 %v997, %v984
        %v1002 = vadd.s32 %v997, %v985
        %v1003 = vadd.s32 %v997, %v986
        %v1004 = vadd.s32 %v997, %v987
        %v1005 = vadd.s32 %v997, %v988
        %v1006 = vadd.s32 %v997, %v989
        %v1007 = vadd.s32 %v997, %v990
        %v1008 = vadd.s32 %v997, %v991
        %v1009 = vadd.s32 %v997, %v992
        %v1010 = vadd.s32 %v997, %v993
        %v1011 = vadd.s32 %v997, %v994
        %v1012 = vadd.s32 %v997, %v995
        %v1013 = vadd.s32 %v997, %v996
        %v1014 = vlaneseq
        %v1015 = vand.u32 %v1014, 127
        %v1016 = vstv %s456
        %v1017 = vadd.s32 %v1016, %v1015
        %vm1018 = vcmp.le.s32.totalorder %v1017, %v998
        %vm1019 = vcmp.le.s32.totalorder %v1017, %v999
        %vm1020 = vcmp.le.s32.totalorder %v1017, %v1000
        %vm1021 = vcmp.le.s32.totalorder %v1017, %v1001
        %vm1022 = vcmp.le.s32.totalorder %v1017, %v1002
        %vm1023 = vcmp.le.s32.totalorder %v1017, %v1003
        %vm1024 = vcmp.le.s32.totalorder %v1017, %v1004
        %vm1025 = vcmp.le.s32.totalorder %v1017, %v1005
        %vm1026 = vcmp.le.s32.totalorder %v1017, %v1006
        %vm1027 = vcmp.le.s32.totalorder %v1017, %v1007
        %vm1028 = vcmp.le.s32.totalorder %v1017, %v1008
        %vm1029 = vcmp.le.s32.totalorder %v1017, %v1009
        %vm1030 = vcmp.le.s32.totalorder %v1017, %v1010
        %vm1031 = vcmp.le.s32.totalorder %v1017, %v1011
        %vm1032 = vcmp.le.s32.totalorder %v1017, %v1012
        %vm1033 = vcmp.le.s32.totalorder %v1017, %v1013
        %v1034 = vsel %vm1018, %v917, -1e+30
        %v1035 = vsel %vm1019, %v920, -1e+30
        %v1036 = vsel %vm1020, %v925, -1e+30
        %v1037 = vsel %vm1021, %v928, -1e+30
        %v1038 = vsel %vm1022, %v933, -1e+30
        %v1039 = vsel %vm1023, %v936, -1e+30
        %v1040 = vsel %vm1024, %v941, -1e+30
        %v1041 = vsel %vm1025, %v944, -1e+30
        %v1042 = vsel %vm1026, %v949, -1e+30
        %v1043 = vsel %vm1027, %v952, -1e+30
        %v1044 = vsel %vm1028, %v957, -1e+30
        %v1045 = vsel %vm1029, %v960, -1e+30
        %v1046 = vsel %vm1030, %v965, -1e+30
        %v1047 = vsel %vm1031, %v968, -1e+30
        %v1048 = vsel %vm1032, %v973, -1e+30
        %v1049 = vsel %vm1033, %v976, -1e+30
        %v1050 = vld [vmem:[#allocation2] sm:$0xff]
        %v1051 = vld [vmem:[#allocation2 + $0x8] sm:$0xff]
        %v1052 = vld [vmem:[#allocation2 + $0x10] sm:$0xff]
        %v1053 = vld [vmem:[#allocation2 + $0x18] sm:$0xff]
        %v1054 = vld [vmem:[#allocation2 + $0x20] sm:$0xff]
        %v1055 = vld [vmem:[#allocation2 + $0x28] sm:$0xff]
        %v1056 = vld [vmem:[#allocation2 + $0x30] sm:$0xff]
        %v1057 = vld [vmem:[#allocation2 + $0x38] sm:$0xff]
        %v1058 = vld [vmem:[#allocation2 + $0x40] sm:$0xff]
        %v1059 = vld [vmem:[#allocation2 + $0x48] sm:$0xff]
        %v1060 = vld [vmem:[#allocation2 + $0x50] sm:$0xff]
        %v1061 = vld [vmem:[#allocation2 + $0x58] sm:$0xff]
        %v1062 = vld [vmem:[#allocation2 + $0x60] sm:$0xff]
        %v1063 = vld [vmem:[#allocation2 + $0x68] sm:$0xff]
        %v1064 = vld [vmem:[#allocation2 + $0x70] sm:$0xff]
        %v1065 = vld [vmem:[#allocation2 + $0x78] sm:$0xff]
        %1066 = vmax.xlane.f32.xlu0 %v1034
        %v1067 = vpop.xlane.xlu0 %1066
        %1068 = vmax.xlane.f32.xlu0 %v1035
        %v1069 = vpop.xlane.xlu0 %1068
        %1070 = vmax.xlane.f32.xlu0 %v1036
        %v1071 = vpop.xlane.xlu0 %1070
        %1072 = vmax.xlane.f32.xlu0 %v1037
        %v1073 = vpop.xlane.xlu0 %1072
        %1074 = vmax.xlane.f32.xlu0 %v1038
        %v1075 = vpop.xlane.xlu0 %1074
        %1076 = vmax.xlane.f32.xlu0 %v1039
        %v1077 = vpop.xlane.xlu0 %1076
        %1078 = vmax.xlane.f32.xlu0 %v1040
        %v1079 = vpop.xlane.xlu0 %1078
        %1080 = vmax.xlane.f32.xlu0 %v1041
        %v1081 = vpop.xlane.xlu0 %1080
        %1082 = vmax.xlane.f32.xlu0 %v1042
        %v1083 = vpop.xlane.xlu0 %1082
        %1084 = vmax.xlane.f32.xlu0 %v1043
        %v1085 = vpop.xlane.xlu0 %1084
        %1086 = vmax.xlane.f32.xlu0 %v1044
        %v1087 = vpop.xlane.xlu0 %1086
        %1088 = vmax.xlane.f32.xlu0 %v1045
        %v1089 = vpop.xlane.xlu0 %1088
        %1090 = vmax.xlane.f32.xlu0 %v1046
        %v1091 = vpop.xlane.xlu0 %1090
        %1092 = vmax.xlane.f32.xlu0 %v1047
        %v1093 = vpop.xlane.xlu0 %1092
        %1094 = vmax.xlane.f32.xlu0 %v1048
        %v1095 = vpop.xlane.xlu0 %1094
        %1096 = vmax.xlane.f32.xlu0 %v1049
        %v1097 = vpop.xlane.xlu0 %1096
        %v1098 = vmax.f32 %v1050, %v1067
        %v1099 = vmax.f32 %v1051, %v1069
        %v1100 = vmax.f32 %v1052, %v1071
        %v1101 = vmax.f32 %v1053, %v1073
        %v1102 = vmax.f32 %v1054, %v1075
        %v1103 = vmax.f32 %v1055, %v1077
        %v1104 = vmax.f32 %v1056, %v1079
        %v1105 = vmax.f32 %v1057, %v1081
        %v1106 = vmax.f32 %v1058, %v1083
        %v1107 = vmax.f32 %v1059, %v1085
        %v1108 = vmax.f32 %v1060, %v1087
        %v1109 = vmax.f32 %v1061, %v1089
        %v1110 = vmax.f32 %v1062, %v1091
        %v1111 = vmax.f32 %v1063, %v1093
        %v1112 = vmax.f32 %v1064, %v1095
        %v1113 = vmax.f32 %v1065, %v1097
        %v1114 = vsub.f32 %v1050, %v1098
        %v1115 = vsub.f32 %v1051, %v1099
        %v1116 = vsub.f32 %v1052, %v1100
        %v1117 = vsub.f32 %v1053, %v1101
        %v1118 = vsub.f32 %v1054, %v1102
        %v1119 = vsub.f32 %v1055, %v1103
        %v1120 = vsub.f32 %v1056, %v1104
        %v1121 = vsub.f32 %v1057, %v1105
        %v1122 = vsub.f32 %v1058, %v1106
        %v1123 = vsub.f32 %v1059, %v1107
        %v1124 = vsub.f32 %v1060, %v1108
        %v1125 = vsub.f32 %v1061, %v1109
        %v1126 = vsub.f32 %v1062, %v1110
        %v1127 = vsub.f32 %v1063, %v1111
        %v1128 = vsub.f32 %v1064, %v1112
        %v1129 = vsub.f32 %v1065, %v1113
        %v1130 = vmul.f32 %v1114, 1.442695
        %v1131 = vpow.pop %v1130
        %v1132 = vmul.f32 %v1115, 1.442695
        %v1133 = vpow.pop %v1132
        %v1134 = vmul.f32 %v1116, 1.442695
        %v1135 = vpow.pop %v1134
        %v1136 = vmul.f32 %v1117, 1.442695
        %v1137 = vpow.pop %v1136
        %v1138 = vmul.f32 %v1118, 1.442695
        %v1139 = vpow.pop %v1138
        %v1140 = vmul.f32 %v1119, 1.442695
        %v1141 = vpow.pop %v1140
        %v1142 = vmul.f32 %v1120, 1.442695
        %v1143 = vpow.pop %v1142
        %v1144 = vmul.f32 %v1121, 1.442695
        %v1145 = vpow.pop %v1144
        %v1146 = vmul.f32 %v1122, 1.442695
        %v1147 = vpow.pop %v1146
        %v1148 = vmul.f32 %v1123, 1.442695
        %v1149 = vpow.pop %v1148
        %v1150 = vmul.f32 %v1124, 1.442695
        %v1151 = vpow.pop %v1150
        %v1152 = vmul.f32 %v1125, 1.442695
        %v1153 = vpow.pop %v1152
        %v1154 = vmul.f32 %v1126, 1.442695
        %v1155 = vpow.pop %v1154
        %v1156 = vmul.f32 %v1127, 1.442695
        %v1157 = vpow.pop %v1156
        %v1158 = vmul.f32 %v1128, 1.442695
        %v1159 = vpow.pop %v1158
        %v1160 = vmul.f32 %v1129, 1.442695
        %v1161 = vpow.pop %v1160
        %1163 = vset.pattern.permute.xlu0 0
        %1164 = vperm.xlu0 %1163, %v1098
        %v1165 = vpop.permute.xlu0 %1164
        %1168 = vset.pattern.permute.xlu0 0
        %1169 = vperm.xlu0 %1168, %v1099
        %v1170 = vpop.permute.xlu0 %1169
        %1173 = vset.pattern.permute.xlu0 0
        %1174 = vperm.xlu0 %1173, %v1100
        %v1175 = vpop.permute.xlu0 %1174
        %1178 = vset.pattern.permute.xlu0 0
        %1179 = vperm.xlu0 %1178, %v1101
        %v1180 = vpop.permute.xlu0 %1179
        %1183 = vset.pattern.permute.xlu0 0
        %1184 = vperm.xlu0 %1183, %v1102
        %v1185 = vpop.permute.xlu0 %1184
        %1188 = vset.pattern.permute.xlu0 0
        %1189 = vperm.xlu0 %1188, %v1103
        %v1190 = vpop.permute.xlu0 %1189
        %1193 = vset.pattern.permute.xlu0 0
        %1194 = vperm.xlu0 %1193, %v1104
        %v1195 = vpop.permute.xlu0 %1194
        %1198 = vset.pattern.permute.xlu0 0
        %1199 = vperm.xlu0 %1198, %v1105
        %v1200 = vpop.permute.xlu0 %1199
        %1203 = vset.pattern.permute.xlu0 0
        %1204 = vperm.xlu0 %1203, %v1106
        %v1205 = vpop.permute.xlu0 %1204
        %1208 = vset.pattern.permute.xlu0 0
        %1209 = vperm.xlu0 %1208, %v1107
        %v1210 = vpop.permute.xlu0 %1209
        %1213 = vset.pattern.permute.xlu0 0
        %1214 = vperm.xlu0 %1213, %v1108
        %v1215 = vpop.permute.xlu0 %1214
        %1218 = vset.pattern.permute.xlu0 0
        %1219 = vperm.xlu0 %1218, %v1109
        %v1220 = vpop.permute.xlu0 %1219
        %1223 = vset.pattern.permute.xlu0 0
        %1224 = vperm.xlu0 %1223, %v1110
        %v1225 = vpop.permute.xlu0 %1224
        %1228 = vset.pattern.permute.xlu0 0
        %1229 = vperm.xlu0 %1228, %v1111
        %v1230 = vpop.permute.xlu0 %1229
        %1233 = vset.pattern.permute.xlu0 0
        %1234 = vperm.xlu0 %1233, %v1112
        %v1235 = vpop.permute.xlu0 %1234
        %1238 = vset.pattern.permute.xlu0 0
        %1239 = vperm.xlu0 %1238, %v1113
        %v1240 = vpop.permute.xlu0 %1239
        %v1242 = vsub.f32 %v1034, %v1165
        %v1243 = vsub.f32 %v1035, %v1170
        %v1244 = vsub.f32 %v1036, %v1175
        %v1245 = vsub.f32 %v1037, %v1180
        %v1246 = vsub.f32 %v1038, %v1185
        %v1247 = vsub.f32 %v1039, %v1190
        %v1248 = vsub.f32 %v1040, %v1195
        %v1249 = vsub.f32 %v1041, %v1200
        %v1250 = vsub.f32 %v1042, %v1205
        %v1251 = vsub.f32 %v1043, %v1210
        %v1252 = vsub.f32 %v1044, %v1215
        %v1253 = vsub.f32 %v1045, %v1220
        %v1254 = vsub.f32 %v1046, %v1225
        %v1255 = vsub.f32 %v1047, %v1230
        %v1256 = vsub.f32 %v1048, %v1235
        %v1257 = vsub.f32 %v1049, %v1240
        %v1258 = vmul.f32 %v1242, 1.442695
        %v1259 = vpow.pop %v1258
        %v1260 = vmul.f32 %v1243, 1.442695
        %v1261 = vpow.pop %v1260
        %v1262 = vmul.f32 %v1244, 1.442695
        %v1263 = vpow.pop %v1262
        %v1264 = vmul.f32 %v1245, 1.442695
        %v1265 = vpow.pop %v1264
        %v1266 = vmul.f32 %v1246, 1.442695
        %v1267 = vpow.pop %v1266
        %v1268 = vmul.f32 %v1247, 1.442695
        %v1269 = vpow.pop %v1268
        %v1270 = vmul.f32 %v1248, 1.442695
        %v1271 = vpow.pop %v1270
        %v1272 = vmul.f32 %v1249, 1.442695
        %v1273 = vpow.pop %v1272
        %v1274 = vmul.f32 %v1250, 1.442695
        %v1275 = vpow.pop %v1274
        %v1276 = vmul.f32 %v1251, 1.442695
        %v1277 = vpow.pop %v1276
        %v1278 = vmul.f32 %v1252, 1.442695
        %v1279 = vpow.pop %v1278
        %v1280 = vmul.f32 %v1253, 1.442695
        %v1281 = vpow.pop %v1280
        %v1282 = vmul.f32 %v1254, 1.442695
        %v1283 = vpow.pop %v1282
        %v1284 = vmul.f32 %v1255, 1.442695
        %v1285 = vpow.pop %v1284
        %v1286 = vmul.f32 %v1256, 1.442695
        %v1287 = vpow.pop %v1286
        %v1288 = vmul.f32 %v1257, 1.442695
        %v1289 = vpow.pop %v1288
        %v1290 = vld [vmem:[#allocation3] sm:$0xff]
        %v1291 = vld [vmem:[#allocation3 + $0x8] sm:$0xff]
        %v1292 = vld [vmem:[#allocation3 + $0x10] sm:$0xff]
        %v1293 = vld [vmem:[#allocation3 + $0x18] sm:$0xff]
        %v1294 = vld [vmem:[#allocation3 + $0x20] sm:$0xff]
        %v1295 = vld [vmem:[#allocation3 + $0x28] sm:$0xff]
        %v1296 = vld [vmem:[#allocation3 + $0x30] sm:$0xff]
        %v1297 = vld [vmem:[#allocation3 + $0x38] sm:$0xff]
        %v1298 = vld [vmem:[#allocation3 + $0x40] sm:$0xff]
        %v1299 = vld [vmem:[#allocation3 + $0x48] sm:$0xff]
        %v1300 = vld [vmem:[#allocation3 + $0x50] sm:$0xff]
        %v1301 = vld [vmem:[#allocation3 + $0x58] sm:$0xff]
        %v1302 = vld [vmem:[#allocation3 + $0x60] sm:$0xff]
        %v1303 = vld [vmem:[#allocation3 + $0x68] sm:$0xff]
        %v1304 = vld [vmem:[#allocation3 + $0x70] sm:$0xff]
        %v1305 = vld [vmem:[#allocation3 + $0x78] sm:$0xff]
        %v1306 = vmul.f32 %v1131, %v1290
        %v1307 = vmul.f32 %v1133, %v1291
        %v1308 = vmul.f32 %v1135, %v1292
        %v1309 = vmul.f32 %v1137, %v1293
        %v1310 = vmul.f32 %v1139, %v1294
        %v1311 = vmul.f32 %v1141, %v1295
        %v1312 = vmul.f32 %v1143, %v1296
        %v1313 = vmul.f32 %v1145, %v1297
        %v1314 = vmul.f32 %v1147, %v1298
        %v1315 = vmul.f32 %v1149, %v1299
        %v1316 = vmul.f32 %v1151, %v1300
        %v1317 = vmul.f32 %v1153, %v1301
        %v1318 = vmul.f32 %v1155, %v1302
        %v1319 = vmul.f32 %v1157, %v1303
        %v1320 = vmul.f32 %v1159, %v1304
        %v1321 = vmul.f32 %v1161, %v1305
        %1322 = vadd.xlane.f32.xlu0 %v1259
        %v1323 = vpop.xlane.xlu0 %1322
        %1324 = vadd.xlane.f32.xlu0 %v1261
        %v1325 = vpop.xlane.xlu0 %1324
        %1326 = vadd.xlane.f32.xlu0 %v1263
        %v1327 = vpop.xlane.xlu0 %1326
        %1328 = vadd.xlane.f32.xlu0 %v1265
        %v1329 = vpop.xlane.xlu0 %1328
        %1330 = vadd.xlane.f32.xlu0 %v1267
        %v1331 = vpop.xlane.xlu0 %1330
        %1332 = vadd.xlane.f32.xlu0 %v1269
        %v1333 = vpop.xlane.xlu0 %1332
        %1334 = vadd.xlane.f32.xlu0 %v1271
        %v1335 = vpop.xlane.xlu0 %1334
        %1336 = vadd.xlane.f32.xlu0 %v1273
        %v1337 = vpop.xlane.xlu0 %1336
        %1338 = vadd.xlane.f32.xlu0 %v1275
        %v1339 = vpop.xlane.xlu0 %1338
        %1340 = vadd.xlane.f32.xlu0 %v1277
        %v1341 = vpop.xlane.xlu0 %1340
        %1342 = vadd.xlane.f32.xlu0 %v1279
        %v1343 = vpop.xlane.xlu0 %1342
        %1344 = vadd.xlane.f32.xlu0 %v1281
        %v1345 = vpop.xlane.xlu0 %1344
        %1346 = vadd.xlane.f32.xlu0 %v1283
        %v1347 = vpop.xlane.xlu0 %1346
        %1348 = vadd.xlane.f32.xlu0 %v1285
        %v1349 = vpop.xlane.xlu0 %1348
        %1350 = vadd.xlane.f32.xlu0 %v1287
        %v1351 = vpop.xlane.xlu0 %1350
        %1352 = vadd.xlane.f32.xlu0 %v1289
        %v1353 = vpop.xlane.xlu0 %1352
        %v1354 = vadd.f32 %v1306, %v1323
        %v1355 = vadd.f32 %v1307, %v1325
        %v1356 = vadd.f32 %v1308, %v1327
        %v1357 = vadd.f32 %v1309, %v1329
        %v1358 = vadd.f32 %v1310, %v1331
        %v1359 = vadd.f32 %v1311, %v1333
        %v1360 = vadd.f32 %v1312, %v1335
        %v1361 = vadd.f32 %v1313, %v1337
        %v1362 = vadd.f32 %v1314, %v1339
        %v1363 = vadd.f32 %v1315, %v1341
        %v1364 = vadd.f32 %v1316, %v1343
        %v1365 = vadd.f32 %v1317, %v1345
        %v1366 = vadd.f32 %v1318, %v1347
        %v1367 = vadd.f32 %v1319, %v1349
        %v1368 = vadd.f32 %v1320, %v1351
        %v1369 = vadd.f32 %v1321, %v1353
        %vm1370 = vcmask 7168
        %1371 = vst.msk [vmem:[#allocation3] sm:$0xff] %vm1370, %v1354
        %1372 = vst.msk [vmem:[#allocation3 + $0x8] sm:$0xff] %vm1370, %v1355
        %1373 = vst.msk [vmem:[#allocation3 + $0x10] sm:$0xff] %vm1370, %v1356
        %1374 = vst.msk [vmem:[#allocation3 + $0x18] sm:$0xff] %vm1370, %v1357
        %1375 = vst.msk [vmem:[#allocation3 + $0x20] sm:$0xff] %vm1370, %v1358
        %1376 = vst.msk [vmem:[#allocation3 + $0x28] sm:$0xff] %vm1370, %v1359
        %1377 = vst.msk [vmem:[#allocation3 + $0x30] sm:$0xff] %vm1370, %v1360
        %1378 = vst.msk [vmem:[#allocation3 + $0x38] sm:$0xff] %vm1370, %v1361
        %1379 = vst.msk [vmem:[#allocation3 + $0x40] sm:$0xff] %vm1370, %v1362
        %1380 = vst.msk [vmem:[#allocation3 + $0x48] sm:$0xff] %vm1370, %v1363
        %1381 = vst.msk [vmem:[#allocation3 + $0x50] sm:$0xff] %vm1370, %v1364
        %1382 = vst.msk [vmem:[#allocation3 + $0x58] sm:$0xff] %vm1370, %v1365
        %1383 = vst.msk [vmem:[#allocation3 + $0x60] sm:$0xff] %vm1370, %v1366
        %1384 = vst.msk [vmem:[#allocation3 + $0x68] sm:$0xff] %vm1370, %v1367
        %1385 = vst.msk [vmem:[#allocation3 + $0x70] sm:$0xff] %vm1370, %v1368
        %1386 = vst.msk [vmem:[#allocation3 + $0x78] sm:$0xff] %vm1370, %v1369
        %v1387 = vld [vmem:[#allocation4] sm:$0xff]
        %v1388 = vld [vmem:[#allocation4 + $0x8] sm:$0xff]
        %v1389 = vld [vmem:[#allocation4 + $0x10] sm:$0xff]
        %v1390 = vld [vmem:[#allocation4 + $0x18] sm:$0xff]
        %v1391 = vld [vmem:[#allocation4 + $0x20] sm:$0xff]
        %v1392 = vld [vmem:[#allocation4 + $0x28] sm:$0xff]
        %v1393 = vld [vmem:[#allocation4 + $0x30] sm:$0xff]
        %v1394 = vld [vmem:[#allocation4 + $0x38] sm:$0xff]
        %v1395 = vld [vmem:[#allocation4 + $0x40] sm:$0xff]
        %v1396 = vld [vmem:[#allocation4 + $0x48] sm:$0xff]
        %v1397 = vld [vmem:[#allocation4 + $0x50] sm:$0xff]
        %v1398 = vld [vmem:[#allocation4 + $0x58] sm:$0xff]
        %v1399 = vld [vmem:[#allocation4 + $0x60] sm:$0xff]
        %v1400 = vld [vmem:[#allocation4 + $0x68] sm:$0xff]
        %v1401 = vld [vmem:[#allocation4 + $0x70] sm:$0xff]
        %v1402 = vld [vmem:[#allocation4 + $0x78] sm:$0xff]
        %1404 = vset.pattern.permute.xlu0 0
        %1405 = vperm.xlu0 %1404, %v1131
        %v1406 = vpop.permute.xlu0 %1405
        %1409 = vset.pattern.permute.xlu0 0
        %1410 = vperm.xlu0 %1409, %v1133
        %v1411 = vpop.permute.xlu0 %1410
        %1414 = vset.pattern.permute.xlu0 0
        %1415 = vperm.xlu0 %1414, %v1135
        %v1416 = vpop.permute.xlu0 %1415
        %1419 = vset.pattern.permute.xlu0 0
        %1420 = vperm.xlu0 %1419, %v1137
        %v1421 = vpop.permute.xlu0 %1420
        %1424 = vset.pattern.permute.xlu0 0
        %1425 = vperm.xlu0 %1424, %v1139
        %v1426 = vpop.permute.xlu0 %1425
        %1429 = vset.pattern.permute.xlu0 0
        %1430 = vperm.xlu0 %1429, %v1141
        %v1431 = vpop.permute.xlu0 %1430
        %1434 = vset.pattern.permute.xlu0 0
        %1435 = vperm.xlu0 %1434, %v1143
        %v1436 = vpop.permute.xlu0 %1435
        %1439 = vset.pattern.permute.xlu0 0
        %1440 = vperm.xlu0 %1439, %v1145
        %v1441 = vpop.permute.xlu0 %1440
        %1444 = vset.pattern.permute.xlu0 0
        %1445 = vperm.xlu0 %1444, %v1147
        %v1446 = vpop.permute.xlu0 %1445
        %1449 = vset.pattern.permute.xlu0 0
        %1450 = vperm.xlu0 %1449, %v1149
        %v1451 = vpop.permute.xlu0 %1450
        %1454 = vset.pattern.permute.xlu0 0
        %1455 = vperm.xlu0 %1454, %v1151
        %v1456 = vpop.permute.xlu0 %1455
        %1459 = vset.pattern.permute.xlu0 0
        %1460 = vperm.xlu0 %1459, %v1153
        %v1461 = vpop.permute.xlu0 %1460
        %1464 = vset.pattern.permute.xlu0 0
        %1465 = vperm.xlu0 %1464, %v1155
        %v1466 = vpop.permute.xlu0 %1465
        %1469 = vset.pattern.permute.xlu0 0
        %1470 = vperm.xlu0 %1469, %v1157
        %v1471 = vpop.permute.xlu0 %1470
        %1474 = vset.pattern.permute.xlu0 0
        %1475 = vperm.xlu0 %1474, %v1159
        %v1476 = vpop.permute.xlu0 %1475
        %1479 = vset.pattern.permute.xlu0 0
        %1480 = vperm.xlu0 %1479, %v1161
        %v1481 = vpop.permute.xlu0 %1480
        %v1483 = vmul.f32 %v1406, %v1387
        %v1484 = vmul.f32 %v1411, %v1388
        %v1485 = vmul.f32 %v1416, %v1389
        %v1486 = vmul.f32 %v1421, %v1390
        %v1487 = vmul.f32 %v1426, %v1391
        %v1488 = vmul.f32 %v1431, %v1392
        %v1489 = vmul.f32 %v1436, %v1393
        %v1490 = vmul.f32 %v1441, %v1394
        %v1491 = vmul.f32 %v1446, %v1395
        %v1492 = vmul.f32 %v1451, %v1396
        %v1493 = vmul.f32 %v1456, %v1397
        %v1494 = vmul.f32 %v1461, %v1398
        %v1495 = vmul.f32 %v1466, %v1399
        %v1496 = vmul.f32 %v1471, %v1400
        %v1497 = vmul.f32 %v1476, %v1401
        %v1498 = vmul.f32 %v1481, %v1402
        %v1499 = vpack.c.bf16 %v1261, %v1259
        %v1500 = vpack.c.bf16 %v1265, %v1263
        %v1501 = vpack.c.bf16 %v1269, %v1267
        %v1502 = vpack.c.bf16 %v1273, %v1271
        %v1503 = vpack.c.bf16 %v1277, %v1275
        %v1504 = vpack.c.bf16 %v1281, %v1279
        %v1505 = vpack.c.bf16 %v1285, %v1283
        %v1506 = vpack.c.bf16 %v1289, %v1287
        %v1507 = vld [vmem:[%s389] sm:$0xf]
        %v1508 = vld [vmem:[%s389 + $0x4] sm:$0xf]
        %v1509 = vld [vmem:[%s389 + $0x8] sm:$0xf]
        %v1510 = vld [vmem:[%s389 + $0xc] sm:$0xf]
        %v1511 = vld [vmem:[%s389 + $0x10] sm:$0xf]
        %v1512 = vld [vmem:[%s389 + $0x14] sm:$0xf]
        %v1513 = vld [vmem:[%s389 + $0x18] sm:$0xf]
        %v1514 = vld [vmem:[%s389 + $0x1c] sm:$0xf]
        %v1515 = vld [vmem:[%s389 + $0x20] sm:$0xf]
        %v1516 = vld [vmem:[%s389 + $0x24] sm:$0xf]
        %v1517 = vld [vmem:[%s389 + $0x28] sm:$0xf]
        %v1518 = vld [vmem:[%s389 + $0x2c] sm:$0xf]
        %v1519 = vld [vmem:[%s389 + $0x30] sm:$0xf]
        %v1520 = vld [vmem:[%s389 + $0x34] sm:$0xf]
        %v1521 = vld [vmem:[%s389 + $0x38] sm:$0xf]
        %v1522 = vld [vmem:[%s389 + $0x3c] sm:$0xf]
        %v1539 = vunpack.c.l.b16 %v1507
        %v1540 = vunpack.c.l.b16 %v1508
        %v1541 = vunpack.c.l.b16 %v1509
        %v1542 = vunpack.c.l.b16 %v1510
        %v1543 = vunpack.c.l.b16 %v1511
        %v1544 = vunpack.c.l.b16 %v1512
        %v1545 = vunpack.c.l.b16 %v1513
        %v1546 = vunpack.c.l.b16 %v1514
        %v1547 = vunpack.c.l.b16 %v1515
        %v1548 = vunpack.c.l.b16 %v1516
        %v1549 = vunpack.c.l.b16 %v1517
        %v1550 = vunpack.c.l.b16 %v1518
        %v1551 = vunpack.c.l.b16 %v1519
        %v1552 = vunpack.c.l.b16 %v1520
        %v1553 = vunpack.c.l.b16 %v1521
        %v1554 = vunpack.c.l.b16 %v1522
        %v1555 = vpack.c.b16 %v1540, %v1539
        %v1556 = vpack.c.b16 %v1542, %v1541
        %v1557 = vpack.c.b16 %v1544, %v1543
        %v1558 = vpack.c.b16 %v1546, %v1545
        %v1559 = vpack.c.b16 %v1548, %v1547
        %v1560 = vpack.c.b16 %v1550, %v1549
        %v1561 = vpack.c.b16 %v1552, %v1551
        %v1562 = vpack.c.b16 %v1554, %v1553
        %1571 = vmatprep.subr.bf16.mxu0 0
        %1572 = vmatpush1.bf16.msra.mxu0 %v1555
        %1573 = vmatprep.subr.bf16.mxu0 0
        %1574 = vmatpush1.bf16.msra.mxu0 %v1556
        %1575 = vmatprep.subr.bf16.mxu0 0
        %1576 = vmatpush1.bf16.msra.mxu0 %v1557
        %1577 = vmatprep.subr.bf16.mxu0 0
        %1578 = vmatpush1.bf16.msra.mxu0 %v1558
        %1579 = vmatprep.subr.bf16.mxu0 0
        %1580 = vmatpush1.bf16.msra.mxu0 %v1559
        %1581 = vmatprep.subr.bf16.mxu0 0
        %1582 = vmatpush1.bf16.msra.mxu0 %v1560
        %1583 = vmatprep.subr.bf16.mxu0 0
        %1584 = vmatpush1.bf16.msra.mxu0 %v1561
        %1585 = vmatprep.subr.bf16.mxu0 0
        %1586 = vmatpush1.bf16.msra.mxu0 %v1562
        %1587 = vmatprep.subr.bf16.mxu0 0
        %1588 = vmatpush1.bf16.msra.mxu0 0
        %1589 = vmatprep.subr.bf16.mxu0 0
        %1590 = vmatpush1.bf16.msra.mxu0 0
        %1591 = vmatprep.subr.bf16.mxu0 0
        %1592 = vmatpush1.bf16.msra.mxu0 0
        %1593 = vmatprep.subr.bf16.mxu0 0
        %1594 = vmatpush1.bf16.msra.mxu0 0
        %1595 = vmatprep.subr.bf16.mxu0 0
        %1596 = vmatpush1.bf16.msra.mxu0 0
        %1597 = vmatprep.subr.bf16.mxu0 0
        %1598 = vmatpush1.bf16.msra.mxu0 0
        %1599 = vmatprep.subr.bf16.mxu0 0
        %1600 = vmatpush1.bf16.msra.mxu0 0
        %1601 = vmatprep.subr.bf16.mxu0 0
        %1602 = vmatpush1.bf16.msra.mxu0 0
        %1603 = vmatprep.mubr.bf16.mxu0 0
        %1604 = vmatmul.mubr.bf16.gmra.mrb[0].mxu0 %v1499
        %v1605 = vpop.f32.mrb[0].mxu0
        %v1606 = vadd.f32 0.0, %v1605
        %v1607 = vpop.f32.mrb[0].mxu0
        %v1608 = vpop.f32.mrb[0].mxu0
        %v1609 = vadd.f32 0.0, %v1608
        %v1610 = vpop.f32.mrb[0].mxu0
        %1611 = vmatprep.mubr.bf16.mxu0 0
        %1612 = vmatmul.mubr.bf16.gmra.mrb[0].mxu0 %v1500
        %v1613 = vpop.f32.mrb[0].mxu0
        %v1614 = vadd.f32 0.0, %v1613
        %v1615 = vpop.f32.mrb[0].mxu0
        %v1616 = vpop.f32.mrb[0].mxu0
        %v1617 = vadd.f32 0.0, %v1616
        %v1618 = vpop.f32.mrb[0].mxu0
        %1619 = vmatprep.mubr.bf16.mxu0 0
        %1620 = vmatmul.mubr.bf16.gmra.mrb[0].mxu0 %v1501
        %v1621 = vpop.f32.mrb[0].mxu0
        %v1622 = vadd.f32 0.0, %v1621
        %v1623 = vpop.f32.mrb[0].mxu0
        %v1624 = vpop.f32.mrb[0].mxu0
        %v1625 = vadd.f32 0.0, %v1624
        %v1626 = vpop.f32.mrb[0].mxu0
        %1627 = vmatprep.mubr.bf16.mxu0 0
        %1628 = vmatmul.mubr.bf16.gmra.mrb[0].mxu0 %v1502
        %v1629 = vpop.f32.mrb[0].mxu0
        %v1630 = vadd.f32 0.0, %v1629
        %v1631 = vpop.f32.mrb[0].mxu0
        %v1632 = vpop.f32.mrb[0].mxu0
        %v1633 = vadd.f32 0.0, %v1632
        %v1634 = vpop.f32.mrb[0].mxu0
        %1635 = vmatprep.mubr.bf16.mxu0 0
        %1636 = vmatmul.mubr.bf16.gmra.mrb[0].mxu0 %v1503
        %v1637 = vpop.f32.mrb[0].mxu0
        %v1638 = vadd.f32 0.0, %v1637
        %v1639 = vpop.f32.mrb[0].mxu0
        %v1640 = vpop.f32.mrb[0].mxu0
        %v1641 = vadd.f32 0.0, %v1640
        %v1642 = vpop.f32.mrb[0].mxu0
        %1643 = vmatprep.mubr.bf16.mxu0 0
        %1644 = vmatmul.mubr.bf16.gmra.mrb[0].mxu0 %v1504
        %v1645 = vpop.f32.mrb[0].mxu0
        %v1646 = vadd.f32 0.0, %v1645
        %v1647 = vpop.f32.mrb[0].mxu0
        %v1648 = vpop.f32.mrb[0].mxu0
        %v1649 = vadd.f32 0.0, %v1648
        %v1650 = vpop.f32.mrb[0].mxu0
        %1651 = vmatprep.mubr.bf16.mxu0 0
        %1652 = vmatmul.mubr.bf16.gmra.mrb[0].mxu0 %v1505
        %v1653 = vpop.f32.mrb[0].mxu0
        %v1654 = vadd.f32 0.0, %v1653
        %v1655 = vpop.f32.mrb[0].mxu0
        %v1656 = vpop.f32.mrb[0].mxu0
        %v1657 = vadd.f32 0.0, %v1656
        %v1658 = vpop.f32.mrb[0].mxu0
        %1659 = vmatprep.mubr.bf16.mxu0 0
        %1660 = vmatmul.mubr.bf16.gmra.mrb[0].mxu0 %v1506
        %v1661 = vpop.f32.mrb[0].mxu0
        %v1662 = vadd.f32 0.0, %v1661
        %v1663 = vpop.f32.mrb[0].mxu0
        %v1664 = vpop.f32.mrb[0].mxu0
        %v1665 = vadd.f32 0.0, %v1664
        %v1666 = vpop.f32.mrb[0].mxu0
        %1667 = vdwg.mxu0
        %v1668 = vadd.f32 %v1483, %v1606
        %v1669 = vadd.f32 %v1484, %v1609
        %v1670 = vadd.f32 %v1485, %v1614
        %v1671 = vadd.f32 %v1486, %v1617
        %v1672 = vadd.f32 %v1487, %v1622
        %v1673 = vadd.f32 %v1488, %v1625
        %v1674 = vadd.f32 %v1489, %v1630
        %v1675 = vadd.f32 %v1490, %v1633
        %v1676 = vadd.f32 %v1491, %v1638
        %v1677 = vadd.f32 %v1492, %v1641
        %v1678 = vadd.f32 %v1493, %v1646
        %v1679 = vadd.f32 %v1494, %v1649
        %v1680 = vadd.f32 %v1495, %v1654
        %v1681 = vadd.f32 %v1496, %v1657
        %v1682 = vadd.f32 %v1497, %v1662
        %v1683 = vadd.f32 %v1498, %v1665
        %1684 = vst.msk [vmem:[#allocation4] sm:$0xff] %vm833, %v1668
        %1685 = vst.msk [vmem:[#allocation4 + $0x8] sm:$0xff] %vm833, %v1669
        %1686 = vst.msk [vmem:[#allocation4 + $0x10] sm:$0xff] %vm833, %v1670
        %1687 = vst.msk [vmem:[#allocation4 + $0x18] sm:$0xff] %vm833, %v1671
        %1688 = vst.msk [vmem:[#allocation4 + $0x20] sm:$0xff] %vm833, %v1672
        %1689 = vst.msk [vmem:[#allocation4 + $0x28] sm:$0xff] %vm833, %v1673
        %1690 = vst.msk [vmem:[#allocation4 + $0x30] sm:$0xff] %vm833, %v1674
        %1691 = vst.msk [vmem:[#allocation4 + $0x38] sm:$0xff] %vm833, %v1675
        %1692 = vst.msk [vmem:[#allocation4 + $0x40] sm:$0xff] %vm833, %v1676
        %1693 = vst.msk [vmem:[#allocation4 + $0x48] sm:$0xff] %vm833, %v1677
        %1694 = vst.msk [vmem:[#allocation4 + $0x50] sm:$0xff] %vm833, %v1678
        %1695 = vst.msk [vmem:[#allocation4 + $0x58] sm:$0xff] %vm833, %v1679
        %1696 = vst.msk [vmem:[#allocation4 + $0x60] sm:$0xff] %vm833, %v1680
        %1697 = vst.msk [vmem:[#allocation4 + $0x68] sm:$0xff] %vm833, %v1681
        %1698 = vst.msk [vmem:[#allocation4 + $0x70] sm:$0xff] %vm833, %v1682
        %1699 = vst.msk [vmem:[#allocation4 + $0x78] sm:$0xff] %vm833, %v1683
        %1700 = vst.msk [vmem:[#allocation2] sm:$0xff] %vm1370, %v1098
        %1701 = vst.msk [vmem:[#allocation2 + $0x8] sm:$0xff] %vm1370, %v1099
        %1702 = vst.msk [vmem:[#allocation2 + $0x10] sm:$0xff] %vm1370, %v1100
        %1703 = vst.msk [vmem:[#allocation2 + $0x18] sm:$0xff] %vm1370, %v1101
        %1704 = vst.msk [vmem:[#allocation2 + $0x20] sm:$0xff] %vm1370, %v1102
        %1705 = vst.msk [vmem:[#allocation2 + $0x28] sm:$0xff] %vm1370, %v1103
        %1706 = vst.msk [vmem:[#allocation2 + $0x30] sm:$0xff] %vm1370, %v1104
        %1707 = vst.msk [vmem:[#allocation2 + $0x38] sm:$0xff] %vm1370, %v1105
        %1708 = vst.msk [vmem:[#allocation2 + $0x40] sm:$0xff] %vm1370, %v1106
        %1709 = vst.msk [vmem:[#allocation2 + $0x48] sm:$0xff] %vm1370, %v1107
        %1710 = vst.msk [vmem:[#allocation2 + $0x50] sm:$0xff] %vm1370, %v1108
        %1711 = vst.msk [vmem:[#allocation2 + $0x58] sm:$0xff] %vm1370, %v1109
        %1712 = vst.msk [vmem:[#allocation2 + $0x60] sm:$0xff] %vm1370, %v1110
        %1713 = vst.msk [vmem:[#allocation2 + $0x68] sm:$0xff] %vm1370, %v1111
        %1714 = vst.msk [vmem:[#allocation2 + $0x70] sm:$0xff] %vm1370, %v1112
        %1715 = vst.msk [vmem:[#allocation2 + $0x78] sm:$0xff] %vm1370, %v1113
      $region48: #{_lambda_.9} parent=39 // pred_fallthru
        _
      %p1716 = scmp.eq.s32.totalorder %s23, 1
      // Predicated region
      $region49: #{_lambda_.9} parent=39 // pred_check
        %p1717 = pneg %p1716
      $region50: #{_lambda_.9} parent=39 // pred_check_branch
        %1719 = sbr.rel (%p1717) target = $region52
      $region51: #{_lambda_.9} parent=39 // pred_region
        %v1720 = vld [vmem:[#allocation3] sm:$0xff]
        %v1721 = vld [vmem:[#allocation3 + $0x8] sm:$0xff]
        %v1722 = vld [vmem:[#allocation3 + $0x10] sm:$0xff]
        %v1723 = vld [vmem:[#allocation3 + $0x18] sm:$0xff]
        %v1724 = vld [vmem:[#allocation3 + $0x20] sm:$0xff]
        %v1725 = vld [vmem:[#allocation3 + $0x28] sm:$0xff]
        %v1726 = vld [vmem:[#allocation3 + $0x30] sm:$0xff]
        %v1727 = vld [vmem:[#allocation3 + $0x38] sm:$0xff]
        %v1728 = vld [vmem:[#allocation3 + $0x40] sm:$0xff]
        %v1729 = vld [vmem:[#allocation3 + $0x48] sm:$0xff]
        %v1730 = vld [vmem:[#allocation3 + $0x50] sm:$0xff]
        %v1731 = vld [vmem:[#allocation3 + $0x58] sm:$0xff]
        %v1732 = vld [vmem:[#allocation3 + $0x60] sm:$0xff]
        %v1733 = vld [vmem:[#allocation3 + $0x68] sm:$0xff]
        %v1734 = vld [vmem:[#allocation3 + $0x70] sm:$0xff]
        %v1735 = vld [vmem:[#allocation3 + $0x78] sm:$0xff]
        %v1736 = vrcp.pop %v1720
        %v1737 = vrcp.pop %v1721
        %v1738 = vrcp.pop %v1722
        %v1739 = vrcp.pop %v1723
        %v1740 = vrcp.pop %v1724
        %v1741 = vrcp.pop %v1725
        %v1742 = vrcp.pop %v1726
        %v1743 = vrcp.pop %v1727
        %v1744 = vrcp.pop %v1728
        %v1745 = vrcp.pop %v1729
        %v1746 = vrcp.pop %v1730
        %v1747 = vrcp.pop %v1731
        %v1748 = vrcp.pop %v1732
        %v1749 = vrcp.pop %v1733
        %v1750 = vrcp.pop %v1734
        %v1751 = vrcp.pop %v1735
        %v1752 = vld [vmem:[#allocation4] sm:$0xff]
        %v1753 = vld [vmem:[#allocation4 + $0x8] sm:$0xff]
        %v1754 = vld [vmem:[#allocation4 + $0x10] sm:$0xff]
        %v1755 = vld [vmem:[#allocation4 + $0x18] sm:$0xff]
        %v1756 = vld [vmem:[#allocation4 + $0x20] sm:$0xff]
        %v1757 = vld [vmem:[#allocation4 + $0x28] sm:$0xff]
        %v1758 = vld [vmem:[#allocation4 + $0x30] sm:$0xff]
        %v1759 = vld [vmem:[#allocation4 + $0x38] sm:$0xff]
        %v1760 = vld [vmem:[#allocation4 + $0x40] sm:$0xff]
        %v1761 = vld [vmem:[#allocation4 + $0x48] sm:$0xff]
        %v1762 = vld [vmem:[#allocation4 + $0x50] sm:$0xff]
        %v1763 = vld [vmem:[#allocation4 + $0x58] sm:$0xff]
        %v1764 = vld [vmem:[#allocation4 + $0x60] sm:$0xff]
        %v1765 = vld [vmem:[#allocation4 + $0x68] sm:$0xff]
        %v1766 = vld [vmem:[#allocation4 + $0x70] sm:$0xff]
        %v1767 = vld [vmem:[#allocation4 + $0x78] sm:$0xff]
        %1769 = vset.pattern.permute.xlu0 0
        %1770 = vperm.xlu0 %1769, %v1736
        %v1771 = vpop.permute.xlu0 %1770
        %1774 = vset.pattern.permute.xlu0 0
        %1775 = vperm.xlu0 %1774, %v1737
        %v1776 = vpop.permute.xlu0 %1775
        %1779 = vset.pattern.permute.xlu0 0
        %1780 = vperm.xlu0 %1779, %v1738
        %v1781 = vpop.permute.xlu0 %1780
        %1784 = vset.pattern.permute.xlu0 0
        %1785 = vperm.xlu0 %1784, %v1739
        %v1786 = vpop.permute.xlu0 %1785
        %1789 = vset.pattern.permute.xlu0 0
        %1790 = vperm.xlu0 %1789, %v1740
        %v1791 = vpop.permute.xlu0 %1790
        %1794 = vset.pattern.permute.xlu0 0
        %1795 = vperm.xlu0 %1794, %v1741
        %v1796 = vpop.permute.xlu0 %1795
        %1799 = vset.pattern.permute.xlu0 0
        %1800 = vperm.xlu0 %1799, %v1742
        %v1801 = vpop.permute.xlu0 %1800
        %1804 = vset.pattern.permute.xlu0 0
        %1805 = vperm.xlu0 %1804, %v1743
        %v1806 = vpop.permute.xlu0 %1805
        %1809 = vset.pattern.permute.xlu0 0
        %1810 = vperm.xlu0 %1809, %v1744
        %v1811 = vpop.permute.xlu0 %1810
        %1814 = vset.pattern.permute.xlu0 0
        %1815 = vperm.xlu0 %1814, %v1745
        %v1816 = vpop.permute.xlu0 %1815
        %1819 = vset.pattern.permute.xlu0 0
        %1820 = vperm.xlu0 %1819, %v1746
        %v1821 = vpop.permute.xlu0 %1820
        %1824 = vset.pattern.permute.xlu0 0
        %1825 = vperm.xlu0 %1824, %v1747
        %v1826 = vpop.permute.xlu0 %1825
        %1829 = vset.pattern.permute.xlu0 0
        %1830 = vperm.xlu0 %1829, %v1748
        %v1831 = vpop.permute.xlu0 %1830
        %1834 = vset.pattern.permute.xlu0 0
        %1835 = vperm.xlu0 %1834, %v1749
        %v1836 = vpop.permute.xlu0 %1835
        %1839 = vset.pattern.permute.xlu0 0
        %1840 = vperm.xlu0 %1839, %v1750
        %v1841 = vpop.permute.xlu0 %1840
        %1844 = vset.pattern.permute.xlu0 0
        %1845 = vperm.xlu0 %1844, %v1751
        %v1846 = vpop.permute.xlu0 %1845
        %v1848 = vmul.f32 %v1752, %v1771
        %v1849 = vmul.f32 %v1753, %v1776
        %v1850 = vmul.f32 %v1754, %v1781
        %v1851 = vmul.f32 %v1755, %v1786
        %v1852 = vmul.f32 %v1756, %v1791
        %v1853 = vmul.f32 %v1757, %v1796
        %v1854 = vmul.f32 %v1758, %v1801
        %v1855 = vmul.f32 %v1759, %v1806
        %v1856 = vmul.f32 %v1760, %v1811
        %v1857 = vmul.f32 %v1761, %v1816
        %v1858 = vmul.f32 %v1762, %v1821
        %v1859 = vmul.f32 %v1763, %v1826
        %v1860 = vmul.f32 %v1764, %v1831
        %v1861 = vmul.f32 %v1765, %v1836
        %v1862 = vmul.f32 %v1766, %v1841
        %v1863 = vmul.f32 %v1767, %v1846
        %v1864 = vpack.c.bf16 %v1849, %v1848
        %v1865 = vpack.c.bf16 %v1851, %v1850
        %v1866 = vpack.c.bf16 %v1853, %v1852
        %v1867 = vpack.c.bf16 %v1855, %v1854
        %v1868 = vpack.c.bf16 %v1857, %v1856
        %v1869 = vpack.c.bf16 %v1859, %v1858
        %v1870 = vpack.c.bf16 %v1861, %v1860
        %v1871 = vpack.c.bf16 %v1863, %v1862
        %v1880 = vunpack.c.l.b16 %v1864
        %v1881 = vunpack.c.h.b16 %v1864
        %v1882 = vunpack.c.l.b16 %v1865
        %v1883 = vunpack.c.h.b16 %v1865
        %v1884 = vunpack.c.l.b16 %v1866
        %v1885 = vunpack.c.h.b16 %v1866
        %v1886 = vunpack.c.l.b16 %v1867
        %v1887 = vunpack.c.h.b16 %v1867
        %v1888 = vunpack.c.l.b16 %v1868
        %v1889 = vunpack.c.h.b16 %v1868
        %v1890 = vunpack.c.l.b16 %v1869
        %v1891 = vunpack.c.h.b16 %v1869
        %v1892 = vunpack.c.l.b16 %v1870
        %v1893 = vunpack.c.h.b16 %v1870
        %v1894 = vunpack.c.l.b16 %v1871
        %v1895 = vunpack.c.h.b16 %v1871
        %v1896 = vpack.c.b16 %v1880, %v1880
        %v1897 = vpack.c.b16 %v1881, %v1881
        %v1898 = vpack.c.b16 %v1882, %v1882
        %v1899 = vpack.c.b16 %v1883, %v1883
        %v1900 = vpack.c.b16 %v1884, %v1884
        %v1901 = vpack.c.b16 %v1885, %v1885
        %v1902 = vpack.c.b16 %v1886, %v1886
        %v1903 = vpack.c.b16 %v1887, %v1887
        %v1904 = vpack.c.b16 %v1888, %v1888
        %v1905 = vpack.c.b16 %v1889, %v1889
        %v1906 = vpack.c.b16 %v1890, %v1890
        %v1907 = vpack.c.b16 %v1891, %v1891
        %v1908 = vpack.c.b16 %v1892, %v1892
        %v1909 = vpack.c.b16 %v1893, %v1893
        %v1910 = vpack.c.b16 %v1894, %v1894
        %v1911 = vpack.c.b16 %v1895, %v1895
        %vm1928 = vcmask 519168
        %1929 = vst.msk [vmem:[%s399] sm:$0xf] %vm1928, %v1896
        %1930 = vst.msk [vmem:[%s399 + $0x4] sm:$0xf] %vm1928, %v1897
        %1931 = vst.msk [vmem:[%s399 + $0x8] sm:$0xf] %vm1928, %v1898
        %1932 = vst.msk [vmem:[%s399 + $0xc] sm:$0xf] %vm1928, %v1899
        %1933 = vst.msk [vmem:[%s399 + $0x10] sm:$0xf] %vm1928, %v1900
        %1934 = vst.msk [vmem:[%s399 + $0x14] sm:$0xf] %vm1928, %v1901
        %1935 = vst.msk [vmem:[%s399 + $0x18] sm:$0xf] %vm1928, %v1902
        %1936 = vst.msk [vmem:[%s399 + $0x1c] sm:$0xf] %vm1928, %v1903
        %1937 = vst.msk [vmem:[%s399 + $0x20] sm:$0xf] %vm1928, %v1904
        %1938 = vst.msk [vmem:[%s399 + $0x24] sm:$0xf] %vm1928, %v1905
        %1939 = vst.msk [vmem:[%s399 + $0x28] sm:$0xf] %vm1928, %v1906
        %1940 = vst.msk [vmem:[%s399 + $0x2c] sm:$0xf] %vm1928, %v1907
        %1941 = vst.msk [vmem:[%s399 + $0x30] sm:$0xf] %vm1928, %v1908
        %1942 = vst.msk [vmem:[%s399 + $0x34] sm:$0xf] %vm1928, %v1909
        %1943 = vst.msk [vmem:[%s399 + $0x38] sm:$0xf] %vm1928, %v1910
        %1944 = vst.msk [vmem:[%s399 + $0x3c] sm:$0xf] %vm1928, %v1911
      $region52: #{_lambda_.9} parent=39 // pred_fallthru
        _
      %s1945 = smul.u32 16, %s22
      %p1946 = scmp.lt.s32.totalorder %s21, 1
      %s1947 = scalar_select %p1946, %s21, 1
      %p1948 = scmp.lt.s32.totalorder %s1945, 31
      %s1949 = scalar_select %p1948, %s1945, 31
      %s1950 = smul.addr %s1947, 32
      %s1951 = sadd.s32 %s1949, %s1950
      %s1952 = smul.addr %s1951, 4
      %s1953 = scalar_lea.vmem %s5, %s1952
      // Predicated region
      $region53: #{_lambda_.9} parent=39 // pred_check
        %p1954 = pneg %p193
      $region54: #{_lambda_.9} parent=39 // pred_check_branch
        %1956 = sbr.rel (%p1954) target = $region56
      $region55: #{_lambda_.9} parent=39 // pred_region
        %s1957 = smul.u32 16, %s22
      $region56: #{_lambda_.9} parent=39 // pred_fallthru
        _
    $region40: #{_lambda_.9} parent=5 // pred_fallthru
      _
    %p1958 = scmp.le.s32.totalorder 2, %s11
    // Predicated region
    $region57: #{_lambda_.9} parent=5 // pred_check
      %p1959 = pneg %p1958
    $region58: #{_lambda_.9} parent=5 // pred_check_branch
      %1961 = sbr.rel (%p1959) target = $region60
    $region59: #{_lambda_.9} parent=5 // pred_region
      %s1962 = ssub.s32 %s11, 2
      // Predicated region
      $region61: #{_lambda_.9} parent=59 // pred_check
        %p1963 = pneg %p199
      $region62: #{_lambda_.9} parent=59 // pred_check_branch
        %1965 = sbr.rel (%p1963) target = $region64
      $region63: #{_lambda_.9} parent=59 // pred_region
        %s1966 = smul.u32 16, %s25
        %p1967 = scmp.lt.s32.totalorder %s24, 1
        %s1968 = scalar_select %p1967, %s24, 1
        %p1969 = scmp.lt.s32.totalorder %s1966, 31
        %s1970 = scalar_select %p1969, %s1966, 31
        %s1971 = smul.addr %s1968, 32
        %s1972 = sadd.s32 %s1970, %s1971
        %s1973 = smul.addr %s1972, 4
        %s1974 = scalar_lea.vmem %s5, %s1973
      $region64: #{_lambda_.9} parent=59 // pred_fallthru
        _
    $region60: #{_lambda_.9} parent=5 // pred_fallthru
      _
  $region6: #{_lambda_.9} parent=0 // loop_footer
    %s15 = sadd.s32 1, %s11
  $region7: #{_lambda_.9} parent=0 // loop_footer_branch
    %10 = sbr.rel target = $region3
  $region8: #{_lambda_.9} parent=0 // loop_exit
    _

</llo_original>
